<compile_context>
chip_gen: v5e
topology: v5e:2x2
jax: 0.10.0
libtpu: 0.0.40
codegen_flags: <defaults>
</compile_context>

<pallas_src>
import functools
import math

import jax
import jax.numpy as jnp
from jax.experimental import pallas as pl
from jax.experimental.pallas import tpu as pltpu


_VMEM_LIMIT = 32 * 1024 * 1024  # scoped-VMEM cap, safe on v5e/v6e/v7x


def _choose_tile_m(M, K, N, extra_resident_bytes=0, budget=22 * 1024 * 1024):
    """Largest M-tile (<=512, multiple of 8) whose double-buffered f32
    activations plus VMEM-resident weights fit the budget (sized against
    v7x's 64 MiB physical / 32 MiB scoped VMEM)."""
    resident = (K * N + K + N) * 4 + extra_resident_bytes
    tile = 512
    while tile > 128 and resident + 2 * 2 * tile * (K + N) * 4 > budget:
        tile //= 2
    return min(tile, M)  # tile == M (full dim) is always layout-legal


def _erf_f32(x):
    # Abramowitz & Stegun 7.1.26 (max abs err ~1.5e-7): exact-GELU semantics
    # to f32 precision using only exp/mul/add (robust Mosaic lowering).
    a1, a2, a3, a4, a5 = (0.254829592, -0.284496736, 1.421413741,
                          -1.453152027, 1.061405429)
    pp = 0.3275911
    sgn = jnp.where(x >= 0.0, 1.0, -1.0)
    ax = jnp.abs(x)
    t = 1.0 / (1.0 + pp * ax)
    poly = ((((a5 * t + a4) * t + a3) * t + a2) * t + a1) * t
    return sgn * (1.0 - poly * jnp.exp(-ax * ax))


def _gelu_exact(x):
    return 0.5 * x * (1.0 + _erf_f32(x * (1.0 / math.sqrt(2.0))))


# ----------------------------------------------------------------------------
# Pallas kernels
# ----------------------------------------------------------------------------
def _norm_linear_kernel(*refs, use_norm, act, has_residual, eps):
    """Fused (optional RMSNorm) -> Linear(bf16 MXU, f32 acc) -> activation
    -> (optional residual add), over a (TILE_M, K) row tile."""
    if has_residual:
        x_ref, res_ref, g_ref, w_ref, b_ref, o_ref = refs
    else:
        x_ref, g_ref, w_ref, b_ref, o_ref = refs
        res_ref = None
    x = x_ref[...].astype(jnp.float32)                        # (tm, K)
    if use_norm:
        ms = jnp.mean(x * x, axis=-1, keepdims=True)
        x = x * jax.lax.rsqrt(ms + eps)
        x = x * g_ref[...].astype(jnp.float32)                # (1, K) broadcast
    y = jnp.dot(x.astype(jnp.bfloat16), w_ref[...].astype(jnp.bfloat16),
                preferred_element_type=jnp.float32)           # (tm, N) f32 acc
    y = y + b_ref[...].astype(jnp.float32)                    # (1, N) broadcast
    if act == "sigmoid":
        y = jax.nn.sigmoid(y)
    if has_residual:
        y = y + res_ref[...].astype(jnp.float32)
    o_ref[...] = y.astype(o_ref.dtype)


def fused_norm_linear(x, w, b, g=None, act="none", residual=None):
    """x: (..., K) -> (..., N). RMSNorm applied iff g is not None; residual
    (same shape as output) added in-kernel if given."""
    orig_shape = x.shape
    K = orig_shape[-1]
    N = w.shape[1]
    x2 = x.reshape(-1, K)
    M = x2.shape[0]
    use_norm = g is not None
    has_residual = residual is not None
    g2 = (g if use_norm else jnp.ones((K,), jnp.float32)).reshape(1, K)
    b2 = b.reshape(1, N)

    tile_m = _choose_tile_m(M, K, N)
    grid = (pl.cdiv(M, tile_m),)

    kernel = functools.partial(_norm_linear_kernel, use_norm=use_norm,
                               act=act, has_residual=has_residual, eps=1e-6)
    in_specs = [pl.BlockSpec((tile_m, K), lambda i: (i, 0))]
    args = [x2]
    if has_residual:
        in_specs.append(pl.BlockSpec((tile_m, N), lambda i: (i, 0)))
        args.append(residual.reshape(-1, N))
    in_specs += [
        pl.BlockSpec((1, K), lambda i: (0, 0)),     # gamma   (resident)
        pl.BlockSpec((K, N), lambda i: (0, 0)),     # weights (resident)
        pl.BlockSpec((1, N), lambda i: (0, 0)),     # bias    (resident)
    ]
    args += [g2, w, b2]

    out = pl.pallas_call(
        kernel,
        out_shape=jax.ShapeDtypeStruct((M, N), jnp.float32),
        grid=grid,
        in_specs=in_specs,
        out_specs=pl.BlockSpec((tile_m, N), lambda i: (i, 0)),
        compiler_params=pltpu.CompilerParams(
            dimension_semantics=("parallel",),
            vmem_limit_bytes=_VMEM_LIMIT),
    )(*args)
    return out.reshape(orig_shape[:-1] + (N,))


def _mlp_tail_kernel(x_ref, g3_ref, w3_ref, b3_ref, g4_ref, w4_ref, b4_ref,
                     o_ref, *, eps):
    """Fused RMSNorm -> w3 -> GELU(exact) -> RMSNorm -> w4 -> + residual(x)."""
    x = x_ref[...].astype(jnp.float32)                        # (tm, D), also resid
    ms = jnp.mean(x * x, axis=-1, keepdims=True)
    h = x * jax.lax.rsqrt(ms + eps) * g3_ref[...].astype(jnp.float32)
    h = jnp.dot(h.astype(jnp.bfloat16), w3_ref[...].astype(jnp.bfloat16),
                preferred_element_type=jnp.float32) + b3_ref[...].astype(jnp.float32)
    h = _gelu_exact(h)                                        # torch nn.GELU (erf)
    ms2 = jnp.mean(h * h, axis=-1, keepdims=True)
    h = h * jax.lax.rsqrt(ms2 + eps) * g4_ref[...].astype(jnp.float32)
    h = jnp.dot(h.astype(jnp.bfloat16), w4_ref[...].astype(jnp.bfloat16),
                preferred_element_type=jnp.float32) + b4_ref[...].astype(jnp.float32)
    o_ref[...] = (h + x).astype(o_ref.dtype)


def mlp_tail(x, p):
    """Encoder encode2 path fused: keeps the intermediate (M, D) activations in
    VMEM/vregs instead of two extra HBM round trips."""
    orig_shape = x.shape
    D = orig_shape[-1]
    x2 = x.reshape(-1, D)
    M = x2.shape[0]
    tile_m = _choose_tile_m(M, D, D, extra_resident_bytes=D * D * 4)
    rowspec = pl.BlockSpec((1, D), lambda i: (0, 0))
    out = pl.pallas_call(
        functools.partial(_mlp_tail_kernel, eps=1e-6),
        out_shape=jax.ShapeDtypeStruct((M, D), jnp.float32),
        grid=(pl.cdiv(M, tile_m),),
        in_specs=[
            pl.BlockSpec((tile_m, D), lambda i: (i, 0)),
            rowspec,                                   # g3
            pl.BlockSpec((D, D), lambda i: (0, 0)),    # w3 (resident)
            rowspec,                                   # b3
            rowspec,                                   # g4
            pl.BlockSpec((D, D), lambda i: (0, 0)),    # w4 (resident)
            rowspec,                                   # b4
        ],
        out_specs=pl.BlockSpec((tile_m, D), lambda i: (i, 0)),
        compiler_params=pltpu.CompilerParams(
            dimension_semantics=("parallel",),
            vmem_limit_bytes=_VMEM_LIMIT),
    )(x2, p["g3"].reshape(1, D), p["w3"], p["b3"].reshape(1, D),
      p["g4"].reshape(1, D), p["w4"], p["b4"].reshape(1, D))
    return out.reshape(orig_shape)


def _mha_kernel(q_ref, k_ref, v_ref, o_ref, *, num_heads, scale):
    """All heads of one batch row per grid step; lane-dense (Nq, D) output."""
    q = q_ref[0].astype(jnp.float32)                          # (Nq, D)
    k = k_ref[0].astype(jnp.float32)                          # (Nk, D)
    v = v_ref[0]                                              # (Nk, D)
    D = q.shape[-1]
    dh = D // num_heads
    outs = []
    for h in range(num_heads):                                # static unroll
        lo, hi = h * dh, (h + 1) * dh
        qs = q[:, lo:hi]
        ks = k[:, lo:hi]
        vs = v[:, lo:hi]
        s = jax.lax.dot_general(
            qs.astype(jnp.bfloat16), ks.astype(jnp.bfloat16),
            (((1,), (1,)), ((), ())),
            preferred_element_type=jnp.float32) * scale       # (Nq, Nk) f32
        s = s - jnp.max(s, axis=-1, keepdims=True)
        p = jnp.exp(s)
        inv = pl.reciprocal(jnp.sum(p, axis=-1, keepdims=True), approx=True)
        o = jnp.dot(p.astype(jnp.bfloat16), vs.astype(jnp.bfloat16),
                    preferred_element_type=jnp.float32)
        outs.append(o * inv)
    o_ref[0] = jnp.concatenate(outs, axis=-1).astype(o_ref.dtype)


def mha_attend(q, k, v, num_heads):
    """q: (M, Nq, D), k/v: (M, Nk, D) -> (M, Nq, D); heads handled in-kernel."""
    M, Nq, D = q.shape
    Nk = k.shape[1]
    dh = D // num_heads
    scale = 1.0 / math.sqrt(dh)
    kernel = functools.partial(_mha_kernel, num_heads=num_heads, scale=scale)
    return pl.pallas_call(
        kernel,
        out_shape=jax.ShapeDtypeStruct((M, Nq, D), jnp.float32),
        grid=(M,),
        in_specs=[
            pl.BlockSpec((1, Nq, D), lambda m: (m, 0, 0)),
            pl.BlockSpec((1, Nk, D), lambda m: (m, 0, 0)),
            pl.BlockSpec((1, Nk, D), lambda m: (m, 0, 0)),
        ],
        out_specs=pl.BlockSpec((1, Nq, D), lambda m: (m, 0, 0)),
        compiler_params=pltpu.CompilerParams(
            dimension_semantics=("parallel",),
            vmem_limit_bytes=_VMEM_LIMIT),
    )(q, k, v)


def _mean_tokens_kernel(x_ref, o_ref):
    x = x_ref[...].astype(jnp.float32)                        # (tr, N, D)
    o_ref[...] = jnp.mean(x, axis=1).astype(o_ref.dtype)      # (tr, D)


def mean_tokens(x):
    """x: (B, L, N, D) -> (B, L, D) (mean over token axis 2), row-tiled."""
    B, L, N, D = x.shape
    BL = B * L
    x3 = x.reshape(BL, N, D)
    tile_r = BL if BL <= 8 else 8
    out = pl.pallas_call(
        _mean_tokens_kernel,
        out_shape=jax.ShapeDtypeStruct((BL, D), jnp.float32),
        grid=(pl.cdiv(BL, tile_r),),
        in_specs=[pl.BlockSpec((tile_r, N, D), lambda i: (i, 0, 0))],
        out_specs=pl.BlockSpec((tile_r, D), lambda i: (i, 0)),
        compiler_params=pltpu.CompilerParams(
            dimension_semantics=("parallel",),
            vmem_limit_bytes=_VMEM_LIMIT),
    )(x3)
    return out.reshape(B, L, D)


# ----------------------------------------------------------------------------
# Glue (rotary tables, pair-swap, patchify) in plain JAX
# ----------------------------------------------------------------------------
def pixel_rotary_tables(n, dim, num_heads, max_freq=10.0):
    """Full-width (n, dim) cos/sin tables so rotary applies directly to the
    (M, N, D) q/k slabs with no per-head transpose.  RotaryEmbedding was
    constructed with dim = floor(D / H / 2) and freqs_for='pixel': only the
    first rot_dim features of each head rotate; the rest pass through
    (cos=1, sin=0)."""
    # TODO(synk): RotaryEmbedding internals not in the provided source; standard
    # lucidrains 'pixel' freqs assumed: linspace(1, max_freq/2, rot_dim//2)*pi.
    dh = dim // num_heads
    rot_dim = dh // 2                        # math.floor(dim / num_heads / 2)
    half = max(rot_dim // 2, 1)
    freqs = jnp.linspace(1.0, max_freq / 2.0, half) * jnp.pi
    t = jnp.arange(n, dtype=jnp.float32)
    ang = t[:, None] * freqs[None, :]                          # (n, half)
    cos_h = jnp.repeat(jnp.cos(ang), 2, axis=-1)               # (n, 2*half)
    sin_h = jnp.repeat(jnp.sin(ang), 2, axis=-1)
    rd = cos_h.shape[-1]
    if rd < dh:
        cos_h = jnp.concatenate([cos_h, jnp.ones((n, dh - rd), jnp.float32)], -1)
        sin_h = jnp.concatenate([sin_h, jnp.zeros((n, dh - rd), jnp.float32)], -1)
    cos = jnp.tile(cos_h, (1, num_heads))                      # (n, dim)
    sin = jnp.tile(sin_h, (1, num_heads))
    return cos, sin


def apply_rotary_full(x, cos, sin):
    """x: (M, N, D); interleaved-pair rotation across full width (head-local
    because per-head width is even).  Pure XLA glue; fuses with the split."""
    D = x.shape[-1]
    x2 = x.reshape(x.shape[:-1] + (D // 2, 2))
    xr = jnp.stack([-x2[..., 1], x2[..., 0]], axis=-1).reshape(x.shape)
    return x * cos + xr * sin


# ----------------------------------------------------------------------------
# Model blocks
# ----------------------------------------------------------------------------
def multihead_attention(x, p, num_heads, rotary=None):
    # TODO(synk): `attention` module source not provided; assumed qkv + out proj
    # with rotary applied to q/k.
    qkv = fused_norm_linear(x, p["w_qkv"], p["b_qkv"])        # (M, N, 3D)
    q, k, v = jnp.split(qkv, 3, axis=-1)
    if rotary is not None:
        cos, sin = rotary
        q = apply_rotary_full(q, cos, sin)
        k = apply_rotary_full(k, cos, sin)
    o = mha_attend(q, k, v, num_heads)                        # (M, N, D)
    return fused_norm_linear(o, p["w_out"], p["b_out"])


def encoder_forward(x, p, num_heads, rotary=None):
    """visionEncoder forward (also reused for languageEncoder, w/o rotary)."""
    h = fused_norm_linear(x, p["w1"], p["b1"], g=p["g1"])         # RMSNorm+Linear
    h = multihead_attention(h, p["attn"], num_heads, rotary)       # attention
    inter = fused_norm_linear(h, p["w2"], p["b2"], g=p["g2"],
                              residual=x)                          # +residual fused
    return mlp_tail(inter, p)                                      # fused encode2


def temporal_attention(x, p, num_heads):
    # TODO(synk): `temporal` module source not provided; assumed attention whose
    # query is the last lag step (makes the final .squeeze(dim=1) meaningful).
    qkv = fused_norm_linear(x, p["w_qkv"], p["b_qkv"])            # (B, L, 3D)
    q, k, v = jnp.split(qkv, 3, axis=-1)
    q = q[:, -1:, :]                                              # (B, 1, D)
    o = mha_attend(q, k, v, num_heads)                            # (B, 1, D)
    return fused_norm_linear(o, p["w_out"], p["b_out"])


def temporal_encoder_forward(x, p, num_heads):
    x = x + p["temp_embedding"]                                   # (1, lag, dim)
    h = fused_norm_linear(x, p["w1"], p["b1"], g=p["g1"])
    h = temporal_attention(h, p["attn"], num_heads)               # (B, 1, dim)
    h = fused_norm_linear(h, p["w2"], p["b2"], g=p["g2"])
    return h


def patch_embed(images, w, b, patch_res):
    # images layout: (B, lag, C, H, W)  (NCHW per lag step, as in PyTorch)
    B, L, C, H, W = images.shape
    p = patch_res
    hh, ww = H // p, W // p
    x = images.reshape(B, L, C, hh, p, ww, p)
    x = x.transpose(0, 1, 3, 5, 4, 6, 2)                          # b l h w p1 p2 c
    x = x.reshape(B, L, hh * ww, p * p * C)
    return fused_norm_linear(x, w, b)                             # (B, L, n, image_dim)


# ----------------------------------------------------------------------------
# meant_v2 forward
# ----------------------------------------------------------------------------
def meant_v2_forward(params, tweets, images, cfg):
    B, lag, seq = tweets.shape
    text_dim = cfg["text_dim"]
    image_dim = cfg["image_dim"]
    H = cfg["num_heads"]

    # --- language path -----------------------------------------------------
    words = tweets.reshape(B * lag, seq)
    x = jnp.take(params["embedding"], words, axis=0)              # (B*lag, seq, text_dim)
    for p in params["language_encoders"]:
        # TODO(synk): languageEncoder source not provided; using visionEncoder
        # structure (without rotary) after the token embedding.
        x = encoder_forward(x, p, H, rotary=None)
    words_out = x.reshape(B, lag, seq, text_dim)

    # --- vision path -------------------------------------------------------
    image = patch_embed(images, params["w_patch"], params["b_patch"],
                        cfg["patch_res"])                          # (B, lag, n, image_dim)
    n = image.shape[2]
    rotary = pixel_rotary_tables(n, image_dim, H)
    img = image.reshape(B * lag, n, image_dim)
    for p in params["vision_encoders"]:
        img = encoder_forward(img, p, H, rotary=rotary)
    image_out = img.reshape(B, lag, n, image_dim)

    # --- temporal fusion ---------------------------------------------------
    temporal = jnp.concatenate(
        [mean_tokens(words_out), mean_tokens(image_out)], axis=2)  # (B, lag, dim)
    temporal = temporal_encoder_forward(temporal, params["temporal"], H)  # (B,1,dim)
    # TODO(synk): torch.isnan(...)/ValueError runtime check omitted (host control flow).

    # --- mlp head: RMSNorm -> Linear(dim, num_classes) -> Sigmoid -----------
    out = fused_norm_linear(temporal, params["w_head"], params["b_head"],
                            g=params["g_head"], act="sigmoid")     # (B, 1, C)
    return out[:, 0, :]                                            # .squeeze(dim=1)


# ----------------------------------------------------------------------------
# Deterministic synthetic parameters
# ----------------------------------------------------------------------------
def _dense(key, shape, scale=0.02):
    return scale * jax.random.normal(key, shape, dtype=jnp.float32)


def init_encoder(key, dim):
    ks = jax.random.split(key, 6)
    ones = jnp.ones((dim,), jnp.float32)
    zeros = jnp.zeros((dim,), jnp.float32)
    return {
        "g1": ones, "w1": _dense(ks[0], (dim, dim)), "b1": zeros,
        "attn": {
            "w_qkv": _dense(ks[1], (dim, 3 * dim)),
            "b_qkv": jnp.zeros((3 * dim,), jnp.float32),
            "w_out": _dense(ks[2], (dim, dim)),
            "b_out": zeros,
        },
        "g2": ones, "w2": _dense(ks[3], (dim, dim)), "b2": zeros,
        "g3": ones, "w3": _dense(ks[4], (dim, dim)), "b3": zeros,
        "g4": ones, "w4": _dense(ks[5], (dim, dim)), "b4": zeros,
    }


def init_params(key, cfg):
    keys = jax.random.split(key, 8)
    text_dim, image_dim = cfg["text_dim"], cfg["image_dim"]
    dim = text_dim + image_dim
    patch_dim = cfg["channels"] * cfg["patch_res"] ** 2

    params = {}
    params["embedding"] = 0.02 * jax.random.normal(
        keys[0], (cfg["vocab"], text_dim), dtype=jnp.float32)
    params["language_encoders"] = [
        init_encoder(k, text_dim)
        for k in jax.random.split(keys[1], cfg["num_encoders"])]
    params["vision_encoders"] = [
        init_encoder(k, image_dim)
        for k in jax.random.split(keys[2], cfg["num_encoders"])]
    params["w_patch"] = _dense(keys[3], (patch_dim, image_dim))
    params["b_patch"] = jnp.zeros((image_dim,), jnp.float32)

    tk = jax.random.split(keys[4], 5)
    ones_d = jnp.ones((dim,), jnp.float32)
    zeros_d = jnp.zeros((dim,), jnp.float32)
    params["temporal"] = {
        "temp_embedding": jax.random.normal(tk[0], (1, cfg["lag"], dim),
                                            dtype=jnp.float32),
        "g1": ones_d, "w1": _dense(tk[1], (dim, dim)), "b1": zeros_d,
        "attn": {
            "w_qkv": _dense(tk[2], (dim, 3 * dim)),
            "b_qkv": jnp.zeros((3 * dim,), jnp.float32),
            "w_out": _dense(tk[3], (dim, dim)),
            "b_out": zeros_d,
        },
        "g2": ones_d, "w2": _dense(tk[4], (dim, dim)), "b2": zeros_d,
    }
    params["g_head"] = ones_d
    params["w_head"] = _dense(keys[5], (dim, cfg["num_classes"]))
    params["b_head"] = jnp.zeros((cfg["num_classes"],), jnp.float32)
    # img_classtkn / txt_classtkn exist in __init__ but are unused in forward.
    return params


# ----------------------------------------------------------------------------
if __name__ == "__main__":
    cfg = dict(
        text_dim=32, image_dim=32, num_heads=4, lag=2, seq_len=8,
        channels=4, height=16, width=16, patch_res=8,
        num_classes=3, num_encoders=1, vocab=50,
    )
    key = jax.random.PRNGKey(0)
    pkey, tkey, ikey = jax.random.split(key, 3)
    params = init_params(pkey, cfg)

    batch = 2
    tweets = jax.random.randint(
        tkey, (batch, cfg["lag"], cfg["seq_len"]), 0, cfg["vocab"], dtype=jnp.int32)
    images = jax.random.normal(
        ikey, (batch, cfg["lag"], cfg["channels"], cfg["height"], cfg["width"]),
        dtype=jnp.float32)

    fwd = jax.jit(functools.partial(meant_v2_forward, cfg=cfg))
    out = fwd(params, tweets, images)
    out = jax.block_until_ready(out)
    assert out.shape == (batch, cfg["num_classes"]), out.shape
    assert bool(jnp.all(jnp.isfinite(out)))
    print("KERNEL_OK")
</pallas_src>

<mosaic_0001>
module attributes {stable_mosaic.version = 11 : i64} {
  func.func @_norm_linear_kernel(%arg0: i32, %arg1: memref<16x32xf32, #tpu.memory_space<vmem>>, %arg2: memref<1x32xf32, #tpu.memory_space<vmem>>, %arg3: memref<32x32xf32, #tpu.memory_space<vmem>>, %arg4: memref<1x32xf32, #tpu.memory_space<vmem>>, %arg5: memref<16x32xf32, #tpu.memory_space<vmem>>) attributes {dimension_semantics = [#tpu.dimension_semantics<parallel>], iteration_bounds = array<i64: 1>, scalar_prefetch = 0 : i64, scratch_operands = 0 : i64, tpu.core_type = #tpu.core_type<tc>, window_params = [{transform_indices = @transform_0, window_bounds = array<i64: 16, 32>}, {pipeline_mode = #tpu.pipeline_mode<synchronous>, transform_indices = @transform_1, window_bounds = array<i64: 1, 32>}, {pipeline_mode = #tpu.pipeline_mode<synchronous>, transform_indices = @transform_2, window_bounds = array<i64: 32, 32>}, {pipeline_mode = #tpu.pipeline_mode<synchronous>, transform_indices = @transform_3, window_bounds = array<i64: 1, 32>}, {transform_indices = @transform_4, window_bounds = array<i64: 16, 32>}]} {
    %c0 = arith.constant 0 : index
    %c0_0 = arith.constant 0 : index
    %0 = vector.load %arg1[%c0, %c0_0] : memref<16x32xf32, #tpu.memory_space<vmem>>, vector<16x32xf32>
    %1 = arith.mulf %0, %0 : vector<16x32xf32>
    %cst = arith.constant dense<0.000000e+00> : vector<16xf32>
    %2 = vector.multi_reduction <add>, %1, %cst [1] : vector<16x32xf32> to vector<16xf32>
    %3 = vector.shape_cast %2 : vector<16xf32> to vector<16x1xf32>
    %cst_1 = arith.constant 3.200000e+01 : f32
    %4 = vector.broadcast %cst_1 : f32 to vector<16x1xf32>
    %5 = arith.divf %3, %4 : vector<16x1xf32>
    %cst_2 = arith.constant 9.99999997E-7 : f32
    %6 = vector.broadcast %cst_2 : f32 to vector<16x1xf32>
    %7 = arith.addf %5, %6 : vector<16x1xf32>
    %8 = math.rsqrt %7 : vector<16x1xf32>
    %9 = vector.broadcast %8 : vector<16x1xf32> to vector<16x32xf32>
    %10 = arith.mulf %0, %9 : vector<16x32xf32>
    %c0_3 = arith.constant 0 : index
    %c0_4 = arith.constant 0 : index
    %11 = vector.load %arg2[%c0_3, %c0_4] : memref<1x32xf32, #tpu.memory_space<vmem>>, vector<1x32xf32>
    %12 = vector.broadcast %11 : vector<1x32xf32> to vector<16x32xf32>
    %13 = arith.mulf %10, %12 : vector<16x32xf32>
    %14 = arith.truncf %13 : vector<16x32xf32> to vector<16x32xbf16>
    %c0_5 = arith.constant 0 : index
    %c0_6 = arith.constant 0 : index
    %15 = vector.load %arg3[%c0_5, %c0_6] : memref<32x32xf32, #tpu.memory_space<vmem>>, vector<32x32xf32>
    %16 = arith.truncf %15 : vector<32x32xf32> to vector<32x32xbf16>
    %cst_7 = arith.constant dense<0.000000e+00> : vector<16x32xf32>
    %17 = tpu.matmul %14, %16, %cst_7 {dimension_numbers = #tpu.dot_dimension_numbers<[1], [0], [0], [1], [0, 0, 1, 1], [], []>} : vector<16x32xbf16>, vector<32x32xbf16>, vector<16x32xf32> -> vector<16x32xf32>
    %c0_8 = arith.constant 0 : index
    %c0_9 = arith.constant 0 : index
    %18 = vector.load %arg4[%c0_8, %c0_9] : memref<1x32xf32, #tpu.memory_space<vmem>>, vector<1x32xf32>
    %19 = vector.broadcast %18 : vector<1x32xf32> to vector<16x32xf32>
    %20 = arith.addf %17, %19 : vector<16x32xf32>
    %c0_10 = arith.constant 0 : index
    %c0_11 = arith.constant 0 : index
    %21 = vector.load %arg5[%c0_10, %c0_11] : memref<16x32xf32, #tpu.memory_space<vmem>>, vector<16x32xf32>
    tpu.vector_store %arg5[%c0_10, %c0_11], %20 {strides = array<i32>} : memref<16x32xf32, #tpu.memory_space<vmem>>, vector<16x32xf32>,
    return
  }
  func.func @transform_0(%arg0: i32) -> (i32, i32) {
    %c0_i32 = arith.constant 0 : i32
    %c0_i32_0 = arith.constant 0 : i32
    return %arg0, %c0_i32 : i32, i32
  }
  func.func @transform_1(%arg0: i32) -> (i32, i32) {
    %c0_i32 = arith.constant 0 : i32
    %c0_i32_0 = arith.constant 0 : i32
    %c0_i32_1 = arith.constant 0 : i32
    return %c0_i32, %c0_i32_0 : i32, i32
  }
  func.func @transform_2(%arg0: i32) -> (i32, i32) {
    %c0_i32 = arith.constant 0 : i32
    %c0_i32_0 = arith.constant 0 : i32
    %c0_i32_1 = arith.constant 0 : i32
    return %c0_i32, %c0_i32_0 : i32, i32
  }
  func.func @transform_3(%arg0: i32) -> (i32, i32) {
    %c0_i32 = arith.constant 0 : i32
    %c0_i32_0 = arith.constant 0 : i32
    %c0_i32_1 = arith.constant 0 : i32
    return %c0_i32, %c0_i32_0 : i32, i32
  }
  func.func @transform_4(%arg0: i32) -> (i32, i32) {
    %c0_i32 = arith.constant 0 : i32
    %c0_i32_0 = arith.constant 0 : i32
    return %arg0, %c0_i32 : i32, i32
  }
}

module attributes {stable_mosaic.version = 11 : i64} {
  func.func @_norm_linear_kernel(%arg0: i32, %arg1: memref<16x256xf32, #tpu.memory_space<vmem>>, %arg2: memref<1x256xf32, #tpu.memory_space<vmem>>, %arg3: memref<256x32xf32, #tpu.memory_space<vmem>>, %arg4: memref<1x32xf32, #tpu.memory_space<vmem>>, %arg5: memref<16x32xf32, #tpu.memory_space<vmem>>) attributes {dimension_semantics = [#tpu.dimension_semantics<parallel>], iteration_bounds = array<i64: 1>, scalar_prefetch = 0 : i64, scratch_operands = 0 : i64, tpu.core_type = #tpu.core_type<tc>, window_params = [{transform_indices = @transform_0, window_bounds = array<i64: 16, 256>}, {pipeline_mode = #tpu.pipeline_mode<synchronous>, transform_indices = @transform_1, window_bounds = array<i64: 1, 256>}, {pipeline_mode = #tpu.pipeline_mode<synchronous>, transform_indices = @transform_2, window_bounds = array<i64: 256, 32>}, {pipeline_mode = #tpu.pipeline_mode<synchronous>, transform_indices = @transform_3, window_bounds = array<i64: 1, 32>}, {transform_indices = @transform_4, window_bounds = array<i64: 16, 32>}]} {
    %c0 = arith.constant 0 : index
    %c0_0 = arith.constant 0 : index
    %0 = vector.load %arg1[%c0, %c0_0] : memref<16x256xf32, #tpu.memory_space<vmem>>, vector<16x256xf32>
    %1 = arith.truncf %0 : vector<16x256xf32> to vector<16x256xbf16>
    %c0_1 = arith.constant 0 : index
    %c0_2 = arith.constant 0 : index
    %2 = vector.load %arg3[%c0_1, %c0_2] : memref<256x32xf32, #tpu.memory_space<vmem>>, vector<256x32xf32>
    %3 = arith.truncf %2 : vector<256x32xf32> to vector<256x32xbf16>
    %cst = arith.constant dense<0.000000e+00> : vector<16x32xf32>
    %4 = tpu.matmul %1, %3, %cst {dimension_numbers = #tpu.dot_dimension_numbers<[1], [0], [0], [1], [0, 0, 1, 1], [], []>} : vector<16x256xbf16>, vector<256x32xbf16>, vector<16x32xf32> -> vector<16x32xf32>
    %c0_3 = arith.constant 0 : index
    %c0_4 = arith.constant 0 : index
    %5 = vector.load %arg4[%c0_3, %c0_4] : memref<1x32xf32, #tpu.memory_space<vmem>>, vector<1x32xf32>
    %6 = vector.broadcast %5 : vector<1x32xf32> to vector<16x32xf32>
    %7 = arith.addf %4, %6 : vector<16x32xf32>
    %c0_5 = arith.constant 0 : index
    %c0_6 = arith.constant 0 : index
    %8 = vector.load %arg5[%c0_5, %c0_6] : memref<16x32xf32, #tpu.memory_space<vmem>>, vector<16x32xf32>
    tpu.vector_store %arg5[%c0_5, %c0_6], %7 {strides = array<i32>} : memref<16x32xf32, #tpu.memory_space<vmem>>, vector<16x32xf32>,
    return
  }
  func.func @transform_0(%arg0: i32) -> (i32, i32) {
    %c0_i32 = arith.constant 0 : i32
    %c0_i32_0 = arith.constant 0 : i32
    return %arg0, %c0_i32 : i32, i32
  }
  func.func @transform_1(%arg0: i32) -> (i32, i32) {
    %c0_i32 = arith.constant 0 : i32
    %c0_i32_0 = arith.constant 0 : i32
    %c0_i32_1 = arith.constant 0 : i32
    return %c0_i32, %c0_i32_0 : i32, i32
  }
  func.func @transform_2(%arg0: i32) -> (i32, i32) {
    %c0_i32 = arith.constant 0 : i32
    %c0_i32_0 = arith.constant 0 : i32
    %c0_i32_1 = arith.constant 0 : i32
    return %c0_i32, %c0_i32_0 : i32, i32
  }
  func.func @transform_3(%arg0: i32) -> (i32, i32) {
    %c0_i32 = arith.constant 0 : i32
    %c0_i32_0 = arith.constant 0 : i32
    %c0_i32_1 = arith.constant 0 : i32
    return %c0_i32, %c0_i32_0 : i32, i32
  }
  func.func @transform_4(%arg0: i32) -> (i32, i32) {
    %c0_i32 = arith.constant 0 : i32
    %c0_i32_0 = arith.constant 0 : i32
    return %arg0, %c0_i32 : i32, i32
  }
}

module attributes {stable_mosaic.version = 11 : i64} {
  func.func @_norm_linear_kernel(%arg0: i32, %arg1: memref<16x32xf32, #tpu.memory_space<vmem>>, %arg2: memref<1x32xf32, #tpu.memory_space<vmem>>, %arg3: memref<32x96xf32, #tpu.memory_space<vmem>>, %arg4: memref<1x96xf32, #tpu.memory_space<vmem>>, %arg5: memref<16x96xf32, #tpu.memory_space<vmem>>) attributes {dimension_semantics = [#tpu.dimension_semantics<parallel>], iteration_bounds = array<i64: 1>, scalar_prefetch = 0 : i64, scratch_operands = 0 : i64, tpu.core_type = #tpu.core_type<tc>, window_params = [{transform_indices = @transform_0, window_bounds = array<i64: 16, 32>}, {pipeline_mode = #tpu.pipeline_mode<synchronous>, transform_indices = @transform_1, window_bounds = array<i64: 1, 32>}, {pipeline_mode = #tpu.pipeline_mode<synchronous>, transform_indices = @transform_2, window_bounds = array<i64: 32, 96>}, {pipeline_mode = #tpu.pipeline_mode<synchronous>, transform_indices = @transform_3, window_bounds = array<i64: 1, 96>}, {transform_indices = @transform_4, window_bounds = array<i64: 16, 96>}]} {
    %c0 = arith.constant 0 : index
    %c0_0 = arith.constant 0 : index
    %0 = vector.load %arg1[%c0, %c0_0] : memref<16x32xf32, #tpu.memory_space<vmem>>, vector<16x32xf32>
    %1 = arith.truncf %0 : vector<16x32xf32> to vector<16x32xbf16>
    %c0_1 = arith.constant 0 : index
    %c0_2 = arith.constant 0 : index
    %2 = vector.load %arg3[%c0_1, %c0_2] : memref<32x96xf32, #tpu.memory_space<vmem>>, vector<32x96xf32>
    %3 = arith.truncf %2 : vector<32x96xf32> to vector<32x96xbf16>
    %cst = arith.constant dense<0.000000e+00> : vector<16x96xf32>
    %4 = tpu.matmul %1, %3, %cst {dimension_numbers = #tpu.dot_dimension_numbers<[1], [0], [0], [1], [0, 0, 1, 1], [], []>} : vector<16x32xbf16>, vector<32x96xbf16>, vector<16x96xf32> -> vector<16x96xf32>
    %c0_3 = arith.constant 0 : index
    %c0_4 = arith.constant 0 : index
    %5 = vector.load %arg4[%c0_3, %c0_4] : memref<1x96xf32, #tpu.memory_space<vmem>>, vector<1x96xf32>
    %6 = vector.broadcast %5 : vector<1x96xf32> to vector<16x96xf32>
    %7 = arith.addf %4, %6 : vector<16x96xf32>
    %c0_5 = arith.constant 0 : index
    %c0_6 = arith.constant 0 : index
    %8 = vector.load %arg5[%c0_5, %c0_6] : memref<16x96xf32, #tpu.memory_space<vmem>>, vector<16x96xf32>
    tpu.vector_store %arg5[%c0_5, %c0_6], %7 {strides = array<i32>} : memref<16x96xf32, #tpu.memory_space<vmem>>, vector<16x96xf32>,
    return
  }
  func.func @transform_0(%arg0: i32) -> (i32, i32) {
    %c0_i32 = arith.constant 0 : i32
    %c0_i32_0 = arith.constant 0 : i32
    return %arg0, %c0_i32 : i32, i32
  }
  func.func @transform_1(%arg0: i32) -> (i32, i32) {
    %c0_i32 = arith.constant 0 : i32
    %c0_i32_0 = arith.constant 0 : i32
    %c0_i32_1 = arith.constant 0 : i32
    return %c0_i32, %c0_i32_0 : i32, i32
  }
  func.func @transform_2(%arg0: i32) -> (i32, i32) {
    %c0_i32 = arith.constant 0 : i32
    %c0_i32_0 = arith.constant 0 : i32
    %c0_i32_1 = arith.constant 0 : i32
    return %c0_i32, %c0_i32_0 : i32, i32
  }
  func.func @transform_3(%arg0: i32) -> (i32, i32) {
    %c0_i32 = arith.constant 0 : i32
    %c0_i32_0 = arith.constant 0 : i32
    %c0_i32_1 = arith.constant 0 : i32
    return %c0_i32, %c0_i32_0 : i32, i32
  }
  func.func @transform_4(%arg0: i32) -> (i32, i32) {
    %c0_i32 = arith.constant 0 : i32
    %c0_i32_0 = arith.constant 0 : i32
    return %arg0, %c0_i32 : i32, i32
  }
}

module attributes {stable_mosaic.version = 11 : i64} {
  func.func @_norm_linear_kernel(%arg0: i32, %arg1: memref<16x32xf32, #tpu.memory_space<vmem>>, %arg2: memref<1x32xf32, #tpu.memory_space<vmem>>, %arg3: memref<32x32xf32, #tpu.memory_space<vmem>>, %arg4: memref<1x32xf32, #tpu.memory_space<vmem>>, %arg5: memref<16x32xf32, #tpu.memory_space<vmem>>) attributes {dimension_semantics = [#tpu.dimension_semantics<parallel>], iteration_bounds = array<i64: 1>, scalar_prefetch = 0 : i64, scratch_operands = 0 : i64, tpu.core_type = #tpu.core_type<tc>, window_params = [{transform_indices = @transform_0, window_bounds = array<i64: 16, 32>}, {pipeline_mode = #tpu.pipeline_mode<synchronous>, transform_indices = @transform_1, window_bounds = array<i64: 1, 32>}, {pipeline_mode = #tpu.pipeline_mode<synchronous>, transform_indices = @transform_2, window_bounds = array<i64: 32, 32>}, {pipeline_mode = #tpu.pipeline_mode<synchronous>, transform_indices = @transform_3, window_bounds = array<i64: 1, 32>}, {transform_indices = @transform_4, window_bounds = array<i64: 16, 32>}]} {
    %c0 = arith.constant 0 : index
    %c0_0 = arith.constant 0 : index
    %0 = vector.load %arg1[%c0, %c0_0] : memref<16x32xf32, #tpu.memory_space<vmem>>, vector<16x32xf32>
    %1 = arith.truncf %0 : vector<16x32xf32> to vector<16x32xbf16>
    %c0_1 = arith.constant 0 : index
    %c0_2 = arith.constant 0 : index
    %2 = vector.load %arg3[%c0_1, %c0_2] : memref<32x32xf32, #tpu.memory_space<vmem>>, vector<32x32xf32>
    %3 = arith.truncf %2 : vector<32x32xf32> to vector<32x32xbf16>
    %cst = arith.constant dense<0.000000e+00> : vector<16x32xf32>
    %4 = tpu.matmul %1, %3, %cst {dimension_numbers = #tpu.dot_dimension_numbers<[1], [0], [0], [1], [0, 0, 1, 1], [], []>} : vector<16x32xbf16>, vector<32x32xbf16>, vector<16x32xf32> -> vector<16x32xf32>
    %c0_3 = arith.constant 0 : index
    %c0_4 = arith.constant 0 : index
    %5 = vector.load %arg4[%c0_3, %c0_4] : memref<1x32xf32, #tpu.memory_space<vmem>>, vector<1x32xf32>
    %6 = vector.broadcast %5 : vector<1x32xf32> to vector<16x32xf32>
    %7 = arith.addf %4, %6 : vector<16x32xf32>
    %c0_5 = arith.constant 0 : index
    %c0_6 = arith.constant 0 : index
    %8 = vector.load %arg5[%c0_5, %c0_6] : memref<16x32xf32, #tpu.memory_space<vmem>>, vector<16x32xf32>
    tpu.vector_store %arg5[%c0_5, %c0_6], %7 {strides = array<i32>} : memref<16x32xf32, #tpu.memory_space<vmem>>, vector<16x32xf32>,
    return
  }
  func.func @transform_0(%arg0: i32) -> (i32, i32) {
    %c0_i32 = arith.constant 0 : i32
    %c0_i32_0 = arith.constant 0 : i32
    return %arg0, %c0_i32 : i32, i32
  }
  func.func @transform_1(%arg0: i32) -> (i32, i32) {
    %c0_i32 = arith.constant 0 : i32
    %c0_i32_0 = arith.constant 0 : i32
    %c0_i32_1 = arith.constant 0 : i32
    return %c0_i32, %c0_i32_0 : i32, i32
  }
  func.func @transform_2(%arg0: i32) -> (i32, i32) {
    %c0_i32 = arith.constant 0 : i32
    %c0_i32_0 = arith.constant 0 : i32
    %c0_i32_1 = arith.constant 0 : i32
    return %c0_i32, %c0_i32_0 : i32, i32
  }
  func.func @transform_3(%arg0: i32) -> (i32, i32) {
    %c0_i32 = arith.constant 0 : i32
    %c0_i32_0 = arith.constant 0 : i32
    %c0_i32_1 = arith.constant 0 : i32
    return %c0_i32, %c0_i32_0 : i32, i32
  }
  func.func @transform_4(%arg0: i32) -> (i32, i32) {
    %c0_i32 = arith.constant 0 : i32
    %c0_i32_0 = arith.constant 0 : i32
    return %arg0, %c0_i32 : i32, i32
  }
}

module attributes {stable_mosaic.version = 11 : i64} {
  func.func @_norm_linear_kernel(%arg0: i32, %arg1: memref<16x32xf32, #tpu.memory_space<vmem>>, %arg2: memref<16x32xf32, #tpu.memory_space<vmem>>, %arg3: memref<1x32xf32, #tpu.memory_space<vmem>>, %arg4: memref<32x32xf32, #tpu.memory_space<vmem>>, %arg5: memref<1x32xf32, #tpu.memory_space<vmem>>, %arg6: memref<16x32xf32, #tpu.memory_space<vmem>>) attributes {dimension_semantics = [#tpu.dimension_semantics<parallel>], iteration_bounds = array<i64: 1>, scalar_prefetch = 0 : i64, scratch_operands = 0 : i64, tpu.core_type = #tpu.core_type<tc>, window_params = [{transform_indices = @transform_0, window_bounds = array<i64: 16, 32>}, {transform_indices = @transform_1, window_bounds = array<i64: 16, 32>}, {pipeline_mode = #tpu.pipeline_mode<synchronous>, transform_indices = @transform_2, window_bounds = array<i64: 1, 32>}, {pipeline_mode = #tpu.pipeline_mode<synchronous>, transform_indices = @transform_3, window_bounds = array<i64: 32, 32>}, {pipeline_mode = #tpu.pipeline_mode<synchronous>, transform_indices = @transform_4, window_bounds = array<i64: 1, 32>}, {transform_indices = @transform_5, window_bounds = array<i64: 16, 32>}]} {
    %c0 = arith.constant 0 : index
    %c0_0 = arith.constant 0 : index
    %0 = vector.load %arg1[%c0, %c0_0] : memref<16x32xf32, #tpu.memory_space<vmem>>, vector<16x32xf32>
    %1 = arith.mulf %0, %0 : vector<16x32xf32>
    %cst = arith.constant dense<0.000000e+00> : vector<16xf32>
    %2 = vector.multi_reduction <add>, %1, %cst [1] : vector<16x32xf32> to vector<16xf32>
    %3 = vector.shape_cast %2 : vector<16xf32> to vector<16x1xf32>
    %cst_1 = arith.constant 3.200000e+01 : f32
    %4 = vector.broadcast %cst_1 : f32 to vector<16x1xf32>
    %5 = arith.divf %3, %4 : vector<16x1xf32>
    %cst_2 = arith.constant 9.99999997E-7 : f32
    %6 = vector.broadcast %cst_2 : f32 to vector<16x1xf32>
    %7 = arith.addf %5, %6 : vector<16x1xf32>
    %8 = math.rsqrt %7 : vector<16x1xf32>
    %9 = vector.broadcast %8 : vector<16x1xf32> to vector<16x32xf32>
    %10 = arith.mulf %0, %9 : vector<16x32xf32>
    %c0_3 = arith.constant 0 : index
    %c0_4 = arith.constant 0 : index
    %11 = vector.load %arg3[%c0_3, %c0_4] : memref<1x32xf32, #tpu.memory_space<vmem>>, vector<1x32xf32>
    %12 = vector.broadcast %11 : vector<1x32xf32> to vector<16x32xf32>
    %13 = arith.mulf %10, %12 : vector<16x32xf32>
    %14 = arith.truncf %13 : vector<16x32xf32> to vector<16x32xbf16>
    %c0_5 = arith.constant 0 : index
    %c0_6 = arith.constant 0 : index
    %15 = vector.load %arg4[%c0_5, %c0_6] : memref<32x32xf32, #tpu.memory_space<vmem>>, vector<32x32xf32>
    %16 = arith.truncf %15 : vector<32x32xf32> to vector<32x32xbf16>
    %cst_7 = arith.constant dense<0.000000e+00> : vector<16x32xf32>
    %17 = tpu.matmul %14, %16, %cst_7 {dimension_numbers = #tpu.dot_dimension_numbers<[1], [0], [0], [1], [0, 0, 1, 1], [], []>} : vector<16x32xbf16>, vector<32x32xbf16>, vector<16x32xf32> -> vector<16x32xf32>
    %c0_8 = arith.constant 0 : index
    %c0_9 = arith.constant 0 : index
    %18 = vector.load %arg5[%c0_8, %c0_9] : memref<1x32xf32, #tpu.memory_space<vmem>>, vector<1x32xf32>
    %19 = vector.broadcast %18 : vector<1x32xf32> to vector<16x32xf32>
    %20 = arith.addf %17, %19 : vector<16x32xf32>
    %c0_10 = arith.constant 0 : index
    %c0_11 = arith.constant 0 : index
    %21 = vector.load %arg2[%c0_10, %c0_11] : memref<16x32xf32, #tpu.memory_space<vmem>>, vector<16x32xf32>
    %22 = arith.addf %20, %21 : vector<16x32xf32>
    %c0_12 = arith.constant 0 : index
    %c0_13 = arith.constant 0 : index
    %23 = vector.load %arg6[%c0_12, %c0_13] : memref<16x32xf32, #tpu.memory_space<vmem>>, vector<16x32xf32>
    tpu.vector_store %arg6[%c0_12, %c0_13], %22 {strides = array<i32>} : memref<16x32xf32, #tpu.memory_space<vmem>>, vector<16x32xf32>,
    return
  }
  func.func @transform_0(%arg0: i32) -> (i32, i32) {
    %c0_i32 = arith.constant 0 : i32
    %c0_i32_0 = arith.constant 0 : i32
    return %arg0, %c0_i32 : i32, i32
  }
  func.func @transform_1(%arg0: i32) -> (i32, i32) {
    %c0_i32 = arith.constant 0 : i32
    %c0_i32_0 = arith.constant 0 : i32
    return %arg0, %c0_i32 : i32, i32
  }
  func.func @transform_2(%arg0: i32) -> (i32, i32) {
    %c0_i32 = arith.constant 0 : i32
    %c0_i32_0 = arith.constant 0 : i32
    %c0_i32_1 = arith.constant 0 : i32
    return %c0_i32, %c0_i32_0 : i32, i32
  }
  func.func @transform_3(%arg0: i32) -> (i32, i32) {
    %c0_i32 = arith.constant 0 : i32
    %c0_i32_0 = arith.constant 0 : i32
    %c0_i32_1 = arith.constant 0 : i32
    return %c0_i32, %c0_i32_0 : i32, i32
  }
  func.func @transform_4(%arg0: i32) -> (i32, i32) {
    %c0_i32 = arith.constant 0 : i32
    %c0_i32_0 = arith.constant 0 : i32
    %c0_i32_1 = arith.constant 0 : i32
    return %c0_i32, %c0_i32_0 : i32, i32
  }
  func.func @transform_5(%arg0: i32) -> (i32, i32) {
    %c0_i32 = arith.constant 0 : i32
    %c0_i32_0 = arith.constant 0 : i32
    return %arg0, %c0_i32 : i32, i32
  }
}

module attributes {stable_mosaic.version = 11 : i64} {
  func.func @_mha_kernel(%arg0: i32, %arg1: memref<1x4x32xf32, #tpu.memory_space<vmem>>, %arg2: memref<1x4x32xf32, #tpu.memory_space<vmem>>, %arg3: memref<1x4x32xf32, #tpu.memory_space<vmem>>, %arg4: memref<1x4x32xf32, #tpu.memory_space<vmem>>) attributes {dimension_semantics = [#tpu.dimension_semantics<parallel>], iteration_bounds = array<i64: 4>, scalar_prefetch = 0 : i64, scratch_operands = 0 : i64, tpu.core_type = #tpu.core_type<tc>, window_params = [{transform_indices = @transform_0, window_bounds = array<i64: 1, 4, 32>}, {transform_indices = @transform_1, window_bounds = array<i64: 1, 4, 32>}, {transform_indices = @transform_2, window_bounds = array<i64: 1, 4, 32>}, {transform_indices = @transform_3, window_bounds = array<i64: 1, 4, 32>}]} {
    %c0 = arith.constant 0 : index
    %c0_0 = arith.constant 0 : index
    %c0_1 = arith.constant 0 : index
    %0 = vector.load %arg1[%c0, %c0_0, %c0_1] : memref<1x4x32xf32, #tpu.memory_space<vmem>>, vector<1x4x32xf32>
    %1 = vector.shape_cast %0 : vector<1x4x32xf32> to vector<4x32xf32>
    %c0_2 = arith.constant 0 : index
    %c0_3 = arith.constant 0 : index
    %c0_4 = arith.constant 0 : index
    %2 = vector.load %arg2[%c0_2, %c0_3, %c0_4] : memref<1x4x32xf32, #tpu.memory_space<vmem>>, vector<1x4x32xf32>
    %3 = vector.shape_cast %2 : vector<1x4x32xf32> to vector<4x32xf32>
    %c0_5 = arith.constant 0 : index
    %c0_6 = arith.constant 0 : index
    %c0_7 = arith.constant 0 : index
    %4 = vector.load %arg3[%c0_5, %c0_6, %c0_7] : memref<1x4x32xf32, #tpu.memory_space<vmem>>, vector<1x4x32xf32>
    %5 = vector.shape_cast %4 : vector<1x4x32xf32> to vector<4x32xf32>
    %6 = vector.extract_strided_slice %1 {offsets = [0, 0], sizes = [4, 8], strides = [1, 1]} : vector<4x32xf32> to vector<4x8xf32>
    %7 = vector.extract_strided_slice %3 {offsets = [0, 0], sizes = [4, 8], strides = [1, 1]} : vector<4x32xf32> to vector<4x8xf32>
    %8 = vector.extract_strided_slice %5 {offsets = [0, 0], sizes = [4, 8], strides = [1, 1]} : vector<4x32xf32> to vector<4x8xf32>
    %9 = arith.truncf %6 : vector<4x8xf32> to vector<4x8xbf16>
    %10 = arith.truncf %7 : vector<4x8xf32> to vector<4x8xbf16>
    %cst = arith.constant dense<0.000000e+00> : vector<4x4xf32>
    %11 = tpu.matmul %9, %10, %cst {dimension_numbers = #tpu.dot_dimension_numbers<[1], [1], [0], [0], [0, 0, 1, 0], [], []>} : vector<4x8xbf16>, vector<4x8xbf16>, vector<4x4xf32> -> vector<4x4xf32>
    %cst_8 = arith.constant 0.353553385 : f32
    %12 = vector.broadcast %cst_8 : f32 to vector<4x4xf32>
    %13 = arith.mulf %11, %12 : vector<4x4xf32>
    %cst_9 = arith.constant dense<0xFF800000> : vector<4xf32>
    %14 = vector.multi_reduction <maximumf>, %13, %cst_9 [1] : vector<4x4xf32> to vector<4xf32>
    %15 = vector.shape_cast %14 : vector<4xf32> to vector<4x1xf32>
    %16 = vector.broadcast %15 : vector<4x1xf32> to vector<4x4xf32>
    %17 = arith.subf %13, %16 : vector<4x4xf32>
    %18 = math.exp %17 : vector<4x4xf32>
    %cst_10 = arith.constant dense<0.000000e+00> : vector<4xf32>
    %19 = vector.multi_reduction <add>, %18, %cst_10 [1] : vector<4x4xf32> to vector<4xf32>
    %20 = vector.shape_cast %19 : vector<4xf32> to vector<4x1xf32>
    %21 = tpu.reciprocal %20 {approx = true} : vector<4x1xf32> -> vector<4x1xf32>
    %22 = arith.truncf %18 : vector<4x4xf32> to vector<4x4xbf16>
    %23 = arith.truncf %8 : vector<4x8xf32> to vector<4x8xbf16>
    %cst_11 = arith.constant dense<0.000000e+00> : vector<4x8xf32>
    %24 = tpu.matmul %22, %23, %cst_11 {dimension_numbers = #tpu.dot_dimension_numbers<[1], [0], [0], [1], [0, 0, 1, 1], [], []>} : vector<4x4xbf16>, vector<4x8xbf16>, vector<4x8xf32> -> vector<4x8xf32>
    %25 = vector.broadcast %21 : vector<4x1xf32> to vector<4x8xf32>
    %26 = arith.mulf %24, %25 : vector<4x8xf32>
    %27 = vector.extract_strided_slice %1 {offsets = [0, 8], sizes = [4, 8], strides = [1, 1]} : vector<4x32xf32> to vector<4x8xf32>
    %28 = vector.extract_strided_slice %3 {offsets = [0, 8], sizes = [4, 8], strides = [1, 1]} : vector<4x32xf32> to vector<4x8xf32>
    %29 = vector.extract_strided_slice %5 {offsets = [0, 8], sizes = [4, 8], strides = [1, 1]} : vector<4x32xf32> to vector<4x8xf32>
    %30 = arith.truncf %27 : vector<4x8xf32> to vector<4x8xbf16>
    %31 = arith.truncf %28 : vector<4x8xf32> to vector<4x8xbf16>
    %cst_12 = arith.constant dense<0.000000e+00> : vector<4x4xf32>
    %32 = tpu.matmul %30, %31, %cst_12 {dimension_numbers = #tpu.dot_dimension_numbers<[1], [1], [0], [0], [0, 0, 1, 0], [], []>} : vector<4x8xbf16>, vector<4x8xbf16>, vector<4x4xf32> -> vector<4x4xf32>
    %cst_13 = arith.constant 0.353553385 : f32
    %33 = vector.broadcast %cst_13 : f32 to vector<4x4xf32>
    %34 = arith.mulf %32, %33 : vector<4x4xf32>
    %cst_14 = arith.constant dense<0xFF800000> : vector<4xf32>
    %35 = vector.multi_reduction <maximumf>, %34, %cst_14 [1] : vector<4x4xf32> to vector<4xf32>
    %36 = vector.shape_cast %35 : vector<4xf32> to vector<4x1xf32>
    %37 = vector.broadcast %36 : vector<4x1xf32> to vector<4x4xf32>
    %38 = arith.subf %34, %37 : vector<4x4xf32>
    %39 = math.exp %38 : vector<4x4xf32>
    %cst_15 = arith.constant dense<0.000000e+00> : vector<4xf32>
    %40 = vector.multi_reduction <add>, %39, %cst_15 [1] : vector<4x4xf32> to vector<4xf32>
    %41 = vector.shape_cast %40 : vector<4xf32> to vector<4x1xf32>
    %42 = tpu.reciprocal %41 {approx = true} : vector<4x1xf32> -> vector<4x1xf32>
    %43 = arith.truncf %39 : vector<4x4xf32> to vector<4x4xbf16>
    %44 = arith.truncf %29 : vector<4x8xf32> to vector<4x8xbf16>
    %cst_16 = arith.constant dense<0.000000e+00> : vector<4x8xf32>
    %45 = tpu.matmul %43, %44, %cst_16 {dimension_numbers = #tpu.dot_dimension_numbers<[1], [0], [0], [1], [0, 0, 1, 1], [], []>} : vector<4x4xbf16>, vector<4x8xbf16>, vector<4x8xf32> -> vector<4x8xf32>
    %46 = vector.broadcast %42 : vector<4x1xf32> to vector<4x8xf32>
    %47 = arith.mulf %45, %46 : vector<4x8xf32>
    %48 = vector.extract_strided_slice %1 {offsets = [0, 16], sizes = [4, 8], strides = [1, 1]} : vector<4x32xf32> to vector<4x8xf32>
    %49 = vector.extract_strided_slice %3 {offsets = [0, 16], sizes = [4, 8], strides = [1, 1]} : vector<4x32xf32> to vector<4x8xf32>
    %50 = vector.extract_strided_slice %5 {offsets = [0, 16], sizes = [4, 8], strides = [1, 1]} : vector<4x32xf32> to vector<4x8xf32>
    %51 = arith.truncf %48 : vector<4x8xf32> to vector<4x8xbf16>
    %52 = arith.truncf %49 : vector<4x8xf32> to vector<4x8xbf16>
    %cst_17 = arith.constant dense<0.000000e+00> : vector<4x4xf32>
    %53 = tpu.matmul %51, %52, %cst_17 {dimension_numbers = #tpu.dot_dimension_numbers<[1], [1], [0], [0], [0, 0, 1, 0], [], []>} : vector<4x8xbf16>, vector<4x8xbf16>, vector<4x4xf32> -> vector<4x4xf32>
    %cst_18 = arith.constant 0.353553385 : f32
    %54 = vector.broadcast %cst_18 : f32 to vector<4x4xf32>
    %55 = arith.mulf %53, %54 : vector<4x4xf32>
    %cst_19 = arith.constant dense<0xFF800000> : vector<4xf32>
    %56 = vector.multi_reduction <maximumf>, %55, %cst_19 [1] : vector<4x4xf32> to vector<4xf32>
    %57 = vector.shape_cast %56 : vector<4xf32> to vector<4x1xf32>
    %58 = vector.broadcast %57 : vector<4x1xf32> to vector<4x4xf32>
    %59 = arith.subf %55, %58 : vector<4x4xf32>
    %60 = math.exp %59 : vector<4x4xf32>
    %cst_20 = arith.constant dense<0.000000e+00> : vector<4xf32>
    %61 = vector.multi_reduction <add>, %60, %cst_20 [1] : vector<4x4xf32> to vector<4xf32>
    %62 = vector.shape_cast %61 : vector<4xf32> to vector<4x1xf32>
    %63 = tpu.reciprocal %62 {approx = true} : vector<4x1xf32> -> vector<4x1xf32>
    %64 = arith.truncf %60 : vector<4x4xf32> to vector<4x4xbf16>
    %65 = arith.truncf %50 : vector<4x8xf32> to vector<4x8xbf16>
    %cst_21 = arith.constant dense<0.000000e+00> : vector<4x8xf32>
    %66 = tpu.matmul %64, %65, %cst_21 {dimension_numbers = #tpu.dot_dimension_numbers<[1], [0], [0], [1], [0, 0, 1, 1], [], []>} : vector<4x4xbf16>, vector<4x8xbf16>, vector<4x8xf32> -> vector<4x8xf32>
    %67 = vector.broadcast %63 : vector<4x1xf32> to vector<4x8xf32>
    %68 = arith.mulf %66, %67 : vector<4x8xf32>
    %69 = vector.extract_strided_slice %1 {offsets = [0, 24], sizes = [4, 8], strides = [1, 1]} : vector<4x32xf32> to vector<4x8xf32>
    %70 = vector.extract_strided_slice %3 {offsets = [0, 24], sizes = [4, 8], strides = [1, 1]} : vector<4x32xf32> to vector<4x8xf32>
    %71 = vector.extract_strided_slice %5 {offsets = [0, 24], sizes = [4, 8], strides = [1, 1]} : vector<4x32xf32> to vector<4x8xf32>
    %72 = arith.truncf %69 : vector<4x8xf32> to vector<4x8xbf16>
    %73 = arith.truncf %70 : vector<4x8xf32> to vector<4x8xbf16>
    %cst_22 = arith.constant dense<0.000000e+00> : vector<4x4xf32>
    %74 = tpu.matmul %72, %73, %cst_22 {dimension_numbers = #tpu.dot_dimension_numbers<[1], [1], [0], [0], [0, 0, 1, 0], [], []>} : vector<4x8xbf16>, vector<4x8xbf16>, vector<4x4xf32> -> vector<4x4xf32>
    %cst_23 = arith.constant 0.353553385 : f32
    %75 = vector.broadcast %cst_23 : f32 to vector<4x4xf32>
    %76 = arith.mulf %74, %75 : vector<4x4xf32>
    %cst_24 = arith.constant dense<0xFF800000> : vector<4xf32>
    %77 = vector.multi_reduction <maximumf>, %76, %cst_24 [1] : vector<4x4xf32> to vector<4xf32>
    %78 = vector.shape_cast %77 : vector<4xf32> to vector<4x1xf32>
    %79 = vector.broadcast %78 : vector<4x1xf32> to vector<4x4xf32>
    %80 = arith.subf %76, %79 : vector<4x4xf32>
    %81 = math.exp %80 : vector<4x4xf32>
    %cst_25 = arith.constant dense<0.000000e+00> : vector<4xf32>
    %82 = vector.multi_reduction <add>, %81, %cst_25 [1] : vector<4x4xf32> to vector<4xf32>
    %83 = vector.shape_cast %82 : vector<4xf32> to vector<4x1xf32>
    %84 = tpu.reciprocal %83 {approx = true} : vector<4x1xf32> -> vector<4x1xf32>
    %85 = arith.truncf %81 : vector<4x4xf32> to vector<4x4xbf16>
    %86 = arith.truncf %71 : vector<4x8xf32> to vector<4x8xbf16>
    %cst_26 = arith.constant dense<0.000000e+00> : vector<4x8xf32>
    %87 = tpu.matmul %85, %86, %cst_26 {dimension_numbers = #tpu.dot_dimension_numbers<[1], [0], [0], [1], [0, 0, 1, 1], [], []>} : vector<4x4xbf16>, vector<4x8xbf16>, vector<4x8xf32> -> vector<4x8xf32>
    %88 = vector.broadcast %84 : vector<4x1xf32> to vector<4x8xf32>
    %89 = arith.mulf %87, %88 : vector<4x8xf32>
    %90 = tpu.concatenate %26, %47, %68, %89 in 1 : vector<4x8xf32>, vector<4x8xf32>, vector<4x8xf32>, vector<4x8xf32> -> vector<4x32xf32>
    %c0_27 = arith.constant 0 : index
    %c0_28 = arith.constant 0 : index
    %c0_29 = arith.constant 0 : index
    %91 = vector.load %arg4[%c0_27, %c0_28, %c0_29] : memref<1x4x32xf32, #tpu.memory_space<vmem>>, vector<1x4x32xf32>
    %92 = vector.shape_cast %91 : vector<1x4x32xf32> to vector<4x32xf32>
    %93 = vector.shape_cast %90 : vector<4x32xf32> to vector<1x4x32xf32>
    tpu.vector_store %arg4[%c0_27, %c0_28, %c0_29], %93 {strides = array<i32>} : memref<1x4x32xf32, #tpu.memory_space<vmem>>, vector<1x4x32xf32>,
    return
  }
  func.func @transform_0(%arg0: i32) -> (i32, i32, i32) {
    %c0_i32 = arith.constant 0 : i32
    %c0_i32_0 = arith.constant 0 : i32
    %c0_i32_1 = arith.constant 0 : i32
    return %arg0, %c0_i32, %c0_i32_0 : i32, i32, i32
  }
  func.func @transform_1(%arg0: i32) -> (i32, i32, i32) {
    %c0_i32 = arith.constant 0 : i32
    %c0_i32_0 = arith.constant 0 : i32
    %c0_i32_1 = arith.constant 0 : i32
    return %arg0, %c0_i32, %c0_i32_0 : i32, i32, i32
  }
  func.func @transform_2(%arg0: i32) -> (i32, i32, i32) {
    %c0_i32 = arith.constant 0 : i32
    %c0_i32_0 = arith.constant 0 : i32
    %c0_i32_1 = arith.constant 0 : i32
    return %arg0, %c0_i32, %c0_i32_0 : i32, i32, i32
  }
  func.func @transform_3(%arg0: i32) -> (i32, i32, i32) {
    %c0_i32 = arith.constant 0 : i32
    %c0_i32_0 = arith.constant 0 : i32
    %c0_i32_1 = arith.constant 0 : i32
    return %arg0, %c0_i32, %c0_i32_0 : i32, i32, i32
  }
}

module attributes {stable_mosaic.version = 11 : i64} {
  func.func @_mlp_tail_kernel(%arg0: i32, %arg1: memref<16x32xf32, #tpu.memory_space<vmem>>, %arg2: memref<1x32xf32, #tpu.memory_space<vmem>>, %arg3: memref<32x32xf32, #tpu.memory_space<vmem>>, %arg4: memref<1x32xf32, #tpu.memory_space<vmem>>, %arg5: memref<1x32xf32, #tpu.memory_space<vmem>>, %arg6: memref<32x32xf32, #tpu.memory_space<vmem>>, %arg7: memref<1x32xf32, #tpu.memory_space<vmem>>, %arg8: memref<16x32xf32, #tpu.memory_space<vmem>>) attributes {dimension_semantics = [#tpu.dimension_semantics<parallel>], iteration_bounds = array<i64: 1>, scalar_prefetch = 0 : i64, scratch_operands = 0 : i64, tpu.core_type = #tpu.core_type<tc>, window_params = [{transform_indices = @transform_0, window_bounds = array<i64: 16, 32>}, {pipeline_mode = #tpu.pipeline_mode<synchronous>, transform_indices = @transform_1, window_bounds = array<i64: 1, 32>}, {pipeline_mode = #tpu.pipeline_mode<synchronous>, transform_indices = @transform_2, window_bounds = array<i64: 32, 32>}, {pipeline_mode = #tpu.pipeline_mode<synchronous>, transform_indices = @transform_3, window_bounds = array<i64: 1, 32>}, {pipeline_mode = #tpu.pipeline_mode<synchronous>, transform_indices = @transform_4, window_bounds = array<i64: 1, 32>}, {pipeline_mode = #tpu.pipeline_mode<synchronous>, transform_indices = @transform_5, window_bounds = array<i64: 32, 32>}, {pipeline_mode = #tpu.pipeline_mode<synchronous>, transform_indices = @transform_6, window_bounds = array<i64: 1, 32>}, {transform_indices = @transform_7, window_bounds = array<i64: 16, 32>}]} {
    %c0 = arith.constant 0 : index
    %c0_0 = arith.constant 0 : index
    %0 = vector.load %arg1[%c0, %c0_0] : memref<16x32xf32, #tpu.memory_space<vmem>>, vector<16x32xf32>
    %1 = arith.mulf %0, %0 : vector<16x32xf32>
    %cst = arith.constant dense<0.000000e+00> : vector<16xf32>
    %2 = vector.multi_reduction <add>, %1, %cst [1] : vector<16x32xf32> to vector<16xf32>
    %3 = vector.shape_cast %2 : vector<16xf32> to vector<16x1xf32>
    %cst_1 = arith.constant 3.200000e+01 : f32
    %4 = vector.broadcast %cst_1 : f32 to vector<16x1xf32>
    %5 = arith.divf %3, %4 : vector<16x1xf32>
    %cst_2 = arith.constant 9.99999997E-7 : f32
    %6 = vector.broadcast %cst_2 : f32 to vector<16x1xf32>
    %7 = arith.addf %5, %6 : vector<16x1xf32>
    %8 = math.rsqrt %7 : vector<16x1xf32>
    %9 = vector.broadcast %8 : vector<16x1xf32> to vector<16x32xf32>
    %10 = arith.mulf %0, %9 : vector<16x32xf32>
    %c0_3 = arith.constant 0 : index
    %c0_4 = arith.constant 0 : index
    %11 = vector.load %arg2[%c0_3, %c0_4] : memref<1x32xf32, #tpu.memory_space<vmem>>, vector<1x32xf32>
    %12 = vector.broadcast %11 : vector<1x32xf32> to vector<16x32xf32>
    %13 = arith.mulf %10, %12 : vector<16x32xf32>
    %14 = arith.truncf %13 : vector<16x32xf32> to vector<16x32xbf16>
    %c0_5 = arith.constant 0 : index
    %c0_6 = arith.constant 0 : index
    %15 = vector.load %arg3[%c0_5, %c0_6] : memref<32x32xf32, #tpu.memory_space<vmem>>, vector<32x32xf32>
    %16 = arith.truncf %15 : vector<32x32xf32> to vector<32x32xbf16>
    %cst_7 = arith.constant dense<0.000000e+00> : vector<16x32xf32>
    %17 = tpu.matmul %14, %16, %cst_7 {dimension_numbers = #tpu.dot_dimension_numbers<[1], [0], [0], [1], [0, 0, 1, 1], [], []>} : vector<16x32xbf16>, vector<32x32xbf16>, vector<16x32xf32> -> vector<16x32xf32>
    %c0_8 = arith.constant 0 : index
    %c0_9 = arith.constant 0 : index
    %18 = vector.load %arg4[%c0_8, %c0_9] : memref<1x32xf32, #tpu.memory_space<vmem>>, vector<1x32xf32>
    %19 = vector.broadcast %18 : vector<1x32xf32> to vector<16x32xf32>
    %20 = arith.addf %17, %19 : vector<16x32xf32>
    %cst_10 = arith.constant 5.000000e-01 : f32
    %21 = vector.broadcast %cst_10 : f32 to vector<16x32xf32>
    %22 = arith.mulf %21, %20 : vector<16x32xf32>
    %cst_11 = arith.constant 0.707106769 : f32
    %23 = vector.broadcast %cst_11 : f32 to vector<16x32xf32>
    %24 = arith.mulf %20, %23 : vector<16x32xf32>
    %cst_12 = arith.constant 0.000000e+00 : f32
    %25 = vector.broadcast %cst_12 : f32 to vector<16x32xf32>
    %26 = arith.cmpf oge, %24, %25 : vector<16x32xf32>
    %cst_13 = arith.constant 1.000000e+00 : f32
    %cst_14 = arith.constant -1.000000e+00 : f32
    %27 = vector.broadcast %cst_13 : f32 to vector<16x32xf32>
    %28 = vector.broadcast %cst_14 : f32 to vector<16x32xf32>
    %29 = arith.select %26, %27, %28 : vector<16x32xi1>, vector<16x32xf32>
    %30 = math.absf %24 : vector<16x32xf32>
    %cst_15 = arith.constant 0.327591091 : f32
    %31 = vector.broadcast %cst_15 : f32 to vector<16x32xf32>
    %32 = arith.mulf %31, %30 : vector<16x32xf32>
    %cst_16 = arith.constant 1.000000e+00 : f32
    %33 = vector.broadcast %cst_16 : f32 to vector<16x32xf32>
    %34 = arith.addf %33, %32 : vector<16x32xf32>
    %cst_17 = arith.constant 1.000000e+00 : f32
    %35 = vector.broadcast %cst_17 : f32 to vector<16x32xf32>
    %36 = arith.divf %35, %34 : vector<16x32xf32>
    %cst_18 = arith.constant 1.06140542 : f32
    %37 = vector.broadcast %cst_18 : f32 to vector<16x32xf32>
    %38 = arith.mulf %37, %36 : vector<16x32xf32>
    %cst_19 = arith.constant -1.45315206 : f32
    %39 = vector.broadcast %cst_19 : f32 to vector<16x32xf32>
    %40 = arith.addf %38, %39 : vector<16x32xf32>
    %41 = arith.mulf %40, %36 : vector<16x32xf32>
    %cst_20 = arith.constant 1.42141378 : f32
    %42 = vector.broadcast %cst_20 : f32 to vector<16x32xf32>
    %43 = arith.addf %41, %42 : vector<16x32xf32>
    %44 = arith.mulf %43, %36 : vector<16x32xf32>
    %cst_21 = arith.constant -0.284496725 : f32
    %45 = vector.broadcast %cst_21 : f32 to vector<16x32xf32>
    %46 = arith.addf %44, %45 : vector<16x32xf32>
    %47 = arith.mulf %46, %36 : vector<16x32xf32>
    %cst_22 = arith.constant 0.254829586 : f32
    %48 = vector.broadcast %cst_22 : f32 to vector<16x32xf32>
    %49 = arith.addf %47, %48 : vector<16x32xf32>
    %50 = arith.mulf %49, %36 : vector<16x32xf32>
    %cst_23 = arith.constant 0.000000e+00 : f32
    %51 = vector.broadcast %cst_23 : f32 to vector<16x32xf32>
    %52 = arith.subf %51, %30 : vector<16x32xf32>
    %53 = arith.mulf %52, %30 : vector<16x32xf32>
    %54 = math.exp %53 : vector<16x32xf32>
    %55 = arith.mulf %50, %54 : vector<16x32xf32>
    %cst_24 = arith.constant 1.000000e+00 : f32
    %56 = vector.broadcast %cst_24 : f32 to vector<16x32xf32>
    %57 = arith.subf %56, %55 : vector<16x32xf32>
    %58 = arith.mulf %29, %57 : vector<16x32xf32>
    %cst_25 = arith.constant 1.000000e+00 : f32
    %59 = vector.broadcast %cst_25 : f32 to vector<16x32xf32>
    %60 = arith.addf %59, %58 : vector<16x32xf32>
    %61 = arith.mulf %22, %60 : vector<16x32xf32>
    %62 = arith.mulf %61, %61 : vector<16x32xf32>
    %cst_26 = arith.constant dense<0.000000e+00> : vector<16xf32>
    %63 = vector.multi_reduction <add>, %62, %cst_26 [1] : vector<16x32xf32> to vector<16xf32>
    %64 = vector.shape_cast %63 : vector<16xf32> to vector<16x1xf32>
    %cst_27 = arith.constant 3.200000e+01 : f32
    %65 = vector.broadcast %cst_27 : f32 to vector<16x1xf32>
    %66 = arith.divf %64, %65 : vector<16x1xf32>
    %cst_28 = arith.constant 9.99999997E-7 : f32
    %67 = vector.broadcast %cst_28 : f32 to vector<16x1xf32>
    %68 = arith.addf %66, %67 : vector<16x1xf32>
    %69 = math.rsqrt %68 : vector<16x1xf32>
    %70 = vector.broadcast %69 : vector<16x1xf32> to vector<16x32xf32>
    %71 = arith.mulf %61, %70 : vector<16x32xf32>
    %c0_29 = arith.constant 0 : index
    %c0_30 = arith.constant 0 : index
    %72 = vector.load %arg5[%c0_29, %c0_30] : memref<1x32xf32, #tpu.memory_space<vmem>>, vector<1x32xf32>
    %73 = vector.broadcast %72 : vector<1x32xf32> to vector<16x32xf32>
    %74 = arith.mulf %71, %73 : vector<16x32xf32>
    %75 = arith.truncf %74 : vector<16x32xf32> to vector<16x32xbf16>
    %c0_31 = arith.constant 0 : index
    %c0_32 = arith.constant 0 : index
    %76 = vector.load %arg6[%c0_31, %c0_32] : memref<32x32xf32, #tpu.memory_space<vmem>>, vector<32x32xf32>
    %77 = arith.truncf %76 : vector<32x32xf32> to vector<32x32xbf16>
    %cst_33 = arith.constant dense<0.000000e+00> : vector<16x32xf32>
    %78 = tpu.matmul %75, %77, %cst_33 {dimension_numbers = #tpu.dot_dimension_numbers<[1], [0], [0], [1], [0, 0, 1, 1], [], []>} : vector<16x32xbf16>, vector<32x32xbf16>, vector<16x32xf32> -> vector<16x32xf32>
    %c0_34 = arith.constant 0 : index
    %c0_35 = arith.constant 0 : index
    %79 = vector.load %arg7[%c0_34, %c0_35] : memref<1x32xf32, #tpu.memory_space<vmem>>, vector<1x32xf32>
    %80 = vector.broadcast %79 : vector<1x32xf32> to vector<16x32xf32>
    %81 = arith.addf %78, %80 : vector<16x32xf32>
    %82 = arith.addf %81, %0 : vector<16x32xf32>
    %c0_36 = arith.constant 0 : index
    %c0_37 = arith.constant 0 : index
    %83 = vector.load %arg8[%c0_36, %c0_37] : memref<16x32xf32, #tpu.memory_space<vmem>>, vector<16x32xf32>
    tpu.vector_store %arg8[%c0_36, %c0_37], %82 {strides = array<i32>} : memref<16x32xf32, #tpu.memory_space<vmem>>, vector<16x32xf32>,
    return
  }
  func.func @transform_0(%arg0: i32) -> (i32, i32) {
    %c0_i32 = arith.constant 0 : i32
    %c0_i32_0 = arith.constant 0 : i32
    return %arg0, %c0_i32 : i32, i32
  }
  func.func @transform_1(%arg0: i32) -> (i32, i32) {
    %c0_i32 = arith.constant 0 : i32
    %c0_i32_0 = arith.constant 0 : i32
    %c0_i32_1 = arith.constant 0 : i32
    return %c0_i32, %c0_i32_0 : i32, i32
  }
  func.func @transform_2(%arg0: i32) -> (i32, i32) {
    %c0_i32 = arith.constant 0 : i32
    %c0_i32_0 = arith.constant 0 : i32
    %c0_i32_1 = arith.constant 0 : i32
    return %c0_i32, %c0_i32_0 : i32, i32
  }
  func.func @transform_3(%arg0: i32) -> (i32, i32) {
    %c0_i32 = arith.constant 0 : i32
    %c0_i32_0 = arith.constant 0 : i32
    %c0_i32_1 = arith.constant 0 : i32
    return %c0_i32, %c0_i32_0 : i32, i32
  }
  func.func @transform_4(%arg0: i32) -> (i32, i32) {
    %c0_i32 = arith.constant 0 : i32
    %c0_i32_0 = arith.constant 0 : i32
    %c0_i32_1 = arith.constant 0 : i32
    return %c0_i32, %c0_i32_0 : i32, i32
  }
  func.func @transform_5(%arg0: i32) -> (i32, i32) {
    %c0_i32 = arith.constant 0 : i32
    %c0_i32_0 = arith.constant 0 : i32
    %c0_i32_1 = arith.constant 0 : i32
    return %c0_i32, %c0_i32_0 : i32, i32
  }
  func.func @transform_6(%arg0: i32) -> (i32, i32) {
    %c0_i32 = arith.constant 0 : i32
    %c0_i32_0 = arith.constant 0 : i32
    %c0_i32_1 = arith.constant 0 : i32
    return %c0_i32, %c0_i32_0 : i32, i32
  }
  func.func @transform_7(%arg0: i32) -> (i32, i32) {
    %c0_i32 = arith.constant 0 : i32
    %c0_i32_0 = arith.constant 0 : i32
    return %arg0, %c0_i32 : i32, i32
  }
}

module attributes {stable_mosaic.version = 11 : i64} {
  func.func @_mean_tokens_kernel(%arg0: i32, %arg1: memref<4x4x32xf32, #tpu.memory_space<vmem>>, %arg2: memref<4x32xf32, #tpu.memory_space<vmem>>) attributes {dimension_semantics = [#tpu.dimension_semantics<parallel>], iteration_bounds = array<i64: 1>, scalar_prefetch = 0 : i64, scratch_operands = 0 : i64, tpu.core_type = #tpu.core_type<tc>, window_params = [{transform_indices = @transform_0, window_bounds = array<i64: 4, 4, 32>}, {transform_indices = @transform_1, window_bounds = array<i64: 4, 32>}]} {
    %c0 = arith.constant 0 : index
    %c0_0 = arith.constant 0 : index
    %c0_1 = arith.constant 0 : index
    %0 = vector.load %arg1[%c0, %c0_0, %c0_1] : memref<4x4x32xf32, #tpu.memory_space<vmem>>, vector<4x4x32xf32>
    %cst = arith.constant dense<0.000000e+00> : vector<4x32xf32>
    %1 = vector.multi_reduction <add>, %0, %cst [1] : vector<4x4x32xf32> to vector<4x32xf32>
    %cst_2 = arith.constant 4.000000e+00 : f32
    %2 = vector.broadcast %cst_2 : f32 to vector<4x32xf32>
    %3 = arith.divf %1, %2 : vector<4x32xf32>
    %c0_3 = arith.constant 0 : index
    %c0_4 = arith.constant 0 : index
    %4 = vector.load %arg2[%c0_3, %c0_4] : memref<4x32xf32, #tpu.memory_space<vmem>>, vector<4x32xf32>
    tpu.vector_store %arg2[%c0_3, %c0_4], %3 {strides = array<i32>} : memref<4x32xf32, #tpu.memory_space<vmem>>, vector<4x32xf32>,
    return
  }
  func.func @transform_0(%arg0: i32) -> (i32, i32, i32) {
    %c0_i32 = arith.constant 0 : i32
    %c0_i32_0 = arith.constant 0 : i32
    %c0_i32_1 = arith.constant 0 : i32
    return %arg0, %c0_i32, %c0_i32_0 : i32, i32, i32
  }
  func.func @transform_1(%arg0: i32) -> (i32, i32) {
    %c0_i32 = arith.constant 0 : i32
    %c0_i32_0 = arith.constant 0 : i32
    return %arg0, %c0_i32 : i32, i32
  }
}

module attributes {stable_mosaic.version = 11 : i64} {
  func.func @_norm_linear_kernel(%arg0: i32, %arg1: memref<32x32xf32, #tpu.memory_space<vmem>>, %arg2: memref<1x32xf32, #tpu.memory_space<vmem>>, %arg3: memref<32x32xf32, #tpu.memory_space<vmem>>, %arg4: memref<1x32xf32, #tpu.memory_space<vmem>>, %arg5: memref<32x32xf32, #tpu.memory_space<vmem>>) attributes {dimension_semantics = [#tpu.dimension_semantics<parallel>], iteration_bounds = array<i64: 1>, scalar_prefetch = 0 : i64, scratch_operands = 0 : i64, tpu.core_type = #tpu.core_type<tc>, window_params = [{transform_indices = @transform_0, window_bounds = array<i64: 32, 32>}, {pipeline_mode = #tpu.pipeline_mode<synchronous>, transform_indices = @transform_1, window_bounds = array<i64: 1, 32>}, {pipeline_mode = #tpu.pipeline_mode<synchronous>, transform_indices = @transform_2, window_bounds = array<i64: 32, 32>}, {pipeline_mode = #tpu.pipeline_mode<synchronous>, transform_indices = @transform_3, window_bounds = array<i64: 1, 32>}, {transform_indices = @transform_4, window_bounds = array<i64: 32, 32>}]} {
    %c0 = arith.constant 0 : index
    %c0_0 = arith.constant 0 : index
    %0 = vector.load %arg1[%c0, %c0_0] : memref<32x32xf32, #tpu.memory_space<vmem>>, vector<32x32xf32>
    %1 = arith.mulf %0, %0 : vector<32x32xf32>
    %cst = arith.constant dense<0.000000e+00> : vector<32xf32>
    %2 = vector.multi_reduction <add>, %1, %cst [1] : vector<32x32xf32> to vector<32xf32>
    %3 = vector.shape_cast %2 : vector<32xf32> to vector<32x1xf32>
    %cst_1 = arith.constant 3.200000e+01 : f32
    %4 = vector.broadcast %cst_1 : f32 to vector<32x1xf32>
    %5 = arith.divf %3, %4 : vector<32x1xf32>
    %cst_2 = arith.constant 9.99999997E-7 : f32
    %6 = vector.broadcast %cst_2 : f32 to vector<32x1xf32>
    %7 = arith.addf %5, %6 : vector<32x1xf32>
    %8 = math.rsqrt %7 : vector<32x1xf32>
    %9 = vector.broadcast %8 : vector<32x1xf32> to vector<32x32xf32>
    %10 = arith.mulf %0, %9 : vector<32x32xf32>
    %c0_3 = arith.constant 0 : index
    %c0_4 = arith.constant 0 : index
    %11 = vector.load %arg2[%c0_3, %c0_4] : memref<1x32xf32, #tpu.memory_space<vmem>>, vector<1x32xf32>
    %12 = vector.broadcast %11 : vector<1x32xf32> to vector<32x32xf32>
    %13 = arith.mulf %10, %12 : vector<32x32xf32>
    %14 = arith.truncf %13 : vector<32x32xf32> to vector<32x32xbf16>
    %c0_5 = arith.constant 0 : index
    %c0_6 = arith.constant 0 : index
    %15 = vector.load %arg3[%c0_5, %c0_6] : memref<32x32xf32, #tpu.memory_space<vmem>>, vector<32x32xf32>
    %16 = arith.truncf %15 : vector<32x32xf32> to vector<32x32xbf16>
    %cst_7 = arith.constant dense<0.000000e+00> : vector<32x32xf32>
    %17 = tpu.matmul %14, %16, %cst_7 {dimension_numbers = #tpu.dot_dimension_numbers<[1], [0], [0], [1], [0, 0, 1, 1], [], []>} : vector<32x32xbf16>, vector<32x32xbf16>, vector<32x32xf32> -> vector<32x32xf32>
    %c0_8 = arith.constant 0 : index
    %c0_9 = arith.constant 0 : index
    %18 = vector.load %arg4[%c0_8, %c0_9] : memref<1x32xf32, #tpu.memory_space<vmem>>, vector<1x32xf32>
    %19 = vector.broadcast %18 : vector<1x32xf32> to vector<32x32xf32>
    %20 = arith.addf %17, %19 : vector<32x32xf32>
    %c0_10 = arith.constant 0 : index
    %c0_11 = arith.constant 0 : index
    %21 = vector.load %arg5[%c0_10, %c0_11] : memref<32x32xf32, #tpu.memory_space<vmem>>, vector<32x32xf32>
    tpu.vector_store %arg5[%c0_10, %c0_11], %20 {strides = array<i32>} : memref<32x32xf32, #tpu.memory_space<vmem>>, vector<32x32xf32>,
    return
  }
  func.func @transform_0(%arg0: i32) -> (i32, i32) {
    %c0_i32 = arith.constant 0 : i32
    %c0_i32_0 = arith.constant 0 : i32
    return %arg0, %c0_i32 : i32, i32
  }
  func.func @transform_1(%arg0: i32) -> (i32, i32) {
    %c0_i32 = arith.constant 0 : i32
    %c0_i32_0 = arith.constant 0 : i32
    %c0_i32_1 = arith.constant 0 : i32
    return %c0_i32, %c0_i32_0 : i32, i32
  }
  func.func @transform_2(%arg0: i32) -> (i32, i32) {
    %c0_i32 = arith.constant 0 : i32
    %c0_i32_0 = arith.constant 0 : i32
    %c0_i32_1 = arith.constant 0 : i32
    return %c0_i32, %c0_i32_0 : i32, i32
  }
  func.func @transform_3(%arg0: i32) -> (i32, i32) {
    %c0_i32 = arith.constant 0 : i32
    %c0_i32_0 = arith.constant 0 : i32
    %c0_i32_1 = arith.constant 0 : i32
    return %c0_i32, %c0_i32_0 : i32, i32
  }
  func.func @transform_4(%arg0: i32) -> (i32, i32) {
    %c0_i32 = arith.constant 0 : i32
    %c0_i32_0 = arith.constant 0 : i32
    return %arg0, %c0_i32 : i32, i32
  }
}

module attributes {stable_mosaic.version = 11 : i64} {
  func.func @_norm_linear_kernel(%arg0: i32, %arg1: memref<32x32xf32, #tpu.memory_space<vmem>>, %arg2: memref<1x32xf32, #tpu.memory_space<vmem>>, %arg3: memref<32x96xf32, #tpu.memory_space<vmem>>, %arg4: memref<1x96xf32, #tpu.memory_space<vmem>>, %arg5: memref<32x96xf32, #tpu.memory_space<vmem>>) attributes {dimension_semantics = [#tpu.dimension_semantics<parallel>], iteration_bounds = array<i64: 1>, scalar_prefetch = 0 : i64, scratch_operands = 0 : i64, tpu.core_type = #tpu.core_type<tc>, window_params = [{transform_indices = @transform_0, window_bounds = array<i64: 32, 32>}, {pipeline_mode = #tpu.pipeline_mode<synchronous>, transform_indices = @transform_1, window_bounds = array<i64: 1, 32>}, {pipeline_mode = #tpu.pipeline_mode<synchronous>, transform_indices = @transform_2, window_bounds = array<i64: 32, 96>}, {pipeline_mode = #tpu.pipeline_mode<synchronous>, transform_indices = @transform_3, window_bounds = array<i64: 1, 96>}, {transform_indices = @transform_4, window_bounds = array<i64: 32, 96>}]} {
    %c0 = arith.constant 0 : index
    %c0_0 = arith.constant 0 : index
    %0 = vector.load %arg1[%c0, %c0_0] : memref<32x32xf32, #tpu.memory_space<vmem>>, vector<32x32xf32>
    %1 = arith.truncf %0 : vector<32x32xf32> to vector<32x32xbf16>
    %c0_1 = arith.constant 0 : index
    %c0_2 = arith.constant 0 : index
    %2 = vector.load %arg3[%c0_1, %c0_2] : memref<32x96xf32, #tpu.memory_space<vmem>>, vector<32x96xf32>
    %3 = arith.truncf %2 : vector<32x96xf32> to vector<32x96xbf16>
    %cst = arith.constant dense<0.000000e+00> : vector<32x96xf32>
    %4 = tpu.matmul %1, %3, %cst {dimension_numbers = #tpu.dot_dimension_numbers<[1], [0], [0], [1], [0, 0, 1, 1], [], []>} : vector<32x32xbf16>, vector<32x96xbf16>, vector<32x96xf32> -> vector<32x96xf32>
    %c0_3 = arith.constant 0 : index
    %c0_4 = arith.constant 0 : index
    %5 = vector.load %arg4[%c0_3, %c0_4] : memref<1x96xf32, #tpu.memory_space<vmem>>, vector<1x96xf32>
    %6 = vector.broadcast %5 : vector<1x96xf32> to vector<32x96xf32>
    %7 = arith.addf %4, %6 : vector<32x96xf32>
    %c0_5 = arith.constant 0 : index
    %c0_6 = arith.constant 0 : index
    %8 = vector.load %arg5[%c0_5, %c0_6] : memref<32x96xf32, #tpu.memory_space<vmem>>, vector<32x96xf32>
    tpu.vector_store %arg5[%c0_5, %c0_6], %7 {strides = array<i32>} : memref<32x96xf32, #tpu.memory_space<vmem>>, vector<32x96xf32>,
    return
  }
  func.func @transform_0(%arg0: i32) -> (i32, i32) {
    %c0_i32 = arith.constant 0 : i32
    %c0_i32_0 = arith.constant 0 : i32
    return %arg0, %c0_i32 : i32, i32
  }
  func.func @transform_1(%arg0: i32) -> (i32, i32) {
    %c0_i32 = arith.constant 0 : i32
    %c0_i32_0 = arith.constant 0 : i32
    %c0_i32_1 = arith.constant 0 : i32
    return %c0_i32, %c0_i32_0 : i32, i32
  }
  func.func @transform_2(%arg0: i32) -> (i32, i32) {
    %c0_i32 = arith.constant 0 : i32
    %c0_i32_0 = arith.constant 0 : i32
    %c0_i32_1 = arith.constant 0 : i32
    return %c0_i32, %c0_i32_0 : i32, i32
  }
  func.func @transform_3(%arg0: i32) -> (i32, i32) {
    %c0_i32 = arith.constant 0 : i32
    %c0_i32_0 = arith.constant 0 : i32
    %c0_i32_1 = arith.constant 0 : i32
    return %c0_i32, %c0_i32_0 : i32, i32
  }
  func.func @transform_4(%arg0: i32) -> (i32, i32) {
    %c0_i32 = arith.constant 0 : i32
    %c0_i32_0 = arith.constant 0 : i32
    return %arg0, %c0_i32 : i32, i32
  }
}

module attributes {stable_mosaic.version = 11 : i64} {
  func.func @_norm_linear_kernel(%arg0: i32, %arg1: memref<32x32xf32, #tpu.memory_space<vmem>>, %arg2: memref<1x32xf32, #tpu.memory_space<vmem>>, %arg3: memref<32x32xf32, #tpu.memory_space<vmem>>, %arg4: memref<1x32xf32, #tpu.memory_space<vmem>>, %arg5: memref<32x32xf32, #tpu.memory_space<vmem>>) attributes {dimension_semantics = [#tpu.dimension_semantics<parallel>], iteration_bounds = array<i64: 1>, scalar_prefetch = 0 : i64, scratch_operands = 0 : i64, tpu.core_type = #tpu.core_type<tc>, window_params = [{transform_indices = @transform_0, window_bounds = array<i64: 32, 32>}, {pipeline_mode = #tpu.pipeline_mode<synchronous>, transform_indices = @transform_1, window_bounds = array<i64: 1, 32>}, {pipeline_mode = #tpu.pipeline_mode<synchronous>, transform_indices = @transform_2, window_bounds = array<i64: 32, 32>}, {pipeline_mode = #tpu.pipeline_mode<synchronous>, transform_indices = @transform_3, window_bounds = array<i64: 1, 32>}, {transform_indices = @transform_4, window_bounds = array<i64: 32, 32>}]} {
    %c0 = arith.constant 0 : index
    %c0_0 = arith.constant 0 : index
    %0 = vector.load %arg1[%c0, %c0_0] : memref<32x32xf32, #tpu.memory_space<vmem>>, vector<32x32xf32>
    %1 = arith.truncf %0 : vector<32x32xf32> to vector<32x32xbf16>
    %c0_1 = arith.constant 0 : index
    %c0_2 = arith.constant 0 : index
    %2 = vector.load %arg3[%c0_1, %c0_2] : memref<32x32xf32, #tpu.memory_space<vmem>>, vector<32x32xf32>
    %3 = arith.truncf %2 : vector<32x32xf32> to vector<32x32xbf16>
    %cst = arith.constant dense<0.000000e+00> : vector<32x32xf32>
    %4 = tpu.matmul %1, %3, %cst {dimension_numbers = #tpu.dot_dimension_numbers<[1], [0], [0], [1], [0, 0, 1, 1], [], []>} : vector<32x32xbf16>, vector<32x32xbf16>, vector<32x32xf32> -> vector<32x32xf32>
    %c0_3 = arith.constant 0 : index
    %c0_4 = arith.constant 0 : index
    %5 = vector.load %arg4[%c0_3, %c0_4] : memref<1x32xf32, #tpu.memory_space<vmem>>, vector<1x32xf32>
    %6 = vector.broadcast %5 : vector<1x32xf32> to vector<32x32xf32>
    %7 = arith.addf %4, %6 : vector<32x32xf32>
    %c0_5 = arith.constant 0 : index
    %c0_6 = arith.constant 0 : index
    %8 = vector.load %arg5[%c0_5, %c0_6] : memref<32x32xf32, #tpu.memory_space<vmem>>, vector<32x32xf32>
    tpu.vector_store %arg5[%c0_5, %c0_6], %7 {strides = array<i32>} : memref<32x32xf32, #tpu.memory_space<vmem>>, vector<32x32xf32>,
    return
  }
  func.func @transform_0(%arg0: i32) -> (i32, i32) {
    %c0_i32 = arith.constant 0 : i32
    %c0_i32_0 = arith.constant 0 : i32
    return %arg0, %c0_i32 : i32, i32
  }
  func.func @transform_1(%arg0: i32) -> (i32, i32) {
    %c0_i32 = arith.constant 0 : i32
    %c0_i32_0 = arith.constant 0 : i32
    %c0_i32_1 = arith.constant 0 : i32
    return %c0_i32, %c0_i32_0 : i32, i32
  }
  func.func @transform_2(%arg0: i32) -> (i32, i32) {
    %c0_i32 = arith.constant 0 : i32
    %c0_i32_0 = arith.constant 0 : i32
    %c0_i32_1 = arith.constant 0 : i32
    return %c0_i32, %c0_i32_0 : i32, i32
  }
  func.func @transform_3(%arg0: i32) -> (i32, i32) {
    %c0_i32 = arith.constant 0 : i32
    %c0_i32_0 = arith.constant 0 : i32
    %c0_i32_1 = arith.constant 0 : i32
    return %c0_i32, %c0_i32_0 : i32, i32
  }
  func.func @transform_4(%arg0: i32) -> (i32, i32) {
    %c0_i32 = arith.constant 0 : i32
    %c0_i32_0 = arith.constant 0 : i32
    return %arg0, %c0_i32 : i32, i32
  }
}

module attributes {stable_mosaic.version = 11 : i64} {
  func.func @_mha_kernel(%arg0: i32, %arg1: memref<1x8x32xf32, #tpu.memory_space<vmem>>, %arg2: memref<1x8x32xf32, #tpu.memory_space<vmem>>, %arg3: memref<1x8x32xf32, #tpu.memory_space<vmem>>, %arg4: memref<1x8x32xf32, #tpu.memory_space<vmem>>) attributes {dimension_semantics = [#tpu.dimension_semantics<parallel>], iteration_bounds = array<i64: 4>, scalar_prefetch = 0 : i64, scratch_operands = 0 : i64, tpu.core_type = #tpu.core_type<tc>, window_params = [{transform_indices = @transform_0, window_bounds = array<i64: 1, 8, 32>}, {transform_indices = @transform_1, window_bounds = array<i64: 1, 8, 32>}, {transform_indices = @transform_2, window_bounds = array<i64: 1, 8, 32>}, {transform_indices = @transform_3, window_bounds = array<i64: 1, 8, 32>}]} {
    %c0 = arith.constant 0 : index
    %c0_0 = arith.constant 0 : index
    %c0_1 = arith.constant 0 : index
    %0 = vector.load %arg1[%c0, %c0_0, %c0_1] : memref<1x8x32xf32, #tpu.memory_space<vmem>>, vector<1x8x32xf32>
    %1 = vector.shape_cast %0 : vector<1x8x32xf32> to vector<8x32xf32>
    %c0_2 = arith.constant 0 : index
    %c0_3 = arith.constant 0 : index
    %c0_4 = arith.constant 0 : index
    %2 = vector.load %arg2[%c0_2, %c0_3, %c0_4] : memref<1x8x32xf32, #tpu.memory_space<vmem>>, vector<1x8x32xf32>
    %3 = vector.shape_cast %2 : vector<1x8x32xf32> to vector<8x32xf32>
    %c0_5 = arith.constant 0 : index
    %c0_6 = arith.constant 0 : index
    %c0_7 = arith.constant 0 : index
    %4 = vector.load %arg3[%c0_5, %c0_6, %c0_7] : memref<1x8x32xf32, #tpu.memory_space<vmem>>, vector<1x8x32xf32>
    %5 = vector.shape_cast %4 : vector<1x8x32xf32> to vector<8x32xf32>
    %6 = vector.extract_strided_slice %1 {offsets = [0, 0], sizes = [8, 8], strides = [1, 1]} : vector<8x32xf32> to vector<8x8xf32>
    %7 = vector.extract_strided_slice %3 {offsets = [0, 0], sizes = [8, 8], strides = [1, 1]} : vector<8x32xf32> to vector<8x8xf32>
    %8 = vector.extract_strided_slice %5 {offsets = [0, 0], sizes = [8, 8], strides = [1, 1]} : vector<8x32xf32> to vector<8x8xf32>
    %9 = arith.truncf %6 : vector<8x8xf32> to vector<8x8xbf16>
    %10 = arith.truncf %7 : vector<8x8xf32> to vector<8x8xbf16>
    %cst = arith.constant dense<0.000000e+00> : vector<8x8xf32>
    %11 = tpu.matmul %9, %10, %cst {dimension_numbers = #tpu.dot_dimension_numbers<[1], [1], [0], [0], [0, 0, 1, 0], [], []>} : vector<8x8xbf16>, vector<8x8xbf16>, vector<8x8xf32> -> vector<8x8xf32>
    %cst_8 = arith.constant 0.353553385 : f32
    %12 = vector.broadcast %cst_8 : f32 to vector<8x8xf32>
    %13 = arith.mulf %11, %12 : vector<8x8xf32>
    %cst_9 = arith.constant dense<0xFF800000> : vector<8xf32>
    %14 = vector.multi_reduction <maximumf>, %13, %cst_9 [1] : vector<8x8xf32> to vector<8xf32>
    %15 = vector.shape_cast %14 : vector<8xf32> to vector<8x1xf32>
    %16 = vector.broadcast %15 : vector<8x1xf32> to vector<8x8xf32>
    %17 = arith.subf %13, %16 : vector<8x8xf32>
    %18 = math.exp %17 : vector<8x8xf32>
    %cst_10 = arith.constant dense<0.000000e+00> : vector<8xf32>
    %19 = vector.multi_reduction <add>, %18, %cst_10 [1] : vector<8x8xf32> to vector<8xf32>
    %20 = vector.shape_cast %19 : vector<8xf32> to vector<8x1xf32>
    %21 = tpu.reciprocal %20 {approx = true} : vector<8x1xf32> -> vector<8x1xf32>
    %22 = arith.truncf %18 : vector<8x8xf32> to vector<8x8xbf16>
    %23 = arith.truncf %8 : vector<8x8xf32> to vector<8x8xbf16>
    %cst_11 = arith.constant dense<0.000000e+00> : vector<8x8xf32>
    %24 = tpu.matmul %22, %23, %cst_11 {dimension_numbers = #tpu.dot_dimension_numbers<[1], [0], [0], [1], [0, 0, 1, 1], [], []>} : vector<8x8xbf16>, vector<8x8xbf16>, vector<8x8xf32> -> vector<8x8xf32>
    %25 = vector.broadcast %21 : vector<8x1xf32> to vector<8x8xf32>
    %26 = arith.mulf %24, %25 : vector<8x8xf32>
    %27 = vector.extract_strided_slice %1 {offsets = [0, 8], sizes = [8, 8], strides = [1, 1]} : vector<8x32xf32> to vector<8x8xf32>
    %28 = vector.extract_strided_slice %3 {offsets = [0, 8], sizes = [8, 8], strides = [1, 1]} : vector<8x32xf32> to vector<8x8xf32>
    %29 = vector.extract_strided_slice %5 {offsets = [0, 8], sizes = [8, 8], strides = [1, 1]} : vector<8x32xf32> to vector<8x8xf32>
    %30 = arith.truncf %27 : vector<8x8xf32> to vector<8x8xbf16>
    %31 = arith.truncf %28 : vector<8x8xf32> to vector<8x8xbf16>
    %cst_12 = arith.constant dense<0.000000e+00> : vector<8x8xf32>
    %32 = tpu.matmul %30, %31, %cst_12 {dimension_numbers = #tpu.dot_dimension_numbers<[1], [1], [0], [0], [0, 0, 1, 0], [], []>} : vector<8x8xbf16>, vector<8x8xbf16>, vector<8x8xf32> -> vector<8x8xf32>
    %cst_13 = arith.constant 0.353553385 : f32
    %33 = vector.broadcast %cst_13 : f32 to vector<8x8xf32>
    %34 = arith.mulf %32, %33 : vector<8x8xf32>
    %cst_14 = arith.constant dense<0xFF800000> : vector<8xf32>
    %35 = vector.multi_reduction <maximumf>, %34, %cst_14 [1] : vector<8x8xf32> to vector<8xf32>
    %36 = vector.shape_cast %35 : vector<8xf32> to vector<8x1xf32>
    %37 = vector.broadcast %36 : vector<8x1xf32> to vector<8x8xf32>
    %38 = arith.subf %34, %37 : vector<8x8xf32>
    %39 = math.exp %38 : vector<8x8xf32>
    %cst_15 = arith.constant dense<0.000000e+00> : vector<8xf32>
    %40 = vector.multi_reduction <add>, %39, %cst_15 [1] : vector<8x8xf32> to vector<8xf32>
    %41 = vector.shape_cast %40 : vector<8xf32> to vector<8x1xf32>
    %42 = tpu.reciprocal %41 {approx = true} : vector<8x1xf32> -> vector<8x1xf32>
    %43 = arith.truncf %39 : vector<8x8xf32> to vector<8x8xbf16>
    %44 = arith.truncf %29 : vector<8x8xf32> to vector<8x8xbf16>
    %cst_16 = arith.constant dense<0.000000e+00> : vector<8x8xf32>
    %45 = tpu.matmul %43, %44, %cst_16 {dimension_numbers = #tpu.dot_dimension_numbers<[1], [0], [0], [1], [0, 0, 1, 1], [], []>} : vector<8x8xbf16>, vector<8x8xbf16>, vector<8x8xf32> -> vector<8x8xf32>
    %46 = vector.broadcast %42 : vector<8x1xf32> to vector<8x8xf32>
    %47 = arith.mulf %45, %46 : vector<8x8xf32>
    %48 = vector.extract_strided_slice %1 {offsets = [0, 16], sizes = [8, 8], strides = [1, 1]} : vector<8x32xf32> to vector<8x8xf32>
    %49 = vector.extract_strided_slice %3 {offsets = [0, 16], sizes = [8, 8], strides = [1, 1]} : vector<8x32xf32> to vector<8x8xf32>
    %50 = vector.extract_strided_slice %5 {offsets = [0, 16], sizes = [8, 8], strides = [1, 1]} : vector<8x32xf32> to vector<8x8xf32>
    %51 = arith.truncf %48 : vector<8x8xf32> to vector<8x8xbf16>
    %52 = arith.truncf %49 : vector<8x8xf32> to vector<8x8xbf16>
    %cst_17 = arith.constant dense<0.000000e+00> : vector<8x8xf32>
    %53 = tpu.matmul %51, %52, %cst_17 {dimension_numbers = #tpu.dot_dimension_numbers<[1], [1], [0], [0], [0, 0, 1, 0], [], []>} : vector<8x8xbf16>, vector<8x8xbf16>, vector<8x8xf32> -> vector<8x8xf32>
    %cst_18 = arith.constant 0.353553385 : f32
    %54 = vector.broadcast %cst_18 : f32 to vector<8x8xf32>
    %55 = arith.mulf %53, %54 : vector<8x8xf32>
    %cst_19 = arith.constant dense<0xFF800000> : vector<8xf32>
    %56 = vector.multi_reduction <maximumf>, %55, %cst_19 [1] : vector<8x8xf32> to vector<8xf32>
    %57 = vector.shape_cast %56 : vector<8xf32> to vector<8x1xf32>
    %58 = vector.broadcast %57 : vector<8x1xf32> to vector<8x8xf32>
    %59 = arith.subf %55, %58 : vector<8x8xf32>
    %60 = math.exp %59 : vector<8x8xf32>
    %cst_20 = arith.constant dense<0.000000e+00> : vector<8xf32>
    %61 = vector.multi_reduction <add>, %60, %cst_20 [1] : vector<8x8xf32> to vector<8xf32>
    %62 = vector.shape_cast %61 : vector<8xf32> to vector<8x1xf32>
    %63 = tpu.reciprocal %62 {approx = true} : vector<8x1xf32> -> vector<8x1xf32>
    %64 = arith.truncf %60 : vector<8x8xf32> to vector<8x8xbf16>
    %65 = arith.truncf %50 : vector<8x8xf32> to vector<8x8xbf16>
    %cst_21 = arith.constant dense<0.000000e+00> : vector<8x8xf32>
    %66 = tpu.matmul %64, %65, %cst_21 {dimension_numbers = #tpu.dot_dimension_numbers<[1], [0], [0], [1], [0, 0, 1, 1], [], []>} : vector<8x8xbf16>, vector<8x8xbf16>, vector<8x8xf32> -> vector<8x8xf32>
    %67 = vector.broadcast %63 : vector<8x1xf32> to vector<8x8xf32>
    %68 = arith.mulf %66, %67 : vector<8x8xf32>
    %69 = vector.extract_strided_slice %1 {offsets = [0, 24], sizes = [8, 8], strides = [1, 1]} : vector<8x32xf32> to vector<8x8xf32>
    %70 = vector.extract_strided_slice %3 {offsets = [0, 24], sizes = [8, 8], strides = [1, 1]} : vector<8x32xf32> to vector<8x8xf32>
    %71 = vector.extract_strided_slice %5 {offsets = [0, 24], sizes = [8, 8], strides = [1, 1]} : vector<8x32xf32> to vector<8x8xf32>
    %72 = arith.truncf %69 : vector<8x8xf32> to vector<8x8xbf16>
    %73 = arith.truncf %70 : vector<8x8xf32> to vector<8x8xbf16>
    %cst_22 = arith.constant dense<0.000000e+00> : vector<8x8xf32>
    %74 = tpu.matmul %72, %73, %cst_22 {dimension_numbers = #tpu.dot_dimension_numbers<[1], [1], [0], [0], [0, 0, 1, 0], [], []>} : vector<8x8xbf16>, vector<8x8xbf16>, vector<8x8xf32> -> vector<8x8xf32>
    %cst_23 = arith.constant 0.353553385 : f32
    %75 = vector.broadcast %cst_23 : f32 to vector<8x8xf32>
    %76 = arith.mulf %74, %75 : vector<8x8xf32>
    %cst_24 = arith.constant dense<0xFF800000> : vector<8xf32>
    %77 = vector.multi_reduction <maximumf>, %76, %cst_24 [1] : vector<8x8xf32> to vector<8xf32>
    %78 = vector.shape_cast %77 : vector<8xf32> to vector<8x1xf32>
    %79 = vector.broadcast %78 : vector<8x1xf32> to vector<8x8xf32>
    %80 = arith.subf %76, %79 : vector<8x8xf32>
    %81 = math.exp %80 : vector<8x8xf32>
    %cst_25 = arith.constant dense<0.000000e+00> : vector<8xf32>
    %82 = vector.multi_reduction <add>, %81, %cst_25 [1] : vector<8x8xf32> to vector<8xf32>
    %83 = vector.shape_cast %82 : vector<8xf32> to vector<8x1xf32>
    %84 = tpu.reciprocal %83 {approx = true} : vector<8x1xf32> -> vector<8x1xf32>
    %85 = arith.truncf %81 : vector<8x8xf32> to vector<8x8xbf16>
    %86 = arith.truncf %71 : vector<8x8xf32> to vector<8x8xbf16>
    %cst_26 = arith.constant dense<0.000000e+00> : vector<8x8xf32>
    %87 = tpu.matmul %85, %86, %cst_26 {dimension_numbers = #tpu.dot_dimension_numbers<[1], [0], [0], [1], [0, 0, 1, 1], [], []>} : vector<8x8xbf16>, vector<8x8xbf16>, vector<8x8xf32> -> vector<8x8xf32>
    %88 = vector.broadcast %84 : vector<8x1xf32> to vector<8x8xf32>
    %89 = arith.mulf %87, %88 : vector<8x8xf32>
    %90 = tpu.concatenate %26, %47, %68, %89 in 1 : vector<8x8xf32>, vector<8x8xf32>, vector<8x8xf32>, vector<8x8xf32> -> vector<8x32xf32>
    %c0_27 = arith.constant 0 : index
    %c0_28 = arith.constant 0 : index
    %c0_29 = arith.constant 0 : index
    %91 = vector.load %arg4[%c0_27, %c0_28, %c0_29] : memref<1x8x32xf32, #tpu.memory_space<vmem>>, vector<1x8x32xf32>
    %92 = vector.shape_cast %91 : vector<1x8x32xf32> to vector<8x32xf32>
    %93 = vector.shape_cast %90 : vector<8x32xf32> to vector<1x8x32xf32>
    tpu.vector_store %arg4[%c0_27, %c0_28, %c0_29], %93 {strides = array<i32>} : memref<1x8x32xf32, #tpu.memory_space<vmem>>, vector<1x8x32xf32>,
    return
  }
  func.func @transform_0(%arg0: i32) -> (i32, i32, i32) {
    %c0_i32 = arith.constant 0 : i32
    %c0_i32_0 = arith.constant 0 : i32
    %c0_i32_1 = arith.constant 0 : i32
    return %arg0, %c0_i32, %c0_i32_0 : i32, i32, i32
  }
  func.func @transform_1(%arg0: i32) -> (i32, i32, i32) {
    %c0_i32 = arith.constant 0 : i32
    %c0_i32_0 = arith.constant 0 : i32
    %c0_i32_1 = arith.constant 0 : i32
    return %arg0, %c0_i32, %c0_i32_0 : i32, i32, i32
  }
  func.func @transform_2(%arg0: i32) -> (i32, i32, i32) {
    %c0_i32 = arith.constant 0 : i32
    %c0_i32_0 = arith.constant 0 : i32
    %c0_i32_1 = arith.constant 0 : i32
    return %arg0, %c0_i32, %c0_i32_0 : i32, i32, i32
  }
  func.func @transform_3(%arg0: i32) -> (i32, i32, i32) {
    %c0_i32 = arith.constant 0 : i32
    %c0_i32_0 = arith.constant 0 : i32
    %c0_i32_1 = arith.constant 0 : i32
    return %arg0, %c0_i32, %c0_i32_0 : i32, i32, i32
  }
}

module attributes {stable_mosaic.version = 11 : i64} {
  func.func @_norm_linear_kernel(%arg0: i32, %arg1: memref<32x32xf32, #tpu.memory_space<vmem>>, %arg2: memref<32x32xf32, #tpu.memory_space<vmem>>, %arg3: memref<1x32xf32, #tpu.memory_space<vmem>>, %arg4: memref<32x32xf32, #tpu.memory_space<vmem>>, %arg5: memref<1x32xf32, #tpu.memory_space<vmem>>, %arg6: memref<32x32xf32, #tpu.memory_space<vmem>>) attributes {dimension_semantics = [#tpu.dimension_semantics<parallel>], iteration_bounds = array<i64: 1>, scalar_prefetch = 0 : i64, scratch_operands = 0 : i64, tpu.core_type = #tpu.core_type<tc>, window_params = [{transform_indices = @transform_0, window_bounds = array<i64: 32, 32>}, {transform_indices = @transform_1, window_bounds = array<i64: 32, 32>}, {pipeline_mode = #tpu.pipeline_mode<synchronous>, transform_indices = @transform_2, window_bounds = array<i64: 1, 32>}, {pipeline_mode = #tpu.pipeline_mode<synchronous>, transform_indices = @transform_3, window_bounds = array<i64: 32, 32>}, {pipeline_mode = #tpu.pipeline_mode<synchronous>, transform_indices = @transform_4, window_bounds = array<i64: 1, 32>}, {transform_indices = @transform_5, window_bounds = array<i64: 32, 32>}]} {
    %c0 = arith.constant 0 : index
    %c0_0 = arith.constant 0 : index
    %0 = vector.load %arg1[%c0, %c0_0] : memref<32x32xf32, #tpu.memory_space<vmem>>, vector<32x32xf32>
    %1 = arith.mulf %0, %0 : vector<32x32xf32>
    %cst = arith.constant dense<0.000000e+00> : vector<32xf32>
    %2 = vector.multi_reduction <add>, %1, %cst [1] : vector<32x32xf32> to vector<32xf32>
    %3 = vector.shape_cast %2 : vector<32xf32> to vector<32x1xf32>
    %cst_1 = arith.constant 3.200000e+01 : f32
    %4 = vector.broadcast %cst_1 : f32 to vector<32x1xf32>
    %5 = arith.divf %3, %4 : vector<32x1xf32>
    %cst_2 = arith.constant 9.99999997E-7 : f32
    %6 = vector.broadcast %cst_2 : f32 to vector<32x1xf32>
    %7 = arith.addf %5, %6 : vector<32x1xf32>
    %8 = math.rsqrt %7 : vector<32x1xf32>
    %9 = vector.broadcast %8 : vector<32x1xf32> to vector<32x32xf32>
    %10 = arith.mulf %0, %9 : vector<32x32xf32>
    %c0_3 = arith.constant 0 : index
    %c0_4 = arith.constant 0 : index
    %11 = vector.load %arg3[%c0_3, %c0_4] : memref<1x32xf32, #tpu.memory_space<vmem>>, vector<1x32xf32>
    %12 = vector.broadcast %11 : vector<1x32xf32> to vector<32x32xf32>
    %13 = arith.mulf %10, %12 : vector<32x32xf32>
    %14 = arith.truncf %13 : vector<32x32xf32> to vector<32x32xbf16>
    %c0_5 = arith.constant 0 : index
    %c0_6 = arith.constant 0 : index
    %15 = vector.load %arg4[%c0_5, %c0_6] : memref<32x32xf32, #tpu.memory_space<vmem>>, vector<32x32xf32>
    %16 = arith.truncf %15 : vector<32x32xf32> to vector<32x32xbf16>
    %cst_7 = arith.constant dense<0.000000e+00> : vector<32x32xf32>
    %17 = tpu.matmul %14, %16, %cst_7 {dimension_numbers = #tpu.dot_dimension_numbers<[1], [0], [0], [1], [0, 0, 1, 1], [], []>} : vector<32x32xbf16>, vector<32x32xbf16>, vector<32x32xf32> -> vector<32x32xf32>
    %c0_8 = arith.constant 0 : index
    %c0_9 = arith.constant 0 : index
    %18 = vector.load %arg5[%c0_8, %c0_9] : memref<1x32xf32, #tpu.memory_space<vmem>>, vector<1x32xf32>
    %19 = vector.broadcast %18 : vector<1x32xf32> to vector<32x32xf32>
    %20 = arith.addf %17, %19 : vector<32x32xf32>
    %c0_10 = arith.constant 0 : index
    %c0_11 = arith.constant 0 : index
    %21 = vector.load %arg2[%c0_10, %c0_11] : memref<32x32xf32, #tpu.memory_space<vmem>>, vector<32x32xf32>
    %22 = arith.addf %20, %21 : vector<32x32xf32>
    %c0_12 = arith.constant 0 : index
    %c0_13 = arith.constant 0 : index
    %23 = vector.load %arg6[%c0_12, %c0_13] : memref<32x32xf32, #tpu.memory_space<vmem>>, vector<32x32xf32>
    tpu.vector_store %arg6[%c0_12, %c0_13], %22 {strides = array<i32>} : memref<32x32xf32, #tpu.memory_space<vmem>>, vector<32x32xf32>,
    return
  }
  func.func @transform_0(%arg0: i32) -> (i32, i32) {
    %c0_i32 = arith.constant 0 : i32
    %c0_i32_0 = arith.constant 0 : i32
    return %arg0, %c0_i32 : i32, i32
  }
  func.func @transform_1(%arg0: i32) -> (i32, i32) {
    %c0_i32 = arith.constant 0 : i32
    %c0_i32_0 = arith.constant 0 : i32
    return %arg0, %c0_i32 : i32, i32
  }
  func.func @transform_2(%arg0: i32) -> (i32, i32) {
    %c0_i32 = arith.constant 0 : i32
    %c0_i32_0 = arith.constant 0 : i32
    %c0_i32_1 = arith.constant 0 : i32
    return %c0_i32, %c0_i32_0 : i32, i32
  }
  func.func @transform_3(%arg0: i32) -> (i32, i32) {
    %c0_i32 = arith.constant 0 : i32
    %c0_i32_0 = arith.constant 0 : i32
    %c0_i32_1 = arith.constant 0 : i32
    return %c0_i32, %c0_i32_0 : i32, i32
  }
  func.func @transform_4(%arg0: i32) -> (i32, i32) {
    %c0_i32 = arith.constant 0 : i32
    %c0_i32_0 = arith.constant 0 : i32
    %c0_i32_1 = arith.constant 0 : i32
    return %c0_i32, %c0_i32_0 : i32, i32
  }
  func.func @transform_5(%arg0: i32) -> (i32, i32) {
    %c0_i32 = arith.constant 0 : i32
    %c0_i32_0 = arith.constant 0 : i32
    return %arg0, %c0_i32 : i32, i32
  }
}

module attributes {stable_mosaic.version = 11 : i64} {
  func.func @_mlp_tail_kernel(%arg0: i32, %arg1: memref<32x32xf32, #tpu.memory_space<vmem>>, %arg2: memref<1x32xf32, #tpu.memory_space<vmem>>, %arg3: memref<32x32xf32, #tpu.memory_space<vmem>>, %arg4: memref<1x32xf32, #tpu.memory_space<vmem>>, %arg5: memref<1x32xf32, #tpu.memory_space<vmem>>, %arg6: memref<32x32xf32, #tpu.memory_space<vmem>>, %arg7: memref<1x32xf32, #tpu.memory_space<vmem>>, %arg8: memref<32x32xf32, #tpu.memory_space<vmem>>) attributes {dimension_semantics = [#tpu.dimension_semantics<parallel>], iteration_bounds = array<i64: 1>, scalar_prefetch = 0 : i64, scratch_operands = 0 : i64, tpu.core_type = #tpu.core_type<tc>, window_params = [{transform_indices = @transform_0, window_bounds = array<i64: 32, 32>}, {pipeline_mode = #tpu.pipeline_mode<synchronous>, transform_indices = @transform_1, window_bounds = array<i64: 1, 32>}, {pipeline_mode = #tpu.pipeline_mode<synchronous>, transform_indices = @transform_2, window_bounds = array<i64: 32, 32>}, {pipeline_mode = #tpu.pipeline_mode<synchronous>, transform_indices = @transform_3, window_bounds = array<i64: 1, 32>}, {pipeline_mode = #tpu.pipeline_mode<synchronous>, transform_indices = @transform_4, window_bounds = array<i64: 1, 32>}, {pipeline_mode = #tpu.pipeline_mode<synchronous>, transform_indices = @transform_5, window_bounds = array<i64: 32, 32>}, {pipeline_mode = #tpu.pipeline_mode<synchronous>, transform_indices = @transform_6, window_bounds = array<i64: 1, 32>}, {transform_indices = @transform_7, window_bounds = array<i64: 32, 32>}]} {
    %c0 = arith.constant 0 : index
    %c0_0 = arith.constant 0 : index
    %0 = vector.load %arg1[%c0, %c0_0] : memref<32x32xf32, #tpu.memory_space<vmem>>, vector<32x32xf32>
    %1 = arith.mulf %0, %0 : vector<32x32xf32>
    %cst = arith.constant dense<0.000000e+00> : vector<32xf32>
    %2 = vector.multi_reduction <add>, %1, %cst [1] : vector<32x32xf32> to vector<32xf32>
    %3 = vector.shape_cast %2 : vector<32xf32> to vector<32x1xf32>
    %cst_1 = arith.constant 3.200000e+01 : f32
    %4 = vector.broadcast %cst_1 : f32 to vector<32x1xf32>
    %5 = arith.divf %3, %4 : vector<32x1xf32>
    %cst_2 = arith.constant 9.99999997E-7 : f32
    %6 = vector.broadcast %cst_2 : f32 to vector<32x1xf32>
    %7 = arith.addf %5, %6 : vector<32x1xf32>
    %8 = math.rsqrt %7 : vector<32x1xf32>
    %9 = vector.broadcast %8 : vector<32x1xf32> to vector<32x32xf32>
    %10 = arith.mulf %0, %9 : vector<32x32xf32>
    %c0_3 = arith.constant 0 : index
    %c0_4 = arith.constant 0 : index
    %11 = vector.load %arg2[%c0_3, %c0_4] : memref<1x32xf32, #tpu.memory_space<vmem>>, vector<1x32xf32>
    %12 = vector.broadcast %11 : vector<1x32xf32> to vector<32x32xf32>
    %13 = arith.mulf %10, %12 : vector<32x32xf32>
    %14 = arith.truncf %13 : vector<32x32xf32> to vector<32x32xbf16>
    %c0_5 = arith.constant 0 : index
    %c0_6 = arith.constant 0 : index
    %15 = vector.load %arg3[%c0_5, %c0_6] : memref<32x32xf32, #tpu.memory_space<vmem>>, vector<32x32xf32>
    %16 = arith.truncf %15 : vector<32x32xf32> to vector<32x32xbf16>
    %cst_7 = arith.constant dense<0.000000e+00> : vector<32x32xf32>
    %17 = tpu.matmul %14, %16, %cst_7 {dimension_numbers = #tpu.dot_dimension_numbers<[1], [0], [0], [1], [0, 0, 1, 1], [], []>} : vector<32x32xbf16>, vector<32x32xbf16>, vector<32x32xf32> -> vector<32x32xf32>
    %c0_8 = arith.constant 0 : index
    %c0_9 = arith.constant 0 : index
    %18 = vector.load %arg4[%c0_8, %c0_9] : memref<1x32xf32, #tpu.memory_space<vmem>>, vector<1x32xf32>
    %19 = vector.broadcast %18 : vector<1x32xf32> to vector<32x32xf32>
    %20 = arith.addf %17, %19 : vector<32x32xf32>
    %cst_10 = arith.constant 5.000000e-01 : f32
    %21 = vector.broadcast %cst_10 : f32 to vector<32x32xf32>
    %22 = arith.mulf %21, %20 : vector<32x32xf32>
    %cst_11 = arith.constant 0.707106769 : f32
    %23 = vector.broadcast %cst_11 : f32 to vector<32x32xf32>
    %24 = arith.mulf %20, %23 : vector<32x32xf32>
    %cst_12 = arith.constant 0.000000e+00 : f32
    %25 = vector.broadcast %cst_12 : f32 to vector<32x32xf32>
    %26 = arith.cmpf oge, %24, %25 : vector<32x32xf32>
    %cst_13 = arith.constant 1.000000e+00 : f32
    %cst_14 = arith.constant -1.000000e+00 : f32
    %27 = vector.broadcast %cst_13 : f32 to vector<32x32xf32>
    %28 = vector.broadcast %cst_14 : f32 to vector<32x32xf32>
    %29 = arith.select %26, %27, %28 : vector<32x32xi1>, vector<32x32xf32>
    %30 = math.absf %24 : vector<32x32xf32>
    %cst_15 = arith.constant 0.327591091 : f32
    %31 = vector.broadcast %cst_15 : f32 to vector<32x32xf32>
    %32 = arith.mulf %31, %30 : vector<32x32xf32>
    %cst_16 = arith.constant 1.000000e+00 : f32
    %33 = vector.broadcast %cst_16 : f32 to vector<32x32xf32>
    %34 = arith.addf %33, %32 : vector<32x32xf32>
    %cst_17 = arith.constant 1.000000e+00 : f32
    %35 = vector.broadcast %cst_17 : f32 to vector<32x32xf32>
    %36 = arith.divf %35, %34 : vector<32x32xf32>
    %cst_18 = arith.constant 1.06140542 : f32
    %37 = vector.broadcast %cst_18 : f32 to vector<32x32xf32>
    %38 = arith.mulf %37, %36 : vector<32x32xf32>
    %cst_19 = arith.constant -1.45315206 : f32
    %39 = vector.broadcast %cst_19 : f32 to vector<32x32xf32>
    %40 = arith.addf %38, %39 : vector<32x32xf32>
    %41 = arith.mulf %40, %36 : vector<32x32xf32>
    %cst_20 = arith.constant 1.42141378 : f32
    %42 = vector.broadcast %cst_20 : f32 to vector<32x32xf32>
    %43 = arith.addf %41, %42 : vector<32x32xf32>
    %44 = arith.mulf %43, %36 : vector<32x32xf32>
    %cst_21 = arith.constant -0.284496725 : f32
    %45 = vector.broadcast %cst_21 : f32 to vector<32x32xf32>
    %46 = arith.addf %44, %45 : vector<32x32xf32>
    %47 = arith.mulf %46, %36 : vector<32x32xf32>
    %cst_22 = arith.constant 0.254829586 : f32
    %48 = vector.broadcast %cst_22 : f32 to vector<32x32xf32>
    %49 = arith.addf %47, %48 : vector<32x32xf32>
    %50 = arith.mulf %49, %36 : vector<32x32xf32>
    %cst_23 = arith.constant 0.000000e+00 : f32
    %51 = vector.broadcast %cst_23 : f32 to vector<32x32xf32>
    %52 = arith.subf %51, %30 : vector<32x32xf32>
    %53 = arith.mulf %52, %30 : vector<32x32xf32>
    %54 = math.exp %53 : vector<32x32xf32>
    %55 = arith.mulf %50, %54 : vector<32x32xf32>
    %cst_24 = arith.constant 1.000000e+00 : f32
    %56 = vector.broadcast %cst_24 : f32 to vector<32x32xf32>
    %57 = arith.subf %56, %55 : vector<32x32xf32>
    %58 = arith.mulf %29, %57 : vector<32x32xf32>
    %cst_25 = arith.constant 1.000000e+00 : f32
    %59 = vector.broadcast %cst_25 : f32 to vector<32x32xf32>
    %60 = arith.addf %59, %58 : vector<32x32xf32>
    %61 = arith.mulf %22, %60 : vector<32x32xf32>
    %62 = arith.mulf %61, %61 : vector<32x32xf32>
    %cst_26 = arith.constant dense<0.000000e+00> : vector<32xf32>
    %63 = vector.multi_reduction <add>, %62, %cst_26 [1] : vector<32x32xf32> to vector<32xf32>
    %64 = vector.shape_cast %63 : vector<32xf32> to vector<32x1xf32>
    %cst_27 = arith.constant 3.200000e+01 : f32
    %65 = vector.broadcast %cst_27 : f32 to vector<32x1xf32>
    %66 = arith.divf %64, %65 : vector<32x1xf32>
    %cst_28 = arith.constant 9.99999997E-7 : f32
    %67 = vector.broadcast %cst_28 : f32 to vector<32x1xf32>
    %68 = arith.addf %66, %67 : vector<32x1xf32>
    %69 = math.rsqrt %68 : vector<32x1xf32>
    %70 = vector.broadcast %69 : vector<32x1xf32> to vector<32x32xf32>
    %71 = arith.mulf %61, %70 : vector<32x32xf32>
    %c0_29 = arith.constant 0 : index
    %c0_30 = arith.constant 0 : index
    %72 = vector.load %arg5[%c0_29, %c0_30] : memref<1x32xf32, #tpu.memory_space<vmem>>, vector<1x32xf32>
    %73 = vector.broadcast %72 : vector<1x32xf32> to vector<32x32xf32>
    %74 = arith.mulf %71, %73 : vector<32x32xf32>
    %75 = arith.truncf %74 : vector<32x32xf32> to vector<32x32xbf16>
    %c0_31 = arith.constant 0 : index
    %c0_32 = arith.constant 0 : index
    %76 = vector.load %arg6[%c0_31, %c0_32] : memref<32x32xf32, #tpu.memory_space<vmem>>, vector<32x32xf32>
    %77 = arith.truncf %76 : vector<32x32xf32> to vector<32x32xbf16>
    %cst_33 = arith.constant dense<0.000000e+00> : vector<32x32xf32>
    %78 = tpu.matmul %75, %77, %cst_33 {dimension_numbers = #tpu.dot_dimension_numbers<[1], [0], [0], [1], [0, 0, 1, 1], [], []>} : vector<32x32xbf16>, vector<32x32xbf16>, vector<32x32xf32> -> vector<32x32xf32>
    %c0_34 = arith.constant 0 : index
    %c0_35 = arith.constant 0 : index
    %79 = vector.load %arg7[%c0_34, %c0_35] : memref<1x32xf32, #tpu.memory_space<vmem>>, vector<1x32xf32>
    %80 = vector.broadcast %79 : vector<1x32xf32> to vector<32x32xf32>
    %81 = arith.addf %78, %80 : vector<32x32xf32>
    %82 = arith.addf %81, %0 : vector<32x32xf32>
    %c0_36 = arith.constant 0 : index
    %c0_37 = arith.constant 0 : index
    %83 = vector.load %arg8[%c0_36, %c0_37] : memref<32x32xf32, #tpu.memory_space<vmem>>, vector<32x32xf32>
    tpu.vector_store %arg8[%c0_36, %c0_37], %82 {strides = array<i32>} : memref<32x32xf32, #tpu.memory_space<vmem>>, vector<32x32xf32>,
    return
  }
  func.func @transform_0(%arg0: i32) -> (i32, i32) {
    %c0_i32 = arith.constant 0 : i32
    %c0_i32_0 = arith.constant 0 : i32
    return %arg0, %c0_i32 : i32, i32
  }
  func.func @transform_1(%arg0: i32) -> (i32, i32) {
    %c0_i32 = arith.constant 0 : i32
    %c0_i32_0 = arith.constant 0 : i32
    %c0_i32_1 = arith.constant 0 : i32
    return %c0_i32, %c0_i32_0 : i32, i32
  }
  func.func @transform_2(%arg0: i32) -> (i32, i32) {
    %c0_i32 = arith.constant 0 : i32
    %c0_i32_0 = arith.constant 0 : i32
    %c0_i32_1 = arith.constant 0 : i32
    return %c0_i32, %c0_i32_0 : i32, i32
  }
  func.func @transform_3(%arg0: i32) -> (i32, i32) {
    %c0_i32 = arith.constant 0 : i32
    %c0_i32_0 = arith.constant 0 : i32
    %c0_i32_1 = arith.constant 0 : i32
    return %c0_i32, %c0_i32_0 : i32, i32
  }
  func.func @transform_4(%arg0: i32) -> (i32, i32) {
    %c0_i32 = arith.constant 0 : i32
    %c0_i32_0 = arith.constant 0 : i32
    %c0_i32_1 = arith.constant 0 : i32
    return %c0_i32, %c0_i32_0 : i32, i32
  }
  func.func @transform_5(%arg0: i32) -> (i32, i32) {
    %c0_i32 = arith.constant 0 : i32
    %c0_i32_0 = arith.constant 0 : i32
    %c0_i32_1 = arith.constant 0 : i32
    return %c0_i32, %c0_i32_0 : i32, i32
  }
  func.func @transform_6(%arg0: i32) -> (i32, i32) {
    %c0_i32 = arith.constant 0 : i32
    %c0_i32_0 = arith.constant 0 : i32
    %c0_i32_1 = arith.constant 0 : i32
    return %c0_i32, %c0_i32_0 : i32, i32
  }
  func.func @transform_7(%arg0: i32) -> (i32, i32) {
    %c0_i32 = arith.constant 0 : i32
    %c0_i32_0 = arith.constant 0 : i32
    return %arg0, %c0_i32 : i32, i32
  }
}

module attributes {stable_mosaic.version = 11 : i64} {
  func.func @_mean_tokens_kernel(%arg0: i32, %arg1: memref<4x8x32xf32, #tpu.memory_space<vmem>>, %arg2: memref<4x32xf32, #tpu.memory_space<vmem>>) attributes {dimension_semantics = [#tpu.dimension_semantics<parallel>], iteration_bounds = array<i64: 1>, scalar_prefetch = 0 : i64, scratch_operands = 0 : i64, tpu.core_type = #tpu.core_type<tc>, window_params = [{transform_indices = @transform_0, window_bounds = array<i64: 4, 8, 32>}, {transform_indices = @transform_1, window_bounds = array<i64: 4, 32>}]} {
    %c0 = arith.constant 0 : index
    %c0_0 = arith.constant 0 : index
    %c0_1 = arith.constant 0 : index
    %0 = vector.load %arg1[%c0, %c0_0, %c0_1] : memref<4x8x32xf32, #tpu.memory_space<vmem>>, vector<4x8x32xf32>
    %cst = arith.constant dense<0.000000e+00> : vector<4x32xf32>
    %1 = vector.multi_reduction <add>, %0, %cst [1] : vector<4x8x32xf32> to vector<4x32xf32>
    %cst_2 = arith.constant 8.000000e+00 : f32
    %2 = vector.broadcast %cst_2 : f32 to vector<4x32xf32>
    %3 = arith.divf %1, %2 : vector<4x32xf32>
    %c0_3 = arith.constant 0 : index
    %c0_4 = arith.constant 0 : index
    %4 = vector.load %arg2[%c0_3, %c0_4] : memref<4x32xf32, #tpu.memory_space<vmem>>, vector<4x32xf32>
    tpu.vector_store %arg2[%c0_3, %c0_4], %3 {strides = array<i32>} : memref<4x32xf32, #tpu.memory_space<vmem>>, vector<4x32xf32>,
    return
  }
  func.func @transform_0(%arg0: i32) -> (i32, i32, i32) {
    %c0_i32 = arith.constant 0 : i32
    %c0_i32_0 = arith.constant 0 : i32
    %c0_i32_1 = arith.constant 0 : i32
    return %arg0, %c0_i32, %c0_i32_0 : i32, i32, i32
  }
  func.func @transform_1(%arg0: i32) -> (i32, i32) {
    %c0_i32 = arith.constant 0 : i32
    %c0_i32_0 = arith.constant 0 : i32
    return %arg0, %c0_i32 : i32, i32
  }
}

module attributes {stable_mosaic.version = 11 : i64} {
  func.func @_norm_linear_kernel(%arg0: i32, %arg1: memref<4x64xf32, #tpu.memory_space<vmem>>, %arg2: memref<1x64xf32, #tpu.memory_space<vmem>>, %arg3: memref<64x64xf32, #tpu.memory_space<vmem>>, %arg4: memref<1x64xf32, #tpu.memory_space<vmem>>, %arg5: memref<4x64xf32, #tpu.memory_space<vmem>>) attributes {dimension_semantics = [#tpu.dimension_semantics<parallel>], iteration_bounds = array<i64: 1>, scalar_prefetch = 0 : i64, scratch_operands = 0 : i64, tpu.core_type = #tpu.core_type<tc>, window_params = [{transform_indices = @transform_0, window_bounds = array<i64: 4, 64>}, {pipeline_mode = #tpu.pipeline_mode<synchronous>, transform_indices = @transform_1, window_bounds = array<i64: 1, 64>}, {pipeline_mode = #tpu.pipeline_mode<synchronous>, transform_indices = @transform_2, window_bounds = array<i64: 64, 64>}, {pipeline_mode = #tpu.pipeline_mode<synchronous>, transform_indices = @transform_3, window_bounds = array<i64: 1, 64>}, {transform_indices = @transform_4, window_bounds = array<i64: 4, 64>}]} {
    %c0 = arith.constant 0 : index
    %c0_0 = arith.constant 0 : index
    %0 = vector.load %arg1[%c0, %c0_0] : memref<4x64xf32, #tpu.memory_space<vmem>>, vector<4x64xf32>
    %1 = arith.mulf %0, %0 : vector<4x64xf32>
    %cst = arith.constant dense<0.000000e+00> : vector<4xf32>
    %2 = vector.multi_reduction <add>, %1, %cst [1] : vector<4x64xf32> to vector<4xf32>
    %3 = vector.shape_cast %2 : vector<4xf32> to vector<4x1xf32>
    %cst_1 = arith.constant 6.400000e+01 : f32
    %4 = vector.broadcast %cst_1 : f32 to vector<4x1xf32>
    %5 = arith.divf %3, %4 : vector<4x1xf32>
    %cst_2 = arith.constant 9.99999997E-7 : f32
    %6 = vector.broadcast %cst_2 : f32 to vector<4x1xf32>
    %7 = arith.addf %5, %6 : vector<4x1xf32>
    %8 = math.rsqrt %7 : vector<4x1xf32>
    %9 = vector.broadcast %8 : vector<4x1xf32> to vector<4x64xf32>
    %10 = arith.mulf %0, %9 : vector<4x64xf32>
    %c0_3 = arith.constant 0 : index
    %c0_4 = arith.constant 0 : index
    %11 = vector.load %arg2[%c0_3, %c0_4] : memref<1x64xf32, #tpu.memory_space<vmem>>, vector<1x64xf32>
    %12 = vector.broadcast %11 : vector<1x64xf32> to vector<4x64xf32>
    %13 = arith.mulf %10, %12 : vector<4x64xf32>
    %14 = arith.truncf %13 : vector<4x64xf32> to vector<4x64xbf16>
    %c0_5 = arith.constant 0 : index
    %c0_6 = arith.constant 0 : index
    %15 = vector.load %arg3[%c0_5, %c0_6] : memref<64x64xf32, #tpu.memory_space<vmem>>, vector<64x64xf32>
    %16 = arith.truncf %15 : vector<64x64xf32> to vector<64x64xbf16>
    %cst_7 = arith.constant dense<0.000000e+00> : vector<4x64xf32>
    %17 = tpu.matmul %14, %16, %cst_7 {dimension_numbers = #tpu.dot_dimension_numbers<[1], [0], [0], [1], [0, 0, 1, 1], [], []>} : vector<4x64xbf16>, vector<64x64xbf16>, vector<4x64xf32> -> vector<4x64xf32>
    %c0_8 = arith.constant 0 : index
    %c0_9 = arith.constant 0 : index
    %18 = vector.load %arg4[%c0_8, %c0_9] : memref<1x64xf32, #tpu.memory_space<vmem>>, vector<1x64xf32>
    %19 = vector.broadcast %18 : vector<1x64xf32> to vector<4x64xf32>
    %20 = arith.addf %17, %19 : vector<4x64xf32>
    %c0_10 = arith.constant 0 : index
    %c0_11 = arith.constant 0 : index
    %21 = vector.load %arg5[%c0_10, %c0_11] : memref<4x64xf32, #tpu.memory_space<vmem>>, vector<4x64xf32>
    tpu.vector_store %arg5[%c0_10, %c0_11], %20 {strides = array<i32>} : memref<4x64xf32, #tpu.memory_space<vmem>>, vector<4x64xf32>,
    return
  }
  func.func @transform_0(%arg0: i32) -> (i32, i32) {
    %c0_i32 = arith.constant 0 : i32
    %c0_i32_0 = arith.constant 0 : i32
    return %arg0, %c0_i32 : i32, i32
  }
  func.func @transform_1(%arg0: i32) -> (i32, i32) {
    %c0_i32 = arith.constant 0 : i32
    %c0_i32_0 = arith.constant 0 : i32
    %c0_i32_1 = arith.constant 0 : i32
    return %c0_i32, %c0_i32_0 : i32, i32
  }
  func.func @transform_2(%arg0: i32) -> (i32, i32) {
    %c0_i32 = arith.constant 0 : i32
    %c0_i32_0 = arith.constant 0 : i32
    %c0_i32_1 = arith.constant 0 : i32
    return %c0_i32, %c0_i32_0 : i32, i32
  }
  func.func @transform_3(%arg0: i32) -> (i32, i32) {
    %c0_i32 = arith.constant 0 : i32
    %c0_i32_0 = arith.constant 0 : i32
    %c0_i32_1 = arith.constant 0 : i32
    return %c0_i32, %c0_i32_0 : i32, i32
  }
  func.func @transform_4(%arg0: i32) -> (i32, i32) {
    %c0_i32 = arith.constant 0 : i32
    %c0_i32_0 = arith.constant 0 : i32
    return %arg0, %c0_i32 : i32, i32
  }
}

module attributes {stable_mosaic.version = 11 : i64} {
  func.func @_norm_linear_kernel(%arg0: i32, %arg1: memref<4x64xf32, #tpu.memory_space<vmem>>, %arg2: memref<1x64xf32, #tpu.memory_space<vmem>>, %arg3: memref<64x192xf32, #tpu.memory_space<vmem>>, %arg4: memref<1x192xf32, #tpu.memory_space<vmem>>, %arg5: memref<4x192xf32, #tpu.memory_space<vmem>>) attributes {dimension_semantics = [#tpu.dimension_semantics<parallel>], iteration_bounds = array<i64: 1>, scalar_prefetch = 0 : i64, scratch_operands = 0 : i64, tpu.core_type = #tpu.core_type<tc>, window_params = [{transform_indices = @transform_0, window_bounds = array<i64: 4, 64>}, {pipeline_mode = #tpu.pipeline_mode<synchronous>, transform_indices = @transform_1, window_bounds = array<i64: 1, 64>}, {pipeline_mode = #tpu.pipeline_mode<synchronous>, transform_indices = @transform_2, window_bounds = array<i64: 64, 192>}, {pipeline_mode = #tpu.pipeline_mode<synchronous>, transform_indices = @transform_3, window_bounds = array<i64: 1, 192>}, {transform_indices = @transform_4, window_bounds = array<i64: 4, 192>}]} {
    %c0 = arith.constant 0 : index
    %c0_0 = arith.constant 0 : index
    %0 = vector.load %arg1[%c0, %c0_0] : memref<4x64xf32, #tpu.memory_space<vmem>>, vector<4x64xf32>
    %1 = arith.truncf %0 : vector<4x64xf32> to vector<4x64xbf16>
    %c0_1 = arith.constant 0 : index
    %c0_2 = arith.constant 0 : index
    %2 = vector.load %arg3[%c0_1, %c0_2] : memref<64x192xf32, #tpu.memory_space<vmem>>, vector<64x192xf32>
    %3 = arith.truncf %2 : vector<64x192xf32> to vector<64x192xbf16>
    %cst = arith.constant dense<0.000000e+00> : vector<4x192xf32>
    %4 = tpu.matmul %1, %3, %cst {dimension_numbers = #tpu.dot_dimension_numbers<[1], [0], [0], [1], [0, 0, 1, 1], [], []>} : vector<4x64xbf16>, vector<64x192xbf16>, vector<4x192xf32> -> vector<4x192xf32>
    %c0_3 = arith.constant 0 : index
    %c0_4 = arith.constant 0 : index
    %5 = vector.load %arg4[%c0_3, %c0_4] : memref<1x192xf32, #tpu.memory_space<vmem>>, vector<1x192xf32>
    %6 = vector.broadcast %5 : vector<1x192xf32> to vector<4x192xf32>
    %7 = arith.addf %4, %6 : vector<4x192xf32>
    %c0_5 = arith.constant 0 : index
    %c0_6 = arith.constant 0 : index
    %8 = vector.load %arg5[%c0_5, %c0_6] : memref<4x192xf32, #tpu.memory_space<vmem>>, vector<4x192xf32>
    tpu.vector_store %arg5[%c0_5, %c0_6], %7 {strides = array<i32>} : memref<4x192xf32, #tpu.memory_space<vmem>>, vector<4x192xf32>,
    return
  }
  func.func @transform_0(%arg0: i32) -> (i32, i32) {
    %c0_i32 = arith.constant 0 : i32
    %c0_i32_0 = arith.constant 0 : i32
    return %arg0, %c0_i32 : i32, i32
  }
  func.func @transform_1(%arg0: i32) -> (i32, i32) {
    %c0_i32 = arith.constant 0 : i32
    %c0_i32_0 = arith.constant 0 : i32
    %c0_i32_1 = arith.constant 0 : i32
    return %c0_i32, %c0_i32_0 : i32, i32
  }
  func.func @transform_2(%arg0: i32) -> (i32, i32) {
    %c0_i32 = arith.constant 0 : i32
    %c0_i32_0 = arith.constant 0 : i32
    %c0_i32_1 = arith.constant 0 : i32
    return %c0_i32, %c0_i32_0 : i32, i32
  }
  func.func @transform_3(%arg0: i32) -> (i32, i32) {
    %c0_i32 = arith.constant 0 : i32
    %c0_i32_0 = arith.constant 0 : i32
    %c0_i32_1 = arith.constant 0 : i32
    return %c0_i32, %c0_i32_0 : i32, i32
  }
  func.func @transform_4(%arg0: i32) -> (i32, i32) {
    %c0_i32 = arith.constant 0 : i32
    %c0_i32_0 = arith.constant 0 : i32
    return %arg0, %c0_i32 : i32, i32
  }
}

module attributes {stable_mosaic.version = 11 : i64} {
  func.func @_mha_kernel(%arg0: i32, %arg1: memref<1x1x64xf32, #tpu.memory_space<vmem>>, %arg2: memref<1x2x64xf32, #tpu.memory_space<vmem>>, %arg3: memref<1x2x64xf32, #tpu.memory_space<vmem>>, %arg4: memref<1x1x64xf32, #tpu.memory_space<vmem>>) attributes {dimension_semantics = [#tpu.dimension_semantics<parallel>], iteration_bounds = array<i64: 2>, scalar_prefetch = 0 : i64, scratch_operands = 0 : i64, tpu.core_type = #tpu.core_type<tc>, window_params = [{transform_indices = @transform_0, window_bounds = array<i64: 1, 1, 64>}, {transform_indices = @transform_1, window_bounds = array<i64: 1, 2, 64>}, {transform_indices = @transform_2, window_bounds = array<i64: 1, 2, 64>}, {transform_indices = @transform_3, window_bounds = array<i64: 1, 1, 64>}]} {
    %c0 = arith.constant 0 : index
    %c0_0 = arith.constant 0 : index
    %c0_1 = arith.constant 0 : index
    %0 = vector.load %arg1[%c0, %c0_0, %c0_1] : memref<1x1x64xf32, #tpu.memory_space<vmem>>, vector<1x1x64xf32>
    %1 = vector.shape_cast %0 : vector<1x1x64xf32> to vector<1x64xf32>
    %c0_2 = arith.constant 0 : index
    %c0_3 = arith.constant 0 : index
    %c0_4 = arith.constant 0 : index
    %2 = vector.load %arg2[%c0_2, %c0_3, %c0_4] : memref<1x2x64xf32, #tpu.memory_space<vmem>>, vector<1x2x64xf32>
    %3 = vector.shape_cast %2 : vector<1x2x64xf32> to vector<2x64xf32>
    %c0_5 = arith.constant 0 : index
    %c0_6 = arith.constant 0 : index
    %c0_7 = arith.constant 0 : index
    %4 = vector.load %arg3[%c0_5, %c0_6, %c0_7] : memref<1x2x64xf32, #tpu.memory_space<vmem>>, vector<1x2x64xf32>
    %5 = vector.shape_cast %4 : vector<1x2x64xf32> to vector<2x64xf32>
    %6 = vector.extract_strided_slice %1 {offsets = [0, 0], sizes = [1, 16], strides = [1, 1]} : vector<1x64xf32> to vector<1x16xf32>
    %7 = vector.extract_strided_slice %3 {offsets = [0, 0], sizes = [2, 16], strides = [1, 1]} : vector<2x64xf32> to vector<2x16xf32>
    %8 = vector.extract_strided_slice %5 {offsets = [0, 0], sizes = [2, 16], strides = [1, 1]} : vector<2x64xf32> to vector<2x16xf32>
    %9 = arith.truncf %6 : vector<1x16xf32> to vector<1x16xbf16>
    %10 = arith.truncf %7 : vector<2x16xf32> to vector<2x16xbf16>
    %cst = arith.constant dense<0.000000e+00> : vector<1x2xf32>
    %11 = tpu.matmul %9, %10, %cst {dimension_numbers = #tpu.dot_dimension_numbers<[1], [1], [0], [0], [0, 0, 1, 0], [], []>} : vector<1x16xbf16>, vector<2x16xbf16>, vector<1x2xf32> -> vector<1x2xf32>
    %cst_8 = arith.constant 2.500000e-01 : f32
    %12 = vector.broadcast %cst_8 : f32 to vector<1x2xf32>
    %13 = arith.mulf %11, %12 : vector<1x2xf32>
    %cst_9 = arith.constant dense<0xFF800000> : vector<1xf32>
    %14 = vector.multi_reduction <maximumf>, %13, %cst_9 [1] : vector<1x2xf32> to vector<1xf32>
    %15 = vector.shape_cast %14 : vector<1xf32> to vector<1x1xf32>
    %16 = vector.broadcast %15 : vector<1x1xf32> to vector<1x2xf32>
    %17 = arith.subf %13, %16 : vector<1x2xf32>
    %18 = math.exp %17 : vector<1x2xf32>
    %cst_10 = arith.constant dense<0.000000e+00> : vector<1xf32>
    %19 = vector.multi_reduction <add>, %18, %cst_10 [1] : vector<1x2xf32> to vector<1xf32>
    %20 = vector.shape_cast %19 : vector<1xf32> to vector<1x1xf32>
    %21 = tpu.reciprocal %20 {approx = true} : vector<1x1xf32> -> vector<1x1xf32>
    %22 = arith.truncf %18 : vector<1x2xf32> to vector<1x2xbf16>
    %23 = arith.truncf %8 : vector<2x16xf32> to vector<2x16xbf16>
    %cst_11 = arith.constant dense<0.000000e+00> : vector<1x16xf32>
    %24 = tpu.matmul %22, %23, %cst_11 {dimension_numbers = #tpu.dot_dimension_numbers<[1], [0], [0], [1], [0, 0, 1, 1], [], []>} : vector<1x2xbf16>, vector<2x16xbf16>, vector<1x16xf32> -> vector<1x16xf32>
    %25 = vector.broadcast %21 : vector<1x1xf32> to vector<1x16xf32>
    %26 = arith.mulf %24, %25 : vector<1x16xf32>
    %27 = vector.extract_strided_slice %1 {offsets = [0, 16], sizes = [1, 16], strides = [1, 1]} : vector<1x64xf32> to vector<1x16xf32>
    %28 = vector.extract_strided_slice %3 {offsets = [0, 16], sizes = [2, 16], strides = [1, 1]} : vector<2x64xf32> to vector<2x16xf32>
    %29 = vector.extract_strided_slice %5 {offsets = [0, 16], sizes = [2, 16], strides = [1, 1]} : vector<2x64xf32> to vector<2x16xf32>
    %30 = arith.truncf %27 : vector<1x16xf32> to vector<1x16xbf16>
    %31 = arith.truncf %28 : vector<2x16xf32> to vector<2x16xbf16>
    %cst_12 = arith.constant dense<0.000000e+00> : vector<1x2xf32>
    %32 = tpu.matmul %30, %31, %cst_12 {dimension_numbers = #tpu.dot_dimension_numbers<[1], [1], [0], [0], [0, 0, 1, 0], [], []>} : vector<1x16xbf16>, vector<2x16xbf16>, vector<1x2xf32> -> vector<1x2xf32>
    %cst_13 = arith.constant 2.500000e-01 : f32
    %33 = vector.broadcast %cst_13 : f32 to vector<1x2xf32>
    %34 = arith.mulf %32, %33 : vector<1x2xf32>
    %cst_14 = arith.constant dense<0xFF800000> : vector<1xf32>
    %35 = vector.multi_reduction <maximumf>, %34, %cst_14 [1] : vector<1x2xf32> to vector<1xf32>
    %36 = vector.shape_cast %35 : vector<1xf32> to vector<1x1xf32>
    %37 = vector.broadcast %36 : vector<1x1xf32> to vector<1x2xf32>
    %38 = arith.subf %34, %37 : vector<1x2xf32>
    %39 = math.exp %38 : vector<1x2xf32>
    %cst_15 = arith.constant dense<0.000000e+00> : vector<1xf32>
    %40 = vector.multi_reduction <add>, %39, %cst_15 [1] : vector<1x2xf32> to vector<1xf32>
    %41 = vector.shape_cast %40 : vector<1xf32> to vector<1x1xf32>
    %42 = tpu.reciprocal %41 {approx = true} : vector<1x1xf32> -> vector<1x1xf32>
    %43 = arith.truncf %39 : vector<1x2xf32> to vector<1x2xbf16>
    %44 = arith.truncf %29 : vector<2x16xf32> to vector<2x16xbf16>
    %cst_16 = arith.constant dense<0.000000e+00> : vector<1x16xf32>
    %45 = tpu.matmul %43, %44, %cst_16 {dimension_numbers = #tpu.dot_dimension_numbers<[1], [0], [0], [1], [0, 0, 1, 1], [], []>} : vector<1x2xbf16>, vector<2x16xbf16>, vector<1x16xf32> -> vector<1x16xf32>
    %46 = vector.broadcast %42 : vector<1x1xf32> to vector<1x16xf32>
    %47 = arith.mulf %45, %46 : vector<1x16xf32>
    %48 = vector.extract_strided_slice %1 {offsets = [0, 32], sizes = [1, 16], strides = [1, 1]} : vector<1x64xf32> to vector<1x16xf32>
    %49 = vector.extract_strided_slice %3 {offsets = [0, 32], sizes = [2, 16], strides = [1, 1]} : vector<2x64xf32> to vector<2x16xf32>
    %50 = vector.extract_strided_slice %5 {offsets = [0, 32], sizes = [2, 16], strides = [1, 1]} : vector<2x64xf32> to vector<2x16xf32>
    %51 = arith.truncf %48 : vector<1x16xf32> to vector<1x16xbf16>
    %52 = arith.truncf %49 : vector<2x16xf32> to vector<2x16xbf16>
    %cst_17 = arith.constant dense<0.000000e+00> : vector<1x2xf32>
    %53 = tpu.matmul %51, %52, %cst_17 {dimension_numbers = #tpu.dot_dimension_numbers<[1], [1], [0], [0], [0, 0, 1, 0], [], []>} : vector<1x16xbf16>, vector<2x16xbf16>, vector<1x2xf32> -> vector<1x2xf32>
    %cst_18 = arith.constant 2.500000e-01 : f32
    %54 = vector.broadcast %cst_18 : f32 to vector<1x2xf32>
    %55 = arith.mulf %53, %54 : vector<1x2xf32>
    %cst_19 = arith.constant dense<0xFF800000> : vector<1xf32>
    %56 = vector.multi_reduction <maximumf>, %55, %cst_19 [1] : vector<1x2xf32> to vector<1xf32>
    %57 = vector.shape_cast %56 : vector<1xf32> to vector<1x1xf32>
    %58 = vector.broadcast %57 : vector<1x1xf32> to vector<1x2xf32>
    %59 = arith.subf %55, %58 : vector<1x2xf32>
    %60 = math.exp %59 : vector<1x2xf32>
    %cst_20 = arith.constant dense<0.000000e+00> : vector<1xf32>
    %61 = vector.multi_reduction <add>, %60, %cst_20 [1] : vector<1x2xf32> to vector<1xf32>
    %62 = vector.shape_cast %61 : vector<1xf32> to vector<1x1xf32>
    %63 = tpu.reciprocal %62 {approx = true} : vector<1x1xf32> -> vector<1x1xf32>
    %64 = arith.truncf %60 : vector<1x2xf32> to vector<1x2xbf16>
    %65 = arith.truncf %50 : vector<2x16xf32> to vector<2x16xbf16>
    %cst_21 = arith.constant dense<0.000000e+00> : vector<1x16xf32>
    %66 = tpu.matmul %64, %65, %cst_21 {dimension_numbers = #tpu.dot_dimension_numbers<[1], [0], [0], [1], [0, 0, 1, 1], [], []>} : vector<1x2xbf16>, vector<2x16xbf16>, vector<1x16xf32> -> vector<1x16xf32>
    %67 = vector.broadcast %63 : vector<1x1xf32> to vector<1x16xf32>
    %68 = arith.mulf %66, %67 : vector<1x16xf32>
    %69 = vector.extract_strided_slice %1 {offsets = [0, 48], sizes = [1, 16], strides = [1, 1]} : vector<1x64xf32> to vector<1x16xf32>
    %70 = vector.extract_strided_slice %3 {offsets = [0, 48], sizes = [2, 16], strides = [1, 1]} : vector<2x64xf32> to vector<2x16xf32>
    %71 = vector.extract_strided_slice %5 {offsets = [0, 48], sizes = [2, 16], strides = [1, 1]} : vector<2x64xf32> to vector<2x16xf32>
    %72 = arith.truncf %69 : vector<1x16xf32> to vector<1x16xbf16>
    %73 = arith.truncf %70 : vector<2x16xf32> to vector<2x16xbf16>
    %cst_22 = arith.constant dense<0.000000e+00> : vector<1x2xf32>
    %74 = tpu.matmul %72, %73, %cst_22 {dimension_numbers = #tpu.dot_dimension_numbers<[1], [1], [0], [0], [0, 0, 1, 0], [], []>} : vector<1x16xbf16>, vector<2x16xbf16>, vector<1x2xf32> -> vector<1x2xf32>
    %cst_23 = arith.constant 2.500000e-01 : f32
    %75 = vector.broadcast %cst_23 : f32 to vector<1x2xf32>
    %76 = arith.mulf %74, %75 : vector<1x2xf32>
    %cst_24 = arith.constant dense<0xFF800000> : vector<1xf32>
    %77 = vector.multi_reduction <maximumf>, %76, %cst_24 [1] : vector<1x2xf32> to vector<1xf32>
    %78 = vector.shape_cast %77 : vector<1xf32> to vector<1x1xf32>
    %79 = vector.broadcast %78 : vector<1x1xf32> to vector<1x2xf32>
    %80 = arith.subf %76, %79 : vector<1x2xf32>
    %81 = math.exp %80 : vector<1x2xf32>
    %cst_25 = arith.constant dense<0.000000e+00> : vector<1xf32>
    %82 = vector.multi_reduction <add>, %81, %cst_25 [1] : vector<1x2xf32> to vector<1xf32>
    %83 = vector.shape_cast %82 : vector<1xf32> to vector<1x1xf32>
    %84 = tpu.reciprocal %83 {approx = true} : vector<1x1xf32> -> vector<1x1xf32>
    %85 = arith.truncf %81 : vector<1x2xf32> to vector<1x2xbf16>
    %86 = arith.truncf %71 : vector<2x16xf32> to vector<2x16xbf16>
    %cst_26 = arith.constant dense<0.000000e+00> : vector<1x16xf32>
    %87 = tpu.matmul %85, %86, %cst_26 {dimension_numbers = #tpu.dot_dimension_numbers<[1], [0], [0], [1], [0, 0, 1, 1], [], []>} : vector<1x2xbf16>, vector<2x16xbf16>, vector<1x16xf32> -> vector<1x16xf32>
    %88 = vector.broadcast %84 : vector<1x1xf32> to vector<1x16xf32>
    %89 = arith.mulf %87, %88 : vector<1x16xf32>
    %90 = tpu.concatenate %26, %47, %68, %89 in 1 : vector<1x16xf32>, vector<1x16xf32>, vector<1x16xf32>, vector<1x16xf32> -> vector<1x64xf32>
    %c0_27 = arith.constant 0 : index
    %c0_28 = arith.constant 0 : index
    %c0_29 = arith.constant 0 : index
    %91 = vector.load %arg4[%c0_27, %c0_28, %c0_29] : memref<1x1x64xf32, #tpu.memory_space<vmem>>, vector<1x1x64xf32>
    %92 = vector.shape_cast %91 : vector<1x1x64xf32> to vector<1x64xf32>
    %93 = vector.shape_cast %90 : vector<1x64xf32> to vector<1x1x64xf32>
    tpu.vector_store %arg4[%c0_27, %c0_28, %c0_29], %93 {strides = array<i32>} : memref<1x1x64xf32, #tpu.memory_space<vmem>>, vector<1x1x64xf32>,
    return
  }
  func.func @transform_0(%arg0: i32) -> (i32, i32, i32) {
    %c0_i32 = arith.constant 0 : i32
    %c0_i32_0 = arith.constant 0 : i32
    %c0_i32_1 = arith.constant 0 : i32
    return %arg0, %c0_i32, %c0_i32_0 : i32, i32, i32
  }
  func.func @transform_1(%arg0: i32) -> (i32, i32, i32) {
    %c0_i32 = arith.constant 0 : i32
    %c0_i32_0 = arith.constant 0 : i32
    %c0_i32_1 = arith.constant 0 : i32
    return %arg0, %c0_i32, %c0_i32_0 : i32, i32, i32
  }
  func.func @transform_2(%arg0: i32) -> (i32, i32, i32) {
    %c0_i32 = arith.constant 0 : i32
    %c0_i32_0 = arith.constant 0 : i32
    %c0_i32_1 = arith.constant 0 : i32
    return %arg0, %c0_i32, %c0_i32_0 : i32, i32, i32
  }
  func.func @transform_3(%arg0: i32) -> (i32, i32, i32) {
    %c0_i32 = arith.constant 0 : i32
    %c0_i32_0 = arith.constant 0 : i32
    %c0_i32_1 = arith.constant 0 : i32
    return %arg0, %c0_i32, %c0_i32_0 : i32, i32, i32
  }
}

module attributes {stable_mosaic.version = 11 : i64} {
  func.func @_norm_linear_kernel(%arg0: i32, %arg1: memref<2x64xf32, #tpu.memory_space<vmem>>, %arg2: memref<1x64xf32, #tpu.memory_space<vmem>>, %arg3: memref<64x64xf32, #tpu.memory_space<vmem>>, %arg4: memref<1x64xf32, #tpu.memory_space<vmem>>, %arg5: memref<2x64xf32, #tpu.memory_space<vmem>>) attributes {dimension_semantics = [#tpu.dimension_semantics<parallel>], iteration_bounds = array<i64: 1>, scalar_prefetch = 0 : i64, scratch_operands = 0 : i64, tpu.core_type = #tpu.core_type<tc>, window_params = [{transform_indices = @transform_0, window_bounds = array<i64: 2, 64>}, {pipeline_mode = #tpu.pipeline_mode<synchronous>, transform_indices = @transform_1, window_bounds = array<i64: 1, 64>}, {pipeline_mode = #tpu.pipeline_mode<synchronous>, transform_indices = @transform_2, window_bounds = array<i64: 64, 64>}, {pipeline_mode = #tpu.pipeline_mode<synchronous>, transform_indices = @transform_3, window_bounds = array<i64: 1, 64>}, {transform_indices = @transform_4, window_bounds = array<i64: 2, 64>}]} {
    %c0 = arith.constant 0 : index
    %c0_0 = arith.constant 0 : index
    %0 = vector.load %arg1[%c0, %c0_0] : memref<2x64xf32, #tpu.memory_space<vmem>>, vector<2x64xf32>
    %1 = arith.truncf %0 : vector<2x64xf32> to vector<2x64xbf16>
    %c0_1 = arith.constant 0 : index
    %c0_2 = arith.constant 0 : index
    %2 = vector.load %arg3[%c0_1, %c0_2] : memref<64x64xf32, #tpu.memory_space<vmem>>, vector<64x64xf32>
    %3 = arith.truncf %2 : vector<64x64xf32> to vector<64x64xbf16>
    %cst = arith.constant dense<0.000000e+00> : vector<2x64xf32>
    %4 = tpu.matmul %1, %3, %cst {dimension_numbers = #tpu.dot_dimension_numbers<[1], [0], [0], [1], [0, 0, 1, 1], [], []>} : vector<2x64xbf16>, vector<64x64xbf16>, vector<2x64xf32> -> vector<2x64xf32>
    %c0_3 = arith.constant 0 : index
    %c0_4 = arith.constant 0 : index
    %5 = vector.load %arg4[%c0_3, %c0_4] : memref<1x64xf32, #tpu.memory_space<vmem>>, vector<1x64xf32>
    %6 = vector.broadcast %5 : vector<1x64xf32> to vector<2x64xf32>
    %7 = arith.addf %4, %6 : vector<2x64xf32>
    %c0_5 = arith.constant 0 : index
    %c0_6 = arith.constant 0 : index
    %8 = vector.load %arg5[%c0_5, %c0_6] : memref<2x64xf32, #tpu.memory_space<vmem>>, vector<2x64xf32>
    tpu.vector_store %arg5[%c0_5, %c0_6], %7 {strides = array<i32>} : memref<2x64xf32, #tpu.memory_space<vmem>>, vector<2x64xf32>,
    return
  }
  func.func @transform_0(%arg0: i32) -> (i32, i32) {
    %c0_i32 = arith.constant 0 : i32
    %c0_i32_0 = arith.constant 0 : i32
    return %arg0, %c0_i32 : i32, i32
  }
  func.func @transform_1(%arg0: i32) -> (i32, i32) {
    %c0_i32 = arith.constant 0 : i32
    %c0_i32_0 = arith.constant 0 : i32
    %c0_i32_1 = arith.constant 0 : i32
    return %c0_i32, %c0_i32_0 : i32, i32
  }
  func.func @transform_2(%arg0: i32) -> (i32, i32) {
    %c0_i32 = arith.constant 0 : i32
    %c0_i32_0 = arith.constant 0 : i32
    %c0_i32_1 = arith.constant 0 : i32
    return %c0_i32, %c0_i32_0 : i32, i32
  }
  func.func @transform_3(%arg0: i32) -> (i32, i32) {
    %c0_i32 = arith.constant 0 : i32
    %c0_i32_0 = arith.constant 0 : i32
    %c0_i32_1 = arith.constant 0 : i32
    return %c0_i32, %c0_i32_0 : i32, i32
  }
  func.func @transform_4(%arg0: i32) -> (i32, i32) {
    %c0_i32 = arith.constant 0 : i32
    %c0_i32_0 = arith.constant 0 : i32
    return %arg0, %c0_i32 : i32, i32
  }
}

module attributes {stable_mosaic.version = 11 : i64} {
  func.func @_norm_linear_kernel(%arg0: i32, %arg1: memref<2x64xf32, #tpu.memory_space<vmem>>, %arg2: memref<1x64xf32, #tpu.memory_space<vmem>>, %arg3: memref<64x64xf32, #tpu.memory_space<vmem>>, %arg4: memref<1x64xf32, #tpu.memory_space<vmem>>, %arg5: memref<2x64xf32, #tpu.memory_space<vmem>>) attributes {dimension_semantics = [#tpu.dimension_semantics<parallel>], iteration_bounds = array<i64: 1>, scalar_prefetch = 0 : i64, scratch_operands = 0 : i64, tpu.core_type = #tpu.core_type<tc>, window_params = [{transform_indices = @transform_0, window_bounds = array<i64: 2, 64>}, {pipeline_mode = #tpu.pipeline_mode<synchronous>, transform_indices = @transform_1, window_bounds = array<i64: 1, 64>}, {pipeline_mode = #tpu.pipeline_mode<synchronous>, transform_indices = @transform_2, window_bounds = array<i64: 64, 64>}, {pipeline_mode = #tpu.pipeline_mode<synchronous>, transform_indices = @transform_3, window_bounds = array<i64: 1, 64>}, {transform_indices = @transform_4, window_bounds = array<i64: 2, 64>}]} {
    %c0 = arith.constant 0 : index
    %c0_0 = arith.constant 0 : index
    %0 = vector.load %arg1[%c0, %c0_0] : memref<2x64xf32, #tpu.memory_space<vmem>>, vector<2x64xf32>
    %1 = arith.mulf %0, %0 : vector<2x64xf32>
    %cst = arith.constant dense<0.000000e+00> : vector<2xf32>
    %2 = vector.multi_reduction <add>, %1, %cst [1] : vector<2x64xf32> to vector<2xf32>
    %3 = vector.shape_cast %2 : vector<2xf32> to vector<2x1xf32>
    %cst_1 = arith.constant 6.400000e+01 : f32
    %4 = vector.broadcast %cst_1 : f32 to vector<2x1xf32>
    %5 = arith.divf %3, %4 : vector<2x1xf32>
    %cst_2 = arith.constant 9.99999997E-7 : f32
    %6 = vector.broadcast %cst_2 : f32 to vector<2x1xf32>
    %7 = arith.addf %5, %6 : vector<2x1xf32>
    %8 = math.rsqrt %7 : vector<2x1xf32>
    %9 = vector.broadcast %8 : vector<2x1xf32> to vector<2x64xf32>
    %10 = arith.mulf %0, %9 : vector<2x64xf32>
    %c0_3 = arith.constant 0 : index
    %c0_4 = arith.constant 0 : index
    %11 = vector.load %arg2[%c0_3, %c0_4] : memref<1x64xf32, #tpu.memory_space<vmem>>, vector<1x64xf32>
    %12 = vector.broadcast %11 : vector<1x64xf32> to vector<2x64xf32>
    %13 = arith.mulf %10, %12 : vector<2x64xf32>
    %14 = arith.truncf %13 : vector<2x64xf32> to vector<2x64xbf16>
    %c0_5 = arith.constant 0 : index
    %c0_6 = arith.constant 0 : index
    %15 = vector.load %arg3[%c0_5, %c0_6] : memref<64x64xf32, #tpu.memory_space<vmem>>, vector<64x64xf32>
    %16 = arith.truncf %15 : vector<64x64xf32> to vector<64x64xbf16>
    %cst_7 = arith.constant dense<0.000000e+00> : vector<2x64xf32>
    %17 = tpu.matmul %14, %16, %cst_7 {dimension_numbers = #tpu.dot_dimension_numbers<[1], [0], [0], [1], [0, 0, 1, 1], [], []>} : vector<2x64xbf16>, vector<64x64xbf16>, vector<2x64xf32> -> vector<2x64xf32>
    %c0_8 = arith.constant 0 : index
    %c0_9 = arith.constant 0 : index
    %18 = vector.load %arg4[%c0_8, %c0_9] : memref<1x64xf32, #tpu.memory_space<vmem>>, vector<1x64xf32>
    %19 = vector.broadcast %18 : vector<1x64xf32> to vector<2x64xf32>
    %20 = arith.addf %17, %19 : vector<2x64xf32>
    %c0_10 = arith.constant 0 : index
    %c0_11 = arith.constant 0 : index
    %21 = vector.load %arg5[%c0_10, %c0_11] : memref<2x64xf32, #tpu.memory_space<vmem>>, vector<2x64xf32>
    tpu.vector_store %arg5[%c0_10, %c0_11], %20 {strides = array<i32>} : memref<2x64xf32, #tpu.memory_space<vmem>>, vector<2x64xf32>,
    return
  }
  func.func @transform_0(%arg0: i32) -> (i32, i32) {
    %c0_i32 = arith.constant 0 : i32
    %c0_i32_0 = arith.constant 0 : i32
    return %arg0, %c0_i32 : i32, i32
  }
  func.func @transform_1(%arg0: i32) -> (i32, i32) {
    %c0_i32 = arith.constant 0 : i32
    %c0_i32_0 = arith.constant 0 : i32
    %c0_i32_1 = arith.constant 0 : i32
    return %c0_i32, %c0_i32_0 : i32, i32
  }
  func.func @transform_2(%arg0: i32) -> (i32, i32) {
    %c0_i32 = arith.constant 0 : i32
    %c0_i32_0 = arith.constant 0 : i32
    %c0_i32_1 = arith.constant 0 : i32
    return %c0_i32, %c0_i32_0 : i32, i32
  }
  func.func @transform_3(%arg0: i32) -> (i32, i32) {
    %c0_i32 = arith.constant 0 : i32
    %c0_i32_0 = arith.constant 0 : i32
    %c0_i32_1 = arith.constant 0 : i32
    return %c0_i32, %c0_i32_0 : i32, i32
  }
  func.func @transform_4(%arg0: i32) -> (i32, i32) {
    %c0_i32 = arith.constant 0 : i32
    %c0_i32_0 = arith.constant 0 : i32
    return %arg0, %c0_i32 : i32, i32
  }
}

module attributes {stable_mosaic.version = 11 : i64} {
  func.func @_norm_linear_kernel(%arg0: i32, %arg1: memref<2x64xf32, #tpu.memory_space<vmem>>, %arg2: memref<1x64xf32, #tpu.memory_space<vmem>>, %arg3: memref<64x3xf32, #tpu.memory_space<vmem>>, %arg4: memref<1x3xf32, #tpu.memory_space<vmem>>, %arg5: memref<2x3xf32, #tpu.memory_space<vmem>>) attributes {dimension_semantics = [#tpu.dimension_semantics<parallel>], iteration_bounds = array<i64: 1>, scalar_prefetch = 0 : i64, scratch_operands = 0 : i64, tpu.core_type = #tpu.core_type<tc>, window_params = [{transform_indices = @transform_0, window_bounds = array<i64: 2, 64>}, {pipeline_mode = #tpu.pipeline_mode<synchronous>, transform_indices = @transform_1, window_bounds = array<i64: 1, 64>}, {pipeline_mode = #tpu.pipeline_mode<synchronous>, transform_indices = @transform_2, window_bounds = array<i64: 64, 3>}, {pipeline_mode = #tpu.pipeline_mode<synchronous>, transform_indices = @transform_3, window_bounds = array<i64: 1, 3>}, {transform_indices = @transform_4, window_bounds = array<i64: 2, 3>}]} {
    %c0 = arith.constant 0 : index
    %c0_0 = arith.constant 0 : index
    %0 = vector.load %arg1[%c0, %c0_0] : memref<2x64xf32, #tpu.memory_space<vmem>>, vector<2x64xf32>
    %1 = arith.mulf %0, %0 : vector<2x64xf32>
    %cst = arith.constant dense<0.000000e+00> : vector<2xf32>
    %2 = vector.multi_reduction <add>, %1, %cst [1] : vector<2x64xf32> to vector<2xf32>
    %3 = vector.shape_cast %2 : vector<2xf32> to vector<2x1xf32>
    %cst_1 = arith.constant 6.400000e+01 : f32
    %4 = vector.broadcast %cst_1 : f32 to vector<2x1xf32>
    %5 = arith.divf %3, %4 : vector<2x1xf32>
    %cst_2 = arith.constant 9.99999997E-7 : f32
    %6 = vector.broadcast %cst_2 : f32 to vector<2x1xf32>
    %7 = arith.addf %5, %6 : vector<2x1xf32>
    %8 = math.rsqrt %7 : vector<2x1xf32>
    %9 = vector.broadcast %8 : vector<2x1xf32> to vector<2x64xf32>
    %10 = arith.mulf %0, %9 : vector<2x64xf32>
    %c0_3 = arith.constant 0 : index
    %c0_4 = arith.constant 0 : index
    %11 = vector.load %arg2[%c0_3, %c0_4] : memref<1x64xf32, #tpu.memory_space<vmem>>, vector<1x64xf32>
    %12 = vector.broadcast %11 : vector<1x64xf32> to vector<2x64xf32>
    %13 = arith.mulf %10, %12 : vector<2x64xf32>
    %14 = arith.truncf %13 : vector<2x64xf32> to vector<2x64xbf16>
    %c0_5 = arith.constant 0 : index
    %c0_6 = arith.constant 0 : index
    %15 = vector.load %arg3[%c0_5, %c0_6] : memref<64x3xf32, #tpu.memory_space<vmem>>, vector<64x3xf32>
    %16 = arith.truncf %15 : vector<64x3xf32> to vector<64x3xbf16>
    %cst_7 = arith.constant dense<0.000000e+00> : vector<2x3xf32>
    %17 = tpu.matmul %14, %16, %cst_7 {dimension_numbers = #tpu.dot_dimension_numbers<[1], [0], [0], [1], [0, 0, 1, 1], [], []>} : vector<2x64xbf16>, vector<64x3xbf16>, vector<2x3xf32> -> vector<2x3xf32>
    %c0_8 = arith.constant 0 : index
    %c0_9 = arith.constant 0 : index
    %18 = vector.load %arg4[%c0_8, %c0_9] : memref<1x3xf32, #tpu.memory_space<vmem>>, vector<1x3xf32>
    %19 = vector.broadcast %18 : vector<1x3xf32> to vector<2x3xf32>
    %20 = arith.addf %17, %19 : vector<2x3xf32>
    %21 = arith.negf %20 : vector<2x3xf32>
    %22 = math.exp %21 : vector<2x3xf32>
    %cst_10 = arith.constant 1.000000e+00 : f32
    %23 = vector.broadcast %cst_10 : f32 to vector<2x3xf32>
    %24 = arith.addf %23, %22 : vector<2x3xf32>
    %25 = arith.divf %23, %24 : vector<2x3xf32>
    %c0_11 = arith.constant 0 : index
    %c0_12 = arith.constant 0 : index
    %26 = vector.load %arg5[%c0_11, %c0_12] : memref<2x3xf32, #tpu.memory_space<vmem>>, vector<2x3xf32>
    tpu.vector_store %arg5[%c0_11, %c0_12], %25 {strides = array<i32>} : memref<2x3xf32, #tpu.memory_space<vmem>>, vector<2x3xf32>,
    return
  }
  func.func @transform_0(%arg0: i32) -> (i32, i32) {
    %c0_i32 = arith.constant 0 : i32
    %c0_i32_0 = arith.constant 0 : i32
    return %arg0, %c0_i32 : i32, i32
  }
  func.func @transform_1(%arg0: i32) -> (i32, i32) {
    %c0_i32 = arith.constant 0 : i32
    %c0_i32_0 = arith.constant 0 : i32
    %c0_i32_1 = arith.constant 0 : i32
    return %c0_i32, %c0_i32_0 : i32, i32
  }
  func.func @transform_2(%arg0: i32) -> (i32, i32) {
    %c0_i32 = arith.constant 0 : i32
    %c0_i32_0 = arith.constant 0 : i32
    %c0_i32_1 = arith.constant 0 : i32
    return %c0_i32, %c0_i32_0 : i32, i32
  }
  func.func @transform_3(%arg0: i32) -> (i32, i32) {
    %c0_i32 = arith.constant 0 : i32
    %c0_i32_0 = arith.constant 0 : i32
    %c0_i32_1 = arith.constant 0 : i32
    return %c0_i32, %c0_i32_0 : i32, i32
  }
  func.func @transform_4(%arg0: i32) -> (i32, i32) {
    %c0_i32 = arith.constant 0 : i32
    %c0_i32_0 = arith.constant 0 : i32
    return %arg0, %c0_i32 : i32, i32
  }
}

</mosaic_0001>

<llo_original>
// kernel: meant_v2_forward.28
$region0: #{meant_v2_forward.28}
  #allocation0 [shape = 'u32[]', space=smem, size = 0x4, offset = 0x4, fixed_abs, tag = 'smem constant byte address 0x4 - core index']
  #allocation1 [shape = 'u32[72,128]{1,0:T(1,128)}', space=vmem, size = 0x9000, scoped, tag = 'internal scratch']
  %s0 = inlined_call_operand.vmem [shape: f32[16,32], index: 0, kind: input, shape index: {}]
  %s1 = inlined_call_operand.vmem [shape: f32[1,32], index: 1, kind: input, shape index: {}]
  %s2 = inlined_call_operand.vmem [shape: f32[32,32], index: 2, kind: input, shape index: {}]
  %s3 = inlined_call_operand.vmem [shape: f32[1,32], index: 3, kind: input, shape index: {}]
  %s4 = inlined_call_operand.vmem [shape: f32[16,32], index: 4, kind: output, shape index: {}]
  %s5 = sld [smem:[#allocation0]]
  $region26: #{meant_v2_forward.28} parent=0
    _
  %s7 = ssub.s32 1, %s5
  %s8 = scalar_select 0, %s7, %s5
  // Predicated region
  $region2: #{meant_v2_forward.28} parent=0 // pred_check
    _
  $region3: #{meant_v2_forward.28} parent=0 // pred_check_branch
    %10 = sbr.rel (0) target = $region5
  $region4: #{meant_v2_forward.28} parent=0 // pred_region
    _
  $region5: #{meant_v2_forward.28} parent=0 // pred_fallthru
    _
  // Predicated region
  $region6: #{meant_v2_forward.28} parent=0 // pred_check
    _
  $region7: #{meant_v2_forward.28} parent=0 // pred_check_branch
    %12 = sbr.rel (0) target = $region9
  $region8: #{meant_v2_forward.28} parent=0 // pred_region
    _
  $region9: #{meant_v2_forward.28} parent=0 // pred_fallthru
    _
  // Predicated region
  $region10: #{meant_v2_forward.28} parent=0 // pred_check
    _
  $region11: #{meant_v2_forward.28} parent=0 // pred_check_branch
    %14 = sbr.rel (0) target = $region13
  $region12: #{meant_v2_forward.28} parent=0 // pred_region
    _
  $region13: #{meant_v2_forward.28} parent=0 // pred_fallthru
    _
  // Predicated region
  $region14: #{meant_v2_forward.28} parent=0 // pred_check
    _
  $region15: #{meant_v2_forward.28} parent=0 // pred_check_branch
    %16 = sbr.rel (0) target = $region17
  $region16: #{meant_v2_forward.28} parent=0 // pred_region
    _
  $region17: #{meant_v2_forward.28} parent=0 // pred_fallthru
    _
  %v18 = vld [vmem:[%s0] sm:$0xff]
  %v19 = vld [vmem:[%s0 + $0x8] sm:$0xff]
  %v20 = vmul.f32 %v18, %v18
  %v21 = vmul.f32 %v19, %v19
  %vm22 = vcmask 261120
  %v23 = vsel %vm22, %v20, 0.0
  %24 = vadd.xlane.f32.xlu0 %v23
  %v25 = vpop.xlane.xlu0 %24
  %v26 = vsel %vm22, %v21, 0.0
  %27 = vadd.xlane.f32.xlu0 %v26
  %v28 = vpop.xlane.xlu0 %27
  %v29 = vrcp.pop 32.0
  %v30 = vmul.f32 32.0, %v29
  %v31 = vsub.f32 1.0, %v30
  %v32 = vmul.f32 %v29, %v31
  %v33 = vadd.f32 %v29, %v32
  %vm34 = vweird.f32 %v29
  %v35 = vsel %vm34, %v29, %v33
  %v36 = vmul.f32 %v25, %v35
  %v37 = vmul.f32 %v28, %v35
  %v38 = vadd.f32 %v36, 1e-06
  %v39 = vadd.f32 %v37, 1e-06
  %v40 = vrsqrt.pop %v38
  %v41 = vmul.f32 %v40, %v38
  %v42 = vmul.f32 %v41, %v40
  %v43 = vmul.f32 0.5, %v42
  %v44 = vsub.f32 1.5, %v43
  %v45 = vmul.f32 %v40, %v44
  %vm46 = vweird.f32 %v38
  %vm47 = vweird.f32 %v40
  %vm48 = vmor %vm46, %vm47
  %v49 = vsel %vm48, %v40, %v45
  %v50 = vrsqrt.pop %v39
  %v51 = vmul.f32 %v50, %v39
  %v52 = vmul.f32 %v51, %v50
  %v53 = vmul.f32 0.5, %v52
  %v54 = vsub.f32 1.5, %v53
  %v55 = vmul.f32 %v50, %v54
  %vm56 = vweird.f32 %v39
  %vm57 = vweird.f32 %v50
  %vm58 = vmor %vm56, %vm57
  %v59 = vsel %vm58, %v50, %v55
  %v60 = vmul.f32 %v18, %v49
  %v61 = vmul.f32 %v19, %v59
  %v62 = vld [vmem:[%s1] sm:$0x1]
  %v64 = vperm.slane %v62, 0
  %v66 = vmul.f32 %v60, %v64
  %v67 = vmul.f32 %v61, %v64
  %v68 = vpack.c.bf16 %v67, %v66
  %v69 = vld [vmem:[%s2] sm:$0xff]
  %v70 = vld [vmem:[%s2 + $0x8] sm:$0xff]
  %v71 = vld [vmem:[%s2 + $0x10] sm:$0xff]
  %v72 = vld [vmem:[%s2 + $0x18] sm:$0xff]
  %v73 = vpack.c.bf16 %v70, %v69
  %v74 = vpack.c.bf16 %v72, %v71
  %v75 = vld [vmem:[%s3] sm:$0x1]
  %v77 = vperm.slane %v75, 0
  %v80 = vsel %vm22, %v68, 0
  %82 = vmatpush.bf16.msra.mxu0 0
  %83 = vmatpush.bf16.msra.mxu0 0
  %84 = vmatpush.bf16.msra.mxu0 0
  %85 = vmatpush.bf16.msra.mxu0 0
  %86 = vmatpush.bf16.msra.mxu0 0
  %87 = vmatpush.bf16.msra.mxu0 0
  %88 = vmatpush.bf16.msra.mxu0 %v74
  %89 = vmatpush.bf16.msra.mxu0 %v73
  %90 = vmatmul.bf16.gmra.mxu0 %v80
  %v91 = vpop.f32.mrf.mxu0
  %v92 = vadd.f32 %v77, %v91
  %v93 = vpop.f32.mrf.mxu0
  %v94 = vadd.f32 %v77, %v93
  %95 = vdwg.mxu0
  %96 = vst.msk [vmem:[%s4] sm:$0xff] %vm22, %v92
  %97 = vst.msk [vmem:[%s4 + $0x8] sm:$0xff] %vm22, %v94
  // Predicated region
  $region18: #{meant_v2_forward.28} parent=0 // pred_check
    _
  $region19: #{meant_v2_forward.28} parent=0 // pred_check_branch
    %99 = sbr.rel (0) target = $region21
  $region20: #{meant_v2_forward.28} parent=0 // pred_region
    _
  $region21: #{meant_v2_forward.28} parent=0 // pred_fallthru
    _
  // Predicated region
  $region22: #{meant_v2_forward.28} parent=0 // pred_check
    _
  $region23: #{meant_v2_forward.28} parent=0 // pred_check_branch
    %101 = sbr.rel (0) target = $region25
  $region24: #{meant_v2_forward.28} parent=0 // pred_region
    _
  $region25: #{meant_v2_forward.28} parent=0 // pred_fallthru
    _

// kernel: meant_v2_forward.27
$region0: #{meant_v2_forward.27}
  #allocation0 [shape = 'u32[]', space=smem, size = 0x4, offset = 0x4, fixed_abs, tag = 'smem constant byte address 0x4 - core index']
  #allocation1 [shape = 'u32[72,128]{1,0:T(1,128)}', space=vmem, size = 0x9000, scoped, tag = 'internal scratch']
  %s0 = inlined_call_operand.vmem [shape: f32[16,256], index: 0, kind: input, shape index: {}]
  %s1 = inlined_call_operand.vmem [shape: f32[1,256], index: 1, kind: input, shape index: {}]
  %s2 = inlined_call_operand.vmem [shape: f32[256,32], index: 2, kind: input, shape index: {}]
  %s3 = inlined_call_operand.vmem [shape: f32[1,32], index: 3, kind: input, shape index: {}]
  %s4 = inlined_call_operand.vmem [shape: f32[16,32], index: 4, kind: output, shape index: {}]
  %s5 = sld [smem:[#allocation0]]
  $region26: #{meant_v2_forward.27} parent=0
    _
  %s7 = ssub.s32 1, %s5
  %s8 = scalar_select 0, %s7, %s5
  // Predicated region
  $region2: #{meant_v2_forward.27} parent=0 // pred_check
    _
  $region3: #{meant_v2_forward.27} parent=0 // pred_check_branch
    %10 = sbr.rel (0) target = $region5
  $region4: #{meant_v2_forward.27} parent=0 // pred_region
    _
  $region5: #{meant_v2_forward.27} parent=0 // pred_fallthru
    _
  // Predicated region
  $region6: #{meant_v2_forward.27} parent=0 // pred_check
    _
  $region7: #{meant_v2_forward.27} parent=0 // pred_check_branch
    %12 = sbr.rel (0) target = $region9
  $region8: #{meant_v2_forward.27} parent=0 // pred_region
    _
  $region9: #{meant_v2_forward.27} parent=0 // pred_fallthru
    _
  // Predicated region
  $region10: #{meant_v2_forward.27} parent=0 // pred_check
    _
  $region11: #{meant_v2_forward.27} parent=0 // pred_check_branch
    %14 = sbr.rel (0) target = $region13
  $region12: #{meant_v2_forward.27} parent=0 // pred_region
    _
  $region13: #{meant_v2_forward.27} parent=0 // pred_fallthru
    _
  // Predicated region
  $region14: #{meant_v2_forward.27} parent=0 // pred_check
    _
  $region15: #{meant_v2_forward.27} parent=0 // pred_check_branch
    %16 = sbr.rel (0) target = $region17
  $region16: #{meant_v2_forward.27} parent=0 // pred_region
    _
  $region17: #{meant_v2_forward.27} parent=0 // pred_fallthru
    _
  %v17 = vld [vmem:[%s0] sm:$0xff]
  %v18 = vld [vmem:[%s0 + $0x8] sm:$0xff]
  %v19 = vld [vmem:[%s0 + $0x10] sm:$0xff]
  %v20 = vld [vmem:[%s0 + $0x18] sm:$0xff]
  %v21 = vpack.c.bf16 %v19, %v17
  %v22 = vpack.c.bf16 %v20, %v18
  %v23 = vld [vmem:[%s2] sm:$0xff]
  %v24 = vld [vmem:[%s2 + $0x8] sm:$0xff]
  %v25 = vld [vmem:[%s2 + $0x10] sm:$0xff]
  %v26 = vld [vmem:[%s2 + $0x18] sm:$0xff]
  %v27 = vld [vmem:[%s2 + $0x20] sm:$0xff]
  %v28 = vld [vmem:[%s2 + $0x28] sm:$0xff]
  %v29 = vld [vmem:[%s2 + $0x30] sm:$0xff]
  %v30 = vld [vmem:[%s2 + $0x38] sm:$0xff]
  %v31 = vld [vmem:[%s2 + $0x40] sm:$0xff]
  %v32 = vld [vmem:[%s2 + $0x48] sm:$0xff]
  %v33 = vld [vmem:[%s2 + $0x50] sm:$0xff]
  %v34 = vld [vmem:[%s2 + $0x58] sm:$0xff]
  %v35 = vld [vmem:[%s2 + $0x60] sm:$0xff]
  %v36 = vld [vmem:[%s2 + $0x68] sm:$0xff]
  %v37 = vld [vmem:[%s2 + $0x70] sm:$0xff]
  %v38 = vld [vmem:[%s2 + $0x78] sm:$0xff]
  %v39 = vld [vmem:[%s2 + $0x80] sm:$0xff]
  %v40 = vld [vmem:[%s2 + $0x88] sm:$0xff]
  %v41 = vld [vmem:[%s2 + $0x90] sm:$0xff]
  %v42 = vld [vmem:[%s2 + $0x98] sm:$0xff]
  %v43 = vld [vmem:[%s2 + $0xa0] sm:$0xff]
  %v44 = vld [vmem:[%s2 + $0xa8] sm:$0xff]
  %v45 = vld [vmem:[%s2 + $0xb0] sm:$0xff]
  %v46 = vld [vmem:[%s2 + $0xb8] sm:$0xff]
  %v47 = vld [vmem:[%s2 + $0xc0] sm:$0xff]
  %v48 = vld [vmem:[%s2 + $0xc8] sm:$0xff]
  %v49 = vld [vmem:[%s2 + $0xd0] sm:$0xff]
  %v50 = vld [vmem:[%s2 + $0xd8] sm:$0xff]
  %v51 = vld [vmem:[%s2 + $0xe0] sm:$0xff]
  %v52 = vld [vmem:[%s2 + $0xe8] sm:$0xff]
  %v53 = vld [vmem:[%s2 + $0xf0] sm:$0xff]
  %v54 = vld [vmem:[%s2 + $0xf8] sm:$0xff]
  %v55 = vpack.c.bf16 %v24, %v23
  %v56 = vpack.c.bf16 %v26, %v25
  %v57 = vpack.c.bf16 %v28, %v27
  %v58 = vpack.c.bf16 %v30, %v29
  %v59 = vpack.c.bf16 %v32, %v31
  %v60 = vpack.c.bf16 %v34, %v33
  %v61 = vpack.c.bf16 %v36, %v35
  %v62 = vpack.c.bf16 %v38, %v37
  %v63 = vpack.c.bf16 %v40, %v39
  %v64 = vpack.c.bf16 %v42, %v41
  %v65 = vpack.c.bf16 %v44, %v43
  %v66 = vpack.c.bf16 %v46, %v45
  %v67 = vpack.c.bf16 %v48, %v47
  %v68 = vpack.c.bf16 %v50, %v49
  %v69 = vpack.c.bf16 %v52, %v51
  %v70 = vpack.c.bf16 %v54, %v53
  %v71 = vld [vmem:[%s3] sm:$0x1]
  %v73 = vperm.slane %v71, 0
  %75 = vmatpush.bf16.msra.mxu0 %v62
  %76 = vmatpush.bf16.msra.mxu0 %v61
  %77 = vmatpush.bf16.msra.mxu0 %v60
  %78 = vmatpush.bf16.msra.mxu0 %v59
  %79 = vmatpush.bf16.msra.mxu0 %v58
  %80 = vmatpush.bf16.msra.mxu0 %v57
  %81 = vmatpush.bf16.msra.mxu0 %v56
  %82 = vmatpush.bf16.msra.mxu0 %v55
  %83 = vmatmul.bf16.gmra.mxu0 %v21
  %v84 = vpop.f32.mrf.mxu0
  %v85 = vadd.f32 %v73, %v84
  %v86 = vpop.f32.mrf.mxu0
  %v87 = vadd.f32 %v73, %v86
  %88 = vdwg.mxu0
  %89 = vmatpush.bf16.msra.mxu0 %v70
  %90 = vmatpush.bf16.msra.mxu0 %v69
  %91 = vmatpush.bf16.msra.mxu0 %v68
  %92 = vmatpush.bf16.msra.mxu0 %v67
  %93 = vmatpush.bf16.msra.mxu0 %v66
  %94 = vmatpush.bf16.msra.mxu0 %v65
  %95 = vmatpush.bf16.msra.mxu0 %v64
  %96 = vmatpush.bf16.msra.mxu0 %v63
  %97 = vmatmul.bf16.gmra.mxu0 %v22
  %v98 = vpop.f32.mrf.mxu0
  %v99 = vadd.f32 %v85, %v98
  %v100 = vpop.f32.mrf.mxu0
  %v101 = vadd.f32 %v87, %v100
  %102 = vdwg.mxu0
  %vm103 = vcmask 261120
  %104 = vst.msk [vmem:[%s4] sm:$0xff] %vm103, %v99
  %105 = vst.msk [vmem:[%s4 + $0x8] sm:$0xff] %vm103, %v101
  // Predicated region
  $region18: #{meant_v2_forward.27} parent=0 // pred_check
    _
  $region19: #{meant_v2_forward.27} parent=0 // pred_check_branch
    %107 = sbr.rel (0) target = $region21
  $region20: #{meant_v2_forward.27} parent=0 // pred_region
    _
  $region21: #{meant_v2_forward.27} parent=0 // pred_fallthru
    _
  // Predicated region
  $region22: #{meant_v2_forward.27} parent=0 // pred_check
    _
  $region23: #{meant_v2_forward.27} parent=0 // pred_check_branch
    %109 = sbr.rel (0) target = $region25
  $region24: #{meant_v2_forward.27} parent=0 // pred_region
    _
  $region25: #{meant_v2_forward.27} parent=0 // pred_fallthru
    _

// kernel: meant_v2_forward.29
$region0: #{meant_v2_forward.29}
  #allocation0 [shape = 'u32[]', space=smem, size = 0x4, offset = 0x4, fixed_abs, tag = 'smem constant byte address 0x4 - core index']
  #allocation1 [shape = 'u32[72,128]{1,0:T(1,128)}', space=vmem, size = 0x9000, scoped, tag = 'internal scratch']
  %s0 = inlined_call_operand.vmem [shape: f32[16,32], index: 0, kind: input, shape index: {}]
  %s1 = inlined_call_operand.vmem [shape: f32[1,32], index: 1, kind: input, shape index: {}]
  %s2 = inlined_call_operand.vmem [shape: f32[32,96], index: 2, kind: input, shape index: {}]
  %s3 = inlined_call_operand.vmem [shape: f32[1,96], index: 3, kind: input, shape index: {}]
  %s4 = inlined_call_operand.vmem [shape: f32[16,96], index: 4, kind: output, shape index: {}]
  %s5 = sld [smem:[#allocation0]]
  $region26: #{meant_v2_forward.29} parent=0
    _
  %s7 = ssub.s32 1, %s5
  %s8 = scalar_select 0, %s7, %s5
  // Predicated region
  $region2: #{meant_v2_forward.29} parent=0 // pred_check
    _
  $region3: #{meant_v2_forward.29} parent=0 // pred_check_branch
    %10 = sbr.rel (0) target = $region5
  $region4: #{meant_v2_forward.29} parent=0 // pred_region
    _
  $region5: #{meant_v2_forward.29} parent=0 // pred_fallthru
    _
  // Predicated region
  $region6: #{meant_v2_forward.29} parent=0 // pred_check
    _
  $region7: #{meant_v2_forward.29} parent=0 // pred_check_branch
    %12 = sbr.rel (0) target = $region9
  $region8: #{meant_v2_forward.29} parent=0 // pred_region
    _
  $region9: #{meant_v2_forward.29} parent=0 // pred_fallthru
    _
  // Predicated region
  $region10: #{meant_v2_forward.29} parent=0 // pred_check
    _
  $region11: #{meant_v2_forward.29} parent=0 // pred_check_branch
    %14 = sbr.rel (0) target = $region13
  $region12: #{meant_v2_forward.29} parent=0 // pred_region
    _
  $region13: #{meant_v2_forward.29} parent=0 // pred_fallthru
    _
  // Predicated region
  $region14: #{meant_v2_forward.29} parent=0 // pred_check
    _
  $region15: #{meant_v2_forward.29} parent=0 // pred_check_branch
    %16 = sbr.rel (0) target = $region17
  $region16: #{meant_v2_forward.29} parent=0 // pred_region
    _
  $region17: #{meant_v2_forward.29} parent=0 // pred_fallthru
    _
  %v18 = vld [vmem:[%s0] sm:$0xff]
  %v19 = vld [vmem:[%s0 + $0x8] sm:$0xff]
  %v20 = vpack.c.bf16 %v19, %v18
  %v21 = vld [vmem:[%s2] sm:$0xff]
  %v22 = vld [vmem:[%s2 + $0x8] sm:$0xff]
  %v23 = vld [vmem:[%s2 + $0x10] sm:$0xff]
  %v24 = vld [vmem:[%s2 + $0x18] sm:$0xff]
  %v25 = vpack.c.bf16 %v22, %v21
  %v26 = vpack.c.bf16 %v24, %v23
  %v27 = vld [vmem:[%s3] sm:$0x1]
  %v29 = vperm.slane %v27, 0
  %vm31 = vcmask 261120
  %v33 = vsel %vm31, %v20, 0
  %35 = vmatpush.bf16.msra.mxu0 0
  %36 = vmatpush.bf16.msra.mxu0 0
  %37 = vmatpush.bf16.msra.mxu0 0
  %38 = vmatpush.bf16.msra.mxu0 0
  %39 = vmatpush.bf16.msra.mxu0 0
  %40 = vmatpush.bf16.msra.mxu0 0
  %41 = vmatpush.bf16.msra.mxu0 %v26
  %42 = vmatpush.bf16.msra.mxu0 %v25
  %43 = vmatmul.bf16.gmra.mxu0 %v33
  %v44 = vpop.f32.mrf.mxu0
  %v45 = vadd.f32 %v29, %v44
  %v46 = vpop.f32.mrf.mxu0
  %v47 = vadd.f32 %v29, %v46
  %48 = vdwg.mxu0
  %vm49 = vcmask 785408
  %50 = vst.msk [vmem:[%s4] sm:$0xff] %vm49, %v45
  %51 = vst.msk [vmem:[%s4 + $0x8] sm:$0xff] %vm49, %v47
  // Predicated region
  $region18: #{meant_v2_forward.29} parent=0 // pred_check
    _
  $region19: #{meant_v2_forward.29} parent=0 // pred_check_branch
    %53 = sbr.rel (0) target = $region21
  $region20: #{meant_v2_forward.29} parent=0 // pred_region
    _
  $region21: #{meant_v2_forward.29} parent=0 // pred_fallthru
    _
  // Predicated region
  $region22: #{meant_v2_forward.29} parent=0 // pred_check
    _
  $region23: #{meant_v2_forward.29} parent=0 // pred_check_branch
    %55 = sbr.rel (0) target = $region25
  $region24: #{meant_v2_forward.29} parent=0 // pred_region
    _
  $region25: #{meant_v2_forward.29} parent=0 // pred_fallthru
    _

// kernel: meant_v2_forward.32
$region0: #{meant_v2_forward.32}
  #allocation0 [shape = 'u32[]', space=smem, size = 0x4, offset = 0x4, fixed_abs, tag = 'smem constant byte address 0x4 - core index']
  #allocation1 [shape = 'u32[72,128]{1,0:T(1,128)}', space=vmem, size = 0x9000, scoped, tag = 'internal scratch']
  %s0 = inlined_call_operand.vmem [shape: f32[16,32], index: 0, kind: input, shape index: {}]
  %s1 = inlined_call_operand.vmem [shape: f32[16,32], index: 1, kind: input, shape index: {}]
  %s2 = inlined_call_operand.vmem [shape: f32[1,32], index: 2, kind: input, shape index: {}]
  %s3 = inlined_call_operand.vmem [shape: f32[32,32], index: 3, kind: input, shape index: {}]
  %s4 = inlined_call_operand.vmem [shape: f32[1,32], index: 4, kind: input, shape index: {}]
  %s5 = inlined_call_operand.vmem [shape: f32[16,32], index: 5, kind: output, shape index: {}]
  %s6 = sld [smem:[#allocation0]]
  $region30: #{meant_v2_forward.32} parent=0
    _
  %s8 = ssub.s32 1, %s6
  %s9 = scalar_select 0, %s8, %s6
  // Predicated region
  $region2: #{meant_v2_forward.32} parent=0 // pred_check
    _
  $region3: #{meant_v2_forward.32} parent=0 // pred_check_branch
    %11 = sbr.rel (0) target = $region5
  $region4: #{meant_v2_forward.32} parent=0 // pred_region
    _
  $region5: #{meant_v2_forward.32} parent=0 // pred_fallthru
    _
  // Predicated region
  $region6: #{meant_v2_forward.32} parent=0 // pred_check
    _
  $region7: #{meant_v2_forward.32} parent=0 // pred_check_branch
    %13 = sbr.rel (0) target = $region9
  $region8: #{meant_v2_forward.32} parent=0 // pred_region
    _
  $region9: #{meant_v2_forward.32} parent=0 // pred_fallthru
    _
  // Predicated region
  $region10: #{meant_v2_forward.32} parent=0 // pred_check
    _
  $region11: #{meant_v2_forward.32} parent=0 // pred_check_branch
    %15 = sbr.rel (0) target = $region13
  $region12: #{meant_v2_forward.32} parent=0 // pred_region
    _
  $region13: #{meant_v2_forward.32} parent=0 // pred_fallthru
    _
  // Predicated region
  $region14: #{meant_v2_forward.32} parent=0 // pred_check
    _
  $region15: #{meant_v2_forward.32} parent=0 // pred_check_branch
    %17 = sbr.rel (0) target = $region17
  $region16: #{meant_v2_forward.32} parent=0 // pred_region
    _
  $region17: #{meant_v2_forward.32} parent=0 // pred_fallthru
    _
  // Predicated region
  $region18: #{meant_v2_forward.32} parent=0 // pred_check
    _
  $region19: #{meant_v2_forward.32} parent=0 // pred_check_branch
    %19 = sbr.rel (0) target = $region21
  $region20: #{meant_v2_forward.32} parent=0 // pred_region
    _
  $region21: #{meant_v2_forward.32} parent=0 // pred_fallthru
    _
  %v21 = vld [vmem:[%s0] sm:$0xff]
  %v22 = vld [vmem:[%s0 + $0x8] sm:$0xff]
  %v23 = vmul.f32 %v21, %v21
  %v24 = vmul.f32 %v22, %v22
  %vm25 = vcmask 261120
  %v26 = vsel %vm25, %v23, 0.0
  %27 = vadd.xlane.f32.xlu0 %v26
  %v28 = vpop.xlane.xlu0 %27
  %v29 = vsel %vm25, %v24, 0.0
  %30 = vadd.xlane.f32.xlu0 %v29
  %v31 = vpop.xlane.xlu0 %30
  %v32 = vrcp.pop 32.0
  %v33 = vmul.f32 32.0, %v32
  %v34 = vsub.f32 1.0, %v33
  %v35 = vmul.f32 %v32, %v34
  %v36 = vadd.f32 %v32, %v35
  %vm37 = vweird.f32 %v32
  %v38 = vsel %vm37, %v32, %v36
  %v39 = vmul.f32 %v28, %v38
  %v40 = vmul.f32 %v31, %v38
  %v41 = vadd.f32 %v39, 1e-06
  %v42 = vadd.f32 %v40, 1e-06
  %v43 = vrsqrt.pop %v41
  %v44 = vmul.f32 %v43, %v41
  %v45 = vmul.f32 %v44, %v43
  %v46 = vmul.f32 0.5, %v45
  %v47 = vsub.f32 1.5, %v46
  %v48 = vmul.f32 %v43, %v47
  %vm49 = vweird.f32 %v41
  %vm50 = vweird.f32 %v43
  %vm51 = vmor %vm49, %vm50
  %v52 = vsel %vm51, %v43, %v48
  %v53 = vrsqrt.pop %v42
  %v54 = vmul.f32 %v53, %v42
  %v55 = vmul.f32 %v54, %v53
  %v56 = vmul.f32 0.5, %v55
  %v57 = vsub.f32 1.5, %v56
  %v58 = vmul.f32 %v53, %v57
  %vm59 = vweird.f32 %v42
  %vm60 = vweird.f32 %v53
  %vm61 = vmor %vm59, %vm60
  %v62 = vsel %vm61, %v53, %v58
  %v63 = vmul.f32 %v21, %v52
  %v64 = vmul.f32 %v22, %v62
  %v65 = vld [vmem:[%s2] sm:$0x1]
  %v67 = vperm.slane %v65, 0
  %v69 = vmul.f32 %v63, %v67
  %v70 = vmul.f32 %v64, %v67
  %v71 = vpack.c.bf16 %v70, %v69
  %v72 = vld [vmem:[%s3] sm:$0xff]
  %v73 = vld [vmem:[%s3 + $0x8] sm:$0xff]
  %v74 = vld [vmem:[%s3 + $0x10] sm:$0xff]
  %v75 = vld [vmem:[%s3 + $0x18] sm:$0xff]
  %v76 = vpack.c.bf16 %v73, %v72
  %v77 = vpack.c.bf16 %v75, %v74
  %v78 = vld [vmem:[%s4] sm:$0x1]
  %v80 = vperm.slane %v78, 0
  %v83 = vsel %vm25, %v71, 0
  %85 = vmatpush.bf16.msra.mxu0 0
  %86 = vmatpush.bf16.msra.mxu0 0
  %87 = vmatpush.bf16.msra.mxu0 0
  %88 = vmatpush.bf16.msra.mxu0 0
  %89 = vmatpush.bf16.msra.mxu0 0
  %90 = vmatpush.bf16.msra.mxu0 0
  %91 = vmatpush.bf16.msra.mxu0 %v77
  %92 = vmatpush.bf16.msra.mxu0 %v76
  %93 = vmatmul.bf16.gmra.mxu0 %v83
  %v94 = vpop.f32.mrf.mxu0
  %v95 = vadd.f32 %v80, %v94
  %v96 = vpop.f32.mrf.mxu0
  %v97 = vadd.f32 %v80, %v96
  %98 = vdwg.mxu0
  %v99 = vld [vmem:[%s1] sm:$0xff]
  %v100 = vld [vmem:[%s1 + $0x8] sm:$0xff]
  %v101 = vadd.f32 %v95, %v99
  %v102 = vadd.f32 %v97, %v100
  %103 = vst.msk [vmem:[%s5] sm:$0xff] %vm25, %v101
  %104 = vst.msk [vmem:[%s5 + $0x8] sm:$0xff] %vm25, %v102
  // Predicated region
  $region22: #{meant_v2_forward.32} parent=0 // pred_check
    _
  $region23: #{meant_v2_forward.32} parent=0 // pred_check_branch
    %106 = sbr.rel (0) target = $region25
  $region24: #{meant_v2_forward.32} parent=0 // pred_region
    _
  $region25: #{meant_v2_forward.32} parent=0 // pred_fallthru
    _
  // Predicated region
  $region26: #{meant_v2_forward.32} parent=0 // pred_check
    _
  $region27: #{meant_v2_forward.32} parent=0 // pred_check_branch
    %108 = sbr.rel (0) target = $region29
  $region28: #{meant_v2_forward.32} parent=0 // pred_region
    _
  $region29: #{meant_v2_forward.32} parent=0 // pred_fallthru
    _

// kernel: meant_v2_forward.31
$region0: #{meant_v2_forward.31}
  #allocation0 [shape = 'u32[]', space=smem, size = 0x4, offset = 0x4, fixed_abs, tag = 'smem constant byte address 0x4 - core index']
  #allocation1 [shape = 'u32[72,128]{1,0:T(1,128)}', space=vmem, size = 0x9000, scoped, tag = 'internal scratch']
  %s0 = inlined_call_operand.vmem [shape: f32[16,32], index: 0, kind: input, shape index: {}]
  %s1 = inlined_call_operand.vmem [shape: f32[1,32], index: 1, kind: input, shape index: {}]
  %s2 = inlined_call_operand.vmem [shape: f32[32,32], index: 2, kind: input, shape index: {}]
  %s3 = inlined_call_operand.vmem [shape: f32[1,32], index: 3, kind: input, shape index: {}]
  %s4 = inlined_call_operand.vmem [shape: f32[16,32], index: 4, kind: output, shape index: {}]
  %s5 = sld [smem:[#allocation0]]
  $region26: #{meant_v2_forward.31} parent=0
    _
  %s7 = ssub.s32 1, %s5
  %s8 = scalar_select 0, %s7, %s5
  // Predicated region
  $region2: #{meant_v2_forward.31} parent=0 // pred_check
    _
  $region3: #{meant_v2_forward.31} parent=0 // pred_check_branch
    %10 = sbr.rel (0) target = $region5
  $region4: #{meant_v2_forward.31} parent=0 // pred_region
    _
  $region5: #{meant_v2_forward.31} parent=0 // pred_fallthru
    _
  // Predicated region
  $region6: #{meant_v2_forward.31} parent=0 // pred_check
    _
  $region7: #{meant_v2_forward.31} parent=0 // pred_check_branch
    %12 = sbr.rel (0) target = $region9
  $region8: #{meant_v2_forward.31} parent=0 // pred_region
    _
  $region9: #{meant_v2_forward.31} parent=0 // pred_fallthru
    _
  // Predicated region
  $region10: #{meant_v2_forward.31} parent=0 // pred_check
    _
  $region11: #{meant_v2_forward.31} parent=0 // pred_check_branch
    %14 = sbr.rel (0) target = $region13
  $region12: #{meant_v2_forward.31} parent=0 // pred_region
    _
  $region13: #{meant_v2_forward.31} parent=0 // pred_fallthru
    _
  // Predicated region
  $region14: #{meant_v2_forward.31} parent=0 // pred_check
    _
  $region15: #{meant_v2_forward.31} parent=0 // pred_check_branch
    %16 = sbr.rel (0) target = $region17
  $region16: #{meant_v2_forward.31} parent=0 // pred_region
    _
  $region17: #{meant_v2_forward.31} parent=0 // pred_fallthru
    _
  %v18 = vld [vmem:[%s0] sm:$0xff]
  %v19 = vld [vmem:[%s0 + $0x8] sm:$0xff]
  %v20 = vpack.c.bf16 %v19, %v18
  %v21 = vld [vmem:[%s2] sm:$0xff]
  %v22 = vld [vmem:[%s2 + $0x8] sm:$0xff]
  %v23 = vld [vmem:[%s2 + $0x10] sm:$0xff]
  %v24 = vld [vmem:[%s2 + $0x18] sm:$0xff]
  %v25 = vpack.c.bf16 %v22, %v21
  %v26 = vpack.c.bf16 %v24, %v23
  %v27 = vld [vmem:[%s3] sm:$0x1]
  %v29 = vperm.slane %v27, 0
  %vm31 = vcmask 261120
  %v33 = vsel %vm31, %v20, 0
  %35 = vmatpush.bf16.msra.mxu0 0
  %36 = vmatpush.bf16.msra.mxu0 0
  %37 = vmatpush.bf16.msra.mxu0 0
  %38 = vmatpush.bf16.msra.mxu0 0
  %39 = vmatpush.bf16.msra.mxu0 0
  %40 = vmatpush.bf16.msra.mxu0 0
  %41 = vmatpush.bf16.msra.mxu0 %v26
  %42 = vmatpush.bf16.msra.mxu0 %v25
  %43 = vmatmul.bf16.gmra.mxu0 %v33
  %v44 = vpop.f32.mrf.mxu0
  %v45 = vadd.f32 %v29, %v44
  %v46 = vpop.f32.mrf.mxu0
  %v47 = vadd.f32 %v29, %v46
  %48 = vdwg.mxu0
  %49 = vst.msk [vmem:[%s4] sm:$0xff] %vm31, %v45
  %50 = vst.msk [vmem:[%s4 + $0x8] sm:$0xff] %vm31, %v47
  // Predicated region
  $region18: #{meant_v2_forward.31} parent=0 // pred_check
    _
  $region19: #{meant_v2_forward.31} parent=0 // pred_check_branch
    %52 = sbr.rel (0) target = $region21
  $region20: #{meant_v2_forward.31} parent=0 // pred_region
    _
  $region21: #{meant_v2_forward.31} parent=0 // pred_fallthru
    _
  // Predicated region
  $region22: #{meant_v2_forward.31} parent=0 // pred_check
    _
  $region23: #{meant_v2_forward.31} parent=0 // pred_check_branch
    %54 = sbr.rel (0) target = $region25
  $region24: #{meant_v2_forward.31} parent=0 // pred_region
    _
  $region25: #{meant_v2_forward.31} parent=0 // pred_fallthru
    _

// kernel: meant_v2_forward.30
$region0: #{meant_v2_forward.30}
  #allocation0 [shape = 'u32[]', space=smem, size = 0x4, offset = 0x4, fixed_abs, tag = 'smem constant byte address 0x4 - core index']
  #allocation1 [shape = 'u32[72,128]{1,0:T(1,128)}', space=vmem, size = 0x9000, scoped, tag = 'internal scratch']
  %s0 = inlined_call_operand.vmem [shape: f32[4,4,32], index: 0, kind: input, shape index: {}]
  %s1 = inlined_call_operand.vmem [shape: f32[4,4,32], index: 1, kind: input, shape index: {}]
  %s2 = inlined_call_operand.vmem [shape: f32[4,4,32], index: 2, kind: input, shape index: {}]
  %s3 = inlined_call_operand.vmem [shape: f32[4,4,32], index: 3, kind: output, shape index: {}]
  %s4 = sld [smem:[#allocation0]]
  $region45: #{meant_v2_forward.30} parent=0
    _
  %s6 = ssub.s32 1, %s4
  %s7 = scalar_select 0, %s6, %s4
  loop: start=0, step=1, limit=6
  $region2: #{meant_v2_forward.30} parent=0 // loop_pre_header
    _
  $region3: #{meant_v2_forward.30} parent=0 // loop_header
    %s9 = sphi 0, %s13
    %p10 = scmp.ge.s32.totalorder %s9, 6
    %s19 = sphi 0, %s21
    %s22 = sphi 0, %s19
    %s23 = sphi 0, %s22
    %s39 = sphi 0, %s23
    %s45 = sphi 0, %s47
    %s48 = sphi 0, %s45
    %s49 = sphi 0, %s48
    %s65 = sphi 0, %s49
    %s71 = sphi 0, %s73
    %s74 = sphi 0, %s71
    %s75 = sphi 0, %s74
    %s91 = sphi 0, %s75
    %s97 = sphi 0, %s99
    %s100 = sphi 0, %s97
    %s101 = sphi 0, %s100
    %s117 = sphi 0, %s101
  $region4: #{meant_v2_forward.30} parent=0 // loop_header_branch
    %12 = sbr.rel (%p10) target = $region8
  $region5: #{meant_v2_forward.30} parent=0 // loop_body
    %s14 = ssub.s32 %s9, 1
    %s15 = ssub.s32 %s9, 2
    %s16 = sadd.s32 %s9, 1
    %s17 = ssub.s32 %s9, %s16
    %p18 = scmp.eq.s32.totalorder %s17, 0
    %s20 = sadd.s32 %s19, 1
    %s21 = scalar_select %p18, %s19, %s20
    %p24 = pneg %p18
    %p25 = scmp.eq.s32.totalorder %s9, 3
    %p26 = por %p24, %p25
    %p27 = scmp.ne.s32.totalorder %s19, %s22
    %p28 = scmp.eq.s32.totalorder %s9, 0
    %p29 = por %p27, %p28
    %p30 = scmp.ne.s32.totalorder %s19, %s22
    %p31 = scmp.eq.s32.totalorder %s14, 3
    %p32 = por %p30, %p31
    %p33 = scmp.ne.s32.totalorder %s22, %s23
    %p34 = scmp.eq.s32.totalorder %s14, 0
    %p35 = por %p33, %p34
    %p36 = scmp.ne.s32.totalorder %s22, %s23
    %p37 = scmp.eq.s32.totalorder %s15, 3
    %p38 = por %p36, %p37
    %p40 = scmp.ne.s32.totalorder %s23, %s39
    %p41 = scmp.eq.s32.totalorder %s15, 0
    %p42 = por %p40, %p41
    %s43 = ssub.s32 %s9, %s16
    %p44 = scmp.eq.s32.totalorder %s43, 0
    %s46 = sadd.s32 %s45, 1
    %s47 = scalar_select %p44, %s45, %s46
    %p50 = pneg %p44
    %p51 = scmp.eq.s32.totalorder %s9, 3
    %p52 = por %p50, %p51
    %p53 = scmp.ne.s32.totalorder %s45, %s48
    %p54 = scmp.eq.s32.totalorder %s9, 0
    %p55 = por %p53, %p54
    %p56 = scmp.ne.s32.totalorder %s45, %s48
    %p57 = scmp.eq.s32.totalorder %s14, 3
    %p58 = por %p56, %p57
    %p59 = scmp.ne.s32.totalorder %s48, %s49
    %p60 = scmp.eq.s32.totalorder %s14, 0
    %p61 = por %p59, %p60
    %p62 = scmp.ne.s32.totalorder %s48, %s49
    %p63 = scmp.eq.s32.totalorder %s15, 3
    %p64 = por %p62, %p63
    %p66 = scmp.ne.s32.totalorder %s49, %s65
    %p67 = scmp.eq.s32.totalorder %s15, 0
    %p68 = por %p66, %p67
    %s69 = ssub.s32 %s9, %s16
    %p70 = scmp.eq.s32.totalorder %s69, 0
    %s72 = sadd.s32 %s71, 1
    %s73 = scalar_select %p70, %s71, %s72
    %p76 = pneg %p70
    %p77 = scmp.eq.s32.totalorder %s9, 3
    %p78 = por %p76, %p77
    %p79 = scmp.ne.s32.totalorder %s71, %s74
    %p80 = scmp.eq.s32.totalorder %s9, 0
    %p81 = por %p79, %p80
    %p82 = scmp.ne.s32.totalorder %s71, %s74
    %p83 = scmp.eq.s32.totalorder %s14, 3
    %p84 = por %p82, %p83
    %p85 = scmp.ne.s32.totalorder %s74, %s75
    %p86 = scmp.eq.s32.totalorder %s14, 0
    %p87 = por %p85, %p86
    %p88 = scmp.ne.s32.totalorder %s74, %s75
    %p89 = scmp.eq.s32.totalorder %s15, 3
    %p90 = por %p88, %p89
    %p92 = scmp.ne.s32.totalorder %s75, %s91
    %p93 = scmp.eq.s32.totalorder %s15, 0
    %p94 = por %p92, %p93
    %s95 = ssub.s32 %s9, %s16
    %p96 = scmp.eq.s32.totalorder %s95, 0
    %s98 = sadd.s32 %s97, 1
    %s99 = scalar_select %p96, %s97, %s98
    %p102 = pneg %p96
    %p103 = scmp.eq.s32.totalorder %s9, 3
    %p104 = por %p102, %p103
    %p105 = scmp.ne.s32.totalorder %s97, %s100
    %p106 = scmp.eq.s32.totalorder %s9, 0
    %p107 = por %p105, %p106
    %p108 = scmp.ne.s32.totalorder %s97, %s100
    %p109 = scmp.eq.s32.totalorder %s14, 3
    %p110 = por %p108, %p109
    %p111 = scmp.ne.s32.totalorder %s100, %s101
    %p112 = scmp.eq.s32.totalorder %s14, 0
    %p113 = por %p111, %p112
    %p114 = scmp.ne.s32.totalorder %s100, %s101
    %p115 = scmp.eq.s32.totalorder %s15, 3
    %p116 = por %p114, %p115
    %p118 = scmp.ne.s32.totalorder %s101, %s117
    %p119 = scmp.eq.s32.totalorder %s15, 0
    %p120 = por %p118, %p119
    %p121 = scmp.le.s32.totalorder 1, %s9
    %p122 = scmp.lt.s32.totalorder %s9, 5
    %p123 = pnand %p121, %p122
    %p124 = pneg %p123
    // Predicated region
    $region9: #{meant_v2_forward.30} parent=5 // pred_check
      _
    $region10: #{meant_v2_forward.30} parent=5 // pred_check_branch
      %126 = sbr.rel (%p123) target = $region12
    $region11: #{meant_v2_forward.30} parent=5 // pred_region
      %s127 = ssub.s32 %s9, 1
    $region12: #{meant_v2_forward.30} parent=5 // pred_fallthru
      _
    %p128 = scmp.lt.s32.totalorder %s9, 4
    // Predicated region
    $region13: #{meant_v2_forward.30} parent=5 // pred_check
      %p129 = pneg %p128
    $region14: #{meant_v2_forward.30} parent=5 // pred_check_branch
      %131 = sbr.rel (%p129) target = $region16
    $region15: #{meant_v2_forward.30} parent=5 // pred_region
      // Predicated region
      $region17: #{meant_v2_forward.30} parent=15 // pred_check
        %p132 = pneg %p29
      $region18: #{meant_v2_forward.30} parent=15 // pred_check_branch
        %134 = sbr.rel (%p132) target = $region20
      $region19: #{meant_v2_forward.30} parent=15 // pred_region
        %p135 = scmp.lt.s32.totalorder %s9, 3
        %s136 = scalar_select %p135, %s9, 3
        %s137 = smul.addr %s136, 4
        %s138 = scalar_lea.vmem %s0, %s137
      $region20: #{meant_v2_forward.30} parent=15 // pred_fallthru
        _
      // Predicated region
      $region21: #{meant_v2_forward.30} parent=15 // pred_check
        %p139 = pneg %p55
      $region22: #{meant_v2_forward.30} parent=15 // pred_check_branch
        %141 = sbr.rel (%p139) target = $region24
      $region23: #{meant_v2_forward.30} parent=15 // pred_region
        %p142 = scmp.lt.s32.totalorder %s9, 3
        %s143 = scalar_select %p142, %s9, 3
        %s144 = smul.addr %s143, 4
        %s145 = scalar_lea.vmem %s1, %s144
      $region24: #{meant_v2_forward.30} parent=15 // pred_fallthru
        _
      // Predicated region
      $region25: #{meant_v2_forward.30} parent=15 // pred_check
        %p146 = pneg %p81
      $region26: #{meant_v2_forward.30} parent=15 // pred_check_branch
        %148 = sbr.rel (%p146) target = $region28
      $region27: #{meant_v2_forward.30} parent=15 // pred_region
        %p149 = scmp.lt.s32.totalorder %s9, 3
        %s150 = scalar_select %p149, %s9, 3
        %s151 = smul.addr %s150, 4
        %s152 = scalar_lea.vmem %s2, %s151
      $region28: #{meant_v2_forward.30} parent=15 // pred_fallthru
        _
    $region16: #{meant_v2_forward.30} parent=5 // pred_fallthru
      _
    %p153 = scmp.le.s32.totalorder 1, %s9
    %p154 = scmp.lt.s32.totalorder %s9, 5
    %p155 = pnand %p153, %p154
    %p156 = pneg %p155
    // Predicated region
    $region29: #{meant_v2_forward.30} parent=5 // pred_check
      _
    $region30: #{meant_v2_forward.30} parent=5 // pred_check_branch
      %158 = sbr.rel (%p155) target = $region32
    $region31: #{meant_v2_forward.30} parent=5 // pred_region
      %s159 = ssub.s32 %s9, 1
      %p160 = scmp.lt.s32.totalorder %s14, 3
      %s161 = scalar_select %p160, %s14, 3
      %s162 = smul.addr %s161, 4
      %s163 = scalar_lea.vmem %s0, %s162
      %p164 = pneg %p35
      %p165 = pneg %p32
      %p166 = scmp.lt.s32.totalorder %s14, 3
      %s167 = scalar_select %p166, %s14, 3
      %s168 = smul.addr %s167, 4
      %s169 = scalar_lea.vmem %s1, %s168
      %p170 = pneg %p61
      %p171 = pneg %p58
      %p172 = scmp.lt.s32.totalorder %s14, 3
      %s173 = scalar_select %p172, %s14, 3
      %s174 = smul.addr %s173, 4
      %s175 = scalar_lea.vmem %s2, %s174
      %p176 = pneg %p87
      %p177 = pneg %p84
      %p178 = pneg %p113
      %p179 = pneg %p110
      %p180 = scmp.lt.s32.totalorder %s14, 3
      %s181 = scalar_select %p180, %s14, 3
      %s182 = smul.addr %s181, 4
      %s183 = scalar_lea.vmem %s3, %s182
      %p184 = scmp.lt.s32.totalorder %s14, 3
      %s185 = scalar_select %p184, %s14, 3
      %s186 = smul.addr %s185, 4
      %s187 = scalar_lea.vmem %s0, %s186
      %p188 = scmp.lt.s32.totalorder %s14, 3
      %s189 = scalar_select %p188, %s14, 3
      %s190 = smul.addr %s189, 4
      %s191 = scalar_lea.vmem %s1, %s190
      %p192 = scmp.lt.s32.totalorder %s14, 3
      %s193 = scalar_select %p192, %s14, 3
      %s194 = smul.addr %s193, 4
      %s195 = scalar_lea.vmem %s2, %s194
      %p196 = scmp.lt.s32.totalorder %s14, 3
      %s197 = scalar_select %p196, %s14, 3
      %s198 = smul.addr %s197, 4
      %s199 = scalar_lea.vmem %s3, %s198
      %v201 = vld [vmem:[%s187] sm:$0xf]
      %v202 = vld [vmem:[%s191] sm:$0xf]
      %v203 = vld [vmem:[%s195] sm:$0xf]
      %v204 = vpack.c.bf16 %v201, %v201
      %v205 = vpack.c.bf16 %v202, %v202
      %vm206 = vcmask 64512
      %v208 = vsel %vm206, %v204, 0
      %v211 = vsel %vm206, %v205, 0
      %213 = vmatpush.bf16.xpose.msra.mxu0 0
      %214 = vmatpush.bf16.xpose.msra.mxu0 0
      %215 = vmatpush.bf16.xpose.msra.mxu0 0
      %216 = vmatpush.bf16.xpose.msra.mxu0 0
      %217 = vmatpush.bf16.xpose.msra.mxu0 0
      %218 = vmatpush.bf16.xpose.msra.mxu0 0
      %219 = vmatpush.bf16.xpose.msra.mxu0 0
      %220 = vmatpush.bf16.xpose.msra.mxu0 %v211
      %221 = vmatmul.bf16.gmra.mxu0 %v208
      %v222 = vpop.f32.mrf.mxu0
      %v223 = vadd.f32 0.0, %v222
      %v224 = vpop.f32.mrf.mxu0
      %225 = vdwg.mxu0
      %v226 = vmul.f32 %v223, 0.35355338
      %vm227 = vcmask 27648
      %v228 = vsel %vm227, %v226, -inf
      %229 = vmax.xlane.f32.xlu0 %v228
      %v230 = vpop.xlane.xlu0 %229
      %v231 = vsub.f32 %v226, %v230
      %v232 = vmul.f32 %v231, 1.442695
      %v233 = vpow.pop %v232
      %v234 = vsel %vm227, %v233, 0.0
      %235 = vadd.xlane.f32.xlu0 %v234
      %v236 = vpop.xlane.xlu0 %235
      %v237 = vrcp.pop %v236
      %v238 = vpack.c.bf16 %v233, %v233
      %v239 = vpack.c.bf16 %v203, %v203
      %vm240 = vcmask 31744
      %v242 = vsel %vm240, %v238, 0
      %vm244 = vcmask 1041408
      %v246 = vsel %vm244, %v239, 0
      %248 = vmatpush.bf16.msra.mxu0 0
      %249 = vmatpush.bf16.msra.mxu0 0
      %250 = vmatpush.bf16.msra.mxu0 0
      %251 = vmatpush.bf16.msra.mxu0 0
      %252 = vmatpush.bf16.msra.mxu0 0
      %253 = vmatpush.bf16.msra.mxu0 0
      %254 = vmatpush.bf16.msra.mxu0 0
      %255 = vmatpush.bf16.msra.mxu0 %v246
      %256 = vmatmul.bf16.gmra.mxu0 %v242
      %v257 = vpop.f32.mrf.mxu0
      %v258 = vadd.f32 0.0, %v257
      %v259 = vpop.f32.mrf.mxu0
      %260 = vdwg.mxu0
      %v261 = vmul.f32 %v258, %v237
      %263 = vrot.lane.b32.xlu0 %v204, 120
      %v264 = vpop.permute.xlu0 %263
      %266 = vrot.lane.b32.xlu0 %v205, 120
      %v267 = vpop.permute.xlu0 %266
      %v269 = vsel %vm206, %v264, 0
      %v272 = vsel %vm206, %v267, 0
      %274 = vmatpush.bf16.xpose.msra.mxu0 0
      %275 = vmatpush.bf16.xpose.msra.mxu0 0
      %276 = vmatpush.bf16.xpose.msra.mxu0 0
      %277 = vmatpush.bf16.xpose.msra.mxu0 0
      %278 = vmatpush.bf16.xpose.msra.mxu0 0
      %279 = vmatpush.bf16.xpose.msra.mxu0 0
      %280 = vmatpush.bf16.xpose.msra.mxu0 0
      %281 = vmatpush.bf16.xpose.msra.mxu0 %v272
      %282 = vmatmul.bf16.gmra.mxu0 %v269
      %v283 = vpop.f32.mrf.mxu0
      %v284 = vadd.f32 0.0, %v283
      %v285 = vpop.f32.mrf.mxu0
      %286 = vdwg.mxu0
      %v287 = vmul.f32 %v284, 0.35355338
      %v288 = vsel %vm227, %v287, -inf
      %289 = vmax.xlane.f32.xlu0 %v288
      %v290 = vpop.xlane.xlu0 %289
      %v291 = vsub.f32 %v287, %v290
      %v292 = vmul.f32 %v291, 1.442695
      %v293 = vpow.pop %v292
      %v294 = vsel %vm227, %v293, 0.0
      %295 = vadd.xlane.f32.xlu0 %v294
      %v296 = vpop.xlane.xlu0 %295
      %v297 = vrcp.pop %v296
      %v298 = vpack.c.bf16 %v293, %v293
      %300 = vrot.lane.b32.xlu0 %v239, 120
      %v301 = vpop.permute.xlu0 %300
      %v303 = vsel %vm240, %v298, 0
      %v306 = vsel %vm244, %v301, 0
      %308 = vmatpush.bf16.msra.mxu0 0
      %309 = vmatpush.bf16.msra.mxu0 0
      %310 = vmatpush.bf16.msra.mxu0 0
      %311 = vmatpush.bf16.msra.mxu0 0
      %312 = vmatpush.bf16.msra.mxu0 0
      %313 = vmatpush.bf16.msra.mxu0 0
      %314 = vmatpush.bf16.msra.mxu0 0
      %315 = vmatpush.bf16.msra.mxu0 %v306
      %316 = vmatmul.bf16.gmra.mxu0 %v303
      %v317 = vpop.f32.mrf.mxu0
      %v318 = vadd.f32 0.0, %v317
      %v319 = vpop.f32.mrf.mxu0
      %320 = vdwg.mxu0
      %v321 = vmul.f32 %v318, %v297
      %322 = vrot.lane.b32.xlu0 %v204, 112
      %v323 = vpop.permute.xlu0 %322
      %324 = vrot.lane.b32.xlu0 %v205, 112
      %v325 = vpop.permute.xlu0 %324
      %v327 = vsel %vm206, %v323, 0
      %v330 = vsel %vm206, %v325, 0
      %332 = vmatpush.bf16.xpose.msra.mxu0 0
      %333 = vmatpush.bf16.xpose.msra.mxu0 0
      %334 = vmatpush.bf16.xpose.msra.mxu0 0
      %335 = vmatpush.bf16.xpose.msra.mxu0 0
      %336 = vmatpush.bf16.xpose.msra.mxu0 0
      %337 = vmatpush.bf16.xpose.msra.mxu0 0
      %338 = vmatpush.bf16.xpose.msra.mxu0 0
      %339 = vmatpush.bf16.xpose.msra.mxu0 %v330
      %340 = vmatmul.bf16.gmra.mxu0 %v327
      %v341 = vpop.f32.mrf.mxu0
      %v342 = vadd.f32 0.0, %v341
      %v343 = vpop.f32.mrf.mxu0
      %344 = vdwg.mxu0
      %v345 = vmul.f32 %v342, 0.35355338
      %v346 = vsel %vm227, %v345, -inf
      %347 = vmax.xlane.f32.xlu0 %v346
      %v348 = vpop.xlane.xlu0 %347
      %v349 = vsub.f32 %v345, %v348
      %v350 = vmul.f32 %v349, 1.442695
      %v351 = vpow.pop %v350
      %v352 = vsel %vm227, %v351, 0.0
      %353 = vadd.xlane.f32.xlu0 %v352
      %v354 = vpop.xlane.xlu0 %353
      %v355 = vrcp.pop %v354
      %v356 = vpack.c.bf16 %v351, %v351
      %357 = vrot.lane.b32.xlu0 %v239, 112
      %v358 = vpop.permute.xlu0 %357
      %v360 = vsel %vm240, %v356, 0
      %v363 = vsel %vm244, %v358, 0
      %365 = vmatpush.bf16.msra.mxu0 0
      %366 = vmatpush.bf16.msra.mxu0 0
      %367 = vmatpush.bf16.msra.mxu0 0
      %368 = vmatpush.bf16.msra.mxu0 0
      %369 = vmatpush.bf16.msra.mxu0 0
      %370 = vmatpush.bf16.msra.mxu0 0
      %371 = vmatpush.bf16.msra.mxu0 0
      %372 = vmatpush.bf16.msra.mxu0 %v363
      %373 = vmatmul.bf16.gmra.mxu0 %v360
      %v374 = vpop.f32.mrf.mxu0
      %v375 = vadd.f32 0.0, %v374
      %v376 = vpop.f32.mrf.mxu0
      %377 = vdwg.mxu0
      %v378 = vmul.f32 %v375, %v355
      %379 = vrot.lane.b32.xlu0 %v204, 104
      %v380 = vpop.permute.xlu0 %379
      %381 = vrot.lane.b32.xlu0 %v205, 104
      %v382 = vpop.permute.xlu0 %381
      %v384 = vsel %vm206, %v380, 0
      %v387 = vsel %vm206, %v382, 0
      %389 = vmatpush.bf16.xpose.msra.mxu0 0
      %390 = vmatpush.bf16.xpose.msra.mxu0 0
      %391 = vmatpush.bf16.xpose.msra.mxu0 0
      %392 = vmatpush.bf16.xpose.msra.mxu0 0
      %393 = vmatpush.bf16.xpose.msra.mxu0 0
      %394 = vmatpush.bf16.xpose.msra.mxu0 0
      %395 = vmatpush.bf16.xpose.msra.mxu0 0
      %396 = vmatpush.bf16.xpose.msra.mxu0 %v387
      %397 = vmatmul.bf16.gmra.mxu0 %v384
      %v398 = vpop.f32.mrf.mxu0
      %v399 = vadd.f32 0.0, %v398
      %v400 = vpop.f32.mrf.mxu0
      %401 = vdwg.mxu0
      %v402 = vmul.f32 %v399, 0.35355338
      %v403 = vsel %vm227, %v402, -inf
      %404 = vmax.xlane.f32.xlu0 %v403
      %v405 = vpop.xlane.xlu0 %404
      %v406 = vsub.f32 %v402, %v405
      %v407 = vmul.f32 %v406, 1.442695
      %v408 = vpow.pop %v407
      %v409 = vsel %vm227, %v408, 0.0
      %410 = vadd.xlane.f32.xlu0 %v409
      %v411 = vpop.xlane.xlu0 %410
      %v412 = vrcp.pop %v411
      %v413 = vpack.c.bf16 %v408, %v408
      %414 = vrot.lane.b32.xlu0 %v239, 104
      %v415 = vpop.permute.xlu0 %414
      %v417 = vsel %vm240, %v413, 0
      %v420 = vsel %vm244, %v415, 0
      %422 = vmatpush.bf16.msra.mxu0 0
      %423 = vmatpush.bf16.msra.mxu0 0
      %424 = vmatpush.bf16.msra.mxu0 0
      %425 = vmatpush.bf16.msra.mxu0 0
      %426 = vmatpush.bf16.msra.mxu0 0
      %427 = vmatpush.bf16.msra.mxu0 0
      %428 = vmatpush.bf16.msra.mxu0 0
      %429 = vmatpush.bf16.msra.mxu0 %v420
      %430 = vmatmul.bf16.gmra.mxu0 %v417
      %v431 = vpop.f32.mrf.mxu0
      %v432 = vadd.f32 0.0, %v431
      %v433 = vpop.f32.mrf.mxu0
      %434 = vdwg.mxu0
      %v435 = vmul.f32 %v432, %v412
      %437 = vrot.lane.b32.xlu0 %v321, 8
      %v438 = vpop.permute.xlu0 %437
      %441 = vrot.lane.b32.xlu0 %v378, 16
      %v442 = vpop.permute.xlu0 %441
      %445 = vrot.lane.b32.xlu0 %v435, 24
      %v446 = vpop.permute.xlu0 %445
      %v448 = vsel %vm206, %v261, %v438
      %vm449 = vcmask 130048
      %v450 = vsel %vm449, %v448, %v442
      %vm451 = vcmask 195584
      %v452 = vsel %vm451, %v450, %v446
      %vm453 = vcmask 257024
      %454 = vst.msk [vmem:[%s199] sm:$0xf] %vm453, %v452
      %p455 = scmp.lt.s32.totalorder %s14, 3
      %s456 = scalar_select %p455, %s14, 3
      %s457 = smul.addr %s456, 4
      %s458 = scalar_lea.vmem %s3, %s457
      // Predicated region
      $region33: #{meant_v2_forward.30} parent=31 // pred_check
        %p459 = pneg %p110
      $region34: #{meant_v2_forward.30} parent=31 // pred_check_branch
        %461 = sbr.rel (%p459) target = $region36
      $region35: #{meant_v2_forward.30} parent=31 // pred_region
        _
      $region36: #{meant_v2_forward.30} parent=31 // pred_fallthru
        _
    $region32: #{meant_v2_forward.30} parent=5 // pred_fallthru
      _
    %p462 = scmp.le.s32.totalorder 2, %s9
    // Predicated region
    $region37: #{meant_v2_forward.30} parent=5 // pred_check
      %p463 = pneg %p462
    $region38: #{meant_v2_forward.30} parent=5 // pred_check_branch
      %465 = sbr.rel (%p463) target = $region40
    $region39: #{meant_v2_forward.30} parent=5 // pred_region
      %s466 = ssub.s32 %s9, 2
      // Predicated region
      $region41: #{meant_v2_forward.30} parent=39 // pred_check
        %p467 = pneg %p116
      $region42: #{meant_v2_forward.30} parent=39 // pred_check_branch
        %469 = sbr.rel (%p467) target = $region44
      $region43: #{meant_v2_forward.30} parent=39 // pred_region
        %p470 = scmp.lt.s32.totalorder %s15, 3
        %s471 = scalar_select %p470, %s15, 3
        %s472 = smul.addr %s471, 4
        %s473 = scalar_lea.vmem %s3, %s472
      $region44: #{meant_v2_forward.30} parent=39 // pred_fallthru
        _
    $region40: #{meant_v2_forward.30} parent=5 // pred_fallthru
      _
  $region6: #{meant_v2_forward.30} parent=0 // loop_footer
    %s13 = sadd.s32 1, %s9
  $region7: #{meant_v2_forward.30} parent=0 // loop_footer_branch
    %8 = sbr.rel target = $region3
  $region8: #{meant_v2_forward.30} parent=0 // loop_exit
    _

// kernel: meant_v2_forward.33
$region0: #{meant_v2_forward.33}
  #allocation0 [shape = 'u32[]', space=smem, size = 0x4, offset = 0x4, fixed_abs, tag = 'smem constant byte address 0x4 - core index']
  #allocation1 [shape = 'u32[72,128]{1,0:T(1,128)}', space=vmem, size = 0x9000, scoped, tag = 'internal scratch']
  %s0 = inlined_call_operand.vmem [shape: f32[16,32], index: 0, kind: input, shape index: {}]
  %s1 = inlined_call_operand.vmem [shape: f32[1,32], index: 1, kind: input, shape index: {}]
  %s2 = inlined_call_operand.vmem [shape: f32[32,32], index: 2, kind: input, shape index: {}]
  %s3 = inlined_call_operand.vmem [shape: f32[1,32], index: 3, kind: input, shape index: {}]
  %s4 = inlined_call_operand.vmem [shape: f32[1,32], index: 4, kind: input, shape index: {}]
  %s5 = inlined_call_operand.vmem [shape: f32[32,32], index: 5, kind: input, shape index: {}]
  %s6 = inlined_call_operand.vmem [shape: f32[1,32], index: 6, kind: input, shape index: {}]
  %s7 = inlined_call_operand.vmem [shape: f32[16,32], index: 7, kind: output, shape index: {}]
  %s8 = sld [smem:[#allocation0]]
  $region38: #{meant_v2_forward.33} parent=0
    _
  %s10 = ssub.s32 1, %s8
  %s11 = scalar_select 0, %s10, %s8
  // Predicated region
  $region2: #{meant_v2_forward.33} parent=0 // pred_check
    _
  $region3: #{meant_v2_forward.33} parent=0 // pred_check_branch
    %13 = sbr.rel (0) target = $region5
  $region4: #{meant_v2_forward.33} parent=0 // pred_region
    _
  $region5: #{meant_v2_forward.33} parent=0 // pred_fallthru
    _
  // Predicated region
  $region6: #{meant_v2_forward.33} parent=0 // pred_check
    _
  $region7: #{meant_v2_forward.33} parent=0 // pred_check_branch
    %15 = sbr.rel (0) target = $region9
  $region8: #{meant_v2_forward.33} parent=0 // pred_region
    _
  $region9: #{meant_v2_forward.33} parent=0 // pred_fallthru
    _
  // Predicated region
  $region10: #{meant_v2_forward.33} parent=0 // pred_check
    _
  $region11: #{meant_v2_forward.33} parent=0 // pred_check_branch
    %17 = sbr.rel (0) target = $region13
  $region12: #{meant_v2_forward.33} parent=0 // pred_region
    _
  $region13: #{meant_v2_forward.33} parent=0 // pred_fallthru
    _
  // Predicated region
  $region14: #{meant_v2_forward.33} parent=0 // pred_check
    _
  $region15: #{meant_v2_forward.33} parent=0 // pred_check_branch
    %19 = sbr.rel (0) target = $region17
  $region16: #{meant_v2_forward.33} parent=0 // pred_region
    _
  $region17: #{meant_v2_forward.33} parent=0 // pred_fallthru
    _
  // Predicated region
  $region18: #{meant_v2_forward.33} parent=0 // pred_check
    _
  $region19: #{meant_v2_forward.33} parent=0 // pred_check_branch
    %21 = sbr.rel (0) target = $region21
  $region20: #{meant_v2_forward.33} parent=0 // pred_region
    _
  $region21: #{meant_v2_forward.33} parent=0 // pred_fallthru
    _
  // Predicated region
  $region22: #{meant_v2_forward.33} parent=0 // pred_check
    _
  $region23: #{meant_v2_forward.33} parent=0 // pred_check_branch
    %23 = sbr.rel (0) target = $region25
  $region24: #{meant_v2_forward.33} parent=0 // pred_region
    _
  $region25: #{meant_v2_forward.33} parent=0 // pred_fallthru
    _
  // Predicated region
  $region26: #{meant_v2_forward.33} parent=0 // pred_check
    _
  $region27: #{meant_v2_forward.33} parent=0 // pred_check_branch
    %25 = sbr.rel (0) target = $region29
  $region28: #{meant_v2_forward.33} parent=0 // pred_region
    _
  $region29: #{meant_v2_forward.33} parent=0 // pred_fallthru
    _
  %v27 = vld [vmem:[%s0] sm:$0xff]
  %v28 = vld [vmem:[%s0 + $0x8] sm:$0xff]
  %v29 = vmul.f32 %v27, %v27
  %v30 = vmul.f32 %v28, %v28
  %vm31 = vcmask 261120
  %v32 = vsel %vm31, %v29, 0.0
  %33 = vadd.xlane.f32.xlu0 %v32
  %v34 = vpop.xlane.xlu0 %33
  %v35 = vsel %vm31, %v30, 0.0
  %36 = vadd.xlane.f32.xlu0 %v35
  %v37 = vpop.xlane.xlu0 %36
  %v38 = vrcp.pop 32.0
  %v39 = vmul.f32 32.0, %v38
  %v40 = vsub.f32 1.0, %v39
  %v41 = vmul.f32 %v38, %v40
  %v42 = vadd.f32 %v38, %v41
  %vm43 = vweird.f32 %v38
  %v44 = vsel %vm43, %v38, %v42
  %v45 = vmul.f32 %v34, %v44
  %v46 = vmul.f32 %v37, %v44
  %v47 = vadd.f32 %v45, 1e-06
  %v48 = vadd.f32 %v46, 1e-06
  %v49 = vrsqrt.pop %v47
  %v50 = vmul.f32 %v49, %v47
  %v51 = vmul.f32 %v50, %v49
  %v52 = vmul.f32 0.5, %v51
  %v53 = vsub.f32 1.5, %v52
  %v54 = vmul.f32 %v49, %v53
  %vm55 = vweird.f32 %v47
  %vm56 = vweird.f32 %v49
  %vm57 = vmor %vm55, %vm56
  %v58 = vsel %vm57, %v49, %v54
  %v59 = vrsqrt.pop %v48
  %v60 = vmul.f32 %v59, %v48
  %v61 = vmul.f32 %v60, %v59
  %v62 = vmul.f32 0.5, %v61
  %v63 = vsub.f32 1.5, %v62
  %v64 = vmul.f32 %v59, %v63
  %vm65 = vweird.f32 %v48
  %vm66 = vweird.f32 %v59
  %vm67 = vmor %vm65, %vm66
  %v68 = vsel %vm67, %v59, %v64
  %v69 = vmul.f32 %v27, %v58
  %v70 = vmul.f32 %v28, %v68
  %v71 = vld [vmem:[%s1] sm:$0x1]
  %v73 = vperm.slane %v71, 0
  %v75 = vmul.f32 %v69, %v73
  %v76 = vmul.f32 %v70, %v73
  %v77 = vpack.c.bf16 %v76, %v75
  %v78 = vld [vmem:[%s2] sm:$0xff]
  %v79 = vld [vmem:[%s2 + $0x8] sm:$0xff]
  %v80 = vld [vmem:[%s2 + $0x10] sm:$0xff]
  %v81 = vld [vmem:[%s2 + $0x18] sm:$0xff]
  %v82 = vpack.c.bf16 %v79, %v78
  %v83 = vpack.c.bf16 %v81, %v80
  %v84 = vld [vmem:[%s3] sm:$0x1]
  %v86 = vperm.slane %v84, 0
  %v89 = vsel %vm31, %v77, 0
  %91 = vmatpush.bf16.msra.mxu0 0
  %92 = vmatpush.bf16.msra.mxu0 0
  %93 = vmatpush.bf16.msra.mxu0 0
  %94 = vmatpush.bf16.msra.mxu0 0
  %95 = vmatpush.bf16.msra.mxu0 0
  %96 = vmatpush.bf16.msra.mxu0 0
  %97 = vmatpush.bf16.msra.mxu0 %v83
  %98 = vmatpush.bf16.msra.mxu0 %v82
  %99 = vmatmul.bf16.gmra.mxu0 %v89
  %v100 = vpop.f32.mrf.mxu0
  %v101 = vadd.f32 %v86, %v100
  %v102 = vpop.f32.mrf.mxu0
  %v103 = vadd.f32 %v86, %v102
  %104 = vdwg.mxu0
  %v105 = vmul.f32 %v101, 0.5
  %v106 = vmul.f32 %v103, 0.5
  %v107 = vmul.f32 %v101, 0.70710677
  %v108 = vmul.f32 %v103, 0.70710677
  %vm109 = vcmp.ge.f32.partialorder %v107, 0.0
  %vm110 = vcmp.ge.f32.partialorder %v108, 0.0
  %v111 = vsel %vm109, 1.0, -1.0
  %v112 = vsel %vm110, 1.0, -1.0
  %v113 = vand.u32 2147483647, %v107
  %v114 = vand.u32 2147483647, %v108
  %v115 = vmul.f32 %v113, 0.3275911
  %v116 = vmul.f32 %v114, 0.3275911
  %v117 = vadd.f32 %v115, 1.0
  %v118 = vadd.f32 %v116, 1.0
  %v119 = vrcp.pop %v117
  %v120 = vmul.f32 %v117, %v119
  %v121 = vsub.f32 1.0, %v120
  %v122 = vmul.f32 %v119, %v121
  %v123 = vadd.f32 %v119, %v122
  %vm124 = vweird.f32 %v117
  %vm125 = vweird.f32 %v119
  %vm126 = vmor %vm124, %vm125
  %v127 = vsel %vm126, %v119, %v123
  %v128 = vand.u32 2147483647, %v117
  %vm129 = vcmp.eq.f32.partialorder %v128, 8.507059e+37
  %v130 = vand.u32 %v117, 2147483648
  %v131 = vor.u32 1.1754944e-38, %v130
  %v132 = vsel %vm129, %v131, %v127
  %v133 = vmul.f32 1.0, %v132
  %v134 = vrcp.pop %v118
  %v135 = vmul.f32 %v118, %v134
  %v136 = vsub.f32 1.0, %v135
  %v137 = vmul.f32 %v134, %v136
  %v138 = vadd.f32 %v134, %v137
  %vm139 = vweird.f32 %v118
  %vm140 = vweird.f32 %v134
  %vm141 = vmor %vm139, %vm140
  %v142 = vsel %vm141, %v134, %v138
  %v143 = vand.u32 2147483647, %v118
  %vm144 = vcmp.eq.f32.partialorder %v143, 8.507059e+37
  %v145 = vand.u32 %v118, 2147483648
  %v146 = vor.u32 1.1754944e-38, %v145
  %v147 = vsel %vm144, %v146, %v142
  %v148 = vmul.f32 1.0, %v147
  %v149 = vmul.f32 %v133, 1.0614054
  %v150 = vmul.f32 %v148, 1.0614054
  %v151 = vadd.f32 %v149, -1.4531521
  %v152 = vadd.f32 %v150, -1.4531521
  %v153 = vmul.f32 %v151, %v133
  %v154 = vmul.f32 %v152, %v148
  %v155 = vadd.f32 %v153, 1.4214138
  %v156 = vadd.f32 %v154, 1.4214138
  %v157 = vmul.f32 %v155, %v133
  %v158 = vmul.f32 %v156, %v148
  %v159 = vadd.f32 %v157, -0.28449672
  %v160 = vadd.f32 %v158, -0.28449672
  %v161 = vmul.f32 %v159, %v133
  %v162 = vmul.f32 %v160, %v148
  %v163 = vadd.f32 %v161, 0.2548296
  %v164 = vadd.f32 %v162, 0.2548296
  %v165 = vmul.f32 %v163, %v133
  %v166 = vmul.f32 %v164, %v148
  %v167 = vsub.f32 0.0, %v113
  %v168 = vsub.f32 0.0, %v114
  %v169 = vmul.f32 %v167, %v113
  %v170 = vmul.f32 %v168, %v114
  %v171 = vmul.f32 %v169, 1.442695
  %v172 = vpow.pop %v171
  %v173 = vmul.f32 %v170, 1.442695
  %v174 = vpow.pop %v173
  %v175 = vmul.f32 %v165, %v172
  %v176 = vmul.f32 %v166, %v174
  %v177 = vsub.f32 1.0, %v175
  %v178 = vsub.f32 1.0, %v176
  %v179 = vmul.f32 %v111, %v177
  %v180 = vmul.f32 %v112, %v178
  %v181 = vadd.f32 %v179, 1.0
  %v182 = vadd.f32 %v180, 1.0
  %v183 = vmul.f32 %v105, %v181
  %v184 = vmul.f32 %v106, %v182
  %v185 = vmul.f32 %v183, %v183
  %v186 = vmul.f32 %v184, %v184
  %v187 = vsel %vm31, %v185, 0.0
  %188 = vadd.xlane.f32.xlu0 %v187
  %v189 = vpop.xlane.xlu0 %188
  %v190 = vsel %vm31, %v186, 0.0
  %191 = vadd.xlane.f32.xlu0 %v190
  %v192 = vpop.xlane.xlu0 %191
  %v193 = vmul.f32 %v189, %v44
  %v194 = vmul.f32 %v192, %v44
  %v195 = vadd.f32 %v193, 1e-06
  %v196 = vadd.f32 %v194, 1e-06
  %v197 = vrsqrt.pop %v195
  %v198 = vmul.f32 %v197, %v195
  %v199 = vmul.f32 %v198, %v197
  %v200 = vmul.f32 0.5, %v199
  %v201 = vsub.f32 1.5, %v200
  %v202 = vmul.f32 %v197, %v201
  %vm203 = vweird.f32 %v195
  %vm204 = vweird.f32 %v197
  %vm205 = vmor %vm203, %vm204
  %v206 = vsel %vm205, %v197, %v202
  %v207 = vrsqrt.pop %v196
  %v208 = vmul.f32 %v207, %v196
  %v209 = vmul.f32 %v208, %v207
  %v210 = vmul.f32 0.5, %v209
  %v211 = vsub.f32 1.5, %v210
  %v212 = vmul.f32 %v207, %v211
  %vm213 = vweird.f32 %v196
  %vm214 = vweird.f32 %v207
  %vm215 = vmor %vm213, %vm214
  %v216 = vsel %vm215, %v207, %v212
  %v217 = vmul.f32 %v183, %v206
  %v218 = vmul.f32 %v184, %v216
  %v219 = vld [vmem:[%s4] sm:$0x1]
  %v221 = vperm.slane %v219, 0
  %v223 = vmul.f32 %v217, %v221
  %v224 = vmul.f32 %v218, %v221
  %v225 = vpack.c.bf16 %v224, %v223
  %v226 = vld [vmem:[%s5] sm:$0xff]
  %v227 = vld [vmem:[%s5 + $0x8] sm:$0xff]
  %v228 = vld [vmem:[%s5 + $0x10] sm:$0xff]
  %v229 = vld [vmem:[%s5 + $0x18] sm:$0xff]
  %v230 = vpack.c.bf16 %v227, %v226
  %v231 = vpack.c.bf16 %v229, %v228
  %v232 = vld [vmem:[%s6] sm:$0x1]
  %v234 = vperm.slane %v232, 0
  %v237 = vsel %vm31, %v225, 0
  %239 = vmatpush.bf16.msra.mxu0 0
  %240 = vmatpush.bf16.msra.mxu0 0
  %241 = vmatpush.bf16.msra.mxu0 0
  %242 = vmatpush.bf16.msra.mxu0 0
  %243 = vmatpush.bf16.msra.mxu0 0
  %244 = vmatpush.bf16.msra.mxu0 0
  %245 = vmatpush.bf16.msra.mxu0 %v231
  %246 = vmatpush.bf16.msra.mxu0 %v230
  %247 = vmatmul.bf16.gmra.mxu0 %v237
  %v248 = vpop.f32.mrf.mxu0
  %v249 = vadd.f32 %v234, %v248
  %v250 = vpop.f32.mrf.mxu0
  %v251 = vadd.f32 %v234, %v250
  %252 = vdwg.mxu0
  %v253 = vadd.f32 %v249, %v27
  %v254 = vadd.f32 %v251, %v28
  %255 = vst.msk [vmem:[%s7] sm:$0xff] %vm31, %v253
  %256 = vst.msk [vmem:[%s7 + $0x8] sm:$0xff] %vm31, %v254
  // Predicated region
  $region30: #{meant_v2_forward.33} parent=0 // pred_check
    _
  $region31: #{meant_v2_forward.33} parent=0 // pred_check_branch
    %258 = sbr.rel (0) target = $region33
  $region32: #{meant_v2_forward.33} parent=0 // pred_region
    _
  $region33: #{meant_v2_forward.33} parent=0 // pred_fallthru
    _
  // Predicated region
  $region34: #{meant_v2_forward.33} parent=0 // pred_check
    _
  $region35: #{meant_v2_forward.33} parent=0 // pred_check_branch
    %260 = sbr.rel (0) target = $region37
  $region36: #{meant_v2_forward.33} parent=0 // pred_region
    _
  $region37: #{meant_v2_forward.33} parent=0 // pred_fallthru
    _

// kernel: meant_v2_forward.35
$region0: #{meant_v2_forward.35}
  #allocation0 [shape = 'u32[]', space=smem, size = 0x4, offset = 0x4, fixed_abs, tag = 'smem constant byte address 0x4 - core index']
  #allocation1 [shape = 'u32[72,128]{1,0:T(1,128)}', space=vmem, size = 0x9000, scoped, tag = 'internal scratch']
  %s0 = inlined_call_operand.vmem [shape: f32[4,4,32], index: 0, kind: input, shape index: {}]
  %s1 = inlined_call_operand.vmem [shape: f32[4,32], index: 1, kind: output, shape index: {}]
  %s2 = sld [smem:[#allocation0]]
  $region14: #{meant_v2_forward.35} parent=0
    _
  %s4 = ssub.s32 1, %s2
  %s5 = scalar_select 0, %s4, %s2
  // Predicated region
  $region2: #{meant_v2_forward.35} parent=0 // pred_check
    _
  $region3: #{meant_v2_forward.35} parent=0 // pred_check_branch
    %7 = sbr.rel (0) target = $region5
  $region4: #{meant_v2_forward.35} parent=0 // pred_region
    _
  $region5: #{meant_v2_forward.35} parent=0 // pred_fallthru
    _
  %v8 = vld [vmem:[%s0] sm:$0xf]
  %v9 = vld [vmem:[%s0 + $0x4] sm:$0xf]
  %v10 = vld [vmem:[%s0 + $0x8] sm:$0xf]
  %v11 = vld [vmem:[%s0 + $0xc] sm:$0xf]
  %vm12 = vcmask 257024
  %v13 = vsel %vm12, %v8, 0.0
  %v14 = vrot.slane %v13, 4
  %v15 = vadd.f32 %v13, %v14
  %v16 = vrot.slane %v15, 2
  %v17 = vadd.f32 %v15, %v16
  %v18 = vrot.slane %v17, 1
  %v19 = vadd.f32 %v17, %v18
  %v20 = vsel %vm12, %v9, 0.0
  %v21 = vrot.slane %v20, 4
  %v22 = vadd.f32 %v20, %v21
  %v23 = vrot.slane %v22, 2
  %v24 = vadd.f32 %v22, %v23
  %v25 = vrot.slane %v24, 1
  %v26 = vadd.f32 %v24, %v25
  %v27 = vsel %vm12, %v10, 0.0
  %v28 = vrot.slane %v27, 4
  %v29 = vadd.f32 %v27, %v28
  %v30 = vrot.slane %v29, 2
  %v31 = vadd.f32 %v29, %v30
  %v32 = vrot.slane %v31, 1
  %v33 = vadd.f32 %v31, %v32
  %v34 = vsel %vm12, %v11, 0.0
  %v35 = vrot.slane %v34, 4
  %v36 = vadd.f32 %v34, %v35
  %v37 = vrot.slane %v36, 2
  %v38 = vadd.f32 %v36, %v37
  %v39 = vrot.slane %v38, 1
  %v40 = vadd.f32 %v38, %v39
  %v41 = vrcp.pop 4.0
  %v42 = vmul.f32 4.0, %v41
  %v43 = vsub.f32 1.0, %v42
  %v44 = vmul.f32 %v41, %v43
  %v45 = vadd.f32 %v41, %v44
  %vm46 = vweird.f32 %v41
  %v47 = vsel %vm46, %v41, %v45
  %v48 = vmul.f32 %v19, %v47
  %v49 = vmul.f32 %v26, %v47
  %v50 = vmul.f32 %v33, %v47
  %v51 = vmul.f32 %v40, %v47
  %vm56 = vcmask 1041409
  %v57 = vsel %vm56, %v49, %v48
  %vm58 = vcmask 1042434
  %v59 = vsel %vm58, %v50, %v57
  %vm60 = vcmask 1043459
  %v61 = vsel %vm60, %v51, %v59
  %63 = vst.msk [vmem:[%s1] sm:$0xf] %vm12, %v61
  // Predicated region
  $region6: #{meant_v2_forward.35} parent=0 // pred_check
    _
  $region7: #{meant_v2_forward.35} parent=0 // pred_check_branch
    %65 = sbr.rel (0) target = $region9
  $region8: #{meant_v2_forward.35} parent=0 // pred_region
    _
  $region9: #{meant_v2_forward.35} parent=0 // pred_fallthru
    _
  // Predicated region
  $region10: #{meant_v2_forward.35} parent=0 // pred_check
    _
  $region11: #{meant_v2_forward.35} parent=0 // pred_check_branch
    %67 = sbr.rel (0) target = $region13
  $region12: #{meant_v2_forward.35} parent=0 // pred_region
    _
  $region13: #{meant_v2_forward.35} parent=0 // pred_fallthru
    _

// kernel: meant_v2_forward.21
$region0: #{meant_v2_forward.21}
  #allocation0 [shape = 'u32[]', space=smem, size = 0x4, offset = 0x4, fixed_abs, tag = 'smem constant byte address 0x4 - core index']
  #allocation1 [shape = 'u32[72,128]{1,0:T(1,128)}', space=vmem, size = 0x9000, scoped, tag = 'internal scratch']
  %s0 = inlined_call_operand.vmem [shape: f32[32,32], index: 0, kind: input, shape index: {}]
  %s1 = inlined_call_operand.vmem [shape: f32[1,32], index: 1, kind: input, shape index: {}]
  %s2 = inlined_call_operand.vmem [shape: f32[32,32], index: 2, kind: input, shape index: {}]
  %s3 = inlined_call_operand.vmem [shape: f32[1,32], index: 3, kind: input, shape index: {}]
  %s4 = inlined_call_operand.vmem [shape: f32[32,32], index: 4, kind: output, shape index: {}]
  %s5 = sld [smem:[#allocation0]]
  $region26: #{meant_v2_forward.21} parent=0
    _
  %s7 = ssub.s32 1, %s5
  %s8 = scalar_select 0, %s7, %s5
  // Predicated region
  $region2: #{meant_v2_forward.21} parent=0 // pred_check
    _
  $region3: #{meant_v2_forward.21} parent=0 // pred_check_branch
    %10 = sbr.rel (0) target = $region5
  $region4: #{meant_v2_forward.21} parent=0 // pred_region
    _
  $region5: #{meant_v2_forward.21} parent=0 // pred_fallthru
    _
  // Predicated region
  $region6: #{meant_v2_forward.21} parent=0 // pred_check
    _
  $region7: #{meant_v2_forward.21} parent=0 // pred_check_branch
    %12 = sbr.rel (0) target = $region9
  $region8: #{meant_v2_forward.21} parent=0 // pred_region
    _
  $region9: #{meant_v2_forward.21} parent=0 // pred_fallthru
    _
  // Predicated region
  $region10: #{meant_v2_forward.21} parent=0 // pred_check
    _
  $region11: #{meant_v2_forward.21} parent=0 // pred_check_branch
    %14 = sbr.rel (0) target = $region13
  $region12: #{meant_v2_forward.21} parent=0 // pred_region
    _
  $region13: #{meant_v2_forward.21} parent=0 // pred_fallthru
    _
  // Predicated region
  $region14: #{meant_v2_forward.21} parent=0 // pred_check
    _
  $region15: #{meant_v2_forward.21} parent=0 // pred_check_branch
    %16 = sbr.rel (0) target = $region17
  $region16: #{meant_v2_forward.21} parent=0 // pred_region
    _
  $region17: #{meant_v2_forward.21} parent=0 // pred_fallthru
    _
  %v18 = vld [vmem:[%s0] sm:$0xff]
  %v19 = vld [vmem:[%s0 + $0x8] sm:$0xff]
  %v20 = vld [vmem:[%s0 + $0x10] sm:$0xff]
  %v21 = vld [vmem:[%s0 + $0x18] sm:$0xff]
  %v22 = vmul.f32 %v18, %v18
  %v23 = vmul.f32 %v19, %v19
  %v24 = vmul.f32 %v20, %v20
  %v25 = vmul.f32 %v21, %v21
  %vm26 = vcmask 261120
  %v27 = vsel %vm26, %v22, 0.0
  %28 = vadd.xlane.f32.xlu0 %v27
  %v29 = vpop.xlane.xlu0 %28
  %v30 = vsel %vm26, %v23, 0.0
  %31 = vadd.xlane.f32.xlu0 %v30
  %v32 = vpop.xlane.xlu0 %31
  %v33 = vsel %vm26, %v24, 0.0
  %34 = vadd.xlane.f32.xlu0 %v33
  %v35 = vpop.xlane.xlu0 %34
  %v36 = vsel %vm26, %v25, 0.0
  %37 = vadd.xlane.f32.xlu0 %v36
  %v38 = vpop.xlane.xlu0 %37
  %v39 = vrcp.pop 32.0
  %v40 = vmul.f32 32.0, %v39
  %v41 = vsub.f32 1.0, %v40
  %v42 = vmul.f32 %v39, %v41
  %v43 = vadd.f32 %v39, %v42
  %vm44 = vweird.f32 %v39
  %v45 = vsel %vm44, %v39, %v43
  %v46 = vmul.f32 %v29, %v45
  %v47 = vmul.f32 %v32, %v45
  %v48 = vmul.f32 %v35, %v45
  %v49 = vmul.f32 %v38, %v45
  %v50 = vadd.f32 %v46, 1e-06
  %v51 = vadd.f32 %v47, 1e-06
  %v52 = vadd.f32 %v48, 1e-06
  %v53 = vadd.f32 %v49, 1e-06
  %v54 = vrsqrt.pop %v50
  %v55 = vmul.f32 %v54, %v50
  %v56 = vmul.f32 %v55, %v54
  %v57 = vmul.f32 0.5, %v56
  %v58 = vsub.f32 1.5, %v57
  %v59 = vmul.f32 %v54, %v58
  %vm60 = vweird.f32 %v50
  %vm61 = vweird.f32 %v54
  %vm62 = vmor %vm60, %vm61
  %v63 = vsel %vm62, %v54, %v59
  %v64 = vrsqrt.pop %v51
  %v65 = vmul.f32 %v64, %v51
  %v66 = vmul.f32 %v65, %v64
  %v67 = vmul.f32 0.5, %v66
  %v68 = vsub.f32 1.5, %v67
  %v69 = vmul.f32 %v64, %v68
  %vm70 = vweird.f32 %v51
  %vm71 = vweird.f32 %v64
  %vm72 = vmor %vm70, %vm71
  %v73 = vsel %vm72, %v64, %v69
  %v74 = vrsqrt.pop %v52
  %v75 = vmul.f32 %v74, %v52
  %v76 = vmul.f32 %v75, %v74
  %v77 = vmul.f32 0.5, %v76
  %v78 = vsub.f32 1.5, %v77
  %v79 = vmul.f32 %v74, %v78
  %vm80 = vweird.f32 %v52
  %vm81 = vweird.f32 %v74
  %vm82 = vmor %vm80, %vm81
  %v83 = vsel %vm82, %v74, %v79
  %v84 = vrsqrt.pop %v53
  %v85 = vmul.f32 %v84, %v53
  %v86 = vmul.f32 %v85, %v84
  %v87 = vmul.f32 0.5, %v86
  %v88 = vsub.f32 1.5, %v87
  %v89 = vmul.f32 %v84, %v88
  %vm90 = vweird.f32 %v53
  %vm91 = vweird.f32 %v84
  %vm92 = vmor %vm90, %vm91
  %v93 = vsel %vm92, %v84, %v89
  %v94 = vmul.f32 %v18, %v63
  %v95 = vmul.f32 %v19, %v73
  %v96 = vmul.f32 %v20, %v83
  %v97 = vmul.f32 %v21, %v93
  %v98 = vld [vmem:[%s1] sm:$0x1]
  %v100 = vperm.slane %v98, 0
  %v102 = vmul.f32 %v94, %v100
  %v103 = vmul.f32 %v95, %v100
  %v104 = vmul.f32 %v96, %v100
  %v105 = vmul.f32 %v97, %v100
  %v106 = vpack.c.bf16 %v103, %v102
  %v107 = vpack.c.bf16 %v105, %v104
  %v108 = vld [vmem:[%s2] sm:$0xff]
  %v109 = vld [vmem:[%s2 + $0x8] sm:$0xff]
  %v110 = vld [vmem:[%s2 + $0x10] sm:$0xff]
  %v111 = vld [vmem:[%s2 + $0x18] sm:$0xff]
  %v112 = vpack.c.bf16 %v109, %v108
  %v113 = vpack.c.bf16 %v111, %v110
  %v114 = vld [vmem:[%s3] sm:$0x1]
  %v116 = vperm.slane %v114, 0
  %v119 = vsel %vm26, %v106, 0
  %v122 = vsel %vm26, %v107, 0
  %124 = vmatpush.bf16.msra.mxu0 0
  %125 = vmatpush.bf16.msra.mxu0 0
  %126 = vmatpush.bf16.msra.mxu0 0
  %127 = vmatpush.bf16.msra.mxu0 0
  %128 = vmatpush.bf16.msra.mxu0 0
  %129 = vmatpush.bf16.msra.mxu0 0
  %130 = vmatpush.bf16.msra.mxu0 %v113
  %131 = vmatpush.bf16.msra.mxu0 %v112
  %132 = vmatmul.bf16.gmra.mxu0 %v119
  %v133 = vpop.f32.mrf.mxu0
  %v134 = vadd.f32 %v116, %v133
  %v135 = vpop.f32.mrf.mxu0
  %v136 = vadd.f32 %v116, %v135
  %137 = vmatmul.bf16.gmra.mxu0 %v122
  %v138 = vpop.f32.mrf.mxu0
  %v139 = vadd.f32 %v116, %v138
  %v140 = vpop.f32.mrf.mxu0
  %v141 = vadd.f32 %v116, %v140
  %142 = vdwg.mxu0
  %143 = vst.msk [vmem:[%s4] sm:$0xff] %vm26, %v134
  %144 = vst.msk [vmem:[%s4 + $0x8] sm:$0xff] %vm26, %v136
  %145 = vst.msk [vmem:[%s4 + $0x10] sm:$0xff] %vm26, %v139
  %146 = vst.msk [vmem:[%s4 + $0x18] sm:$0xff] %vm26, %v141
  // Predicated region
  $region18: #{meant_v2_forward.21} parent=0 // pred_check
    _
  $region19: #{meant_v2_forward.21} parent=0 // pred_check_branch
    %148 = sbr.rel (0) target = $region21
  $region20: #{meant_v2_forward.21} parent=0 // pred_region
    _
  $region21: #{meant_v2_forward.21} parent=0 // pred_fallthru
    _
  // Predicated region
  $region22: #{meant_v2_forward.21} parent=0 // pred_check
    _
  $region23: #{meant_v2_forward.21} parent=0 // pred_check_branch
    %150 = sbr.rel (0) target = $region25
  $region24: #{meant_v2_forward.21} parent=0 // pred_region
    _
  $region25: #{meant_v2_forward.21} parent=0 // pred_fallthru
    _

// kernel: meant_v2_forward.22
$region0: #{meant_v2_forward.22}
  #allocation0 [shape = 'u32[]', space=smem, size = 0x4, offset = 0x4, fixed_abs, tag = 'smem constant byte address 0x4 - core index']
  #allocation1 [shape = 'u32[72,128]{1,0:T(1,128)}', space=vmem, size = 0x9000, scoped, tag = 'internal scratch']
  %s0 = inlined_call_operand.vmem [shape: f32[32,32], index: 0, kind: input, shape index: {}]
  %s1 = inlined_call_operand.vmem [shape: f32[1,32], index: 1, kind: input, shape index: {}]
  %s2 = inlined_call_operand.vmem [shape: f32[32,96], index: 2, kind: input, shape index: {}]
  %s3 = inlined_call_operand.vmem [shape: f32[1,96], index: 3, kind: input, shape index: {}]
  %s4 = inlined_call_operand.vmem [shape: f32[32,96], index: 4, kind: output, shape index: {}]
  %s5 = sld [smem:[#allocation0]]
  $region26: #{meant_v2_forward.22} parent=0
    _
  %s7 = ssub.s32 1, %s5
  %s8 = scalar_select 0, %s7, %s5
  // Predicated region
  $region2: #{meant_v2_forward.22} parent=0 // pred_check
    _
  $region3: #{meant_v2_forward.22} parent=0 // pred_check_branch
    %10 = sbr.rel (0) target = $region5
  $region4: #{meant_v2_forward.22} parent=0 // pred_region
    _
  $region5: #{meant_v2_forward.22} parent=0 // pred_fallthru
    _
  // Predicated region
  $region6: #{meant_v2_forward.22} parent=0 // pred_check
    _
  $region7: #{meant_v2_forward.22} parent=0 // pred_check_branch
    %12 = sbr.rel (0) target = $region9
  $region8: #{meant_v2_forward.22} parent=0 // pred_region
    _
  $region9: #{meant_v2_forward.22} parent=0 // pred_fallthru
    _
  // Predicated region
  $region10: #{meant_v2_forward.22} parent=0 // pred_check
    _
  $region11: #{meant_v2_forward.22} parent=0 // pred_check_branch
    %14 = sbr.rel (0) target = $region13
  $region12: #{meant_v2_forward.22} parent=0 // pred_region
    _
  $region13: #{meant_v2_forward.22} parent=0 // pred_fallthru
    _
  // Predicated region
  $region14: #{meant_v2_forward.22} parent=0 // pred_check
    _
  $region15: #{meant_v2_forward.22} parent=0 // pred_check_branch
    %16 = sbr.rel (0) target = $region17
  $region16: #{meant_v2_forward.22} parent=0 // pred_region
    _
  $region17: #{meant_v2_forward.22} parent=0 // pred_fallthru
    _
  %v18 = vld [vmem:[%s0] sm:$0xff]
  %v19 = vld [vmem:[%s0 + $0x8] sm:$0xff]
  %v20 = vld [vmem:[%s0 + $0x10] sm:$0xff]
  %v21 = vld [vmem:[%s0 + $0x18] sm:$0xff]
  %v22 = vpack.c.bf16 %v19, %v18
  %v23 = vpack.c.bf16 %v21, %v20
  %v24 = vld [vmem:[%s2] sm:$0xff]
  %v25 = vld [vmem:[%s2 + $0x8] sm:$0xff]
  %v26 = vld [vmem:[%s2 + $0x10] sm:$0xff]
  %v27 = vld [vmem:[%s2 + $0x18] sm:$0xff]
  %v28 = vpack.c.bf16 %v25, %v24
  %v29 = vpack.c.bf16 %v27, %v26
  %v30 = vld [vmem:[%s3] sm:$0x1]
  %v32 = vperm.slane %v30, 0
  %vm34 = vcmask 261120
  %v36 = vsel %vm34, %v22, 0
  %v39 = vsel %vm34, %v23, 0
  %41 = vmatpush.bf16.msra.mxu0 0
  %42 = vmatpush.bf16.msra.mxu0 0
  %43 = vmatpush.bf16.msra.mxu0 0
  %44 = vmatpush.bf16.msra.mxu0 0
  %45 = vmatpush.bf16.msra.mxu0 0
  %46 = vmatpush.bf16.msra.mxu0 0
  %47 = vmatpush.bf16.msra.mxu0 %v29
  %48 = vmatpush.bf16.msra.mxu0 %v28
  %49 = vmatmul.bf16.gmra.mxu0 %v36
  %v50 = vpop.f32.mrf.mxu0
  %v51 = vadd.f32 %v32, %v50
  %v52 = vpop.f32.mrf.mxu0
  %v53 = vadd.f32 %v32, %v52
  %54 = vmatmul.bf16.gmra.mxu0 %v39
  %v55 = vpop.f32.mrf.mxu0
  %v56 = vadd.f32 %v32, %v55
  %v57 = vpop.f32.mrf.mxu0
  %v58 = vadd.f32 %v32, %v57
  %59 = vdwg.mxu0
  %vm60 = vcmask 785408
  %61 = vst.msk [vmem:[%s4] sm:$0xff] %vm60, %v51
  %62 = vst.msk [vmem:[%s4 + $0x8] sm:$0xff] %vm60, %v53
  %63 = vst.msk [vmem:[%s4 + $0x10] sm:$0xff] %vm60, %v56
  %64 = vst.msk [vmem:[%s4 + $0x18] sm:$0xff] %vm60, %v58
  // Predicated region
  $region18: #{meant_v2_forward.22} parent=0 // pred_check
    _
  $region19: #{meant_v2_forward.22} parent=0 // pred_check_branch
    %66 = sbr.rel (0) target = $region21
  $region20: #{meant_v2_forward.22} parent=0 // pred_region
    _
  $region21: #{meant_v2_forward.22} parent=0 // pred_fallthru
    _
  // Predicated region
  $region22: #{meant_v2_forward.22} parent=0 // pred_check
    _
  $region23: #{meant_v2_forward.22} parent=0 // pred_check_branch
    %68 = sbr.rel (0) target = $region25
  $region24: #{meant_v2_forward.22} parent=0 // pred_region
    _
  $region25: #{meant_v2_forward.22} parent=0 // pred_fallthru
    _

// kernel: meant_v2_forward.24
$region0: #{meant_v2_forward.24}
  #allocation0 [shape = 'u32[]', space=smem, size = 0x4, offset = 0x4, fixed_abs, tag = 'smem constant byte address 0x4 - core index']
  #allocation1 [shape = 'u32[72,128]{1,0:T(1,128)}', space=vmem, size = 0x9000, scoped, tag = 'internal scratch']
  %s0 = inlined_call_operand.vmem [shape: f32[32,32], index: 0, kind: input, shape index: {}]
  %s1 = inlined_call_operand.vmem [shape: f32[1,32], index: 1, kind: input, shape index: {}]
  %s2 = inlined_call_operand.vmem [shape: f32[32,32], index: 2, kind: input, shape index: {}]
  %s3 = inlined_call_operand.vmem [shape: f32[1,32], index: 3, kind: input, shape index: {}]
  %s4 = inlined_call_operand.vmem [shape: f32[32,32], index: 4, kind: output, shape index: {}]
  %s5 = sld [smem:[#allocation0]]
  $region26: #{meant_v2_forward.24} parent=0
    _
  %s7 = ssub.s32 1, %s5
  %s8 = scalar_select 0, %s7, %s5
  // Predicated region
  $region2: #{meant_v2_forward.24} parent=0 // pred_check
    _
  $region3: #{meant_v2_forward.24} parent=0 // pred_check_branch
    %10 = sbr.rel (0) target = $region5
  $region4: #{meant_v2_forward.24} parent=0 // pred_region
    _
  $region5: #{meant_v2_forward.24} parent=0 // pred_fallthru
    _
  // Predicated region
  $region6: #{meant_v2_forward.24} parent=0 // pred_check
    _
  $region7: #{meant_v2_forward.24} parent=0 // pred_check_branch
    %12 = sbr.rel (0) target = $region9
  $region8: #{meant_v2_forward.24} parent=0 // pred_region
    _
  $region9: #{meant_v2_forward.24} parent=0 // pred_fallthru
    _
  // Predicated region
  $region10: #{meant_v2_forward.24} parent=0 // pred_check
    _
  $region11: #{meant_v2_forward.24} parent=0 // pred_check_branch
    %14 = sbr.rel (0) target = $region13
  $region12: #{meant_v2_forward.24} parent=0 // pred_region
    _
  $region13: #{meant_v2_forward.24} parent=0 // pred_fallthru
    _
  // Predicated region
  $region14: #{meant_v2_forward.24} parent=0 // pred_check
    _
  $region15: #{meant_v2_forward.24} parent=0 // pred_check_branch
    %16 = sbr.rel (0) target = $region17
  $region16: #{meant_v2_forward.24} parent=0 // pred_region
    _
  $region17: #{meant_v2_forward.24} parent=0 // pred_fallthru
    _
  %v18 = vld [vmem:[%s0] sm:$0xff]
  %v19 = vld [vmem:[%s0 + $0x8] sm:$0xff]
  %v20 = vld [vmem:[%s0 + $0x10] sm:$0xff]
  %v21 = vld [vmem:[%s0 + $0x18] sm:$0xff]
  %v22 = vpack.c.bf16 %v19, %v18
  %v23 = vpack.c.bf16 %v21, %v20
  %v24 = vld [vmem:[%s2] sm:$0xff]
  %v25 = vld [vmem:[%s2 + $0x8] sm:$0xff]
  %v26 = vld [vmem:[%s2 + $0x10] sm:$0xff]
  %v27 = vld [vmem:[%s2 + $0x18] sm:$0xff]
  %v28 = vpack.c.bf16 %v25, %v24
  %v29 = vpack.c.bf16 %v27, %v26
  %v30 = vld [vmem:[%s3] sm:$0x1]
  %v32 = vperm.slane %v30, 0
  %vm34 = vcmask 261120
  %v36 = vsel %vm34, %v22, 0
  %v39 = vsel %vm34, %v23, 0
  %41 = vmatpush.bf16.msra.mxu0 0
  %42 = vmatpush.bf16.msra.mxu0 0
  %43 = vmatpush.bf16.msra.mxu0 0
  %44 = vmatpush.bf16.msra.mxu0 0
  %45 = vmatpush.bf16.msra.mxu0 0
  %46 = vmatpush.bf16.msra.mxu0 0
  %47 = vmatpush.bf16.msra.mxu0 %v29
  %48 = vmatpush.bf16.msra.mxu0 %v28
  %49 = vmatmul.bf16.gmra.mxu0 %v36
  %v50 = vpop.f32.mrf.mxu0
  %v51 = vadd.f32 %v32, %v50
  %v52 = vpop.f32.mrf.mxu0
  %v53 = vadd.f32 %v32, %v52
  %54 = vmatmul.bf16.gmra.mxu0 %v39
  %v55 = vpop.f32.mrf.mxu0
  %v56 = vadd.f32 %v32, %v55
  %v57 = vpop.f32.mrf.mxu0
  %v58 = vadd.f32 %v32, %v57
  %59 = vdwg.mxu0
  %60 = vst.msk [vmem:[%s4] sm:$0xff] %vm34, %v51
  %61 = vst.msk [vmem:[%s4 + $0x8] sm:$0xff] %vm34, %v53
  %62 = vst.msk [vmem:[%s4 + $0x10] sm:$0xff] %vm34, %v56
  %63 = vst.msk [vmem:[%s4 + $0x18] sm:$0xff] %vm34, %v58
  // Predicated region
  $region18: #{meant_v2_forward.24} parent=0 // pred_check
    _
  $region19: #{meant_v2_forward.24} parent=0 // pred_check_branch
    %65 = sbr.rel (0) target = $region21
  $region20: #{meant_v2_forward.24} parent=0 // pred_region
    _
  $region21: #{meant_v2_forward.24} parent=0 // pred_fallthru
    _
  // Predicated region
  $region22: #{meant_v2_forward.24} parent=0 // pred_check
    _
  $region23: #{meant_v2_forward.24} parent=0 // pred_check_branch
    %67 = sbr.rel (0) target = $region25
  $region24: #{meant_v2_forward.24} parent=0 // pred_region
    _
  $region25: #{meant_v2_forward.24} parent=0 // pred_fallthru
    _

// kernel: meant_v2_forward.23
$region0: #{meant_v2_forward.23}
  #allocation0 [shape = 'u32[]', space=smem, size = 0x4, offset = 0x4, fixed_abs, tag = 'smem constant byte address 0x4 - core index']
  #allocation1 [shape = 'u32[72,128]{1,0:T(1,128)}', space=vmem, size = 0x9000, scoped, tag = 'internal scratch']
  %s0 = inlined_call_operand.vmem [shape: f32[4,8,32], index: 0, kind: input, shape index: {}]
  %s1 = inlined_call_operand.vmem [shape: f32[4,8,32], index: 1, kind: input, shape index: {}]
  %s2 = inlined_call_operand.vmem [shape: f32[4,8,32], index: 2, kind: input, shape index: {}]
  %s3 = inlined_call_operand.vmem [shape: f32[4,8,32], index: 3, kind: output, shape index: {}]
  %s4 = sld [smem:[#allocation0]]
  $region45: #{meant_v2_forward.23} parent=0
    _
  %s6 = ssub.s32 1, %s4
  %s7 = scalar_select 0, %s6, %s4
  loop: start=0, step=1, limit=6
  $region2: #{meant_v2_forward.23} parent=0 // loop_pre_header
    _
  $region3: #{meant_v2_forward.23} parent=0 // loop_header
    %s9 = sphi 0, %s13
    %p10 = scmp.ge.s32.totalorder %s9, 6
    %s19 = sphi 0, %s21
    %s22 = sphi 0, %s19
    %s23 = sphi 0, %s22
    %s39 = sphi 0, %s23
    %s45 = sphi 0, %s47
    %s48 = sphi 0, %s45
    %s49 = sphi 0, %s48
    %s65 = sphi 0, %s49
    %s71 = sphi 0, %s73
    %s74 = sphi 0, %s71
    %s75 = sphi 0, %s74
    %s91 = sphi 0, %s75
    %s97 = sphi 0, %s99
    %s100 = sphi 0, %s97
    %s101 = sphi 0, %s100
    %s117 = sphi 0, %s101
  $region4: #{meant_v2_forward.23} parent=0 // loop_header_branch
    %12 = sbr.rel (%p10) target = $region8
  $region5: #{meant_v2_forward.23} parent=0 // loop_body
    %s14 = ssub.s32 %s9, 1
    %s15 = ssub.s32 %s9, 2
    %s16 = sadd.s32 %s9, 1
    %s17 = ssub.s32 %s9, %s16
    %p18 = scmp.eq.s32.totalorder %s17, 0
    %s20 = sadd.s32 %s19, 1
    %s21 = scalar_select %p18, %s19, %s20
    %p24 = pneg %p18
    %p25 = scmp.eq.s32.totalorder %s9, 3
    %p26 = por %p24, %p25
    %p27 = scmp.ne.s32.totalorder %s19, %s22
    %p28 = scmp.eq.s32.totalorder %s9, 0
    %p29 = por %p27, %p28
    %p30 = scmp.ne.s32.totalorder %s19, %s22
    %p31 = scmp.eq.s32.totalorder %s14, 3
    %p32 = por %p30, %p31
    %p33 = scmp.ne.s32.totalorder %s22, %s23
    %p34 = scmp.eq.s32.totalorder %s14, 0
    %p35 = por %p33, %p34
    %p36 = scmp.ne.s32.totalorder %s22, %s23
    %p37 = scmp.eq.s32.totalorder %s15, 3
    %p38 = por %p36, %p37
    %p40 = scmp.ne.s32.totalorder %s23, %s39
    %p41 = scmp.eq.s32.totalorder %s15, 0
    %p42 = por %p40, %p41
    %s43 = ssub.s32 %s9, %s16
    %p44 = scmp.eq.s32.totalorder %s43, 0
    %s46 = sadd.s32 %s45, 1
    %s47 = scalar_select %p44, %s45, %s46
    %p50 = pneg %p44
    %p51 = scmp.eq.s32.totalorder %s9, 3
    %p52 = por %p50, %p51
    %p53 = scmp.ne.s32.totalorder %s45, %s48
    %p54 = scmp.eq.s32.totalorder %s9, 0
    %p55 = por %p53, %p54
    %p56 = scmp.ne.s32.totalorder %s45, %s48
    %p57 = scmp.eq.s32.totalorder %s14, 3
    %p58 = por %p56, %p57
    %p59 = scmp.ne.s32.totalorder %s48, %s49
    %p60 = scmp.eq.s32.totalorder %s14, 0
    %p61 = por %p59, %p60
    %p62 = scmp.ne.s32.totalorder %s48, %s49
    %p63 = scmp.eq.s32.totalorder %s15, 3
    %p64 = por %p62, %p63
    %p66 = scmp.ne.s32.totalorder %s49, %s65
    %p67 = scmp.eq.s32.totalorder %s15, 0
    %p68 = por %p66, %p67
    %s69 = ssub.s32 %s9, %s16
    %p70 = scmp.eq.s32.totalorder %s69, 0
    %s72 = sadd.s32 %s71, 1
    %s73 = scalar_select %p70, %s71, %s72
    %p76 = pneg %p70
    %p77 = scmp.eq.s32.totalorder %s9, 3
    %p78 = por %p76, %p77
    %p79 = scmp.ne.s32.totalorder %s71, %s74
    %p80 = scmp.eq.s32.totalorder %s9, 0
    %p81 = por %p79, %p80
    %p82 = scmp.ne.s32.totalorder %s71, %s74
    %p83 = scmp.eq.s32.totalorder %s14, 3
    %p84 = por %p82, %p83
    %p85 = scmp.ne.s32.totalorder %s74, %s75
    %p86 = scmp.eq.s32.totalorder %s14, 0
    %p87 = por %p85, %p86
    %p88 = scmp.ne.s32.totalorder %s74, %s75
    %p89 = scmp.eq.s32.totalorder %s15, 3
    %p90 = por %p88, %p89
    %p92 = scmp.ne.s32.totalorder %s75, %s91
    %p93 = scmp.eq.s32.totalorder %s15, 0
    %p94 = por %p92, %p93
    %s95 = ssub.s32 %s9, %s16
    %p96 = scmp.eq.s32.totalorder %s95, 0
    %s98 = sadd.s32 %s97, 1
    %s99 = scalar_select %p96, %s97, %s98
    %p102 = pneg %p96
    %p103 = scmp.eq.s32.totalorder %s9, 3
    %p104 = por %p102, %p103
    %p105 = scmp.ne.s32.totalorder %s97, %s100
    %p106 = scmp.eq.s32.totalorder %s9, 0
    %p107 = por %p105, %p106
    %p108 = scmp.ne.s32.totalorder %s97, %s100
    %p109 = scmp.eq.s32.totalorder %s14, 3
    %p110 = por %p108, %p109
    %p111 = scmp.ne.s32.totalorder %s100, %s101
    %p112 = scmp.eq.s32.totalorder %s14, 0
    %p113 = por %p111, %p112
    %p114 = scmp.ne.s32.totalorder %s100, %s101
    %p115 = scmp.eq.s32.totalorder %s15, 3
    %p116 = por %p114, %p115
    %p118 = scmp.ne.s32.totalorder %s101, %s117
    %p119 = scmp.eq.s32.totalorder %s15, 0
    %p120 = por %p118, %p119
    %p121 = scmp.le.s32.totalorder 1, %s9
    %p122 = scmp.lt.s32.totalorder %s9, 5
    %p123 = pnand %p121, %p122
    %p124 = pneg %p123
    // Predicated region
    $region9: #{meant_v2_forward.23} parent=5 // pred_check
      _
    $region10: #{meant_v2_forward.23} parent=5 // pred_check_branch
      %126 = sbr.rel (%p123) target = $region12
    $region11: #{meant_v2_forward.23} parent=5 // pred_region
      %s127 = ssub.s32 %s9, 1
    $region12: #{meant_v2_forward.23} parent=5 // pred_fallthru
      _
    %p128 = scmp.lt.s32.totalorder %s9, 4
    // Predicated region
    $region13: #{meant_v2_forward.23} parent=5 // pred_check
      %p129 = pneg %p128
    $region14: #{meant_v2_forward.23} parent=5 // pred_check_branch
      %131 = sbr.rel (%p129) target = $region16
    $region15: #{meant_v2_forward.23} parent=5 // pred_region
      // Predicated region
      $region17: #{meant_v2_forward.23} parent=15 // pred_check
        %p132 = pneg %p29
      $region18: #{meant_v2_forward.23} parent=15 // pred_check_branch
        %134 = sbr.rel (%p132) target = $region20
      $region19: #{meant_v2_forward.23} parent=15 // pred_region
        %p135 = scmp.lt.s32.totalorder %s9, 3
        %s136 = scalar_select %p135, %s9, 3
        %s137 = smul.addr %s136, 8
        %s138 = scalar_lea.vmem %s0, %s137
      $region20: #{meant_v2_forward.23} parent=15 // pred_fallthru
        _
      // Predicated region
      $region21: #{meant_v2_forward.23} parent=15 // pred_check
        %p139 = pneg %p55
      $region22: #{meant_v2_forward.23} parent=15 // pred_check_branch
        %141 = sbr.rel (%p139) target = $region24
      $region23: #{meant_v2_forward.23} parent=15 // pred_region
        %p142 = scmp.lt.s32.totalorder %s9, 3
        %s143 = scalar_select %p142, %s9, 3
        %s144 = smul.addr %s143, 8
        %s145 = scalar_lea.vmem %s1, %s144
      $region24: #{meant_v2_forward.23} parent=15 // pred_fallthru
        _
      // Predicated region
      $region25: #{meant_v2_forward.23} parent=15 // pred_check
        %p146 = pneg %p81
      $region26: #{meant_v2_forward.23} parent=15 // pred_check_branch
        %148 = sbr.rel (%p146) target = $region28
      $region27: #{meant_v2_forward.23} parent=15 // pred_region
        %p149 = scmp.lt.s32.totalorder %s9, 3
        %s150 = scalar_select %p149, %s9, 3
        %s151 = smul.addr %s150, 8
        %s152 = scalar_lea.vmem %s2, %s151
      $region28: #{meant_v2_forward.23} parent=15 // pred_fallthru
        _
    $region16: #{meant_v2_forward.23} parent=5 // pred_fallthru
      _
    %p153 = scmp.le.s32.totalorder 1, %s9
    %p154 = scmp.lt.s32.totalorder %s9, 5
    %p155 = pnand %p153, %p154
    %p156 = pneg %p155
    // Predicated region
    $region29: #{meant_v2_forward.23} parent=5 // pred_check
      _
    $region30: #{meant_v2_forward.23} parent=5 // pred_check_branch
      %158 = sbr.rel (%p155) target = $region32
    $region31: #{meant_v2_forward.23} parent=5 // pred_region
      %s159 = ssub.s32 %s9, 1
      %p160 = scmp.lt.s32.totalorder %s14, 3
      %s161 = scalar_select %p160, %s14, 3
      %s162 = smul.addr %s161, 8
      %s163 = scalar_lea.vmem %s0, %s162
      %p164 = pneg %p35
      %p165 = pneg %p32
      %p166 = scmp.lt.s32.totalorder %s14, 3
      %s167 = scalar_select %p166, %s14, 3
      %s168 = smul.addr %s167, 8
      %s169 = scalar_lea.vmem %s1, %s168
      %p170 = pneg %p61
      %p171 = pneg %p58
      %p172 = scmp.lt.s32.totalorder %s14, 3
      %s173 = scalar_select %p172, %s14, 3
      %s174 = smul.addr %s173, 8
      %s175 = scalar_lea.vmem %s2, %s174
      %p176 = pneg %p87
      %p177 = pneg %p84
      %p178 = pneg %p113
      %p179 = pneg %p110
      %p180 = scmp.lt.s32.totalorder %s14, 3
      %s181 = scalar_select %p180, %s14, 3
      %s182 = smul.addr %s181, 8
      %s183 = scalar_lea.vmem %s3, %s182
      %p184 = scmp.lt.s32.totalorder %s14, 3
      %s185 = scalar_select %p184, %s14, 3
      %s186 = smul.addr %s185, 8
      %s187 = scalar_lea.vmem %s0, %s186
      %p188 = scmp.lt.s32.totalorder %s14, 3
      %s189 = scalar_select %p188, %s14, 3
      %s190 = smul.addr %s189, 8
      %s191 = scalar_lea.vmem %s1, %s190
      %p192 = scmp.lt.s32.totalorder %s14, 3
      %s193 = scalar_select %p192, %s14, 3
      %s194 = smul.addr %s193, 8
      %s195 = scalar_lea.vmem %s2, %s194
      %p196 = scmp.lt.s32.totalorder %s14, 3
      %s197 = scalar_select %p196, %s14, 3
      %s198 = smul.addr %s197, 8
      %s199 = scalar_lea.vmem %s3, %s198
      %v201 = vld [vmem:[%s187] sm:$0xff]
      %v202 = vld [vmem:[%s191] sm:$0xff]
      %v203 = vld [vmem:[%s195] sm:$0xff]
      %v204 = vpack.c.bf16 %v201, %v201
      %v205 = vpack.c.bf16 %v202, %v202
      %vm206 = vcmask 64512
      %v208 = vsel %vm206, %v204, 0
      %v211 = vsel %vm206, %v205, 0
      %213 = vmatpush.bf16.xpose.msra.mxu0 0
      %214 = vmatpush.bf16.xpose.msra.mxu0 0
      %215 = vmatpush.bf16.xpose.msra.mxu0 0
      %216 = vmatpush.bf16.xpose.msra.mxu0 0
      %217 = vmatpush.bf16.xpose.msra.mxu0 0
      %218 = vmatpush.bf16.xpose.msra.mxu0 0
      %219 = vmatpush.bf16.xpose.msra.mxu0 0
      %220 = vmatpush.bf16.xpose.msra.mxu0 %v211
      %221 = vmatmul.bf16.gmra.mxu0 %v208
      %v222 = vpop.f32.mrf.mxu0
      %v223 = vadd.f32 0.0, %v222
      %v224 = vpop.f32.mrf.mxu0
      %225 = vdwg.mxu0
      %v226 = vmul.f32 %v223, 0.35355338
      %v227 = vsel %vm206, %v226, -inf
      %228 = vmax.xlane.f32.xlu0 %v227
      %v229 = vpop.xlane.xlu0 %228
      %v230 = vsub.f32 %v226, %v229
      %v231 = vmul.f32 %v230, 1.442695
      %v232 = vpow.pop %v231
      %v233 = vsel %vm206, %v232, 0.0
      %234 = vadd.xlane.f32.xlu0 %v233
      %v235 = vpop.xlane.xlu0 %234
      %v236 = vrcp.pop %v235
      %v237 = vpack.c.bf16 %v232, %v232
      %v238 = vpack.c.bf16 %v203, %v203
      %v240 = vsel %vm206, %v237, 0
      %vm242 = vcmask 1043456
      %v244 = vsel %vm242, %v238, 0
      %246 = vmatpush.bf16.msra.mxu0 0
      %247 = vmatpush.bf16.msra.mxu0 0
      %248 = vmatpush.bf16.msra.mxu0 0
      %249 = vmatpush.bf16.msra.mxu0 0
      %250 = vmatpush.bf16.msra.mxu0 0
      %251 = vmatpush.bf16.msra.mxu0 0
      %252 = vmatpush.bf16.msra.mxu0 0
      %253 = vmatpush.bf16.msra.mxu0 %v244
      %254 = vmatmul.bf16.gmra.mxu0 %v240
      %v255 = vpop.f32.mrf.mxu0
      %v256 = vadd.f32 0.0, %v255
      %v257 = vpop.f32.mrf.mxu0
      %258 = vdwg.mxu0
      %v259 = vmul.f32 %v256, %v236
      %261 = vrot.lane.b32.xlu0 %v204, 120
      %v262 = vpop.permute.xlu0 %261
      %264 = vrot.lane.b32.xlu0 %v205, 120
      %v265 = vpop.permute.xlu0 %264
      %v267 = vsel %vm206, %v262, 0
      %v270 = vsel %vm206, %v265, 0
      %272 = vmatpush.bf16.xpose.msra.mxu0 0
      %273 = vmatpush.bf16.xpose.msra.mxu0 0
      %274 = vmatpush.bf16.xpose.msra.mxu0 0
      %275 = vmatpush.bf16.xpose.msra.mxu0 0
      %276 = vmatpush.bf16.xpose.msra.mxu0 0
      %277 = vmatpush.bf16.xpose.msra.mxu0 0
      %278 = vmatpush.bf16.xpose.msra.mxu0 0
      %279 = vmatpush.bf16.xpose.msra.mxu0 %v270
      %280 = vmatmul.bf16.gmra.mxu0 %v267
      %v281 = vpop.f32.mrf.mxu0
      %v282 = vadd.f32 0.0, %v281
      %v283 = vpop.f32.mrf.mxu0
      %284 = vdwg.mxu0
      %v285 = vmul.f32 %v282, 0.35355338
      %v286 = vsel %vm206, %v285, -inf
      %287 = vmax.xlane.f32.xlu0 %v286
      %v288 = vpop.xlane.xlu0 %287
      %v289 = vsub.f32 %v285, %v288
      %v290 = vmul.f32 %v289, 1.442695
      %v291 = vpow.pop %v290
      %v292 = vsel %vm206, %v291, 0.0
      %293 = vadd.xlane.f32.xlu0 %v292
      %v294 = vpop.xlane.xlu0 %293
      %v295 = vrcp.pop %v294
      %v296 = vpack.c.bf16 %v291, %v291
      %298 = vrot.lane.b32.xlu0 %v238, 120
      %v299 = vpop.permute.xlu0 %298
      %v301 = vsel %vm206, %v296, 0
      %v304 = vsel %vm242, %v299, 0
      %306 = vmatpush.bf16.msra.mxu0 0
      %307 = vmatpush.bf16.msra.mxu0 0
      %308 = vmatpush.bf16.msra.mxu0 0
      %309 = vmatpush.bf16.msra.mxu0 0
      %310 = vmatpush.bf16.msra.mxu0 0
      %311 = vmatpush.bf16.msra.mxu0 0
      %312 = vmatpush.bf16.msra.mxu0 0
      %313 = vmatpush.bf16.msra.mxu0 %v304
      %314 = vmatmul.bf16.gmra.mxu0 %v301
      %v315 = vpop.f32.mrf.mxu0
      %v316 = vadd.f32 0.0, %v315
      %v317 = vpop.f32.mrf.mxu0
      %318 = vdwg.mxu0
      %v319 = vmul.f32 %v316, %v295
      %320 = vrot.lane.b32.xlu0 %v204, 112
      %v321 = vpop.permute.xlu0 %320
      %322 = vrot.lane.b32.xlu0 %v205, 112
      %v323 = vpop.permute.xlu0 %322
      %v325 = vsel %vm206, %v321, 0
      %v328 = vsel %vm206, %v323, 0
      %330 = vmatpush.bf16.xpose.msra.mxu0 0
      %331 = vmatpush.bf16.xpose.msra.mxu0 0
      %332 = vmatpush.bf16.xpose.msra.mxu0 0
      %333 = vmatpush.bf16.xpose.msra.mxu0 0
      %334 = vmatpush.bf16.xpose.msra.mxu0 0
      %335 = vmatpush.bf16.xpose.msra.mxu0 0
      %336 = vmatpush.bf16.xpose.msra.mxu0 0
      %337 = vmatpush.bf16.xpose.msra.mxu0 %v328
      %338 = vmatmul.bf16.gmra.mxu0 %v325
      %v339 = vpop.f32.mrf.mxu0
      %v340 = vadd.f32 0.0, %v339
      %v341 = vpop.f32.mrf.mxu0
      %342 = vdwg.mxu0
      %v343 = vmul.f32 %v340, 0.35355338
      %v344 = vsel %vm206, %v343, -inf
      %345 = vmax.xlane.f32.xlu0 %v344
      %v346 = vpop.xlane.xlu0 %345
      %v347 = vsub.f32 %v343, %v346
      %v348 = vmul.f32 %v347, 1.442695
      %v349 = vpow.pop %v348
      %v350 = vsel %vm206, %v349, 0.0
      %351 = vadd.xlane.f32.xlu0 %v350
      %v352 = vpop.xlane.xlu0 %351
      %v353 = vrcp.pop %v352
      %v354 = vpack.c.bf16 %v349, %v349
      %355 = vrot.lane.b32.xlu0 %v238, 112
      %v356 = vpop.permute.xlu0 %355
      %v358 = vsel %vm206, %v354, 0
      %v361 = vsel %vm242, %v356, 0
      %363 = vmatpush.bf16.msra.mxu0 0
      %364 = vmatpush.bf16.msra.mxu0 0
      %365 = vmatpush.bf16.msra.mxu0 0
      %366 = vmatpush.bf16.msra.mxu0 0
      %367 = vmatpush.bf16.msra.mxu0 0
      %368 = vmatpush.bf16.msra.mxu0 0
      %369 = vmatpush.bf16.msra.mxu0 0
      %370 = vmatpush.bf16.msra.mxu0 %v361
      %371 = vmatmul.bf16.gmra.mxu0 %v358
      %v372 = vpop.f32.mrf.mxu0
      %v373 = vadd.f32 0.0, %v372
      %v374 = vpop.f32.mrf.mxu0
      %375 = vdwg.mxu0
      %v376 = vmul.f32 %v373, %v353
      %377 = vrot.lane.b32.xlu0 %v204, 104
      %v378 = vpop.permute.xlu0 %377
      %379 = vrot.lane.b32.xlu0 %v205, 104
      %v380 = vpop.permute.xlu0 %379
      %v382 = vsel %vm206, %v378, 0
      %v385 = vsel %vm206, %v380, 0
      %387 = vmatpush.bf16.xpose.msra.mxu0 0
      %388 = vmatpush.bf16.xpose.msra.mxu0 0
      %389 = vmatpush.bf16.xpose.msra.mxu0 0
      %390 = vmatpush.bf16.xpose.msra.mxu0 0
      %391 = vmatpush.bf16.xpose.msra.mxu0 0
      %392 = vmatpush.bf16.xpose.msra.mxu0 0
      %393 = vmatpush.bf16.xpose.msra.mxu0 0
      %394 = vmatpush.bf16.xpose.msra.mxu0 %v385
      %395 = vmatmul.bf16.gmra.mxu0 %v382
      %v396 = vpop.f32.mrf.mxu0
      %v397 = vadd.f32 0.0, %v396
      %v398 = vpop.f32.mrf.mxu0
      %399 = vdwg.mxu0
      %v400 = vmul.f32 %v397, 0.35355338
      %v401 = vsel %vm206, %v400, -inf
      %402 = vmax.xlane.f32.xlu0 %v401
      %v403 = vpop.xlane.xlu0 %402
      %v404 = vsub.f32 %v400, %v403
      %v405 = vmul.f32 %v404, 1.442695
      %v406 = vpow.pop %v405
      %v407 = vsel %vm206, %v406, 0.0
      %408 = vadd.xlane.f32.xlu0 %v407
      %v409 = vpop.xlane.xlu0 %408
      %v410 = vrcp.pop %v409
      %v411 = vpack.c.bf16 %v406, %v406
      %412 = vrot.lane.b32.xlu0 %v238, 104
      %v413 = vpop.permute.xlu0 %412
      %v415 = vsel %vm206, %v411, 0
      %v418 = vsel %vm242, %v413, 0
      %420 = vmatpush.bf16.msra.mxu0 0
      %421 = vmatpush.bf16.msra.mxu0 0
      %422 = vmatpush.bf16.msra.mxu0 0
      %423 = vmatpush.bf16.msra.mxu0 0
      %424 = vmatpush.bf16.msra.mxu0 0
      %425 = vmatpush.bf16.msra.mxu0 0
      %426 = vmatpush.bf16.msra.mxu0 0
      %427 = vmatpush.bf16.msra.mxu0 %v418
      %428 = vmatmul.bf16.gmra.mxu0 %v415
      %v429 = vpop.f32.mrf.mxu0
      %v430 = vadd.f32 0.0, %v429
      %v431 = vpop.f32.mrf.mxu0
      %432 = vdwg.mxu0
      %v433 = vmul.f32 %v430, %v410
      %435 = vrot.lane.b32.xlu0 %v319, 8
      %v436 = vpop.permute.xlu0 %435
      %439 = vrot.lane.b32.xlu0 %v376, 16
      %v440 = vpop.permute.xlu0 %439
      %443 = vrot.lane.b32.xlu0 %v433, 24
      %v444 = vpop.permute.xlu0 %443
      %v446 = vsel %vm206, %v259, %v436
      %vm447 = vcmask 130048
      %v448 = vsel %vm447, %v446, %v440
      %vm449 = vcmask 195584
      %v450 = vsel %vm449, %v448, %v444
      %vm451 = vcmask 261120
      %452 = vst.msk [vmem:[%s199] sm:$0xff] %vm451, %v450
      %p453 = scmp.lt.s32.totalorder %s14, 3
      %s454 = scalar_select %p453, %s14, 3
      %s455 = smul.addr %s454, 8
      %s456 = scalar_lea.vmem %s3, %s455
      // Predicated region
      $region33: #{meant_v2_forward.23} parent=31 // pred_check
        %p457 = pneg %p110
      $region34: #{meant_v2_forward.23} parent=31 // pred_check_branch
        %459 = sbr.rel (%p457) target = $region36
      $region35: #{meant_v2_forward.23} parent=31 // pred_region
        _
      $region36: #{meant_v2_forward.23} parent=31 // pred_fallthru
        _
    $region32: #{meant_v2_forward.23} parent=5 // pred_fallthru
      _
    %p460 = scmp.le.s32.totalorder 2, %s9
    // Predicated region
    $region37: #{meant_v2_forward.23} parent=5 // pred_check
      %p461 = pneg %p460
    $region38: #{meant_v2_forward.23} parent=5 // pred_check_branch
      %463 = sbr.rel (%p461) target = $region40
    $region39: #{meant_v2_forward.23} parent=5 // pred_region
      %s464 = ssub.s32 %s9, 2
      // Predicated region
      $region41: #{meant_v2_forward.23} parent=39 // pred_check
        %p465 = pneg %p116
      $region42: #{meant_v2_forward.23} parent=39 // pred_check_branch
        %467 = sbr.rel (%p465) target = $region44
      $region43: #{meant_v2_forward.23} parent=39 // pred_region
        %p468 = scmp.lt.s32.totalorder %s15, 3
        %s469 = scalar_select %p468, %s15, 3
        %s470 = smul.addr %s469, 8
        %s471 = scalar_lea.vmem %s3, %s470
      $region44: #{meant_v2_forward.23} parent=39 // pred_fallthru
        _
    $region40: #{meant_v2_forward.23} parent=5 // pred_fallthru
      _
  $region6: #{meant_v2_forward.23} parent=0 // loop_footer
    %s13 = sadd.s32 1, %s9
  $region7: #{meant_v2_forward.23} parent=0 // loop_footer_branch
    %8 = sbr.rel target = $region3
  $region8: #{meant_v2_forward.23} parent=0 // loop_exit
    _

// kernel: meant_v2_forward.25
$region0: #{meant_v2_forward.25}
  #allocation0 [shape = 'u32[]', space=smem, size = 0x4, offset = 0x4, fixed_abs, tag = 'smem constant byte address 0x4 - core index']
  #allocation1 [shape = 'u32[72,128]{1,0:T(1,128)}', space=vmem, size = 0x9000, scoped, tag = 'internal scratch']
  %s0 = inlined_call_operand.vmem [shape: f32[32,32], index: 0, kind: input, shape index: {}]
  %s1 = inlined_call_operand.vmem [shape: f32[32,32], index: 1, kind: input, shape index: {}]
  %s2 = inlined_call_operand.vmem [shape: f32[1,32], index: 2, kind: input, shape index: {}]
  %s3 = inlined_call_operand.vmem [shape: f32[32,32], index: 3, kind: input, shape index: {}]
  %s4 = inlined_call_operand.vmem [shape: f32[1,32], index: 4, kind: input, shape index: {}]
  %s5 = inlined_call_operand.vmem [shape: f32[32,32], index: 5, kind: output, shape index: {}]
  %s6 = sld [smem:[#allocation0]]
  $region30: #{meant_v2_forward.25} parent=0
    _
  %s8 = ssub.s32 1, %s6
  %s9 = scalar_select 0, %s8, %s6
  // Predicated region
  $region2: #{meant_v2_forward.25} parent=0 // pred_check
    _
  $region3: #{meant_v2_forward.25} parent=0 // pred_check_branch
    %11 = sbr.rel (0) target = $region5
  $region4: #{meant_v2_forward.25} parent=0 // pred_region
    _
  $region5: #{meant_v2_forward.25} parent=0 // pred_fallthru
    _
  // Predicated region
  $region6: #{meant_v2_forward.25} parent=0 // pred_check
    _
  $region7: #{meant_v2_forward.25} parent=0 // pred_check_branch
    %13 = sbr.rel (0) target = $region9
  $region8: #{meant_v2_forward.25} parent=0 // pred_region
    _
  $region9: #{meant_v2_forward.25} parent=0 // pred_fallthru
    _
  // Predicated region
  $region10: #{meant_v2_forward.25} parent=0 // pred_check
    _
  $region11: #{meant_v2_forward.25} parent=0 // pred_check_branch
    %15 = sbr.rel (0) target = $region13
  $region12: #{meant_v2_forward.25} parent=0 // pred_region
    _
  $region13: #{meant_v2_forward.25} parent=0 // pred_fallthru
    _
  // Predicated region
  $region14: #{meant_v2_forward.25} parent=0 // pred_check
    _
  $region15: #{meant_v2_forward.25} parent=0 // pred_check_branch
    %17 = sbr.rel (0) target = $region17
  $region16: #{meant_v2_forward.25} parent=0 // pred_region
    _
  $region17: #{meant_v2_forward.25} parent=0 // pred_fallthru
    _
  // Predicated region
  $region18: #{meant_v2_forward.25} parent=0 // pred_check
    _
  $region19: #{meant_v2_forward.25} parent=0 // pred_check_branch
    %19 = sbr.rel (0) target = $region21
  $region20: #{meant_v2_forward.25} parent=0 // pred_region
    _
  $region21: #{meant_v2_forward.25} parent=0 // pred_fallthru
    _
  %v21 = vld [vmem:[%s0] sm:$0xff]
  %v22 = vld [vmem:[%s0 + $0x8] sm:$0xff]
  %v23 = vld [vmem:[%s0 + $0x10] sm:$0xff]
  %v24 = vld [vmem:[%s0 + $0x18] sm:$0xff]
  %v25 = vmul.f32 %v21, %v21
  %v26 = vmul.f32 %v22, %v22
  %v27 = vmul.f32 %v23, %v23
  %v28 = vmul.f32 %v24, %v24
  %vm29 = vcmask 261120
  %v30 = vsel %vm29, %v25, 0.0
  %31 = vadd.xlane.f32.xlu0 %v30
  %v32 = vpop.xlane.xlu0 %31
  %v33 = vsel %vm29, %v26, 0.0
  %34 = vadd.xlane.f32.xlu0 %v33
  %v35 = vpop.xlane.xlu0 %34
  %v36 = vsel %vm29, %v27, 0.0
  %37 = vadd.xlane.f32.xlu0 %v36
  %v38 = vpop.xlane.xlu0 %37
  %v39 = vsel %vm29, %v28, 0.0
  %40 = vadd.xlane.f32.xlu0 %v39
  %v41 = vpop.xlane.xlu0 %40
  %v42 = vrcp.pop 32.0
  %v43 = vmul.f32 32.0, %v42
  %v44 = vsub.f32 1.0, %v43
  %v45 = vmul.f32 %v42, %v44
  %v46 = vadd.f32 %v42, %v45
  %vm47 = vweird.f32 %v42
  %v48 = vsel %vm47, %v42, %v46
  %v49 = vmul.f32 %v32, %v48
  %v50 = vmul.f32 %v35, %v48
  %v51 = vmul.f32 %v38, %v48
  %v52 = vmul.f32 %v41, %v48
  %v53 = vadd.f32 %v49, 1e-06
  %v54 = vadd.f32 %v50, 1e-06
  %v55 = vadd.f32 %v51, 1e-06
  %v56 = vadd.f32 %v52, 1e-06
  %v57 = vrsqrt.pop %v53
  %v58 = vmul.f32 %v57, %v53
  %v59 = vmul.f32 %v58, %v57
  %v60 = vmul.f32 0.5, %v59
  %v61 = vsub.f32 1.5, %v60
  %v62 = vmul.f32 %v57, %v61
  %vm63 = vweird.f32 %v53
  %vm64 = vweird.f32 %v57
  %vm65 = vmor %vm63, %vm64
  %v66 = vsel %vm65, %v57, %v62
  %v67 = vrsqrt.pop %v54
  %v68 = vmul.f32 %v67, %v54
  %v69 = vmul.f32 %v68, %v67
  %v70 = vmul.f32 0.5, %v69
  %v71 = vsub.f32 1.5, %v70
  %v72 = vmul.f32 %v67, %v71
  %vm73 = vweird.f32 %v54
  %vm74 = vweird.f32 %v67
  %vm75 = vmor %vm73, %vm74
  %v76 = vsel %vm75, %v67, %v72
  %v77 = vrsqrt.pop %v55
  %v78 = vmul.f32 %v77, %v55
  %v79 = vmul.f32 %v78, %v77
  %v80 = vmul.f32 0.5, %v79
  %v81 = vsub.f32 1.5, %v80
  %v82 = vmul.f32 %v77, %v81
  %vm83 = vweird.f32 %v55
  %vm84 = vweird.f32 %v77
  %vm85 = vmor %vm83, %vm84
  %v86 = vsel %vm85, %v77, %v82
  %v87 = vrsqrt.pop %v56
  %v88 = vmul.f32 %v87, %v56
  %v89 = vmul.f32 %v88, %v87
  %v90 = vmul.f32 0.5, %v89
  %v91 = vsub.f32 1.5, %v90
  %v92 = vmul.f32 %v87, %v91
  %vm93 = vweird.f32 %v56
  %vm94 = vweird.f32 %v87
  %vm95 = vmor %vm93, %vm94
  %v96 = vsel %vm95, %v87, %v92
  %v97 = vmul.f32 %v21, %v66
  %v98 = vmul.f32 %v22, %v76
  %v99 = vmul.f32 %v23, %v86
  %v100 = vmul.f32 %v24, %v96
  %v101 = vld [vmem:[%s2] sm:$0x1]
  %v103 = vperm.slane %v101, 0
  %v105 = vmul.f32 %v97, %v103
  %v106 = vmul.f32 %v98, %v103
  %v107 = vmul.f32 %v99, %v103
  %v108 = vmul.f32 %v100, %v103
  %v109 = vpack.c.bf16 %v106, %v105
  %v110 = vpack.c.bf16 %v108, %v107
  %v111 = vld [vmem:[%s3] sm:$0xff]
  %v112 = vld [vmem:[%s3 + $0x8] sm:$0xff]
  %v113 = vld [vmem:[%s3 + $0x10] sm:$0xff]
  %v114 = vld [vmem:[%s3 + $0x18] sm:$0xff]
  %v115 = vpack.c.bf16 %v112, %v111
  %v116 = vpack.c.bf16 %v114, %v113
  %v117 = vld [vmem:[%s4] sm:$0x1]
  %v119 = vperm.slane %v117, 0
  %v122 = vsel %vm29, %v109, 0
  %v125 = vsel %vm29, %v110, 0
  %127 = vmatpush.bf16.msra.mxu0 0
  %128 = vmatpush.bf16.msra.mxu0 0
  %129 = vmatpush.bf16.msra.mxu0 0
  %130 = vmatpush.bf16.msra.mxu0 0
  %131 = vmatpush.bf16.msra.mxu0 0
  %132 = vmatpush.bf16.msra.mxu0 0
  %133 = vmatpush.bf16.msra.mxu0 %v116
  %134 = vmatpush.bf16.msra.mxu0 %v115
  %135 = vmatmul.bf16.gmra.mxu0 %v122
  %v136 = vpop.f32.mrf.mxu0
  %v137 = vadd.f32 %v119, %v136
  %v138 = vpop.f32.mrf.mxu0
  %v139 = vadd.f32 %v119, %v138
  %140 = vmatmul.bf16.gmra.mxu0 %v125
  %v141 = vpop.f32.mrf.mxu0
  %v142 = vadd.f32 %v119, %v141
  %v143 = vpop.f32.mrf.mxu0
  %v144 = vadd.f32 %v119, %v143
  %145 = vdwg.mxu0
  %v146 = vld [vmem:[%s1] sm:$0xff]
  %v147 = vld [vmem:[%s1 + $0x8] sm:$0xff]
  %v148 = vld [vmem:[%s1 + $0x10] sm:$0xff]
  %v149 = vld [vmem:[%s1 + $0x18] sm:$0xff]
  %v150 = vadd.f32 %v137, %v146
  %v151 = vadd.f32 %v139, %v147
  %v152 = vadd.f32 %v142, %v148
  %v153 = vadd.f32 %v144, %v149
  %154 = vst.msk [vmem:[%s5] sm:$0xff] %vm29, %v150
  %155 = vst.msk [vmem:[%s5 + $0x8] sm:$0xff] %vm29, %v151
  %156 = vst.msk [vmem:[%s5 + $0x10] sm:$0xff] %vm29, %v152
  %157 = vst.msk [vmem:[%s5 + $0x18] sm:$0xff] %vm29, %v153
  // Predicated region
  $region22: #{meant_v2_forward.25} parent=0 // pred_check
    _
  $region23: #{meant_v2_forward.25} parent=0 // pred_check_branch
    %159 = sbr.rel (0) target = $region25
  $region24: #{meant_v2_forward.25} parent=0 // pred_region
    _
  $region25: #{meant_v2_forward.25} parent=0 // pred_fallthru
    _
  // Predicated region
  $region26: #{meant_v2_forward.25} parent=0 // pred_check
    _
  $region27: #{meant_v2_forward.25} parent=0 // pred_check_branch
    %161 = sbr.rel (0) target = $region29
  $region28: #{meant_v2_forward.25} parent=0 // pred_region
    _
  $region29: #{meant_v2_forward.25} parent=0 // pred_fallthru
    _

// kernel: meant_v2_forward.34
$region0: #{meant_v2_forward.34}
  #allocation0 [shape = 'u32[]', space=smem, size = 0x4, offset = 0x4, fixed_abs, tag = 'smem constant byte address 0x4 - core index']
  #allocation1 [shape = 'u32[72,128]{1,0:T(1,128)}', space=vmem, size = 0x9000, scoped, tag = 'internal scratch']
  %s0 = inlined_call_operand.vmem [shape: f32[4,8,32], index: 0, kind: input, shape index: {}]
  %s1 = inlined_call_operand.vmem [shape: f32[4,32], index: 1, kind: output, shape index: {}]
  %s2 = sld [smem:[#allocation0]]
  $region14: #{meant_v2_forward.34} parent=0
    _
  %s4 = ssub.s32 1, %s2
  %s5 = scalar_select 0, %s4, %s2
  // Predicated region
  $region2: #{meant_v2_forward.34} parent=0 // pred_check
    _
  $region3: #{meant_v2_forward.34} parent=0 // pred_check_branch
    %7 = sbr.rel (0) target = $region5
  $region4: #{meant_v2_forward.34} parent=0 // pred_region
    _
  $region5: #{meant_v2_forward.34} parent=0 // pred_fallthru
    _
  %v8 = vld [vmem:[%s0] sm:$0xff]
  %v9 = vld [vmem:[%s0 + $0x8] sm:$0xff]
  %v10 = vld [vmem:[%s0 + $0x10] sm:$0xff]
  %v11 = vld [vmem:[%s0 + $0x18] sm:$0xff]
  %vm12 = vcmask 261120
  %v13 = vsel %vm12, %v8, 0.0
  %v14 = vrot.slane %v13, 4
  %v15 = vadd.f32 %v13, %v14
  %v16 = vrot.slane %v15, 2
  %v17 = vadd.f32 %v15, %v16
  %v18 = vrot.slane %v17, 1
  %v19 = vadd.f32 %v17, %v18
  %v20 = vsel %vm12, %v9, 0.0
  %v21 = vrot.slane %v20, 4
  %v22 = vadd.f32 %v20, %v21
  %v23 = vrot.slane %v22, 2
  %v24 = vadd.f32 %v22, %v23
  %v25 = vrot.slane %v24, 1
  %v26 = vadd.f32 %v24, %v25
  %v27 = vsel %vm12, %v10, 0.0
  %v28 = vrot.slane %v27, 4
  %v29 = vadd.f32 %v27, %v28
  %v30 = vrot.slane %v29, 2
  %v31 = vadd.f32 %v29, %v30
  %v32 = vrot.slane %v31, 1
  %v33 = vadd.f32 %v31, %v32
  %v34 = vsel %vm12, %v11, 0.0
  %v35 = vrot.slane %v34, 4
  %v36 = vadd.f32 %v34, %v35
  %v37 = vrot.slane %v36, 2
  %v38 = vadd.f32 %v36, %v37
  %v39 = vrot.slane %v38, 1
  %v40 = vadd.f32 %v38, %v39
  %v41 = vrcp.pop 8.0
  %v42 = vmul.f32 8.0, %v41
  %v43 = vsub.f32 1.0, %v42
  %v44 = vmul.f32 %v41, %v43
  %v45 = vadd.f32 %v41, %v44
  %vm46 = vweird.f32 %v41
  %v47 = vsel %vm46, %v41, %v45
  %v48 = vmul.f32 %v19, %v47
  %v49 = vmul.f32 %v26, %v47
  %v50 = vmul.f32 %v33, %v47
  %v51 = vmul.f32 %v40, %v47
  %vm56 = vcmask 1041409
  %v57 = vsel %vm56, %v49, %v48
  %vm58 = vcmask 1042434
  %v59 = vsel %vm58, %v50, %v57
  %vm60 = vcmask 1043459
  %v61 = vsel %vm60, %v51, %v59
  %vm63 = vcmask 257024
  %64 = vst.msk [vmem:[%s1] sm:$0xf] %vm63, %v61
  // Predicated region
  $region6: #{meant_v2_forward.34} parent=0 // pred_check
    _
  $region7: #{meant_v2_forward.34} parent=0 // pred_check_branch
    %66 = sbr.rel (0) target = $region9
  $region8: #{meant_v2_forward.34} parent=0 // pred_region
    _
  $region9: #{meant_v2_forward.34} parent=0 // pred_fallthru
    _
  // Predicated region
  $region10: #{meant_v2_forward.34} parent=0 // pred_check
    _
  $region11: #{meant_v2_forward.34} parent=0 // pred_check_branch
    %68 = sbr.rel (0) target = $region13
  $region12: #{meant_v2_forward.34} parent=0 // pred_region
    _
  $region13: #{meant_v2_forward.34} parent=0 // pred_fallthru
    _

// kernel: meant_v2_forward.26
$region0: #{meant_v2_forward.26}
  #allocation0 [shape = 'u32[]', space=smem, size = 0x4, offset = 0x4, fixed_abs, tag = 'smem constant byte address 0x4 - core index']
  #allocation1 [shape = 'u32[72,128]{1,0:T(1,128)}', space=vmem, size = 0x9000, scoped, tag = 'internal scratch']
  %s0 = inlined_call_operand.vmem [shape: f32[32,32], index: 0, kind: input, shape index: {}]
  %s1 = inlined_call_operand.vmem [shape: f32[1,32], index: 1, kind: input, shape index: {}]
  %s2 = inlined_call_operand.vmem [shape: f32[32,32], index: 2, kind: input, shape index: {}]
  %s3 = inlined_call_operand.vmem [shape: f32[1,32], index: 3, kind: input, shape index: {}]
  %s4 = inlined_call_operand.vmem [shape: f32[1,32], index: 4, kind: input, shape index: {}]
  %s5 = inlined_call_operand.vmem [shape: f32[32,32], index: 5, kind: input, shape index: {}]
  %s6 = inlined_call_operand.vmem [shape: f32[1,32], index: 6, kind: input, shape index: {}]
  %s7 = inlined_call_operand.vmem [shape: f32[32,32], index: 7, kind: output, shape index: {}]
  %s8 = sld [smem:[#allocation0]]
  $region38: #{meant_v2_forward.26} parent=0
    _
  %s10 = ssub.s32 1, %s8
  %s11 = scalar_select 0, %s10, %s8
  // Predicated region
  $region2: #{meant_v2_forward.26} parent=0 // pred_check
    _
  $region3: #{meant_v2_forward.26} parent=0 // pred_check_branch
    %13 = sbr.rel (0) target = $region5
  $region4: #{meant_v2_forward.26} parent=0 // pred_region
    _
  $region5: #{meant_v2_forward.26} parent=0 // pred_fallthru
    _
  // Predicated region
  $region6: #{meant_v2_forward.26} parent=0 // pred_check
    _
  $region7: #{meant_v2_forward.26} parent=0 // pred_check_branch
    %15 = sbr.rel (0) target = $region9
  $region8: #{meant_v2_forward.26} parent=0 // pred_region
    _
  $region9: #{meant_v2_forward.26} parent=0 // pred_fallthru
    _
  // Predicated region
  $region10: #{meant_v2_forward.26} parent=0 // pred_check
    _
  $region11: #{meant_v2_forward.26} parent=0 // pred_check_branch
    %17 = sbr.rel (0) target = $region13
  $region12: #{meant_v2_forward.26} parent=0 // pred_region
    _
  $region13: #{meant_v2_forward.26} parent=0 // pred_fallthru
    _
  // Predicated region
  $region14: #{meant_v2_forward.26} parent=0 // pred_check
    _
  $region15: #{meant_v2_forward.26} parent=0 // pred_check_branch
    %19 = sbr.rel (0) target = $region17
  $region16: #{meant_v2_forward.26} parent=0 // pred_region
    _
  $region17: #{meant_v2_forward.26} parent=0 // pred_fallthru
    _
  // Predicated region
  $region18: #{meant_v2_forward.26} parent=0 // pred_check
    _
  $region19: #{meant_v2_forward.26} parent=0 // pred_check_branch
    %21 = sbr.rel (0) target = $region21
  $region20: #{meant_v2_forward.26} parent=0 // pred_region
    _
  $region21: #{meant_v2_forward.26} parent=0 // pred_fallthru
    _
  // Predicated region
  $region22: #{meant_v2_forward.26} parent=0 // pred_check
    _
  $region23: #{meant_v2_forward.26} parent=0 // pred_check_branch
    %23 = sbr.rel (0) target = $region25
  $region24: #{meant_v2_forward.26} parent=0 // pred_region
    _
  $region25: #{meant_v2_forward.26} parent=0 // pred_fallthru
    _
  // Predicated region
  $region26: #{meant_v2_forward.26} parent=0 // pred_check
    _
  $region27: #{meant_v2_forward.26} parent=0 // pred_check_branch
    %25 = sbr.rel (0) target = $region29
  $region28: #{meant_v2_forward.26} parent=0 // pred_region
    _
  $region29: #{meant_v2_forward.26} parent=0 // pred_fallthru
    _
  %v27 = vld [vmem:[%s0] sm:$0xff]
  %v28 = vld [vmem:[%s0 + $0x8] sm:$0xff]
  %v29 = vld [vmem:[%s0 + $0x10] sm:$0xff]
  %v30 = vld [vmem:[%s0 + $0x18] sm:$0xff]
  %v31 = vmul.f32 %v27, %v27
  %v32 = vmul.f32 %v28, %v28
  %v33 = vmul.f32 %v29, %v29
  %v34 = vmul.f32 %v30, %v30
  %vm35 = vcmask 261120
  %v36 = vsel %vm35, %v31, 0.0
  %37 = vadd.xlane.f32.xlu0 %v36
  %v38 = vpop.xlane.xlu0 %37
  %v39 = vsel %vm35, %v32, 0.0
  %40 = vadd.xlane.f32.xlu0 %v39
  %v41 = vpop.xlane.xlu0 %40
  %v42 = vsel %vm35, %v33, 0.0
  %43 = vadd.xlane.f32.xlu0 %v42
  %v44 = vpop.xlane.xlu0 %43
  %v45 = vsel %vm35, %v34, 0.0
  %46 = vadd.xlane.f32.xlu0 %v45
  %v47 = vpop.xlane.xlu0 %46
  %v48 = vrcp.pop 32.0
  %v49 = vmul.f32 32.0, %v48
  %v50 = vsub.f32 1.0, %v49
  %v51 = vmul.f32 %v48, %v50
  %v52 = vadd.f32 %v48, %v51
  %vm53 = vweird.f32 %v48
  %v54 = vsel %vm53, %v48, %v52
  %v55 = vmul.f32 %v38, %v54
  %v56 = vmul.f32 %v41, %v54
  %v57 = vmul.f32 %v44, %v54
  %v58 = vmul.f32 %v47, %v54
  %v59 = vadd.f32 %v55, 1e-06
  %v60 = vadd.f32 %v56, 1e-06
  %v61 = vadd.f32 %v57, 1e-06
  %v62 = vadd.f32 %v58, 1e-06
  %v63 = vrsqrt.pop %v59
  %v64 = vmul.f32 %v63, %v59
  %v65 = vmul.f32 %v64, %v63
  %v66 = vmul.f32 0.5, %v65
  %v67 = vsub.f32 1.5, %v66
  %v68 = vmul.f32 %v63, %v67
  %vm69 = vweird.f32 %v59
  %vm70 = vweird.f32 %v63
  %vm71 = vmor %vm69, %vm70
  %v72 = vsel %vm71, %v63, %v68
  %v73 = vrsqrt.pop %v60
  %v74 = vmul.f32 %v73, %v60
  %v75 = vmul.f32 %v74, %v73
  %v76 = vmul.f32 0.5, %v75
  %v77 = vsub.f32 1.5, %v76
  %v78 = vmul.f32 %v73, %v77
  %vm79 = vweird.f32 %v60
  %vm80 = vweird.f32 %v73
  %vm81 = vmor %vm79, %vm80
  %v82 = vsel %vm81, %v73, %v78
  %v83 = vrsqrt.pop %v61
  %v84 = vmul.f32 %v83, %v61
  %v85 = vmul.f32 %v84, %v83
  %v86 = vmul.f32 0.5, %v85
  %v87 = vsub.f32 1.5, %v86
  %v88 = vmul.f32 %v83, %v87
  %vm89 = vweird.f32 %v61
  %vm90 = vweird.f32 %v83
  %vm91 = vmor %vm89, %vm90
  %v92 = vsel %vm91, %v83, %v88
  %v93 = vrsqrt.pop %v62
  %v94 = vmul.f32 %v93, %v62
  %v95 = vmul.f32 %v94, %v93
  %v96 = vmul.f32 0.5, %v95
  %v97 = vsub.f32 1.5, %v96
  %v98 = vmul.f32 %v93, %v97
  %vm99 = vweird.f32 %v62
  %vm100 = vweird.f32 %v93
  %vm101 = vmor %vm99, %vm100
  %v102 = vsel %vm101, %v93, %v98
  %v103 = vmul.f32 %v27, %v72
  %v104 = vmul.f32 %v28, %v82
  %v105 = vmul.f32 %v29, %v92
  %v106 = vmul.f32 %v30, %v102
  %v107 = vld [vmem:[%s1] sm:$0x1]
  %v109 = vperm.slane %v107, 0
  %v111 = vmul.f32 %v103, %v109
  %v112 = vmul.f32 %v104, %v109
  %v113 = vmul.f32 %v105, %v109
  %v114 = vmul.f32 %v106, %v109
  %v115 = vpack.c.bf16 %v112, %v111
  %v116 = vpack.c.bf16 %v114, %v113
  %v117 = vld [vmem:[%s2] sm:$0xff]
  %v118 = vld [vmem:[%s2 + $0x8] sm:$0xff]
  %v119 = vld [vmem:[%s2 + $0x10] sm:$0xff]
  %v120 = vld [vmem:[%s2 + $0x18] sm:$0xff]
  %v121 = vpack.c.bf16 %v118, %v117
  %v122 = vpack.c.bf16 %v120, %v119
  %v123 = vld [vmem:[%s3] sm:$0x1]
  %v125 = vperm.slane %v123, 0
  %v128 = vsel %vm35, %v115, 0
  %v131 = vsel %vm35, %v116, 0
  %133 = vmatpush.bf16.msra.mxu0 0
  %134 = vmatpush.bf16.msra.mxu0 0
  %135 = vmatpush.bf16.msra.mxu0 0
  %136 = vmatpush.bf16.msra.mxu0 0
  %137 = vmatpush.bf16.msra.mxu0 0
  %138 = vmatpush.bf16.msra.mxu0 0
  %139 = vmatpush.bf16.msra.mxu0 %v122
  %140 = vmatpush.bf16.msra.mxu0 %v121
  %141 = vmatmul.bf16.gmra.mxu0 %v128
  %v142 = vpop.f32.mrf.mxu0
  %v143 = vadd.f32 %v125, %v142
  %v144 = vpop.f32.mrf.mxu0
  %v145 = vadd.f32 %v125, %v144
  %146 = vmatmul.bf16.gmra.mxu0 %v131
  %v147 = vpop.f32.mrf.mxu0
  %v148 = vadd.f32 %v125, %v147
  %v149 = vpop.f32.mrf.mxu0
  %v150 = vadd.f32 %v125, %v149
  %151 = vdwg.mxu0
  %v152 = vmul.f32 %v143, 0.5
  %v153 = vmul.f32 %v145, 0.5
  %v154 = vmul.f32 %v148, 0.5
  %v155 = vmul.f32 %v150, 0.5
  %v156 = vmul.f32 %v143, 0.70710677
  %v157 = vmul.f32 %v145, 0.70710677
  %v158 = vmul.f32 %v148, 0.70710677
  %v159 = vmul.f32 %v150, 0.70710677
  %vm160 = vcmp.ge.f32.partialorder %v156, 0.0
  %vm161 = vcmp.ge.f32.partialorder %v157, 0.0
  %vm162 = vcmp.ge.f32.partialorder %v158, 0.0
  %vm163 = vcmp.ge.f32.partialorder %v159, 0.0
  %v164 = vsel %vm160, 1.0, -1.0
  %v165 = vsel %vm161, 1.0, -1.0
  %v166 = vsel %vm162, 1.0, -1.0
  %v167 = vsel %vm163, 1.0, -1.0
  %v168 = vand.u32 2147483647, %v156
  %v169 = vand.u32 2147483647, %v157
  %v170 = vand.u32 2147483647, %v158
  %v171 = vand.u32 2147483647, %v159
  %v172 = vmul.f32 %v168, 0.3275911
  %v173 = vmul.f32 %v169, 0.3275911
  %v174 = vmul.f32 %v170, 0.3275911
  %v175 = vmul.f32 %v171, 0.3275911
  %v176 = vadd.f32 %v172, 1.0
  %v177 = vadd.f32 %v173, 1.0
  %v178 = vadd.f32 %v174, 1.0
  %v179 = vadd.f32 %v175, 1.0
  %v180 = vrcp.pop %v176
  %v181 = vmul.f32 %v176, %v180
  %v182 = vsub.f32 1.0, %v181
  %v183 = vmul.f32 %v180, %v182
  %v184 = vadd.f32 %v180, %v183
  %vm185 = vweird.f32 %v176
  %vm186 = vweird.f32 %v180
  %vm187 = vmor %vm185, %vm186
  %v188 = vsel %vm187, %v180, %v184
  %v189 = vand.u32 2147483647, %v176
  %vm190 = vcmp.eq.f32.partialorder %v189, 8.507059e+37
  %v191 = vand.u32 %v176, 2147483648
  %v192 = vor.u32 1.1754944e-38, %v191
  %v193 = vsel %vm190, %v192, %v188
  %v194 = vmul.f32 1.0, %v193
  %v195 = vrcp.pop %v177
  %v196 = vmul.f32 %v177, %v195
  %v197 = vsub.f32 1.0, %v196
  %v198 = vmul.f32 %v195, %v197
  %v199 = vadd.f32 %v195, %v198
  %vm200 = vweird.f32 %v177
  %vm201 = vweird.f32 %v195
  %vm202 = vmor %vm200, %vm201
  %v203 = vsel %vm202, %v195, %v199
  %v204 = vand.u32 2147483647, %v177
  %vm205 = vcmp.eq.f32.partialorder %v204, 8.507059e+37
  %v206 = vand.u32 %v177, 2147483648
  %v207 = vor.u32 1.1754944e-38, %v206
  %v208 = vsel %vm205, %v207, %v203
  %v209 = vmul.f32 1.0, %v208
  %v210 = vrcp.pop %v178
  %v211 = vmul.f32 %v178, %v210
  %v212 = vsub.f32 1.0, %v211
  %v213 = vmul.f32 %v210, %v212
  %v214 = vadd.f32 %v210, %v213
  %vm215 = vweird.f32 %v178
  %vm216 = vweird.f32 %v210
  %vm217 = vmor %vm215, %vm216
  %v218 = vsel %vm217, %v210, %v214
  %v219 = vand.u32 2147483647, %v178
  %vm220 = vcmp.eq.f32.partialorder %v219, 8.507059e+37
  %v221 = vand.u32 %v178, 2147483648
  %v222 = vor.u32 1.1754944e-38, %v221
  %v223 = vsel %vm220, %v222, %v218
  %v224 = vmul.f32 1.0, %v223
  %v225 = vrcp.pop %v179
  %v226 = vmul.f32 %v179, %v225
  %v227 = vsub.f32 1.0, %v226
  %v228 = vmul.f32 %v225, %v227
  %v229 = vadd.f32 %v225, %v228
  %vm230 = vweird.f32 %v179
  %vm231 = vweird.f32 %v225
  %vm232 = vmor %vm230, %vm231
  %v233 = vsel %vm232, %v225, %v229
  %v234 = vand.u32 2147483647, %v179
  %vm235 = vcmp.eq.f32.partialorder %v234, 8.507059e+37
  %v236 = vand.u32 %v179, 2147483648
  %v237 = vor.u32 1.1754944e-38, %v236
  %v238 = vsel %vm235, %v237, %v233
  %v239 = vmul.f32 1.0, %v238
  %v240 = vmul.f32 %v194, 1.0614054
  %v241 = vmul.f32 %v209, 1.0614054
  %v242 = vmul.f32 %v224, 1.0614054
  %v243 = vmul.f32 %v239, 1.0614054
  %v244 = vadd.f32 %v240, -1.4531521
  %v245 = vadd.f32 %v241, -1.4531521
  %v246 = vadd.f32 %v242, -1.4531521
  %v247 = vadd.f32 %v243, -1.4531521
  %v248 = vmul.f32 %v244, %v194
  %v249 = vmul.f32 %v245, %v209
  %v250 = vmul.f32 %v246, %v224
  %v251 = vmul.f32 %v247, %v239
  %v252 = vadd.f32 %v248, 1.4214138
  %v253 = vadd.f32 %v249, 1.4214138
  %v254 = vadd.f32 %v250, 1.4214138
  %v255 = vadd.f32 %v251, 1.4214138
  %v256 = vmul.f32 %v252, %v194
  %v257 = vmul.f32 %v253, %v209
  %v258 = vmul.f32 %v254, %v224
  %v259 = vmul.f32 %v255, %v239
  %v260 = vadd.f32 %v256, -0.28449672
  %v261 = vadd.f32 %v257, -0.28449672
  %v262 = vadd.f32 %v258, -0.28449672
  %v263 = vadd.f32 %v259, -0.28449672
  %v264 = vmul.f32 %v260, %v194
  %v265 = vmul.f32 %v261, %v209
  %v266 = vmul.f32 %v262, %v224
  %v267 = vmul.f32 %v263, %v239
  %v268 = vadd.f32 %v264, 0.2548296
  %v269 = vadd.f32 %v265, 0.2548296
  %v270 = vadd.f32 %v266, 0.2548296
  %v271 = vadd.f32 %v267, 0.2548296
  %v272 = vmul.f32 %v268, %v194
  %v273 = vmul.f32 %v269, %v209
  %v274 = vmul.f32 %v270, %v224
  %v275 = vmul.f32 %v271, %v239
  %v276 = vsub.f32 0.0, %v168
  %v277 = vsub.f32 0.0, %v169
  %v278 = vsub.f32 0.0, %v170
  %v279 = vsub.f32 0.0, %v171
  %v280 = vmul.f32 %v276, %v168
  %v281 = vmul.f32 %v277, %v169
  %v282 = vmul.f32 %v278, %v170
  %v283 = vmul.f32 %v279, %v171
  %v284 = vmul.f32 %v280, 1.442695
  %v285 = vpow.pop %v284
  %v286 = vmul.f32 %v281, 1.442695
  %v287 = vpow.pop %v286
  %v288 = vmul.f32 %v282, 1.442695
  %v289 = vpow.pop %v288
  %v290 = vmul.f32 %v283, 1.442695
  %v291 = vpow.pop %v290
  %v292 = vmul.f32 %v272, %v285
  %v293 = vmul.f32 %v273, %v287
  %v294 = vmul.f32 %v274, %v289
  %v295 = vmul.f32 %v275, %v291
  %v296 = vsub.f32 1.0, %v292
  %v297 = vsub.f32 1.0, %v293
  %v298 = vsub.f32 1.0, %v294
  %v299 = vsub.f32 1.0, %v295
  %v300 = vmul.f32 %v164, %v296
  %v301 = vmul.f32 %v165, %v297
  %v302 = vmul.f32 %v166, %v298
  %v303 = vmul.f32 %v167, %v299
  %v304 = vadd.f32 %v300, 1.0
  %v305 = vadd.f32 %v301, 1.0
  %v306 = vadd.f32 %v302, 1.0
  %v307 = vadd.f32 %v303, 1.0
  %v308 = vmul.f32 %v152, %v304
  %v309 = vmul.f32 %v153, %v305
  %v310 = vmul.f32 %v154, %v306
  %v311 = vmul.f32 %v155, %v307
  %v312 = vmul.f32 %v308, %v308
  %v313 = vmul.f32 %v309, %v309
  %v314 = vmul.f32 %v310, %v310
  %v315 = vmul.f32 %v311, %v311
  %v316 = vsel %vm35, %v312, 0.0
  %317 = vadd.xlane.f32.xlu0 %v316
  %v318 = vpop.xlane.xlu0 %317
  %v319 = vsel %vm35, %v313, 0.0
  %320 = vadd.xlane.f32.xlu0 %v319
  %v321 = vpop.xlane.xlu0 %320
  %v322 = vsel %vm35, %v314, 0.0
  %323 = vadd.xlane.f32.xlu0 %v322
  %v324 = vpop.xlane.xlu0 %323
  %v325 = vsel %vm35, %v315, 0.0
  %326 = vadd.xlane.f32.xlu0 %v325
  %v327 = vpop.xlane.xlu0 %326
  %v328 = vmul.f32 %v318, %v54
  %v329 = vmul.f32 %v321, %v54
  %v330 = vmul.f32 %v324, %v54
  %v331 = vmul.f32 %v327, %v54
  %v332 = vadd.f32 %v328, 1e-06
  %v333 = vadd.f32 %v329, 1e-06
  %v334 = vadd.f32 %v330, 1e-06
  %v335 = vadd.f32 %v331, 1e-06
  %v336 = vrsqrt.pop %v332
  %v337 = vmul.f32 %v336, %v332
  %v338 = vmul.f32 %v337, %v336
  %v339 = vmul.f32 0.5, %v338
  %v340 = vsub.f32 1.5, %v339
  %v341 = vmul.f32 %v336, %v340
  %vm342 = vweird.f32 %v332
  %vm343 = vweird.f32 %v336
  %vm344 = vmor %vm342, %vm343
  %v345 = vsel %vm344, %v336, %v341
  %v346 = vrsqrt.pop %v333
  %v347 = vmul.f32 %v346, %v333
  %v348 = vmul.f32 %v347, %v346
  %v349 = vmul.f32 0.5, %v348
  %v350 = vsub.f32 1.5, %v349
  %v351 = vmul.f32 %v346, %v350
  %vm352 = vweird.f32 %v333
  %vm353 = vweird.f32 %v346
  %vm354 = vmor %vm352, %vm353
  %v355 = vsel %vm354, %v346, %v351
  %v356 = vrsqrt.pop %v334
  %v357 = vmul.f32 %v356, %v334
  %v358 = vmul.f32 %v357, %v356
  %v359 = vmul.f32 0.5, %v358
  %v360 = vsub.f32 1.5, %v359
  %v361 = vmul.f32 %v356, %v360
  %vm362 = vweird.f32 %v334
  %vm363 = vweird.f32 %v356
  %vm364 = vmor %vm362, %vm363
  %v365 = vsel %vm364, %v356, %v361
  %v366 = vrsqrt.pop %v335
  %v367 = vmul.f32 %v366, %v335
  %v368 = vmul.f32 %v367, %v366
  %v369 = vmul.f32 0.5, %v368
  %v370 = vsub.f32 1.5, %v369
  %v371 = vmul.f32 %v366, %v370
  %vm372 = vweird.f32 %v335
  %vm373 = vweird.f32 %v366
  %vm374 = vmor %vm372, %vm373
  %v375 = vsel %vm374, %v366, %v371
  %v376 = vmul.f32 %v308, %v345
  %v377 = vmul.f32 %v309, %v355
  %v378 = vmul.f32 %v310, %v365
  %v379 = vmul.f32 %v311, %v375
  %v380 = vld [vmem:[%s4] sm:$0x1]
  %v382 = vperm.slane %v380, 0
  %v384 = vmul.f32 %v376, %v382
  %v385 = vmul.f32 %v377, %v382
  %v386 = vmul.f32 %v378, %v382
  %v387 = vmul.f32 %v379, %v382
  %v388 = vpack.c.bf16 %v385, %v384
  %v389 = vpack.c.bf16 %v387, %v386
  %v390 = vld [vmem:[%s5] sm:$0xff]
  %v391 = vld [vmem:[%s5 + $0x8] sm:$0xff]
  %v392 = vld [vmem:[%s5 + $0x10] sm:$0xff]
  %v393 = vld [vmem:[%s5 + $0x18] sm:$0xff]
  %v394 = vpack.c.bf16 %v391, %v390
  %v395 = vpack.c.bf16 %v393, %v392
  %v396 = vld [vmem:[%s6] sm:$0x1]
  %v398 = vperm.slane %v396, 0
  %v401 = vsel %vm35, %v388, 0
  %v404 = vsel %vm35, %v389, 0
  %406 = vmatpush.bf16.msra.mxu0 0
  %407 = vmatpush.bf16.msra.mxu0 0
  %408 = vmatpush.bf16.msra.mxu0 0
  %409 = vmatpush.bf16.msra.mxu0 0
  %410 = vmatpush.bf16.msra.mxu0 0
  %411 = vmatpush.bf16.msra.mxu0 0
  %412 = vmatpush.bf16.msra.mxu0 %v395
  %413 = vmatpush.bf16.msra.mxu0 %v394
  %414 = vmatmul.bf16.gmra.mxu0 %v401
  %v415 = vpop.f32.mrf.mxu0
  %v416 = vadd.f32 %v398, %v415
  %v417 = vpop.f32.mrf.mxu0
  %v418 = vadd.f32 %v398, %v417
  %419 = vmatmul.bf16.gmra.mxu0 %v404
  %v420 = vpop.f32.mrf.mxu0
  %v421 = vadd.f32 %v398, %v420
  %v422 = vpop.f32.mrf.mxu0
  %v423 = vadd.f32 %v398, %v422
  %424 = vdwg.mxu0
  %v425 = vadd.f32 %v416, %v27
  %v426 = vadd.f32 %v418, %v28
  %v427 = vadd.f32 %v421, %v29
  %v428 = vadd.f32 %v423, %v30
  %429 = vst.msk [vmem:[%s7] sm:$0xff] %vm35, %v425
  %430 = vst.msk [vmem:[%s7 + $0x8] sm:$0xff] %vm35, %v426
  %431 = vst.msk [vmem:[%s7 + $0x10] sm:$0xff] %vm35, %v427
  %432 = vst.msk [vmem:[%s7 + $0x18] sm:$0xff] %vm35, %v428
  // Predicated region
  $region30: #{meant_v2_forward.26} parent=0 // pred_check
    _
  $region31: #{meant_v2_forward.26} parent=0 // pred_check_branch
    %434 = sbr.rel (0) target = $region33
  $region32: #{meant_v2_forward.26} parent=0 // pred_region
    _
  $region33: #{meant_v2_forward.26} parent=0 // pred_fallthru
    _
  // Predicated region
  $region34: #{meant_v2_forward.26} parent=0 // pred_check
    _
  $region35: #{meant_v2_forward.26} parent=0 // pred_check_branch
    %436 = sbr.rel (0) target = $region37
  $region36: #{meant_v2_forward.26} parent=0 // pred_region
    _
  $region37: #{meant_v2_forward.26} parent=0 // pred_fallthru
    _

// kernel: meant_v2_forward.36
$region0: #{meant_v2_forward.36}
  #allocation0 [shape = 'u32[]', space=smem, size = 0x4, offset = 0x4, fixed_abs, tag = 'smem constant byte address 0x4 - core index']
  #allocation1 [shape = 'u32[72,128]{1,0:T(1,128)}', space=vmem, size = 0x9000, scoped, tag = 'internal scratch']
  %s0 = inlined_call_operand.vmem [shape: f32[4,64], index: 0, kind: input, shape index: {}]
  %s1 = inlined_call_operand.vmem [shape: f32[1,64], index: 1, kind: input, shape index: {}]
  %s2 = inlined_call_operand.vmem [shape: f32[64,64], index: 2, kind: input, shape index: {}]
  %s3 = inlined_call_operand.vmem [shape: f32[1,64], index: 3, kind: input, shape index: {}]
  %s4 = inlined_call_operand.vmem [shape: f32[4,64], index: 4, kind: output, shape index: {}]
  %s5 = sld [smem:[#allocation0]]
  $region26: #{meant_v2_forward.36} parent=0
    _
  %s7 = ssub.s32 1, %s5
  %s8 = scalar_select 0, %s7, %s5
  // Predicated region
  $region2: #{meant_v2_forward.36} parent=0 // pred_check
    _
  $region3: #{meant_v2_forward.36} parent=0 // pred_check_branch
    %10 = sbr.rel (0) target = $region5
  $region4: #{meant_v2_forward.36} parent=0 // pred_region
    _
  $region5: #{meant_v2_forward.36} parent=0 // pred_fallthru
    _
  // Predicated region
  $region6: #{meant_v2_forward.36} parent=0 // pred_check
    _
  $region7: #{meant_v2_forward.36} parent=0 // pred_check_branch
    %12 = sbr.rel (0) target = $region9
  $region8: #{meant_v2_forward.36} parent=0 // pred_region
    _
  $region9: #{meant_v2_forward.36} parent=0 // pred_fallthru
    _
  // Predicated region
  $region10: #{meant_v2_forward.36} parent=0 // pred_check
    _
  $region11: #{meant_v2_forward.36} parent=0 // pred_check_branch
    %14 = sbr.rel (0) target = $region13
  $region12: #{meant_v2_forward.36} parent=0 // pred_region
    _
  $region13: #{meant_v2_forward.36} parent=0 // pred_fallthru
    _
  // Predicated region
  $region14: #{meant_v2_forward.36} parent=0 // pred_check
    _
  $region15: #{meant_v2_forward.36} parent=0 // pred_check_branch
    %16 = sbr.rel (0) target = $region17
  $region16: #{meant_v2_forward.36} parent=0 // pred_region
    _
  $region17: #{meant_v2_forward.36} parent=0 // pred_fallthru
    _
  %v18 = vld [vmem:[%s0] sm:$0xf]
  %v19 = vmul.f32 %v18, %v18
  %vm20 = vcmask 519168
  %v21 = vsel %vm20, %v19, 0.0
  %22 = vadd.xlane.f32.xlu0 %v21
  %v23 = vpop.xlane.xlu0 %22
  %v24 = vrcp.pop 64.0
  %v25 = vmul.f32 64.0, %v24
  %v26 = vsub.f32 1.0, %v25
  %v27 = vmul.f32 %v24, %v26
  %v28 = vadd.f32 %v24, %v27
  %vm29 = vweird.f32 %v24
  %v30 = vsel %vm29, %v24, %v28
  %v31 = vmul.f32 %v23, %v30
  %v32 = vadd.f32 %v31, 1e-06
  %v33 = vrsqrt.pop %v32
  %v34 = vmul.f32 %v33, %v32
  %v35 = vmul.f32 %v34, %v33
  %v36 = vmul.f32 0.5, %v35
  %v37 = vsub.f32 1.5, %v36
  %v38 = vmul.f32 %v33, %v37
  %vm39 = vweird.f32 %v32
  %vm40 = vweird.f32 %v33
  %vm41 = vmor %vm39, %vm40
  %v42 = vsel %vm41, %v33, %v38
  %v43 = vmul.f32 %v18, %v42
  %v44 = vld [vmem:[%s1] sm:$0x1]
  %v46 = vperm.slane %v44, 0
  %v48 = vmul.f32 %v43, %v46
  %v49 = vpack.c.bf16 %v48, %v48
  %v50 = vld [vmem:[%s2] sm:$0xff]
  %v51 = vld [vmem:[%s2 + $0x8] sm:$0xff]
  %v52 = vld [vmem:[%s2 + $0x10] sm:$0xff]
  %v53 = vld [vmem:[%s2 + $0x18] sm:$0xff]
  %v54 = vld [vmem:[%s2 + $0x20] sm:$0xff]
  %v55 = vld [vmem:[%s2 + $0x28] sm:$0xff]
  %v56 = vld [vmem:[%s2 + $0x30] sm:$0xff]
  %v57 = vld [vmem:[%s2 + $0x38] sm:$0xff]
  %v58 = vpack.c.bf16 %v51, %v50
  %v59 = vpack.c.bf16 %v53, %v52
  %v60 = vpack.c.bf16 %v55, %v54
  %v61 = vpack.c.bf16 %v57, %v56
  %v62 = vld [vmem:[%s3] sm:$0x1]
  %v64 = vperm.slane %v62, 0
  %vm66 = vcmask 523264
  %v68 = vsel %vm66, %v49, 0
  %70 = vmatpush.bf16.msra.mxu0 0
  %71 = vmatpush.bf16.msra.mxu0 0
  %72 = vmatpush.bf16.msra.mxu0 0
  %73 = vmatpush.bf16.msra.mxu0 0
  %74 = vmatpush.bf16.msra.mxu0 %v61
  %75 = vmatpush.bf16.msra.mxu0 %v60
  %76 = vmatpush.bf16.msra.mxu0 %v59
  %77 = vmatpush.bf16.msra.mxu0 %v58
  %78 = vmatmul.bf16.gmra.mxu0 %v68
  %v79 = vpop.f32.mrf.mxu0
  %v80 = vadd.f32 %v64, %v79
  %v81 = vpop.f32.mrf.mxu0
  %82 = vdwg.mxu0
  %83 = vst.msk [vmem:[%s4] sm:$0xf] %vm20, %v80
  // Predicated region
  $region18: #{meant_v2_forward.36} parent=0 // pred_check
    _
  $region19: #{meant_v2_forward.36} parent=0 // pred_check_branch
    %85 = sbr.rel (0) target = $region21
  $region20: #{meant_v2_forward.36} parent=0 // pred_region
    _
  $region21: #{meant_v2_forward.36} parent=0 // pred_fallthru
    _
  // Predicated region
  $region22: #{meant_v2_forward.36} parent=0 // pred_check
    _
  $region23: #{meant_v2_forward.36} parent=0 // pred_check_branch
    %87 = sbr.rel (0) target = $region25
  $region24: #{meant_v2_forward.36} parent=0 // pred_region
    _
  $region25: #{meant_v2_forward.36} parent=0 // pred_fallthru
    _

// kernel: meant_v2_forward.37
$region0: #{meant_v2_forward.37}
  #allocation0 [shape = 'u32[]', space=smem, size = 0x4, offset = 0x4, fixed_abs, tag = 'smem constant byte address 0x4 - core index']
  #allocation1 [shape = 'u32[72,128]{1,0:T(1,128)}', space=vmem, size = 0x9000, scoped, tag = 'internal scratch']
  %s0 = inlined_call_operand.vmem [shape: f32[4,64], index: 0, kind: input, shape index: {}]
  %s1 = inlined_call_operand.vmem [shape: f32[1,64], index: 1, kind: input, shape index: {}]
  %s2 = inlined_call_operand.vmem [shape: f32[64,192], index: 2, kind: input, shape index: {}]
  %s3 = inlined_call_operand.vmem [shape: f32[1,192], index: 3, kind: input, shape index: {}]
  %s4 = inlined_call_operand.vmem [shape: f32[4,192], index: 4, kind: output, shape index: {}]
  %s5 = sld [smem:[#allocation0]]
  $region26: #{meant_v2_forward.37} parent=0
    _
  %s7 = ssub.s32 1, %s5
  %s8 = scalar_select 0, %s7, %s5
  // Predicated region
  $region2: #{meant_v2_forward.37} parent=0 // pred_check
    _
  $region3: #{meant_v2_forward.37} parent=0 // pred_check_branch
    %10 = sbr.rel (0) target = $region5
  $region4: #{meant_v2_forward.37} parent=0 // pred_region
    _
  $region5: #{meant_v2_forward.37} parent=0 // pred_fallthru
    _
  // Predicated region
  $region6: #{meant_v2_forward.37} parent=0 // pred_check
    _
  $region7: #{meant_v2_forward.37} parent=0 // pred_check_branch
    %12 = sbr.rel (0) target = $region9
  $region8: #{meant_v2_forward.37} parent=0 // pred_region
    _
  $region9: #{meant_v2_forward.37} parent=0 // pred_fallthru
    _
  // Predicated region
  $region10: #{meant_v2_forward.37} parent=0 // pred_check
    _
  $region11: #{meant_v2_forward.37} parent=0 // pred_check_branch
    %14 = sbr.rel (0) target = $region13
  $region12: #{meant_v2_forward.37} parent=0 // pred_region
    _
  $region13: #{meant_v2_forward.37} parent=0 // pred_fallthru
    _
  // Predicated region
  $region14: #{meant_v2_forward.37} parent=0 // pred_check
    _
  $region15: #{meant_v2_forward.37} parent=0 // pred_check_branch
    %16 = sbr.rel (0) target = $region17
  $region16: #{meant_v2_forward.37} parent=0 // pred_region
    _
  $region17: #{meant_v2_forward.37} parent=0 // pred_fallthru
    _
  %v18 = vld [vmem:[%s0] sm:$0xf]
  %v19 = vpack.c.bf16 %v18, %v18
  %v20 = vld [vmem:[%s2] sm:$0xff]
  %v21 = vld [vmem:[%s2 + $0x8] sm:$0xff]
  %v22 = vld [vmem:[%s2 + $0x10] sm:$0xff]
  %v23 = vld [vmem:[%s2 + $0x18] sm:$0xff]
  %v24 = vld [vmem:[%s2 + $0x20] sm:$0xff]
  %v25 = vld [vmem:[%s2 + $0x28] sm:$0xff]
  %v26 = vld [vmem:[%s2 + $0x30] sm:$0xff]
  %v27 = vld [vmem:[%s2 + $0x38] sm:$0xff]
  %v28 = vld [vmem:[%s2 + $0x40] sm:$0xff]
  %v29 = vld [vmem:[%s2 + $0x48] sm:$0xff]
  %v30 = vld [vmem:[%s2 + $0x50] sm:$0xff]
  %v31 = vld [vmem:[%s2 + $0x58] sm:$0xff]
  %v32 = vld [vmem:[%s2 + $0x60] sm:$0xff]
  %v33 = vld [vmem:[%s2 + $0x68] sm:$0xff]
  %v34 = vld [vmem:[%s2 + $0x70] sm:$0xff]
  %v35 = vld [vmem:[%s2 + $0x78] sm:$0xff]
  %v36 = vpack.c.bf16 %v22, %v20
  %v37 = vpack.c.bf16 %v23, %v21
  %v38 = vpack.c.bf16 %v26, %v24
  %v39 = vpack.c.bf16 %v27, %v25
  %v40 = vpack.c.bf16 %v30, %v28
  %v41 = vpack.c.bf16 %v31, %v29
  %v42 = vpack.c.bf16 %v34, %v32
  %v43 = vpack.c.bf16 %v35, %v33
  %v44 = vld [vmem:[%s3] sm:$0x3]
  %v46 = vperm.slane %v44, 0
  %v47 = vperm.slane %v44, 1
  %vm50 = vcmask 523264
  %v52 = vsel %vm50, %v19, 0
  %54 = vmatpush.bf16.msra.mxu0 0
  %55 = vmatpush.bf16.msra.mxu0 0
  %56 = vmatpush.bf16.msra.mxu0 0
  %57 = vmatpush.bf16.msra.mxu0 0
  %58 = vmatpush.bf16.msra.mxu0 %v42
  %59 = vmatpush.bf16.msra.mxu0 %v40
  %60 = vmatpush.bf16.msra.mxu0 %v38
  %61 = vmatpush.bf16.msra.mxu0 %v36
  %62 = vmatmul.bf16.gmra.mxu0 %v52
  %v63 = vpop.f32.mrf.mxu0
  %v64 = vadd.f32 %v46, %v63
  %v65 = vpop.f32.mrf.mxu0
  %66 = vdwg.mxu0
  %67 = vmatpush.bf16.msra.mxu0 0
  %68 = vmatpush.bf16.msra.mxu0 0
  %69 = vmatpush.bf16.msra.mxu0 0
  %70 = vmatpush.bf16.msra.mxu0 0
  %71 = vmatpush.bf16.msra.mxu0 %v43
  %72 = vmatpush.bf16.msra.mxu0 %v41
  %73 = vmatpush.bf16.msra.mxu0 %v39
  %74 = vmatpush.bf16.msra.mxu0 %v37
  %75 = vmatmul.bf16.gmra.mxu0 %v52
  %v76 = vpop.f32.mrf.mxu0
  %v77 = vadd.f32 %v47, %v76
  %v78 = vpop.f32.mrf.mxu0
  %79 = vdwg.mxu0
  %v82 = vrot.slane %v77, 4
  %vm83 = vcmask 1043456
  %v84 = vsel %vm83, %v64, %v82
  %vm86 = vcmask 523268
  %vm87 = vmor %vm86, %vm83
  %88 = vst.msk [vmem:[%s4] sm:$0xff] %vm87, %v84
  // Predicated region
  $region18: #{meant_v2_forward.37} parent=0 // pred_check
    _
  $region19: #{meant_v2_forward.37} parent=0 // pred_check_branch
    %90 = sbr.rel (0) target = $region21
  $region20: #{meant_v2_forward.37} parent=0 // pred_region
    _
  $region21: #{meant_v2_forward.37} parent=0 // pred_fallthru
    _
  // Predicated region
  $region22: #{meant_v2_forward.37} parent=0 // pred_check
    _
  $region23: #{meant_v2_forward.37} parent=0 // pred_check_branch
    %92 = sbr.rel (0) target = $region25
  $region24: #{meant_v2_forward.37} parent=0 // pred_region
    _
  $region25: #{meant_v2_forward.37} parent=0 // pred_fallthru
    _

// kernel: meant_v2_forward.39
$region0: #{meant_v2_forward.39}
  #allocation0 [shape = 'u32[]', space=smem, size = 0x4, offset = 0x4, fixed_abs, tag = 'smem constant byte address 0x4 - core index']
  #allocation1 [shape = 'u32[72,128]{1,0:T(1,128)}', space=vmem, size = 0x9000, scoped, tag = 'internal scratch']
  %s0 = inlined_call_operand.vmem [shape: f32[2,64], index: 0, kind: input, shape index: {}]
  %s1 = inlined_call_operand.vmem [shape: f32[1,64], index: 1, kind: input, shape index: {}]
  %s2 = inlined_call_operand.vmem [shape: f32[64,64], index: 2, kind: input, shape index: {}]
  %s3 = inlined_call_operand.vmem [shape: f32[1,64], index: 3, kind: input, shape index: {}]
  %s4 = inlined_call_operand.vmem [shape: f32[2,64], index: 4, kind: output, shape index: {}]
  %s5 = sld [smem:[#allocation0]]
  $region26: #{meant_v2_forward.39} parent=0
    _
  %s7 = ssub.s32 1, %s5
  %s8 = scalar_select 0, %s7, %s5
  // Predicated region
  $region2: #{meant_v2_forward.39} parent=0 // pred_check
    _
  $region3: #{meant_v2_forward.39} parent=0 // pred_check_branch
    %10 = sbr.rel (0) target = $region5
  $region4: #{meant_v2_forward.39} parent=0 // pred_region
    _
  $region5: #{meant_v2_forward.39} parent=0 // pred_fallthru
    _
  // Predicated region
  $region6: #{meant_v2_forward.39} parent=0 // pred_check
    _
  $region7: #{meant_v2_forward.39} parent=0 // pred_check_branch
    %12 = sbr.rel (0) target = $region9
  $region8: #{meant_v2_forward.39} parent=0 // pred_region
    _
  $region9: #{meant_v2_forward.39} parent=0 // pred_fallthru
    _
  // Predicated region
  $region10: #{meant_v2_forward.39} parent=0 // pred_check
    _
  $region11: #{meant_v2_forward.39} parent=0 // pred_check_branch
    %14 = sbr.rel (0) target = $region13
  $region12: #{meant_v2_forward.39} parent=0 // pred_region
    _
  $region13: #{meant_v2_forward.39} parent=0 // pred_fallthru
    _
  // Predicated region
  $region14: #{meant_v2_forward.39} parent=0 // pred_check
    _
  $region15: #{meant_v2_forward.39} parent=0 // pred_check_branch
    %16 = sbr.rel (0) target = $region17
  $region16: #{meant_v2_forward.39} parent=0 // pred_region
    _
  $region17: #{meant_v2_forward.39} parent=0 // pred_fallthru
    _
  %v18 = vld [vmem:[%s0] sm:$0x3]
  %v19 = vpack.c.bf16 %v18, %v18
  %v20 = vld [vmem:[%s2] sm:$0xff]
  %v21 = vld [vmem:[%s2 + $0x8] sm:$0xff]
  %v22 = vld [vmem:[%s2 + $0x10] sm:$0xff]
  %v23 = vld [vmem:[%s2 + $0x18] sm:$0xff]
  %v24 = vld [vmem:[%s2 + $0x20] sm:$0xff]
  %v25 = vld [vmem:[%s2 + $0x28] sm:$0xff]
  %v26 = vld [vmem:[%s2 + $0x30] sm:$0xff]
  %v27 = vld [vmem:[%s2 + $0x38] sm:$0xff]
  %v28 = vpack.c.bf16 %v21, %v20
  %v29 = vpack.c.bf16 %v23, %v22
  %v30 = vpack.c.bf16 %v25, %v24
  %v31 = vpack.c.bf16 %v27, %v26
  %v32 = vld [vmem:[%s3] sm:$0x1]
  %v34 = vperm.slane %v32, 0
  %vm36 = vcmask 523264
  %v38 = vsel %vm36, %v19, 0
  %40 = vmatpush.bf16.msra.mxu0 0
  %41 = vmatpush.bf16.msra.mxu0 0
  %42 = vmatpush.bf16.msra.mxu0 0
  %43 = vmatpush.bf16.msra.mxu0 0
  %44 = vmatpush.bf16.msra.mxu0 %v31
  %45 = vmatpush.bf16.msra.mxu0 %v30
  %46 = vmatpush.bf16.msra.mxu0 %v29
  %47 = vmatpush.bf16.msra.mxu0 %v28
  %48 = vmatmul.bf16.gmra.mxu0 %v38
  %v49 = vpop.f32.mrf.mxu0
  %v50 = vadd.f32 %v34, %v49
  %v51 = vpop.f32.mrf.mxu0
  %52 = vdwg.mxu0
  %vm53 = vcmask 517120
  %54 = vst.msk [vmem:[%s4] sm:$0x3] %vm53, %v50
  // Predicated region
  $region18: #{meant_v2_forward.39} parent=0 // pred_check
    _
  $region19: #{meant_v2_forward.39} parent=0 // pred_check_branch
    %56 = sbr.rel (0) target = $region21
  $region20: #{meant_v2_forward.39} parent=0 // pred_region
    _
  $region21: #{meant_v2_forward.39} parent=0 // pred_fallthru
    _
  // Predicated region
  $region22: #{meant_v2_forward.39} parent=0 // pred_check
    _
  $region23: #{meant_v2_forward.39} parent=0 // pred_check_branch
    %58 = sbr.rel (0) target = $region25
  $region24: #{meant_v2_forward.39} parent=0 // pred_region
    _
  $region25: #{meant_v2_forward.39} parent=0 // pred_fallthru
    _

// kernel: meant_v2_forward.40
$region0: #{meant_v2_forward.40}
  #allocation0 [shape = 'u32[]', space=smem, size = 0x4, offset = 0x4, fixed_abs, tag = 'smem constant byte address 0x4 - core index']
  #allocation1 [shape = 'u32[72,128]{1,0:T(1,128)}', space=vmem, size = 0x9000, scoped, tag = 'internal scratch']
  %s0 = inlined_call_operand.vmem [shape: f32[2,64], index: 0, kind: input, shape index: {}]
  %s1 = inlined_call_operand.vmem [shape: f32[1,64], index: 1, kind: input, shape index: {}]
  %s2 = inlined_call_operand.vmem [shape: f32[64,64], index: 2, kind: input, shape index: {}]
  %s3 = inlined_call_operand.vmem [shape: f32[1,64], index: 3, kind: input, shape index: {}]
  %s4 = inlined_call_operand.vmem [shape: f32[2,64], index: 4, kind: output, shape index: {}]
  %s5 = sld [smem:[#allocation0]]
  $region26: #{meant_v2_forward.40} parent=0
    _
  %s7 = ssub.s32 1, %s5
  %s8 = scalar_select 0, %s7, %s5
  // Predicated region
  $region2: #{meant_v2_forward.40} parent=0 // pred_check
    _
  $region3: #{meant_v2_forward.40} parent=0 // pred_check_branch
    %10 = sbr.rel (0) target = $region5
  $region4: #{meant_v2_forward.40} parent=0 // pred_region
    _
  $region5: #{meant_v2_forward.40} parent=0 // pred_fallthru
    _
  // Predicated region
  $region6: #{meant_v2_forward.40} parent=0 // pred_check
    _
  $region7: #{meant_v2_forward.40} parent=0 // pred_check_branch
    %12 = sbr.rel (0) target = $region9
  $region8: #{meant_v2_forward.40} parent=0 // pred_region
    _
  $region9: #{meant_v2_forward.40} parent=0 // pred_fallthru
    _
  // Predicated region
  $region10: #{meant_v2_forward.40} parent=0 // pred_check
    _
  $region11: #{meant_v2_forward.40} parent=0 // pred_check_branch
    %14 = sbr.rel (0) target = $region13
  $region12: #{meant_v2_forward.40} parent=0 // pred_region
    _
  $region13: #{meant_v2_forward.40} parent=0 // pred_fallthru
    _
  // Predicated region
  $region14: #{meant_v2_forward.40} parent=0 // pred_check
    _
  $region15: #{meant_v2_forward.40} parent=0 // pred_check_branch
    %16 = sbr.rel (0) target = $region17
  $region16: #{meant_v2_forward.40} parent=0 // pred_region
    _
  $region17: #{meant_v2_forward.40} parent=0 // pred_fallthru
    _
  %v18 = vld [vmem:[%s0] sm:$0x3]
  %v19 = vmul.f32 %v18, %v18
  %vm20 = vcmask 517120
  %v21 = vsel %vm20, %v19, 0.0
  %22 = vadd.xlane.f32.xlu0 %v21
  %v23 = vpop.xlane.xlu0 %22
  %v24 = vrcp.pop 64.0
  %v25 = vmul.f32 64.0, %v24
  %v26 = vsub.f32 1.0, %v25
  %v27 = vmul.f32 %v24, %v26
  %v28 = vadd.f32 %v24, %v27
  %vm29 = vweird.f32 %v24
  %v30 = vsel %vm29, %v24, %v28
  %v31 = vmul.f32 %v23, %v30
  %v32 = vadd.f32 %v31, 1e-06
  %v33 = vrsqrt.pop %v32
  %v34 = vmul.f32 %v33, %v32
  %v35 = vmul.f32 %v34, %v33
  %v36 = vmul.f32 0.5, %v35
  %v37 = vsub.f32 1.5, %v36
  %v38 = vmul.f32 %v33, %v37
  %vm39 = vweird.f32 %v32
  %vm40 = vweird.f32 %v33
  %vm41 = vmor %vm39, %vm40
  %v42 = vsel %vm41, %v33, %v38
  %v43 = vmul.f32 %v18, %v42
  %v44 = vld [vmem:[%s1] sm:$0x1]
  %v46 = vperm.slane %v44, 0
  %v48 = vmul.f32 %v43, %v46
  %v49 = vpack.c.bf16 %v48, %v48
  %v50 = vld [vmem:[%s2] sm:$0xff]
  %v51 = vld [vmem:[%s2 + $0x8] sm:$0xff]
  %v52 = vld [vmem:[%s2 + $0x10] sm:$0xff]
  %v53 = vld [vmem:[%s2 + $0x18] sm:$0xff]
  %v54 = vld [vmem:[%s2 + $0x20] sm:$0xff]
  %v55 = vld [vmem:[%s2 + $0x28] sm:$0xff]
  %v56 = vld [vmem:[%s2 + $0x30] sm:$0xff]
  %v57 = vld [vmem:[%s2 + $0x38] sm:$0xff]
  %v58 = vpack.c.bf16 %v51, %v50
  %v59 = vpack.c.bf16 %v53, %v52
  %v60 = vpack.c.bf16 %v55, %v54
  %v61 = vpack.c.bf16 %v57, %v56
  %v62 = vld [vmem:[%s3] sm:$0x1]
  %v64 = vperm.slane %v62, 0
  %vm66 = vcmask 523264
  %v68 = vsel %vm66, %v49, 0
  %70 = vmatpush.bf16.msra.mxu0 0
  %71 = vmatpush.bf16.msra.mxu0 0
  %72 = vmatpush.bf16.msra.mxu0 0
  %73 = vmatpush.bf16.msra.mxu0 0
  %74 = vmatpush.bf16.msra.mxu0 %v61
  %75 = vmatpush.bf16.msra.mxu0 %v60
  %76 = vmatpush.bf16.msra.mxu0 %v59
  %77 = vmatpush.bf16.msra.mxu0 %v58
  %78 = vmatmul.bf16.gmra.mxu0 %v68
  %v79 = vpop.f32.mrf.mxu0
  %v80 = vadd.f32 %v64, %v79
  %v81 = vpop.f32.mrf.mxu0
  %82 = vdwg.mxu0
  %83 = vst.msk [vmem:[%s4] sm:$0x3] %vm20, %v80
  // Predicated region
  $region18: #{meant_v2_forward.40} parent=0 // pred_check
    _
  $region19: #{meant_v2_forward.40} parent=0 // pred_check_branch
    %85 = sbr.rel (0) target = $region21
  $region20: #{meant_v2_forward.40} parent=0 // pred_region
    _
  $region21: #{meant_v2_forward.40} parent=0 // pred_fallthru
    _
  // Predicated region
  $region22: #{meant_v2_forward.40} parent=0 // pred_check
    _
  $region23: #{meant_v2_forward.40} parent=0 // pred_check_branch
    %87 = sbr.rel (0) target = $region25
  $region24: #{meant_v2_forward.40} parent=0 // pred_region
    _
  $region25: #{meant_v2_forward.40} parent=0 // pred_fallthru
    _

// kernel: meant_v2_forward.38
$region0: #{meant_v2_forward.38}
  #allocation0 [shape = 'u32[]', space=smem, size = 0x4, offset = 0x4, fixed_abs, tag = 'smem constant byte address 0x4 - core index']
  #allocation1 [shape = 'u32[72,128]{1,0:T(1,128)}', space=vmem, size = 0x9000, scoped, tag = 'internal scratch']
  %s0 = inlined_call_operand.vmem [shape: f32[2,1,64], index: 0, kind: input, shape index: {}]
  %s1 = inlined_call_operand.vmem [shape: f32[2,2,64], index: 1, kind: input, shape index: {}]
  %s2 = inlined_call_operand.vmem [shape: f32[2,2,64], index: 2, kind: input, shape index: {}]
  %s3 = inlined_call_operand.vmem [shape: f32[2,1,64], index: 3, kind: output, shape index: {}]
  %s4 = sld [smem:[#allocation0]]
  $region45: #{meant_v2_forward.38} parent=0
    _
  %s6 = ssub.s32 1, %s4
  %s7 = scalar_select 0, %s6, %s4
  loop: start=0, step=1, limit=4
  $region2: #{meant_v2_forward.38} parent=0 // loop_pre_header
    _
  $region3: #{meant_v2_forward.38} parent=0 // loop_header
    %s9 = sphi 0, %s13
    %p10 = scmp.ge.s32.totalorder %s9, 4
    %s19 = sphi 0, %s21
    %s22 = sphi 0, %s19
    %s23 = sphi 0, %s22
    %s39 = sphi 0, %s23
    %s45 = sphi 0, %s47
    %s48 = sphi 0, %s45
    %s49 = sphi 0, %s48
    %s65 = sphi 0, %s49
    %s71 = sphi 0, %s73
    %s74 = sphi 0, %s71
    %s75 = sphi 0, %s74
    %s91 = sphi 0, %s75
    %s97 = sphi 0, %s99
    %s100 = sphi 0, %s97
    %s101 = sphi 0, %s100
    %s117 = sphi 0, %s101
  $region4: #{meant_v2_forward.38} parent=0 // loop_header_branch
    %12 = sbr.rel (%p10) target = $region8
  $region5: #{meant_v2_forward.38} parent=0 // loop_body
    %s14 = ssub.s32 %s9, 1
    %s15 = ssub.s32 %s9, 2
    %s16 = sadd.s32 %s9, 1
    %s17 = ssub.s32 %s9, %s16
    %p18 = scmp.eq.s32.totalorder %s17, 0
    %s20 = sadd.s32 %s19, 1
    %s21 = scalar_select %p18, %s19, %s20
    %p24 = pneg %p18
    %p25 = scmp.eq.s32.totalorder %s9, 1
    %p26 = por %p24, %p25
    %p27 = scmp.ne.s32.totalorder %s19, %s22
    %p28 = scmp.eq.s32.totalorder %s9, 0
    %p29 = por %p27, %p28
    %p30 = scmp.ne.s32.totalorder %s19, %s22
    %p31 = scmp.eq.s32.totalorder %s14, 1
    %p32 = por %p30, %p31
    %p33 = scmp.ne.s32.totalorder %s22, %s23
    %p34 = scmp.eq.s32.totalorder %s14, 0
    %p35 = por %p33, %p34
    %p36 = scmp.ne.s32.totalorder %s22, %s23
    %p37 = scmp.eq.s32.totalorder %s15, 1
    %p38 = por %p36, %p37
    %p40 = scmp.ne.s32.totalorder %s23, %s39
    %p41 = scmp.eq.s32.totalorder %s15, 0
    %p42 = por %p40, %p41
    %s43 = ssub.s32 %s9, %s16
    %p44 = scmp.eq.s32.totalorder %s43, 0
    %s46 = sadd.s32 %s45, 1
    %s47 = scalar_select %p44, %s45, %s46
    %p50 = pneg %p44
    %p51 = scmp.eq.s32.totalorder %s9, 1
    %p52 = por %p50, %p51
    %p53 = scmp.ne.s32.totalorder %s45, %s48
    %p54 = scmp.eq.s32.totalorder %s9, 0
    %p55 = por %p53, %p54
    %p56 = scmp.ne.s32.totalorder %s45, %s48
    %p57 = scmp.eq.s32.totalorder %s14, 1
    %p58 = por %p56, %p57
    %p59 = scmp.ne.s32.totalorder %s48, %s49
    %p60 = scmp.eq.s32.totalorder %s14, 0
    %p61 = por %p59, %p60
    %p62 = scmp.ne.s32.totalorder %s48, %s49
    %p63 = scmp.eq.s32.totalorder %s15, 1
    %p64 = por %p62, %p63
    %p66 = scmp.ne.s32.totalorder %s49, %s65
    %p67 = scmp.eq.s32.totalorder %s15, 0
    %p68 = por %p66, %p67
    %s69 = ssub.s32 %s9, %s16
    %p70 = scmp.eq.s32.totalorder %s69, 0
    %s72 = sadd.s32 %s71, 1
    %s73 = scalar_select %p70, %s71, %s72
    %p76 = pneg %p70
    %p77 = scmp.eq.s32.totalorder %s9, 1
    %p78 = por %p76, %p77
    %p79 = scmp.ne.s32.totalorder %s71, %s74
    %p80 = scmp.eq.s32.totalorder %s9, 0
    %p81 = por %p79, %p80
    %p82 = scmp.ne.s32.totalorder %s71, %s74
    %p83 = scmp.eq.s32.totalorder %s14, 1
    %p84 = por %p82, %p83
    %p85 = scmp.ne.s32.totalorder %s74, %s75
    %p86 = scmp.eq.s32.totalorder %s14, 0
    %p87 = por %p85, %p86
    %p88 = scmp.ne.s32.totalorder %s74, %s75
    %p89 = scmp.eq.s32.totalorder %s15, 1
    %p90 = por %p88, %p89
    %p92 = scmp.ne.s32.totalorder %s75, %s91
    %p93 = scmp.eq.s32.totalorder %s15, 0
    %p94 = por %p92, %p93
    %s95 = ssub.s32 %s9, %s16
    %p96 = scmp.eq.s32.totalorder %s95, 0
    %s98 = sadd.s32 %s97, 1
    %s99 = scalar_select %p96, %s97, %s98
    %p102 = pneg %p96
    %p103 = scmp.eq.s32.totalorder %s9, 1
    %p104 = por %p102, %p103
    %p105 = scmp.ne.s32.totalorder %s97, %s100
    %p106 = scmp.eq.s32.totalorder %s9, 0
    %p107 = por %p105, %p106
    %p108 = scmp.ne.s32.totalorder %s97, %s100
    %p109 = scmp.eq.s32.totalorder %s14, 1
    %p110 = por %p108, %p109
    %p111 = scmp.ne.s32.totalorder %s100, %s101
    %p112 = scmp.eq.s32.totalorder %s14, 0
    %p113 = por %p111, %p112
    %p114 = scmp.ne.s32.totalorder %s100, %s101
    %p115 = scmp.eq.s32.totalorder %s15, 1
    %p116 = por %p114, %p115
    %p118 = scmp.ne.s32.totalorder %s101, %s117
    %p119 = scmp.eq.s32.totalorder %s15, 0
    %p120 = por %p118, %p119
    %p121 = scmp.le.s32.totalorder 1, %s9
    %p122 = scmp.lt.s32.totalorder %s9, 3
    %p123 = pnand %p121, %p122
    %p124 = pneg %p123
    // Predicated region
    $region9: #{meant_v2_forward.38} parent=5 // pred_check
      _
    $region10: #{meant_v2_forward.38} parent=5 // pred_check_branch
      %126 = sbr.rel (%p123) target = $region12
    $region11: #{meant_v2_forward.38} parent=5 // pred_region
      %s127 = ssub.s32 %s9, 1
    $region12: #{meant_v2_forward.38} parent=5 // pred_fallthru
      _
    %p128 = scmp.lt.s32.totalorder %s9, 2
    // Predicated region
    $region13: #{meant_v2_forward.38} parent=5 // pred_check
      %p129 = pneg %p128
    $region14: #{meant_v2_forward.38} parent=5 // pred_check_branch
      %131 = sbr.rel (%p129) target = $region16
    $region15: #{meant_v2_forward.38} parent=5 // pred_region
      // Predicated region
      $region17: #{meant_v2_forward.38} parent=15 // pred_check
        %p132 = pneg %p29
      $region18: #{meant_v2_forward.38} parent=15 // pred_check_branch
        %134 = sbr.rel (%p132) target = $region20
      $region19: #{meant_v2_forward.38} parent=15 // pred_region
        %p135 = scmp.lt.s32.totalorder %s9, 1
        %s136 = scalar_select %p135, %s9, 1
        %s137 = scalar_lea.vmem %s0, %s136
      $region20: #{meant_v2_forward.38} parent=15 // pred_fallthru
        _
      // Predicated region
      $region21: #{meant_v2_forward.38} parent=15 // pred_check
        %p138 = pneg %p55
      $region22: #{meant_v2_forward.38} parent=15 // pred_check_branch
        %140 = sbr.rel (%p138) target = $region24
      $region23: #{meant_v2_forward.38} parent=15 // pred_region
        %p141 = scmp.lt.s32.totalorder %s9, 1
        %s142 = scalar_select %p141, %s9, 1
        %s143 = smul.addr %s142, 2
        %s144 = scalar_lea.vmem %s1, %s143
      $region24: #{meant_v2_forward.38} parent=15 // pred_fallthru
        _
      // Predicated region
      $region25: #{meant_v2_forward.38} parent=15 // pred_check
        %p145 = pneg %p81
      $region26: #{meant_v2_forward.38} parent=15 // pred_check_branch
        %147 = sbr.rel (%p145) target = $region28
      $region27: #{meant_v2_forward.38} parent=15 // pred_region
        %p148 = scmp.lt.s32.totalorder %s9, 1
        %s149 = scalar_select %p148, %s9, 1
        %s150 = smul.addr %s149, 2
        %s151 = scalar_lea.vmem %s2, %s150
      $region28: #{meant_v2_forward.38} parent=15 // pred_fallthru
        _
    $region16: #{meant_v2_forward.38} parent=5 // pred_fallthru
      _
    %p152 = scmp.le.s32.totalorder 1, %s9
    %p153 = scmp.lt.s32.totalorder %s9, 3
    %p154 = pnand %p152, %p153
    %p155 = pneg %p154
    // Predicated region
    $region29: #{meant_v2_forward.38} parent=5 // pred_check
      _
    $region30: #{meant_v2_forward.38} parent=5 // pred_check_branch
      %157 = sbr.rel (%p154) target = $region32
    $region31: #{meant_v2_forward.38} parent=5 // pred_region
      %s158 = ssub.s32 %s9, 1
      %p159 = scmp.lt.s32.totalorder %s14, 1
      %s160 = scalar_select %p159, %s14, 1
      %s161 = scalar_lea.vmem %s0, %s160
      %p162 = pneg %p35
      %p163 = pneg %p32
      %p164 = scmp.lt.s32.totalorder %s14, 1
      %s165 = scalar_select %p164, %s14, 1
      %s166 = smul.addr %s165, 2
      %s167 = scalar_lea.vmem %s1, %s166
      %p168 = pneg %p61
      %p169 = pneg %p58
      %p170 = scmp.lt.s32.totalorder %s14, 1
      %s171 = scalar_select %p170, %s14, 1
      %s172 = smul.addr %s171, 2
      %s173 = scalar_lea.vmem %s2, %s172
      %p174 = pneg %p87
      %p175 = pneg %p84
      %p176 = pneg %p113
      %p177 = pneg %p110
      %p178 = scmp.lt.s32.totalorder %s14, 1
      %s179 = scalar_select %p178, %s14, 1
      %s180 = scalar_lea.vmem %s3, %s179
      %p181 = scmp.lt.s32.totalorder %s14, 1
      %s182 = scalar_select %p181, %s14, 1
      %s183 = scalar_lea.vmem %s0, %s182
      %p184 = scmp.lt.s32.totalorder %s14, 1
      %s185 = scalar_select %p184, %s14, 1
      %s186 = smul.addr %s185, 2
      %s187 = scalar_lea.vmem %s1, %s186
      %p188 = scmp.lt.s32.totalorder %s14, 1
      %s189 = scalar_select %p188, %s14, 1
      %s190 = smul.addr %s189, 2
      %s191 = scalar_lea.vmem %s2, %s190
      %p192 = scmp.lt.s32.totalorder %s14, 1
      %s193 = scalar_select %p192, %s14, 1
      %s194 = scalar_lea.vmem %s3, %s193
      %v196 = vld [vmem:[%s183] sm:$0x1]
      %v197 = vld [vmem:[%s187] sm:$0x3]
      %v198 = vld [vmem:[%s191] sm:$0x3]
      %v199 = vpack.c.bf16 %v196, %v196
      %v200 = vpack.c.bf16 %v197, %v197
      %vm201 = vcmask 130048
      %v203 = vsel %vm201, %v199, 0
      %v206 = vsel %vm201, %v200, 0
      %208 = vmatpush.bf16.xpose.msra.mxu0 0
      %209 = vmatpush.bf16.xpose.msra.mxu0 0
      %210 = vmatpush.bf16.xpose.msra.mxu0 0
      %211 = vmatpush.bf16.xpose.msra.mxu0 0
      %212 = vmatpush.bf16.xpose.msra.mxu0 0
      %213 = vmatpush.bf16.xpose.msra.mxu0 0
      %214 = vmatpush.bf16.xpose.msra.mxu0 0
      %215 = vmatpush.bf16.xpose.msra.mxu0 %v206
      %216 = vmatmul.bf16.gmra.mxu0 %v203
      %v217 = vpop.f32.mrf.mxu0
      %v218 = vadd.f32 0.0, %v217
      %v219 = vpop.f32.mrf.mxu0
      %220 = vdwg.mxu0
      %v221 = vmul.f32 %v218, 0.25
      %vm222 = vcmask 8192
      %v223 = vsel %vm222, %v221, -inf
      %224 = vmax.xlane.f32.xlu0 %v223
      %v225 = vpop.xlane.xlu0 %224
      %v226 = vsub.f32 %v221, %v225
      %v227 = vmul.f32 %v226, 1.442695
      %v228 = vpow.pop %v227
      %v229 = vsel %vm222, %v228, 0.0
      %230 = vadd.xlane.f32.xlu0 %v229
      %v231 = vpop.xlane.xlu0 %230
      %v232 = vrcp.pop %v231
      %v233 = vpack.c.bf16 %v228, %v228
      %v234 = vpack.c.bf16 %v198, %v198
      %vm235 = vcmask 15360
      %v237 = vsel %vm235, %v233, 0
      %vm239 = vcmask 1040384
      %v241 = vsel %vm239, %v234, 0
      %243 = vmatpush.bf16.msra.mxu0 0
      %244 = vmatpush.bf16.msra.mxu0 0
      %245 = vmatpush.bf16.msra.mxu0 0
      %246 = vmatpush.bf16.msra.mxu0 0
      %247 = vmatpush.bf16.msra.mxu0 0
      %248 = vmatpush.bf16.msra.mxu0 0
      %249 = vmatpush.bf16.msra.mxu0 0
      %250 = vmatpush.bf16.msra.mxu0 %v241
      %251 = vmatmul.bf16.gmra.mxu0 %v237
      %v252 = vpop.f32.mrf.mxu0
      %v253 = vadd.f32 0.0, %v252
      %v254 = vpop.f32.mrf.mxu0
      %255 = vdwg.mxu0
      %v256 = vmul.f32 %v253, %v232
      %258 = vrot.lane.b32.xlu0 %v199, 112
      %v259 = vpop.permute.xlu0 %258
      %261 = vrot.lane.b32.xlu0 %v200, 112
      %v262 = vpop.permute.xlu0 %261
      %v264 = vsel %vm201, %v259, 0
      %v267 = vsel %vm201, %v262, 0
      %269 = vmatpush.bf16.xpose.msra.mxu0 0
      %270 = vmatpush.bf16.xpose.msra.mxu0 0
      %271 = vmatpush.bf16.xpose.msra.mxu0 0
      %272 = vmatpush.bf16.xpose.msra.mxu0 0
      %273 = vmatpush.bf16.xpose.msra.mxu0 0
      %274 = vmatpush.bf16.xpose.msra.mxu0 0
      %275 = vmatpush.bf16.xpose.msra.mxu0 0
      %276 = vmatpush.bf16.xpose.msra.mxu0 %v267
      %277 = vmatmul.bf16.gmra.mxu0 %v264
      %v278 = vpop.f32.mrf.mxu0
      %v279 = vadd.f32 0.0, %v278
      %v280 = vpop.f32.mrf.mxu0
      %281 = vdwg.mxu0
      %v282 = vmul.f32 %v279, 0.25
      %v283 = vsel %vm222, %v282, -inf
      %284 = vmax.xlane.f32.xlu0 %v283
      %v285 = vpop.xlane.xlu0 %284
      %v286 = vsub.f32 %v282, %v285
      %v287 = vmul.f32 %v286, 1.442695
      %v288 = vpow.pop %v287
      %v289 = vsel %vm222, %v288, 0.0
      %290 = vadd.xlane.f32.xlu0 %v289
      %v291 = vpop.xlane.xlu0 %290
      %v292 = vrcp.pop %v291
      %v293 = vpack.c.bf16 %v288, %v288
      %295 = vrot.lane.b32.xlu0 %v234, 112
      %v296 = vpop.permute.xlu0 %295
      %v298 = vsel %vm235, %v293, 0
      %v301 = vsel %vm239, %v296, 0
      %303 = vmatpush.bf16.msra.mxu0 0
      %304 = vmatpush.bf16.msra.mxu0 0
      %305 = vmatpush.bf16.msra.mxu0 0
      %306 = vmatpush.bf16.msra.mxu0 0
      %307 = vmatpush.bf16.msra.mxu0 0
      %308 = vmatpush.bf16.msra.mxu0 0
      %309 = vmatpush.bf16.msra.mxu0 0
      %310 = vmatpush.bf16.msra.mxu0 %v301
      %311 = vmatmul.bf16.gmra.mxu0 %v298
      %v312 = vpop.f32.mrf.mxu0
      %v313 = vadd.f32 0.0, %v312
      %v314 = vpop.f32.mrf.mxu0
      %315 = vdwg.mxu0
      %v316 = vmul.f32 %v313, %v292
      %317 = vrot.lane.b32.xlu0 %v199, 96
      %v318 = vpop.permute.xlu0 %317
      %319 = vrot.lane.b32.xlu0 %v200, 96
      %v320 = vpop.permute.xlu0 %319
      %v322 = vsel %vm201, %v318, 0
      %v325 = vsel %vm201, %v320, 0
      %327 = vmatpush.bf16.xpose.msra.mxu0 0
      %328 = vmatpush.bf16.xpose.msra.mxu0 0
      %329 = vmatpush.bf16.xpose.msra.mxu0 0
      %330 = vmatpush.bf16.xpose.msra.mxu0 0
      %331 = vmatpush.bf16.xpose.msra.mxu0 0
      %332 = vmatpush.bf16.xpose.msra.mxu0 0
      %333 = vmatpush.bf16.xpose.msra.mxu0 0
      %334 = vmatpush.bf16.xpose.msra.mxu0 %v325
      %335 = vmatmul.bf16.gmra.mxu0 %v322
      %v336 = vpop.f32.mrf.mxu0
      %v337 = vadd.f32 0.0, %v336
      %v338 = vpop.f32.mrf.mxu0
      %339 = vdwg.mxu0
      %v340 = vmul.f32 %v337, 0.25
      %v341 = vsel %vm222, %v340, -inf
      %342 = vmax.xlane.f32.xlu0 %v341
      %v343 = vpop.xlane.xlu0 %342
      %v344 = vsub.f32 %v340, %v343
      %v345 = vmul.f32 %v344, 1.442695
      %v346 = vpow.pop %v345
      %v347 = vsel %vm222, %v346, 0.0
      %348 = vadd.xlane.f32.xlu0 %v347
      %v349 = vpop.xlane.xlu0 %348
      %v350 = vrcp.pop %v349
      %v351 = vpack.c.bf16 %v346, %v346
      %352 = vrot.lane.b32.xlu0 %v234, 96
      %v353 = vpop.permute.xlu0 %352
      %v355 = vsel %vm235, %v351, 0
      %v358 = vsel %vm239, %v353, 0
      %360 = vmatpush.bf16.msra.mxu0 0
      %361 = vmatpush.bf16.msra.mxu0 0
      %362 = vmatpush.bf16.msra.mxu0 0
      %363 = vmatpush.bf16.msra.mxu0 0
      %364 = vmatpush.bf16.msra.mxu0 0
      %365 = vmatpush.bf16.msra.mxu0 0
      %366 = vmatpush.bf16.msra.mxu0 0
      %367 = vmatpush.bf16.msra.mxu0 %v358
      %368 = vmatmul.bf16.gmra.mxu0 %v355
      %v369 = vpop.f32.mrf.mxu0
      %v370 = vadd.f32 0.0, %v369
      %v371 = vpop.f32.mrf.mxu0
      %372 = vdwg.mxu0
      %v373 = vmul.f32 %v370, %v350
      %374 = vrot.lane.b32.xlu0 %v199, 80
      %v375 = vpop.permute.xlu0 %374
      %376 = vrot.lane.b32.xlu0 %v200, 80
      %v377 = vpop.permute.xlu0 %376
      %v379 = vsel %vm201, %v375, 0
      %v382 = vsel %vm201, %v377, 0
      %384 = vmatpush.bf16.xpose.msra.mxu0 0
      %385 = vmatpush.bf16.xpose.msra.mxu0 0
      %386 = vmatpush.bf16.xpose.msra.mxu0 0
      %387 = vmatpush.bf16.xpose.msra.mxu0 0
      %388 = vmatpush.bf16.xpose.msra.mxu0 0
      %389 = vmatpush.bf16.xpose.msra.mxu0 0
      %390 = vmatpush.bf16.xpose.msra.mxu0 0
      %391 = vmatpush.bf16.xpose.msra.mxu0 %v382
      %392 = vmatmul.bf16.gmra.mxu0 %v379
      %v393 = vpop.f32.mrf.mxu0
      %v394 = vadd.f32 0.0, %v393
      %v395 = vpop.f32.mrf.mxu0
      %396 = vdwg.mxu0
      %v397 = vmul.f32 %v394, 0.25
      %v398 = vsel %vm222, %v397, -inf
      %399 = vmax.xlane.f32.xlu0 %v398
      %v400 = vpop.xlane.xlu0 %399
      %v401 = vsub.f32 %v397, %v400
      %v402 = vmul.f32 %v401, 1.442695
      %v403 = vpow.pop %v402
      %v404 = vsel %vm222, %v403, 0.0
      %405 = vadd.xlane.f32.xlu0 %v404
      %v406 = vpop.xlane.xlu0 %405
      %v407 = vrcp.pop %v406
      %v408 = vpack.c.bf16 %v403, %v403
      %409 = vrot.lane.b32.xlu0 %v234, 80
      %v410 = vpop.permute.xlu0 %409
      %v412 = vsel %vm235, %v408, 0
      %v415 = vsel %vm239, %v410, 0
      %417 = vmatpush.bf16.msra.mxu0 0
      %418 = vmatpush.bf16.msra.mxu0 0
      %419 = vmatpush.bf16.msra.mxu0 0
      %420 = vmatpush.bf16.msra.mxu0 0
      %421 = vmatpush.bf16.msra.mxu0 0
      %422 = vmatpush.bf16.msra.mxu0 0
      %423 = vmatpush.bf16.msra.mxu0 0
      %424 = vmatpush.bf16.msra.mxu0 %v415
      %425 = vmatmul.bf16.gmra.mxu0 %v412
      %v426 = vpop.f32.mrf.mxu0
      %v427 = vadd.f32 0.0, %v426
      %v428 = vpop.f32.mrf.mxu0
      %429 = vdwg.mxu0
      %v430 = vmul.f32 %v427, %v407
      %432 = vrot.lane.b32.xlu0 %v316, 16
      %v433 = vpop.permute.xlu0 %432
      %436 = vrot.lane.b32.xlu0 %v373, 32
      %v437 = vpop.permute.xlu0 %436
      %440 = vrot.lane.b32.xlu0 %v430, 48
      %v441 = vpop.permute.xlu0 %440
      %v443 = vsel %vm201, %v256, %v433
      %vm444 = vcmask 261120
      %v445 = vsel %vm444, %v443, %v437
      %vm446 = vcmask 392192
      %v447 = vsel %vm446, %v445, %v441
      %vm448 = vcmask 516096
      %449 = vst.msk [vmem:[%s194] sm:$0x1] %vm448, %v447
      %p450 = scmp.lt.s32.totalorder %s14, 1
      %s451 = scalar_select %p450, %s14, 1
      %s452 = scalar_lea.vmem %s3, %s451
      // Predicated region
      $region33: #{meant_v2_forward.38} parent=31 // pred_check
        %p453 = pneg %p110
      $region34: #{meant_v2_forward.38} parent=31 // pred_check_branch
        %455 = sbr.rel (%p453) target = $region36
      $region35: #{meant_v2_forward.38} parent=31 // pred_region
        _
      $region36: #{meant_v2_forward.38} parent=31 // pred_fallthru
        _
    $region32: #{meant_v2_forward.38} parent=5 // pred_fallthru
      _
    %p456 = scmp.le.s32.totalorder 2, %s9
    // Predicated region
    $region37: #{meant_v2_forward.38} parent=5 // pred_check
      %p457 = pneg %p456
    $region38: #{meant_v2_forward.38} parent=5 // pred_check_branch
      %459 = sbr.rel (%p457) target = $region40
    $region39: #{meant_v2_forward.38} parent=5 // pred_region
      %s460 = ssub.s32 %s9, 2
      // Predicated region
      $region41: #{meant_v2_forward.38} parent=39 // pred_check
        %p461 = pneg %p116
      $region42: #{meant_v2_forward.38} parent=39 // pred_check_branch
        %463 = sbr.rel (%p461) target = $region44
      $region43: #{meant_v2_forward.38} parent=39 // pred_region
        %p464 = scmp.lt.s32.totalorder %s15, 1
        %s465 = scalar_select %p464, %s15, 1
        %s466 = scalar_lea.vmem %s3, %s465
      $region44: #{meant_v2_forward.38} parent=39 // pred_fallthru
        _
    $region40: #{meant_v2_forward.38} parent=5 // pred_fallthru
      _
  $region6: #{meant_v2_forward.38} parent=0 // loop_footer
    %s13 = sadd.s32 1, %s9
  $region7: #{meant_v2_forward.38} parent=0 // loop_footer_branch
    %8 = sbr.rel target = $region3
  $region8: #{meant_v2_forward.38} parent=0 // loop_exit
    _

// kernel: meant_v2_forward.41
$region0: #{meant_v2_forward.41}
  #allocation0 [shape = 'u32[]', space=smem, size = 0x4, offset = 0x4, fixed_abs, tag = 'smem constant byte address 0x4 - core index']
  #allocation1 [shape = 'u32[72,128]{1,0:T(1,128)}', space=vmem, size = 0x9000, scoped, tag = 'internal scratch']
  %s0 = inlined_call_operand.vmem [shape: f32[2,64], index: 0, kind: input, shape index: {}]
  %s1 = inlined_call_operand.vmem [shape: f32[1,64], index: 1, kind: input, shape index: {}]
  %s2 = inlined_call_operand.vmem [shape: f32[64,3], index: 2, kind: input, shape index: {}]
  %s3 = inlined_call_operand.vmem [shape: f32[1,3], index: 3, kind: input, shape index: {}]
  %s4 = inlined_call_operand.hbm [shape: f32[2,3], index: 4, kind: output, shape index: {}]
  %s5 = sld [smem:[#allocation0]]
  $region26: #{meant_v2_forward.41} parent=0
    _
  %s7 = ssub.s32 1, %s5
  %s8 = scalar_select 0, %s7, %s5
  $region1: #{meant_v2_forward.41} parent=0
    #allocation2 [shape = 'u8[1024]{0}', space=vmem, size = 0x400, scoped, tag = 'output window, operand 0, single buffered']
    #allocation3 [shape = 's32[1]{0}', space=sflag, size = 0x4, scoped, tag = 'scoped memory for meant_v2_forward.41']
    %9 = vsyncpa [#allocation3], 0
    // Predicated region
    $region2: #{meant_v2_forward.41} parent=1 // pred_check
      _
    $region3: #{meant_v2_forward.41} parent=1 // pred_check_branch
      %11 = sbr.rel (0) target = $region5
    $region4: #{meant_v2_forward.41} parent=1 // pred_region
      _
    $region5: #{meant_v2_forward.41} parent=1 // pred_fallthru
      _
    // Predicated region
    $region6: #{meant_v2_forward.41} parent=1 // pred_check
      _
    $region7: #{meant_v2_forward.41} parent=1 // pred_check_branch
      %13 = sbr.rel (0) target = $region9
    $region8: #{meant_v2_forward.41} parent=1 // pred_region
      _
    $region9: #{meant_v2_forward.41} parent=1 // pred_fallthru
      _
    // Predicated region
    $region10: #{meant_v2_forward.41} parent=1 // pred_check
      _
    $region11: #{meant_v2_forward.41} parent=1 // pred_check_branch
      %15 = sbr.rel (0) target = $region13
    $region12: #{meant_v2_forward.41} parent=1 // pred_region
      _
    $region13: #{meant_v2_forward.41} parent=1 // pred_fallthru
      _
    // Predicated region
    $region14: #{meant_v2_forward.41} parent=1 // pred_check
      _
    $region15: #{meant_v2_forward.41} parent=1 // pred_check_branch
      %17 = sbr.rel (0) target = $region17
    $region16: #{meant_v2_forward.41} parent=1 // pred_region
      _
    $region17: #{meant_v2_forward.41} parent=1 // pred_fallthru
      _
    %v19 = vld [vmem:[%s0] sm:$0x3]
    %v20 = vmul.f32 %v19, %v19
    %vm21 = vcmask 517120
    %v22 = vsel %vm21, %v20, 0.0
    %23 = vadd.xlane.f32.xlu0 %v22
    %v24 = vpop.xlane.xlu0 %23
    %v25 = vrcp.pop 64.0
    %v26 = vmul.f32 64.0, %v25
    %v27 = vsub.f32 1.0, %v26
    %v28 = vmul.f32 %v25, %v27
    %v29 = vadd.f32 %v25, %v28
    %vm30 = vweird.f32 %v25
    %v31 = vsel %vm30, %v25, %v29
    %v32 = vmul.f32 %v24, %v31
    %v33 = vadd.f32 %v32, 1e-06
    %v34 = vrsqrt.pop %v33
    %v35 = vmul.f32 %v34, %v33
    %v36 = vmul.f32 %v35, %v34
    %v37 = vmul.f32 0.5, %v36
    %v38 = vsub.f32 1.5, %v37
    %v39 = vmul.f32 %v34, %v38
    %vm40 = vweird.f32 %v33
    %vm41 = vweird.f32 %v34
    %vm42 = vmor %vm40, %vm41
    %v43 = vsel %vm42, %v34, %v39
    %v44 = vmul.f32 %v19, %v43
    %v45 = vld [vmem:[%s1] sm:$0x1]
    %v47 = vperm.slane %v45, 0
    %v49 = vmul.f32 %v44, %v47
    %v50 = vpack.c.bf16 %v49, %v49
    %v51 = vld [vmem:[%s2] sm:$0xff]
    %v52 = vld [vmem:[%s2 + $0x8] sm:$0xff]
    %v53 = vld [vmem:[%s2 + $0x10] sm:$0xff]
    %v54 = vld [vmem:[%s2 + $0x18] sm:$0xff]
    %v55 = vld [vmem:[%s2 + $0x20] sm:$0xff]
    %v56 = vld [vmem:[%s2 + $0x28] sm:$0xff]
    %v57 = vld [vmem:[%s2 + $0x30] sm:$0xff]
    %v58 = vld [vmem:[%s2 + $0x38] sm:$0xff]
    %v59 = vpack.c.bf16 %v52, %v51
    %v60 = vpack.c.bf16 %v54, %v53
    %v61 = vpack.c.bf16 %v56, %v55
    %v62 = vpack.c.bf16 %v58, %v57
    %v63 = vld [vmem:[%s3] sm:$0x1]
    %v65 = vperm.slane %v63, 0
    %vm67 = vcmask 523264
    %v69 = vsel %vm67, %v50, 0
    %71 = vmatpush.bf16.msra.mxu0 0
    %72 = vmatpush.bf16.msra.mxu0 0
    %73 = vmatpush.bf16.msra.mxu0 0
    %74 = vmatpush.bf16.msra.mxu0 0
    %75 = vmatpush.bf16.msra.mxu0 %v62
    %76 = vmatpush.bf16.msra.mxu0 %v61
    %77 = vmatpush.bf16.msra.mxu0 %v60
    %78 = vmatpush.bf16.msra.mxu0 %v59
    %79 = vmatmul.bf16.gmra.mxu0 %v69
    %v80 = vpop.f32.mrf.mxu0
    %v81 = vadd.f32 %v65, %v80
    %v82 = vpop.f32.mrf.mxu0
    %83 = vdwg.mxu0
    %v84 = vxor.u32 %v81, 2147483648
    %v85 = vmul.f32 %v84, 1.442695
    %v86 = vpow.pop %v85
    %v87 = vadd.f32 %v86, 1.0
    %v88 = vrcp.pop %v87
    %v89 = vmul.f32 %v87, %v88
    %v90 = vsub.f32 1.0, %v89
    %v91 = vmul.f32 %v88, %v90
    %v92 = vadd.f32 %v88, %v91
    %vm93 = vweird.f32 %v87
    %vm94 = vweird.f32 %v88
    %vm95 = vmor %vm93, %vm94
    %v96 = vsel %vm95, %v88, %v92
    %v97 = vand.u32 2147483647, %v87
    %vm98 = vcmp.eq.f32.partialorder %v97, 8.507059e+37
    %v99 = vand.u32 %v87, 2147483648
    %v100 = vor.u32 1.1754944e-38, %v99
    %v101 = vsel %vm98, %v100, %v96
    %v102 = vmul.f32 1.0, %v101
    %vm103 = vcmask 17408
    %104 = vst.msk [vmem:[#allocation2] sm:$0x3] %vm103, %v102
    // Predicated region
    $region18: #{meant_v2_forward.41} parent=1 // pred_check
      _
    $region19: #{meant_v2_forward.41} parent=1 // pred_check_branch
      %106 = sbr.rel (0) target = $region21
    $region20: #{meant_v2_forward.41} parent=1 // pred_region
      %108 = vsyncadd [#allocation3], 0
      %s110 = sshll.u32 [#allocation2], 4
      %s111 = int_to_ptr.vmem [resolvable:$true] %s110
      %s112 = sshll.u32 %s4, 4
      %s113 = int_to_ptr.hbm [resolvable:$true] %s112
      %115 = dma.vmem_to_hbm [thread:$0]  %s111, 32, %s113, [#allocation3]
    $region21: #{meant_v2_forward.41} parent=1 // pred_fallthru
      _
    // Predicated region
    $region22: #{meant_v2_forward.41} parent=1 // pred_check
      _
    $region23: #{meant_v2_forward.41} parent=1 // pred_check_branch
      %117 = sbr.rel (0) target = $region25
    $region24: #{meant_v2_forward.41} parent=1 // pred_region
      %119 = dma.done [#allocation3], 32
    $region25: #{meant_v2_forward.41} parent=1 // pred_fallthru
      _
    %120 = vsyncpa [#allocation3], 1

</llo_original>
